<compile_context>
chip_gen: v7x
topology: tpu7x:2x2x1
jax: 0.10.0
libtpu: 0.0.40
codegen_flags: <defaults>
</compile_context>

<pallas_src>
import functools
import math

import jax
import jax.numpy as jnp
from jax.experimental import pallas as pl
from jax.experimental.pallas import tpu as pltpu

BN_EPS = 1e-5


def _round_up(x, m):
    return (x + m - 1) // m * m


def _pick_batch_block(n, ho, wo, max_m=512):
    """Largest power-of-two divisor of n such that bb*Ho*Wo <= max_m (grow MXU M dim)."""
    bb = 1
    while n % (bb * 2) == 0 and (bb * 2) * ho * wo <= max_m:
        bb *= 2
    return bb


# ------------------------------- Pallas kernel -------------------------------

def _basic_block_kernel(src_ref, w1_ref, b1_ref, w2_ref, b2_ref, *rest,
                        stride, Hq, Ho, Wo, has_downsample):
    """Fused BasicBlock for a block of `bb` batch elements.

    src_ref : (bb, S2*Hq, Wq, Cinp) bf16  phase-decomposed, zero-padded, lane-padded input
    w1_ref  : (9*Cinp, Cout) bf16         conv1 weights (bn1 scale folded), im2col order
    b1_ref  : (1, Cout) f32               bn1 shift
    w2_ref  : (9*Cout, Cout) bf16         conv2 weights (bn2 scale folded), im2col order
    b2_ref  : (1, Cout) f32               bn2 shift
    [wd_ref : (Cinp, Cout) bf16, bd_ref : (1, Cout) f32]   downsample 1x1 conv + bn
    o_ref   : (bb, Ho, Wo, Cout) bf16
    im1_ref : (bb*Ho*Wo, 9*Cinp) bf16     im2col scratch for conv1
    h1_ref  : (bb, Ho+2, Wpad, Cout) bf16 zero-padded relu(conv1) scratch
    im2_ref : (bb*Ho*Wo, 9*Cout) bf16     im2col scratch for conv2
    """
    if has_downsample:
        wd_ref, bd_ref, o_ref, im1_ref, h1_ref, im2_ref = rest
    else:
        o_ref, im1_ref, h1_ref, im2_ref = rest

    s = stride
    bb, _, _, cinp = src_ref.shape
    cout = o_ref.shape[3]
    wpad = h1_ref.shape[2]
    M = bb * Ho * Wo

    # ---- im2col pack for conv1 (source is already bf16: casts hoisted out) ----
    for i in range(3):
        for j in range(3):
            p = (i % s) * s + (j % s)          # phase of the stride-s decomposition
            a0, b0 = i // s, j // s            # offset inside the phase sub-image
            t = src_ref[:, p * Hq + a0: p * Hq + a0 + Ho, b0: b0 + Wo, :]
            k = i * 3 + j
            im1_ref[:, k * cinp:(k + 1) * cinp] = t.reshape(M, cinp)

    # ---- conv1 + bn1 (scale folded) + relu : one K = 9*Cinp MXU matmul --------
    acc1 = jnp.dot(im1_ref[...], w1_ref[...], preferred_element_type=jnp.float32)
    y1 = jnp.maximum(acc1 + b1_ref[...], 0.0).astype(jnp.bfloat16)

    # Stage relu(conv1) into the padded scratch; only the 1-px border needs zeroing
    # (interior is fully rewritten every grid step).
    zrow = jnp.zeros((bb, 1, wpad, cout), jnp.bfloat16)
    zcol = jnp.zeros((bb, Ho, 1, cout), jnp.bfloat16)
    h1_ref[:, 0:1, :, :] = zrow
    h1_ref[:, Ho + 1:Ho + 2, :, :] = zrow
    h1_ref[:, 1:1 + Ho, 0:1, :] = zcol
    h1_ref[:, 1:1 + Ho, Wo + 1:Wo + 2, :] = zcol
    h1_ref[:, 1:1 + Ho, 1:1 + Wo, :] = y1.reshape(bb, Ho, Wo, cout)

    # ---- im2col pack for conv2 -------------------------------------------------
    for i in range(3):
        for j in range(3):
            t = h1_ref[:, i:i + Ho, j:j + Wo, :]
            k = i * 3 + j
            im2_ref[:, k * cout:(k + 1) * cout] = t.reshape(M, cout)

    # ---- conv2 + bn2 (scale folded) : one K = 9*Cout MXU matmul ----------------
    y2 = jnp.dot(im2_ref[...], w2_ref[...], preferred_element_type=jnp.float32) + b2_ref[...]

    # ---- residual path ----------------------------------------------------------
    # Unpadded x subsampled by s lives at phase ((1%s)*s + (1%s)), offset (1//s, 1//s).
    pd, a0 = (1 % s) * s + (1 % s), 1 // s
    ident = src_ref[:, pd * Hq + a0: pd * Hq + a0 + Ho, a0: a0 + Wo, :].reshape(M, cinp)
    if has_downsample:
        res = jnp.dot(ident, wd_ref[...], preferred_element_type=jnp.float32) + bd_ref[...]
    else:
        res = ident[:, :cout].astype(jnp.float32)   # requires Cin == Cout, stride == 1

    out = jnp.maximum(y2 + res, 0.0).astype(o_ref.dtype)
    o_ref[...] = out.reshape(bb, Ho, Wo, cout)


# ------------------------------ wrappers (glue) ------------------------------

def _fold_conv_bn_3x3(w_pt, bn, ci_pad):
    """Fold BN scale into a 3x3 conv; return ((9*ci_pad, co) bf16, (1, co) f32 shift)."""
    co, ci, kh, kw = w_pt.shape
    inv_std = 1.0 / jnp.sqrt(bn['var'] + BN_EPS)
    scale = bn['gamma'] * inv_std
    shift = bn['beta'] - bn['mean'] * scale
    w = jnp.transpose(w_pt, (2, 3, 1, 0)) * scale                  # (kh, kw, ci, co)
    w = jnp.pad(w, ((0, 0), (0, 0), (0, ci_pad - ci), (0, 0)))
    w = w.reshape(kh * kw * ci_pad, co).astype(jnp.bfloat16)       # im2col order
    return w, shift.reshape(1, co).astype(jnp.float32)


def _fold_conv_bn_1x1(w_pt, bn, ci_pad):
    """Fold BN scale into a 1x1 conv; return ((ci_pad, co) bf16, (1, co) f32 shift)."""
    co, ci, _, _ = w_pt.shape
    inv_std = 1.0 / jnp.sqrt(bn['var'] + BN_EPS)
    scale = bn['gamma'] * inv_std
    shift = bn['beta'] - bn['mean'] * scale
    w = w_pt[:, :, 0, 0].T * scale                                 # (ci, co)
    w = jnp.pad(w, ((0, ci_pad - ci), (0, 0))).astype(jnp.bfloat16)
    return w, shift.reshape(1, co).astype(jnp.float32)


def basic_block_forward(x_nhwc, params, *, stride):
    """PyTorch BasicBlock forward on an NHWC activation. Returns NHWC bf16."""
    has_ds = params.get('downsample') is not None
    N, H, W, Cin = x_nhwc.shape
    Cout = params['conv1_w'].shape[0]
    s = int(stride)
    if s not in (1, 2):
        raise ValueError("stride must be 1 or 2")
    assert H % s == 0 and W % s == 0
    Ho, Wo = H // s, W // s
    if not has_ds:
        assert s == 1 and Cin == Cout, "identity skip needs stride=1 and Cin==Cout"

    Cinp = _round_up(Cin, 128)          # lane-pad input channels

    # Single fused HBM pass: cast->bf16, channel pad, spatial zero-pad (pad=1),
    # and (stride-2 only) phase decomposition so in-kernel tap slices are stride-1.
    xp = jnp.pad(x_nhwc.astype(jnp.bfloat16),
                 ((0, 0), (1, 1), (1, 1), (0, Cinp - Cin)))
    Hp, Wp = H + 2, W + 2
    if s == 1:
        Hq, Wq = Hp, Wp
        src = xp                                                   # (N, Hp, Wp, Cinp)
    else:
        assert Hp % s == 0 and Wp % s == 0
        Hq, Wq = Hp // s, Wp // s
        # src[n, (i0*s + j0)*Hq + a, b, :] = xp[n, i0 + s*a, j0 + s*b, :]
        src = xp.reshape(N, Hq, s, Wq, s, Cinp)
        src = jnp.transpose(src, (0, 2, 4, 1, 3, 5)).reshape(N, s * s * Hq, Wq, Cinp)

    w1, b1 = _fold_conv_bn_3x3(params['conv1_w'], params['bn1'], Cinp)
    w2, b2 = _fold_conv_bn_3x3(params['conv2_w'], params['bn2'], Cout)

    bb = _pick_batch_block(N, Ho, Wo)
    M = bb * Ho * Wo
    Wpad = _round_up(Wo + 2, 8)

    args = [src, w1, b1, w2, b2]
    in_specs = [
        pl.BlockSpec((bb, src.shape[1], Wq, Cinp), lambda n: (n, 0, 0, 0)),
        pl.BlockSpec(w1.shape, lambda n: (0, 0)),
        pl.BlockSpec(b1.shape, lambda n: (0, 0)),
        pl.BlockSpec(w2.shape, lambda n: (0, 0)),
        pl.BlockSpec(b2.shape, lambda n: (0, 0)),
    ]
    if has_ds:
        wd, bd = _fold_conv_bn_1x1(params['downsample']['w'], params['downsample']['bn'], Cinp)
        args += [wd, bd]
        in_specs += [pl.BlockSpec(wd.shape, lambda n: (0, 0)),
                     pl.BlockSpec(bd.shape, lambda n: (0, 0))]

    kernel = functools.partial(_basic_block_kernel, stride=s, Hq=Hq, Ho=Ho, Wo=Wo,
                               has_downsample=has_ds)

    out = pl.pallas_call(
        kernel,
        out_shape=jax.ShapeDtypeStruct((N, Ho, Wo, Cout), jnp.bfloat16),
        grid_spec=pltpu.PrefetchScalarGridSpec(
            num_scalar_prefetch=0,
            grid=(N // bb,),
            in_specs=in_specs,
            out_specs=pl.BlockSpec((bb, Ho, Wo, Cout), lambda n: (n, 0, 0, 0)),
            scratch_shapes=[
                pltpu.VMEM((M, 9 * Cinp), jnp.bfloat16),              # im2col (conv1)
                pltpu.VMEM((bb, Ho + 2, Wpad, Cout), jnp.bfloat16),   # padded relu(conv1)
                pltpu.VMEM((M, 9 * Cout), jnp.bfloat16),              # im2col (conv2)
            ],
        ),
        compiler_params=pltpu.CompilerParams(dimension_semantics=("parallel",)),
    )(*args)
    return out


# ------------------------------ reference (f32) ------------------------------

def _reference_basic_block_nhwc(x, p, stride):
    def conv(x, w_pt, s, pad):
        return jax.lax.conv_general_dilated(
            x, jnp.transpose(w_pt, (2, 3, 1, 0)),
            window_strides=(s, s), padding=[(pad, pad), (pad, pad)],
            dimension_numbers=('NHWC', 'HWIO', 'NHWC'))

    def bn(x, b):
        inv = 1.0 / jnp.sqrt(b['var'] + BN_EPS)
        return (x - b['mean']) * (b['gamma'] * inv) + b['beta']

    identity = x
    if p.get('downsample') is not None:
        d = p['downsample']
        identity = bn(conv(x, d['w'], stride, 0), d['bn'])
    out = jax.nn.relu(bn(conv(x, p['conv1_w'], stride, 1), p['bn1']))
    out = bn(conv(out, p['conv2_w'], 1, 1), p['bn2'])
    return jax.nn.relu(out + identity)


# --------------------------------- init --------------------------------------

def _kaiming_conv(key, c_out, c_in, kh, kw):
    fan_out = c_out * kh * kw
    std = math.sqrt(2.0 / fan_out)
    return std * jax.random.normal(key, (c_out, c_in, kh, kw), jnp.float32)


def _bn_params(key, c):
    k1, k2, k3, k4 = jax.random.split(key, 4)
    return dict(
        gamma=jax.random.uniform(k1, (c,), jnp.float32, 0.5, 1.5),
        beta=0.1 * jax.random.normal(k2, (c,), jnp.float32),
        mean=0.1 * jax.random.normal(k3, (c,), jnp.float32),
        var=jax.random.uniform(k4, (c,), jnp.float32, 0.5, 1.5),
    )


def init_basic_block(key, c_in, c_out, *, downsample):
    ks = jax.random.split(key, 6)
    p = dict(
        conv1_w=_kaiming_conv(ks[0], c_out, c_in, 3, 3), bn1=_bn_params(ks[1], c_out),
        conv2_w=_kaiming_conv(ks[2], c_out, c_out, 3, 3), bn2=_bn_params(ks[3], c_out),
        downsample=None,
    )
    if downsample:
        p['downsample'] = dict(w=_kaiming_conv(ks[4], c_out, c_in, 1, 1),
                               bn=_bn_params(ks[5], c_out))
    return p


# ---------------------------------- main --------------------------------------

if __name__ == "__main__":
    key = jax.random.PRNGKey(0)
    k_x, k_p1, k_p2 = jax.random.split(key, 3)

    N, Cin, H, W = 2, 64, 16, 16
    Cout = 128                                    # lane-dense (128) output channels
    x = jax.random.normal(k_x, (N, Cin, H, W), jnp.float32)   # NCHW, as PyTorch expects

    blk1 = init_basic_block(k_p1, Cin, Cout, downsample=True)     # stride-2 block
    blk2 = init_basic_block(k_p2, Cout, Cout, downsample=False)   # stride-1 identity block

    @jax.jit
    def fwd(inp):
        y = jnp.transpose(inp, (0, 2, 3, 1))               # NCHW -> NHWC once
        y = basic_block_forward(y, blk1, stride=2)         # bf16 NHWC between blocks
        y = basic_block_forward(y, blk2, stride=1)
        return jnp.transpose(y.astype(jnp.float32), (0, 3, 1, 2))   # back to NCHW f32

    out = jax.block_until_ready(fwd(x))

    @jax.jit
    def ref_fwd(inp):
        xh = jnp.transpose(inp, (0, 2, 3, 1))
        y = _reference_basic_block_nhwc(xh, blk1, 2)
        y = _reference_basic_block_nhwc(y, blk2, 1)
        return jnp.transpose(y, (0, 3, 1, 2))

    ref = jax.block_until_ready(ref_fwd(x))

    assert out.shape == (N, Cout, H // 2, W // 2) and out.dtype == jnp.float32
    assert bool(jnp.all(jnp.isfinite(out)))
    err = float(jnp.max(jnp.abs(out - ref)))
    scale = float(jnp.max(jnp.abs(ref))) + 1e-6
    assert err <= 0.05 * scale + 1e-3, f"mismatch: max|diff|={err} vs scale={scale}"
    print("KERNEL_OK")
</pallas_src>

<mosaic_0001>
module attributes {stable_mosaic.version = 11 : i64} {
  func.func @_basic_block_kernel(%arg0: i32, %arg1: memref<2x36x9x128xbf16, #tpu.memory_space<vmem>>, %arg2: memref<1152x128xbf16, #tpu.memory_space<vmem>>, %arg3: memref<1x128xf32, #tpu.memory_space<vmem>>, %arg4: memref<1152x128xbf16, #tpu.memory_space<vmem>>, %arg5: memref<1x128xf32, #tpu.memory_space<vmem>>, %arg6: memref<128x128xbf16, #tpu.memory_space<vmem>>, %arg7: memref<1x128xf32, #tpu.memory_space<vmem>>, %arg8: memref<2x8x8x128xbf16, #tpu.memory_space<vmem>>, %arg9: memref<128x1152xbf16, #tpu.memory_space<vmem>>, %arg10: memref<2x10x16x128xbf16, #tpu.memory_space<vmem>>, %arg11: memref<128x1152xbf16, #tpu.memory_space<vmem>>) attributes {dimension_semantics = [#tpu.dimension_semantics<parallel>], iteration_bounds = array<i64: 1>, scalar_prefetch = 0 : i64, scratch_operands = 3 : i64, tpu.core_type = #tpu.core_type<tc>, window_params = [{transform_indices = @transform_0, window_bounds = array<i64: 2, 36, 9, 128>}, {pipeline_mode = #tpu.pipeline_mode<synchronous>, transform_indices = @transform_1, window_bounds = array<i64: 1152, 128>}, {pipeline_mode = #tpu.pipeline_mode<synchronous>, transform_indices = @transform_2, window_bounds = array<i64: 1, 128>}, {pipeline_mode = #tpu.pipeline_mode<synchronous>, transform_indices = @transform_3, window_bounds = array<i64: 1152, 128>}, {pipeline_mode = #tpu.pipeline_mode<synchronous>, transform_indices = @transform_4, window_bounds = array<i64: 1, 128>}, {pipeline_mode = #tpu.pipeline_mode<synchronous>, transform_indices = @transform_5, window_bounds = array<i64: 128, 128>}, {pipeline_mode = #tpu.pipeline_mode<synchronous>, transform_indices = @transform_6, window_bounds = array<i64: 1, 128>}, {transform_indices = @transform_7, window_bounds = array<i64: 2, 8, 8, 128>}]} {
    %c0 = arith.constant 0 : index
    %c0_0 = arith.constant 0 : index
    %c0_1 = arith.constant 0 : index
    %c0_2 = arith.constant 0 : index
    %0 = vector.load %arg1[%c0, %c0_0, %c0_1, %c0_2] : memref<2x36x9x128xbf16, #tpu.memory_space<vmem>>, vector<2x8x8x128xbf16>
    %1 = vector.shape_cast %0 : vector<2x8x8x128xbf16> to vector<128x128xbf16>
    %c0_3 = arith.constant 0 : index
    %c0_4 = arith.constant 0 : index
    %2 = vector.load %arg9[%c0_3, %c0_4] : memref<128x1152xbf16, #tpu.memory_space<vmem>>, vector<128x128xbf16>
    tpu.vector_store %arg9[%c0_3, %c0_4], %1 {strides = array<i32>} : memref<128x1152xbf16, #tpu.memory_space<vmem>>, vector<128x128xbf16>,
    %c0_5 = arith.constant 0 : index
    %c9 = arith.constant 9 : index
    %c0_6 = arith.constant 0 : index
    %c0_7 = arith.constant 0 : index
    %3 = vector.load %arg1[%c0_5, %c9, %c0_6, %c0_7] : memref<2x36x9x128xbf16, #tpu.memory_space<vmem>>, vector<2x8x8x128xbf16>
    %4 = vector.shape_cast %3 : vector<2x8x8x128xbf16> to vector<128x128xbf16>
    %c0_8 = arith.constant 0 : index
    %c128 = arith.constant 128 : index
    %5 = vector.load %arg9[%c0_8, %c128] : memref<128x1152xbf16, #tpu.memory_space<vmem>>, vector<128x128xbf16>
    tpu.vector_store %arg9[%c0_8, %c128], %4 {strides = array<i32>} : memref<128x1152xbf16, #tpu.memory_space<vmem>>, vector<128x128xbf16>,
    %c0_9 = arith.constant 0 : index
    %c0_10 = arith.constant 0 : index
    %c1 = arith.constant 1 : index
    %c0_11 = arith.constant 0 : index
    %6 = vector.load %arg1[%c0_9, %c0_10, %c1, %c0_11] : memref<2x36x9x128xbf16, #tpu.memory_space<vmem>>, vector<2x8x8x128xbf16>
    %7 = vector.shape_cast %6 : vector<2x8x8x128xbf16> to vector<128x128xbf16>
    %c0_12 = arith.constant 0 : index
    %c256 = arith.constant 256 : index
    %8 = vector.load %arg9[%c0_12, %c256] : memref<128x1152xbf16, #tpu.memory_space<vmem>>, vector<128x128xbf16>
    tpu.vector_store %arg9[%c0_12, %c256], %7 {strides = array<i32>} : memref<128x1152xbf16, #tpu.memory_space<vmem>>, vector<128x128xbf16>,
    %c0_13 = arith.constant 0 : index
    %c18 = arith.constant 18 : index
    %c0_14 = arith.constant 0 : index
    %c0_15 = arith.constant 0 : index
    %9 = vector.load %arg1[%c0_13, %c18, %c0_14, %c0_15] : memref<2x36x9x128xbf16, #tpu.memory_space<vmem>>, vector<2x8x8x128xbf16>
    %10 = vector.shape_cast %9 : vector<2x8x8x128xbf16> to vector<128x128xbf16>
    %c0_16 = arith.constant 0 : index
    %c384 = arith.constant 384 : index
    %11 = vector.load %arg9[%c0_16, %c384] : memref<128x1152xbf16, #tpu.memory_space<vmem>>, vector<128x128xbf16>
    tpu.vector_store %arg9[%c0_16, %c384], %10 {strides = array<i32>} : memref<128x1152xbf16, #tpu.memory_space<vmem>>, vector<128x128xbf16>,
    %c0_17 = arith.constant 0 : index
    %c27 = arith.constant 27 : index
    %c0_18 = arith.constant 0 : index
    %c0_19 = arith.constant 0 : index
    %12 = vector.load %arg1[%c0_17, %c27, %c0_18, %c0_19] : memref<2x36x9x128xbf16, #tpu.memory_space<vmem>>, vector<2x8x8x128xbf16>
    %13 = vector.shape_cast %12 : vector<2x8x8x128xbf16> to vector<128x128xbf16>
    %c0_20 = arith.constant 0 : index
    %c512 = arith.constant 512 : index
    %14 = vector.load %arg9[%c0_20, %c512] : memref<128x1152xbf16, #tpu.memory_space<vmem>>, vector<128x128xbf16>
    tpu.vector_store %arg9[%c0_20, %c512], %13 {strides = array<i32>} : memref<128x1152xbf16, #tpu.memory_space<vmem>>, vector<128x128xbf16>,
    %c0_21 = arith.constant 0 : index
    %c18_22 = arith.constant 18 : index
    %c1_23 = arith.constant 1 : index
    %c0_24 = arith.constant 0 : index
    %15 = vector.load %arg1[%c0_21, %c18_22, %c1_23, %c0_24] : memref<2x36x9x128xbf16, #tpu.memory_space<vmem>>, vector<2x8x8x128xbf16>
    %16 = vector.shape_cast %15 : vector<2x8x8x128xbf16> to vector<128x128xbf16>
    %c0_25 = arith.constant 0 : index
    %c640 = arith.constant 640 : index
    %17 = vector.load %arg9[%c0_25, %c640] : memref<128x1152xbf16, #tpu.memory_space<vmem>>, vector<128x128xbf16>
    tpu.vector_store %arg9[%c0_25, %c640], %16 {strides = array<i32>} : memref<128x1152xbf16, #tpu.memory_space<vmem>>, vector<128x128xbf16>,
    %c0_26 = arith.constant 0 : index
    %c1_27 = arith.constant 1 : index
    %c0_28 = arith.constant 0 : index
    %c0_29 = arith.constant 0 : index
    %18 = vector.load %arg1[%c0_26, %c1_27, %c0_28, %c0_29] : memref<2x36x9x128xbf16, #tpu.memory_space<vmem>>, vector<2x8x8x128xbf16>
    %19 = vector.shape_cast %18 : vector<2x8x8x128xbf16> to vector<128x128xbf16>
    %c0_30 = arith.constant 0 : index
    %c768 = arith.constant 768 : index
    %20 = vector.load %arg9[%c0_30, %c768] : memref<128x1152xbf16, #tpu.memory_space<vmem>>, vector<128x128xbf16>
    tpu.vector_store %arg9[%c0_30, %c768], %19 {strides = array<i32>} : memref<128x1152xbf16, #tpu.memory_space<vmem>>, vector<128x128xbf16>,
    %c0_31 = arith.constant 0 : index
    %c10 = arith.constant 10 : index
    %c0_32 = arith.constant 0 : index
    %c0_33 = arith.constant 0 : index
    %21 = vector.load %arg1[%c0_31, %c10, %c0_32, %c0_33] : memref<2x36x9x128xbf16, #tpu.memory_space<vmem>>, vector<2x8x8x128xbf16>
    %22 = vector.shape_cast %21 : vector<2x8x8x128xbf16> to vector<128x128xbf16>
    %c0_34 = arith.constant 0 : index
    %c896 = arith.constant 896 : index
    %23 = vector.load %arg9[%c0_34, %c896] : memref<128x1152xbf16, #tpu.memory_space<vmem>>, vector<128x128xbf16>
    tpu.vector_store %arg9[%c0_34, %c896], %22 {strides = array<i32>} : memref<128x1152xbf16, #tpu.memory_space<vmem>>, vector<128x128xbf16>,
    %c0_35 = arith.constant 0 : index
    %c1_36 = arith.constant 1 : index
    %c1_37 = arith.constant 1 : index
    %c0_38 = arith.constant 0 : index
    %24 = vector.load %arg1[%c0_35, %c1_36, %c1_37, %c0_38] : memref<2x36x9x128xbf16, #tpu.memory_space<vmem>>, vector<2x8x8x128xbf16>
    %25 = vector.shape_cast %24 : vector<2x8x8x128xbf16> to vector<128x128xbf16>
    %c0_39 = arith.constant 0 : index
    %c1024 = arith.constant 1024 : index
    %26 = vector.load %arg9[%c0_39, %c1024] : memref<128x1152xbf16, #tpu.memory_space<vmem>>, vector<128x128xbf16>
    tpu.vector_store %arg9[%c0_39, %c1024], %25 {strides = array<i32>} : memref<128x1152xbf16, #tpu.memory_space<vmem>>, vector<128x128xbf16>,
    %c0_40 = arith.constant 0 : index
    %c0_41 = arith.constant 0 : index
    %27 = vector.load %arg9[%c0_40, %c0_41] : memref<128x1152xbf16, #tpu.memory_space<vmem>>, vector<128x1152xbf16>
    %c0_42 = arith.constant 0 : index
    %c0_43 = arith.constant 0 : index
    %28 = vector.load %arg2[%c0_42, %c0_43] : memref<1152x128xbf16, #tpu.memory_space<vmem>>, vector<1152x128xbf16>
    %cst = arith.constant dense<0.000000e+00> : vector<128x128xf32>
    %29 = tpu.matmul %27, %28, %cst {dimension_numbers = #tpu.dot_dimension_numbers<[1], [0], [0], [1], [0, 0, 1, 1], [], []>} : vector<128x1152xbf16>, vector<1152x128xbf16>, vector<128x128xf32> -> vector<128x128xf32>
    %c0_44 = arith.constant 0 : index
    %c0_45 = arith.constant 0 : index
    %30 = vector.load %arg3[%c0_44, %c0_45] : memref<1x128xf32, #tpu.memory_space<vmem>>, vector<1x128xf32>
    %31 = vector.broadcast %30 : vector<1x128xf32> to vector<128x128xf32>
    %32 = arith.addf %29, %31 : vector<128x128xf32>
    %cst_46 = arith.constant 0.000000e+00 : f32
    %33 = vector.broadcast %cst_46 : f32 to vector<128x128xf32>
    %34 = arith.maximumf %32, %33 : vector<128x128xf32>
    %35 = arith.truncf %34 : vector<128x128xf32> to vector<128x128xbf16>
    %cst_47 = arith.constant 0.000000e+00 : bf16
    %36 = vector.broadcast %cst_47 : bf16 to vector<2x1x16x128xbf16>
    %cst_48 = arith.constant 0.000000e+00 : bf16
    %37 = vector.broadcast %cst_48 : bf16 to vector<2x8x1x128xbf16>
    %c0_49 = arith.constant 0 : index
    %c0_50 = arith.constant 0 : index
    %c0_51 = arith.constant 0 : index
    %c0_52 = arith.constant 0 : index
    %38 = vector.load %arg10[%c0_49, %c0_50, %c0_51, %c0_52] : memref<2x10x16x128xbf16, #tpu.memory_space<vmem>>, vector<2x1x16x128xbf16>
    tpu.vector_store %arg10[%c0_49, %c0_50, %c0_51, %c0_52], %36 {strides = array<i32>} : memref<2x10x16x128xbf16, #tpu.memory_space<vmem>>, vector<2x1x16x128xbf16>,
    %c0_53 = arith.constant 0 : index
    %c9_54 = arith.constant 9 : index
    %c0_55 = arith.constant 0 : index
    %c0_56 = arith.constant 0 : index
    %39 = vector.load %arg10[%c0_53, %c9_54, %c0_55, %c0_56] : memref<2x10x16x128xbf16, #tpu.memory_space<vmem>>, vector<2x1x16x128xbf16>
    tpu.vector_store %arg10[%c0_53, %c9_54, %c0_55, %c0_56], %36 {strides = array<i32>} : memref<2x10x16x128xbf16, #tpu.memory_space<vmem>>, vector<2x1x16x128xbf16>,
    %c0_57 = arith.constant 0 : index
    %c1_58 = arith.constant 1 : index
    %c0_59 = arith.constant 0 : index
    %c0_60 = arith.constant 0 : index
    %40 = vector.load %arg10[%c0_57, %c1_58, %c0_59, %c0_60] : memref<2x10x16x128xbf16, #tpu.memory_space<vmem>>, vector<2x8x1x128xbf16>
    tpu.vector_store %arg10[%c0_57, %c1_58, %c0_59, %c0_60], %37 {strides = array<i32>} : memref<2x10x16x128xbf16, #tpu.memory_space<vmem>>, vector<2x8x1x128xbf16>,
    %c0_61 = arith.constant 0 : index
    %c1_62 = arith.constant 1 : index
    %c9_63 = arith.constant 9 : index
    %c0_64 = arith.constant 0 : index
    %41 = vector.load %arg10[%c0_61, %c1_62, %c9_63, %c0_64] : memref<2x10x16x128xbf16, #tpu.memory_space<vmem>>, vector<2x8x1x128xbf16>
    tpu.vector_store %arg10[%c0_61, %c1_62, %c9_63, %c0_64], %37 {strides = array<i32>} : memref<2x10x16x128xbf16, #tpu.memory_space<vmem>>, vector<2x8x1x128xbf16>,
    %42 = vector.shape_cast %35 : vector<128x128xbf16> to vector<2x8x8x128xbf16>
    %c0_65 = arith.constant 0 : index
    %c1_66 = arith.constant 1 : index
    %c1_67 = arith.constant 1 : index
    %c0_68 = arith.constant 0 : index
    %43 = vector.load %arg10[%c0_65, %c1_66, %c1_67, %c0_68] : memref<2x10x16x128xbf16, #tpu.memory_space<vmem>>, vector<2x8x8x128xbf16>
    tpu.vector_store %arg10[%c0_65, %c1_66, %c1_67, %c0_68], %42 {strides = array<i32>} : memref<2x10x16x128xbf16, #tpu.memory_space<vmem>>, vector<2x8x8x128xbf16>,
    %c0_69 = arith.constant 0 : index
    %c0_70 = arith.constant 0 : index
    %c0_71 = arith.constant 0 : index
    %c0_72 = arith.constant 0 : index
    %44 = vector.load %arg10[%c0_69, %c0_70, %c0_71, %c0_72] : memref<2x10x16x128xbf16, #tpu.memory_space<vmem>>, vector<2x8x8x128xbf16>
    %45 = vector.shape_cast %44 : vector<2x8x8x128xbf16> to vector<128x128xbf16>
    %c0_73 = arith.constant 0 : index
    %c0_74 = arith.constant 0 : index
    %46 = vector.load %arg11[%c0_73, %c0_74] : memref<128x1152xbf16, #tpu.memory_space<vmem>>, vector<128x128xbf16>
    tpu.vector_store %arg11[%c0_73, %c0_74], %45 {strides = array<i32>} : memref<128x1152xbf16, #tpu.memory_space<vmem>>, vector<128x128xbf16>,
    %c0_75 = arith.constant 0 : index
    %c0_76 = arith.constant 0 : index
    %c1_77 = arith.constant 1 : index
    %c0_78 = arith.constant 0 : index
    %47 = vector.load %arg10[%c0_75, %c0_76, %c1_77, %c0_78] : memref<2x10x16x128xbf16, #tpu.memory_space<vmem>>, vector<2x8x8x128xbf16>
    %48 = vector.shape_cast %47 : vector<2x8x8x128xbf16> to vector<128x128xbf16>
    %c0_79 = arith.constant 0 : index
    %c128_80 = arith.constant 128 : index
    %49 = vector.load %arg11[%c0_79, %c128_80] : memref<128x1152xbf16, #tpu.memory_space<vmem>>, vector<128x128xbf16>
    tpu.vector_store %arg11[%c0_79, %c128_80], %48 {strides = array<i32>} : memref<128x1152xbf16, #tpu.memory_space<vmem>>, vector<128x128xbf16>,
    %c0_81 = arith.constant 0 : index
    %c0_82 = arith.constant 0 : index
    %c2 = arith.constant 2 : index
    %c0_83 = arith.constant 0 : index
    %50 = vector.load %arg10[%c0_81, %c0_82, %c2, %c0_83] : memref<2x10x16x128xbf16, #tpu.memory_space<vmem>>, vector<2x8x8x128xbf16>
    %51 = vector.shape_cast %50 : vector<2x8x8x128xbf16> to vector<128x128xbf16>
    %c0_84 = arith.constant 0 : index
    %c256_85 = arith.constant 256 : index
    %52 = vector.load %arg11[%c0_84, %c256_85] : memref<128x1152xbf16, #tpu.memory_space<vmem>>, vector<128x128xbf16>
    tpu.vector_store %arg11[%c0_84, %c256_85], %51 {strides = array<i32>} : memref<128x1152xbf16, #tpu.memory_space<vmem>>, vector<128x128xbf16>,
    %c0_86 = arith.constant 0 : index
    %c1_87 = arith.constant 1 : index
    %c0_88 = arith.constant 0 : index
    %c0_89 = arith.constant 0 : index
    %53 = vector.load %arg10[%c0_86, %c1_87, %c0_88, %c0_89] : memref<2x10x16x128xbf16, #tpu.memory_space<vmem>>, vector<2x8x8x128xbf16>
    %54 = vector.shape_cast %53 : vector<2x8x8x128xbf16> to vector<128x128xbf16>
    %c0_90 = arith.constant 0 : index
    %c384_91 = arith.constant 384 : index
    %55 = vector.load %arg11[%c0_90, %c384_91] : memref<128x1152xbf16, #tpu.memory_space<vmem>>, vector<128x128xbf16>
    tpu.vector_store %arg11[%c0_90, %c384_91], %54 {strides = array<i32>} : memref<128x1152xbf16, #tpu.memory_space<vmem>>, vector<128x128xbf16>,
    %c0_92 = arith.constant 0 : index
    %c1_93 = arith.constant 1 : index
    %c1_94 = arith.constant 1 : index
    %c0_95 = arith.constant 0 : index
    %56 = vector.load %arg10[%c0_92, %c1_93, %c1_94, %c0_95] : memref<2x10x16x128xbf16, #tpu.memory_space<vmem>>, vector<2x8x8x128xbf16>
    %57 = vector.shape_cast %56 : vector<2x8x8x128xbf16> to vector<128x128xbf16>
    %c0_96 = arith.constant 0 : index
    %c512_97 = arith.constant 512 : index
    %58 = vector.load %arg11[%c0_96, %c512_97] : memref<128x1152xbf16, #tpu.memory_space<vmem>>, vector<128x128xbf16>
    tpu.vector_store %arg11[%c0_96, %c512_97], %57 {strides = array<i32>} : memref<128x1152xbf16, #tpu.memory_space<vmem>>, vector<128x128xbf16>,
    %c0_98 = arith.constant 0 : index
    %c1_99 = arith.constant 1 : index
    %c2_100 = arith.constant 2 : index
    %c0_101 = arith.constant 0 : index
    %59 = vector.load %arg10[%c0_98, %c1_99, %c2_100, %c0_101] : memref<2x10x16x128xbf16, #tpu.memory_space<vmem>>, vector<2x8x8x128xbf16>
    %60 = vector.shape_cast %59 : vector<2x8x8x128xbf16> to vector<128x128xbf16>
    %c0_102 = arith.constant 0 : index
    %c640_103 = arith.constant 640 : index
    %61 = vector.load %arg11[%c0_102, %c640_103] : memref<128x1152xbf16, #tpu.memory_space<vmem>>, vector<128x128xbf16>
    tpu.vector_store %arg11[%c0_102, %c640_103], %60 {strides = array<i32>} : memref<128x1152xbf16, #tpu.memory_space<vmem>>, vector<128x128xbf16>,
    %c0_104 = arith.constant 0 : index
    %c2_105 = arith.constant 2 : index
    %c0_106 = arith.constant 0 : index
    %c0_107 = arith.constant 0 : index
    %62 = vector.load %arg10[%c0_104, %c2_105, %c0_106, %c0_107] : memref<2x10x16x128xbf16, #tpu.memory_space<vmem>>, vector<2x8x8x128xbf16>
    %63 = vector.shape_cast %62 : vector<2x8x8x128xbf16> to vector<128x128xbf16>
    %c0_108 = arith.constant 0 : index
    %c768_109 = arith.constant 768 : index
    %64 = vector.load %arg11[%c0_108, %c768_109] : memref<128x1152xbf16, #tpu.memory_space<vmem>>, vector<128x128xbf16>
    tpu.vector_store %arg11[%c0_108, %c768_109], %63 {strides = array<i32>} : memref<128x1152xbf16, #tpu.memory_space<vmem>>, vector<128x128xbf16>,
    %c0_110 = arith.constant 0 : index
    %c2_111 = arith.constant 2 : index
    %c1_112 = arith.constant 1 : index
    %c0_113 = arith.constant 0 : index
    %65 = vector.load %arg10[%c0_110, %c2_111, %c1_112, %c0_113] : memref<2x10x16x128xbf16, #tpu.memory_space<vmem>>, vector<2x8x8x128xbf16>
    %66 = vector.shape_cast %65 : vector<2x8x8x128xbf16> to vector<128x128xbf16>
    %c0_114 = arith.constant 0 : index
    %c896_115 = arith.constant 896 : index
    %67 = vector.load %arg11[%c0_114, %c896_115] : memref<128x1152xbf16, #tpu.memory_space<vmem>>, vector<128x128xbf16>
    tpu.vector_store %arg11[%c0_114, %c896_115], %66 {strides = array<i32>} : memref<128x1152xbf16, #tpu.memory_space<vmem>>, vector<128x128xbf16>,
    %c0_116 = arith.constant 0 : index
    %c2_117 = arith.constant 2 : index
    %c2_118 = arith.constant 2 : index
    %c0_119 = arith.constant 0 : index
    %68 = vector.load %arg10[%c0_116, %c2_117, %c2_118, %c0_119] : memref<2x10x16x128xbf16, #tpu.memory_space<vmem>>, vector<2x8x8x128xbf16>
    %69 = vector.shape_cast %68 : vector<2x8x8x128xbf16> to vector<128x128xbf16>
    %c0_120 = arith.constant 0 : index
    %c1024_121 = arith.constant 1024 : index
    %70 = vector.load %arg11[%c0_120, %c1024_121] : memref<128x1152xbf16, #tpu.memory_space<vmem>>, vector<128x128xbf16>
    tpu.vector_store %arg11[%c0_120, %c1024_121], %69 {strides = array<i32>} : memref<128x1152xbf16, #tpu.memory_space<vmem>>, vector<128x128xbf16>,
    %c0_122 = arith.constant 0 : index
    %c0_123 = arith.constant 0 : index
    %71 = vector.load %arg11[%c0_122, %c0_123] : memref<128x1152xbf16, #tpu.memory_space<vmem>>, vector<128x1152xbf16>
    %c0_124 = arith.constant 0 : index
    %c0_125 = arith.constant 0 : index
    %72 = vector.load %arg4[%c0_124, %c0_125] : memref<1152x128xbf16, #tpu.memory_space<vmem>>, vector<1152x128xbf16>
    %cst_126 = arith.constant dense<0.000000e+00> : vector<128x128xf32>
    %73 = tpu.matmul %71, %72, %cst_126 {dimension_numbers = #tpu.dot_dimension_numbers<[1], [0], [0], [1], [0, 0, 1, 1], [], []>} : vector<128x1152xbf16>, vector<1152x128xbf16>, vector<128x128xf32> -> vector<128x128xf32>
    %c0_127 = arith.constant 0 : index
    %c0_128 = arith.constant 0 : index
    %74 = vector.load %arg5[%c0_127, %c0_128] : memref<1x128xf32, #tpu.memory_space<vmem>>, vector<1x128xf32>
    %75 = vector.broadcast %74 : vector<1x128xf32> to vector<128x128xf32>
    %76 = arith.addf %73, %75 : vector<128x128xf32>
    %c0_129 = arith.constant 0 : index
    %c27_130 = arith.constant 27 : index
    %c0_131 = arith.constant 0 : index
    %c0_132 = arith.constant 0 : index
    %77 = vector.load %arg1[%c0_129, %c27_130, %c0_131, %c0_132] : memref<2x36x9x128xbf16, #tpu.memory_space<vmem>>, vector<2x8x8x128xbf16>
    %78 = vector.shape_cast %77 : vector<2x8x8x128xbf16> to vector<128x128xbf16>
    %c0_133 = arith.constant 0 : index
    %c0_134 = arith.constant 0 : index
    %79 = vector.load %arg6[%c0_133, %c0_134] : memref<128x128xbf16, #tpu.memory_space<vmem>>, vector<128x128xbf16>
    %cst_135 = arith.constant dense<0.000000e+00> : vector<128x128xf32>
    %80 = tpu.matmul %78, %79, %cst_135 {dimension_numbers = #tpu.dot_dimension_numbers<[1], [0], [0], [1], [0, 0, 1, 1], [], []>} : vector<128x128xbf16>, vector<128x128xbf16>, vector<128x128xf32> -> vector<128x128xf32>
    %c0_136 = arith.constant 0 : index
    %c0_137 = arith.constant 0 : index
    %81 = vector.load %arg7[%c0_136, %c0_137] : memref<1x128xf32, #tpu.memory_space<vmem>>, vector<1x128xf32>
    %82 = vector.broadcast %81 : vector<1x128xf32> to vector<128x128xf32>
    %83 = arith.addf %80, %82 : vector<128x128xf32>
    %84 = arith.addf %76, %83 : vector<128x128xf32>
    %cst_138 = arith.constant 0.000000e+00 : f32
    %85 = vector.broadcast %cst_138 : f32 to vector<128x128xf32>
    %86 = arith.maximumf %84, %85 : vector<128x128xf32>
    %87 = arith.truncf %86 : vector<128x128xf32> to vector<128x128xbf16>
    %88 = vector.shape_cast %87 : vector<128x128xbf16> to vector<2x8x8x128xbf16>
    %c0_139 = arith.constant 0 : index
    %c0_140 = arith.constant 0 : index
    %c0_141 = arith.constant 0 : index
    %c0_142 = arith.constant 0 : index
    %89 = vector.load %arg8[%c0_139, %c0_140, %c0_141, %c0_142] : memref<2x8x8x128xbf16, #tpu.memory_space<vmem>>, vector<2x8x8x128xbf16>
    tpu.vector_store %arg8[%c0_139, %c0_140, %c0_141, %c0_142], %88 {strides = array<i32>} : memref<2x8x8x128xbf16, #tpu.memory_space<vmem>>, vector<2x8x8x128xbf16>,
    return
  }
  func.func @transform_0(%arg0: i32) -> (i32, i32, i32, i32) {
    %c0_i32 = arith.constant 0 : i32
    %c0_i32_0 = arith.constant 0 : i32
    %c0_i32_1 = arith.constant 0 : i32
    %c0_i32_2 = arith.constant 0 : i32
    return %arg0, %c0_i32, %c0_i32_0, %c0_i32_1 : i32, i32, i32, i32
  }
  func.func @transform_1(%arg0: i32) -> (i32, i32) {
    %c0_i32 = arith.constant 0 : i32
    %c0_i32_0 = arith.constant 0 : i32
    %c0_i32_1 = arith.constant 0 : i32
    return %c0_i32, %c0_i32_0 : i32, i32
  }
  func.func @transform_2(%arg0: i32) -> (i32, i32) {
    %c0_i32 = arith.constant 0 : i32
    %c0_i32_0 = arith.constant 0 : i32
    %c0_i32_1 = arith.constant 0 : i32
    return %c0_i32, %c0_i32_0 : i32, i32
  }
  func.func @transform_3(%arg0: i32) -> (i32, i32) {
    %c0_i32 = arith.constant 0 : i32
    %c0_i32_0 = arith.constant 0 : i32
    %c0_i32_1 = arith.constant 0 : i32
    return %c0_i32, %c0_i32_0 : i32, i32
  }
  func.func @transform_4(%arg0: i32) -> (i32, i32) {
    %c0_i32 = arith.constant 0 : i32
    %c0_i32_0 = arith.constant 0 : i32
    %c0_i32_1 = arith.constant 0 : i32
    return %c0_i32, %c0_i32_0 : i32, i32
  }
  func.func @transform_5(%arg0: i32) -> (i32, i32) {
    %c0_i32 = arith.constant 0 : i32
    %c0_i32_0 = arith.constant 0 : i32
    %c0_i32_1 = arith.constant 0 : i32
    return %c0_i32, %c0_i32_0 : i32, i32
  }
  func.func @transform_6(%arg0: i32) -> (i32, i32) {
    %c0_i32 = arith.constant 0 : i32
    %c0_i32_0 = arith.constant 0 : i32
    %c0_i32_1 = arith.constant 0 : i32
    return %c0_i32, %c0_i32_0 : i32, i32
  }
  func.func @transform_7(%arg0: i32) -> (i32, i32, i32, i32) {
    %c0_i32 = arith.constant 0 : i32
    %c0_i32_0 = arith.constant 0 : i32
    %c0_i32_1 = arith.constant 0 : i32
    %c0_i32_2 = arith.constant 0 : i32
    return %arg0, %c0_i32, %c0_i32_0, %c0_i32_1 : i32, i32, i32, i32
  }
}

module attributes {stable_mosaic.version = 11 : i64} {
  func.func @_basic_block_kernel(%arg0: i32, %arg1: memref<2x10x10x128xbf16, #tpu.memory_space<vmem>>, %arg2: memref<1152x128xbf16, #tpu.memory_space<vmem>>, %arg3: memref<1x128xf32, #tpu.memory_space<vmem>>, %arg4: memref<1152x128xbf16, #tpu.memory_space<vmem>>, %arg5: memref<1x128xf32, #tpu.memory_space<vmem>>, %arg6: memref<2x8x8x128xbf16, #tpu.memory_space<vmem>>, %arg7: memref<128x1152xbf16, #tpu.memory_space<vmem>>, %arg8: memref<2x10x16x128xbf16, #tpu.memory_space<vmem>>, %arg9: memref<128x1152xbf16, #tpu.memory_space<vmem>>) attributes {dimension_semantics = [#tpu.dimension_semantics<parallel>], iteration_bounds = array<i64: 1>, scalar_prefetch = 0 : i64, scratch_operands = 3 : i64, tpu.core_type = #tpu.core_type<tc>, window_params = [{transform_indices = @transform_0, window_bounds = array<i64: 2, 10, 10, 128>}, {pipeline_mode = #tpu.pipeline_mode<synchronous>, transform_indices = @transform_1, window_bounds = array<i64: 1152, 128>}, {pipeline_mode = #tpu.pipeline_mode<synchronous>, transform_indices = @transform_2, window_bounds = array<i64: 1, 128>}, {pipeline_mode = #tpu.pipeline_mode<synchronous>, transform_indices = @transform_3, window_bounds = array<i64: 1152, 128>}, {pipeline_mode = #tpu.pipeline_mode<synchronous>, transform_indices = @transform_4, window_bounds = array<i64: 1, 128>}, {transform_indices = @transform_5, window_bounds = array<i64: 2, 8, 8, 128>}]} {
    %c0 = arith.constant 0 : index
    %c0_0 = arith.constant 0 : index
    %c0_1 = arith.constant 0 : index
    %c0_2 = arith.constant 0 : index
    %0 = vector.load %arg1[%c0, %c0_0, %c0_1, %c0_2] : memref<2x10x10x128xbf16, #tpu.memory_space<vmem>>, vector<2x8x8x128xbf16>
    %1 = vector.shape_cast %0 : vector<2x8x8x128xbf16> to vector<128x128xbf16>
    %c0_3 = arith.constant 0 : index
    %c0_4 = arith.constant 0 : index
    %2 = vector.load %arg7[%c0_3, %c0_4] : memref<128x1152xbf16, #tpu.memory_space<vmem>>, vector<128x128xbf16>
    tpu.vector_store %arg7[%c0_3, %c0_4], %1 {strides = array<i32>} : memref<128x1152xbf16, #tpu.memory_space<vmem>>, vector<128x128xbf16>,
    %c0_5 = arith.constant 0 : index
    %c0_6 = arith.constant 0 : index
    %c1 = arith.constant 1 : index
    %c0_7 = arith.constant 0 : index
    %3 = vector.load %arg1[%c0_5, %c0_6, %c1, %c0_7] : memref<2x10x10x128xbf16, #tpu.memory_space<vmem>>, vector<2x8x8x128xbf16>
    %4 = vector.shape_cast %3 : vector<2x8x8x128xbf16> to vector<128x128xbf16>
    %c0_8 = arith.constant 0 : index
    %c128 = arith.constant 128 : index
    %5 = vector.load %arg7[%c0_8, %c128] : memref<128x1152xbf16, #tpu.memory_space<vmem>>, vector<128x128xbf16>
    tpu.vector_store %arg7[%c0_8, %c128], %4 {strides = array<i32>} : memref<128x1152xbf16, #tpu.memory_space<vmem>>, vector<128x128xbf16>,
    %c0_9 = arith.constant 0 : index
    %c0_10 = arith.constant 0 : index
    %c2 = arith.constant 2 : index
    %c0_11 = arith.constant 0 : index
    %6 = vector.load %arg1[%c0_9, %c0_10, %c2, %c0_11] : memref<2x10x10x128xbf16, #tpu.memory_space<vmem>>, vector<2x8x8x128xbf16>
    %7 = vector.shape_cast %6 : vector<2x8x8x128xbf16> to vector<128x128xbf16>
    %c0_12 = arith.constant 0 : index
    %c256 = arith.constant 256 : index
    %8 = vector.load %arg7[%c0_12, %c256] : memref<128x1152xbf16, #tpu.memory_space<vmem>>, vector<128x128xbf16>
    tpu.vector_store %arg7[%c0_12, %c256], %7 {strides = array<i32>} : memref<128x1152xbf16, #tpu.memory_space<vmem>>, vector<128x128xbf16>,
    %c0_13 = arith.constant 0 : index
    %c1_14 = arith.constant 1 : index
    %c0_15 = arith.constant 0 : index
    %c0_16 = arith.constant 0 : index
    %9 = vector.load %arg1[%c0_13, %c1_14, %c0_15, %c0_16] : memref<2x10x10x128xbf16, #tpu.memory_space<vmem>>, vector<2x8x8x128xbf16>
    %10 = vector.shape_cast %9 : vector<2x8x8x128xbf16> to vector<128x128xbf16>
    %c0_17 = arith.constant 0 : index
    %c384 = arith.constant 384 : index
    %11 = vector.load %arg7[%c0_17, %c384] : memref<128x1152xbf16, #tpu.memory_space<vmem>>, vector<128x128xbf16>
    tpu.vector_store %arg7[%c0_17, %c384], %10 {strides = array<i32>} : memref<128x1152xbf16, #tpu.memory_space<vmem>>, vector<128x128xbf16>,
    %c0_18 = arith.constant 0 : index
    %c1_19 = arith.constant 1 : index
    %c1_20 = arith.constant 1 : index
    %c0_21 = arith.constant 0 : index
    %12 = vector.load %arg1[%c0_18, %c1_19, %c1_20, %c0_21] : memref<2x10x10x128xbf16, #tpu.memory_space<vmem>>, vector<2x8x8x128xbf16>
    %13 = vector.shape_cast %12 : vector<2x8x8x128xbf16> to vector<128x128xbf16>
    %c0_22 = arith.constant 0 : index
    %c512 = arith.constant 512 : index
    %14 = vector.load %arg7[%c0_22, %c512] : memref<128x1152xbf16, #tpu.memory_space<vmem>>, vector<128x128xbf16>
    tpu.vector_store %arg7[%c0_22, %c512], %13 {strides = array<i32>} : memref<128x1152xbf16, #tpu.memory_space<vmem>>, vector<128x128xbf16>,
    %c0_23 = arith.constant 0 : index
    %c1_24 = arith.constant 1 : index
    %c2_25 = arith.constant 2 : index
    %c0_26 = arith.constant 0 : index
    %15 = vector.load %arg1[%c0_23, %c1_24, %c2_25, %c0_26] : memref<2x10x10x128xbf16, #tpu.memory_space<vmem>>, vector<2x8x8x128xbf16>
    %16 = vector.shape_cast %15 : vector<2x8x8x128xbf16> to vector<128x128xbf16>
    %c0_27 = arith.constant 0 : index
    %c640 = arith.constant 640 : index
    %17 = vector.load %arg7[%c0_27, %c640] : memref<128x1152xbf16, #tpu.memory_space<vmem>>, vector<128x128xbf16>
    tpu.vector_store %arg7[%c0_27, %c640], %16 {strides = array<i32>} : memref<128x1152xbf16, #tpu.memory_space<vmem>>, vector<128x128xbf16>,
    %c0_28 = arith.constant 0 : index
    %c2_29 = arith.constant 2 : index
    %c0_30 = arith.constant 0 : index
    %c0_31 = arith.constant 0 : index
    %18 = vector.load %arg1[%c0_28, %c2_29, %c0_30, %c0_31] : memref<2x10x10x128xbf16, #tpu.memory_space<vmem>>, vector<2x8x8x128xbf16>
    %19 = vector.shape_cast %18 : vector<2x8x8x128xbf16> to vector<128x128xbf16>
    %c0_32 = arith.constant 0 : index
    %c768 = arith.constant 768 : index
    %20 = vector.load %arg7[%c0_32, %c768] : memref<128x1152xbf16, #tpu.memory_space<vmem>>, vector<128x128xbf16>
    tpu.vector_store %arg7[%c0_32, %c768], %19 {strides = array<i32>} : memref<128x1152xbf16, #tpu.memory_space<vmem>>, vector<128x128xbf16>,
    %c0_33 = arith.constant 0 : index
    %c2_34 = arith.constant 2 : index
    %c1_35 = arith.constant 1 : index
    %c0_36 = arith.constant 0 : index
    %21 = vector.load %arg1[%c0_33, %c2_34, %c1_35, %c0_36] : memref<2x10x10x128xbf16, #tpu.memory_space<vmem>>, vector<2x8x8x128xbf16>
    %22 = vector.shape_cast %21 : vector<2x8x8x128xbf16> to vector<128x128xbf16>
    %c0_37 = arith.constant 0 : index
    %c896 = arith.constant 896 : index
    %23 = vector.load %arg7[%c0_37, %c896] : memref<128x1152xbf16, #tpu.memory_space<vmem>>, vector<128x128xbf16>
    tpu.vector_store %arg7[%c0_37, %c896], %22 {strides = array<i32>} : memref<128x1152xbf16, #tpu.memory_space<vmem>>, vector<128x128xbf16>,
    %c0_38 = arith.constant 0 : index
    %c2_39 = arith.constant 2 : index
    %c2_40 = arith.constant 2 : index
    %c0_41 = arith.constant 0 : index
    %24 = vector.load %arg1[%c0_38, %c2_39, %c2_40, %c0_41] : memref<2x10x10x128xbf16, #tpu.memory_space<vmem>>, vector<2x8x8x128xbf16>
    %25 = vector.shape_cast %24 : vector<2x8x8x128xbf16> to vector<128x128xbf16>
    %c0_42 = arith.constant 0 : index
    %c1024 = arith.constant 1024 : index
    %26 = vector.load %arg7[%c0_42, %c1024] : memref<128x1152xbf16, #tpu.memory_space<vmem>>, vector<128x128xbf16>
    tpu.vector_store %arg7[%c0_42, %c1024], %25 {strides = array<i32>} : memref<128x1152xbf16, #tpu.memory_space<vmem>>, vector<128x128xbf16>,
    %c0_43 = arith.constant 0 : index
    %c0_44 = arith.constant 0 : index
    %27 = vector.load %arg7[%c0_43, %c0_44] : memref<128x1152xbf16, #tpu.memory_space<vmem>>, vector<128x1152xbf16>
    %c0_45 = arith.constant 0 : index
    %c0_46 = arith.constant 0 : index
    %28 = vector.load %arg2[%c0_45, %c0_46] : memref<1152x128xbf16, #tpu.memory_space<vmem>>, vector<1152x128xbf16>
    %cst = arith.constant dense<0.000000e+00> : vector<128x128xf32>
    %29 = tpu.matmul %27, %28, %cst {dimension_numbers = #tpu.dot_dimension_numbers<[1], [0], [0], [1], [0, 0, 1, 1], [], []>} : vector<128x1152xbf16>, vector<1152x128xbf16>, vector<128x128xf32> -> vector<128x128xf32>
    %c0_47 = arith.constant 0 : index
    %c0_48 = arith.constant 0 : index
    %30 = vector.load %arg3[%c0_47, %c0_48] : memref<1x128xf32, #tpu.memory_space<vmem>>, vector<1x128xf32>
    %31 = vector.broadcast %30 : vector<1x128xf32> to vector<128x128xf32>
    %32 = arith.addf %29, %31 : vector<128x128xf32>
    %cst_49 = arith.constant 0.000000e+00 : f32
    %33 = vector.broadcast %cst_49 : f32 to vector<128x128xf32>
    %34 = arith.maximumf %32, %33 : vector<128x128xf32>
    %35 = arith.truncf %34 : vector<128x128xf32> to vector<128x128xbf16>
    %cst_50 = arith.constant 0.000000e+00 : bf16
    %36 = vector.broadcast %cst_50 : bf16 to vector<2x1x16x128xbf16>
    %cst_51 = arith.constant 0.000000e+00 : bf16
    %37 = vector.broadcast %cst_51 : bf16 to vector<2x8x1x128xbf16>
    %c0_52 = arith.constant 0 : index
    %c0_53 = arith.constant 0 : index
    %c0_54 = arith.constant 0 : index
    %c0_55 = arith.constant 0 : index
    %38 = vector.load %arg8[%c0_52, %c0_53, %c0_54, %c0_55] : memref<2x10x16x128xbf16, #tpu.memory_space<vmem>>, vector<2x1x16x128xbf16>
    tpu.vector_store %arg8[%c0_52, %c0_53, %c0_54, %c0_55], %36 {strides = array<i32>} : memref<2x10x16x128xbf16, #tpu.memory_space<vmem>>, vector<2x1x16x128xbf16>,
    %c0_56 = arith.constant 0 : index
    %c9 = arith.constant 9 : index
    %c0_57 = arith.constant 0 : index
    %c0_58 = arith.constant 0 : index
    %39 = vector.load %arg8[%c0_56, %c9, %c0_57, %c0_58] : memref<2x10x16x128xbf16, #tpu.memory_space<vmem>>, vector<2x1x16x128xbf16>
    tpu.vector_store %arg8[%c0_56, %c9, %c0_57, %c0_58], %36 {strides = array<i32>} : memref<2x10x16x128xbf16, #tpu.memory_space<vmem>>, vector<2x1x16x128xbf16>,
    %c0_59 = arith.constant 0 : index
    %c1_60 = arith.constant 1 : index
    %c0_61 = arith.constant 0 : index
    %c0_62 = arith.constant 0 : index
    %40 = vector.load %arg8[%c0_59, %c1_60, %c0_61, %c0_62] : memref<2x10x16x128xbf16, #tpu.memory_space<vmem>>, vector<2x8x1x128xbf16>
    tpu.vector_store %arg8[%c0_59, %c1_60, %c0_61, %c0_62], %37 {strides = array<i32>} : memref<2x10x16x128xbf16, #tpu.memory_space<vmem>>, vector<2x8x1x128xbf16>,
    %c0_63 = arith.constant 0 : index
    %c1_64 = arith.constant 1 : index
    %c9_65 = arith.constant 9 : index
    %c0_66 = arith.constant 0 : index
    %41 = vector.load %arg8[%c0_63, %c1_64, %c9_65, %c0_66] : memref<2x10x16x128xbf16, #tpu.memory_space<vmem>>, vector<2x8x1x128xbf16>
    tpu.vector_store %arg8[%c0_63, %c1_64, %c9_65, %c0_66], %37 {strides = array<i32>} : memref<2x10x16x128xbf16, #tpu.memory_space<vmem>>, vector<2x8x1x128xbf16>,
    %42 = vector.shape_cast %35 : vector<128x128xbf16> to vector<2x8x8x128xbf16>
    %c0_67 = arith.constant 0 : index
    %c1_68 = arith.constant 1 : index
    %c1_69 = arith.constant 1 : index
    %c0_70 = arith.constant 0 : index
    %43 = vector.load %arg8[%c0_67, %c1_68, %c1_69, %c0_70] : memref<2x10x16x128xbf16, #tpu.memory_space<vmem>>, vector<2x8x8x128xbf16>
    tpu.vector_store %arg8[%c0_67, %c1_68, %c1_69, %c0_70], %42 {strides = array<i32>} : memref<2x10x16x128xbf16, #tpu.memory_space<vmem>>, vector<2x8x8x128xbf16>,
    %c0_71 = arith.constant 0 : index
    %c0_72 = arith.constant 0 : index
    %c0_73 = arith.constant 0 : index
    %c0_74 = arith.constant 0 : index
    %44 = vector.load %arg8[%c0_71, %c0_72, %c0_73, %c0_74] : memref<2x10x16x128xbf16, #tpu.memory_space<vmem>>, vector<2x8x8x128xbf16>
    %45 = vector.shape_cast %44 : vector<2x8x8x128xbf16> to vector<128x128xbf16>
    %c0_75 = arith.constant 0 : index
    %c0_76 = arith.constant 0 : index
    %46 = vector.load %arg9[%c0_75, %c0_76] : memref<128x1152xbf16, #tpu.memory_space<vmem>>, vector<128x128xbf16>
    tpu.vector_store %arg9[%c0_75, %c0_76], %45 {strides = array<i32>} : memref<128x1152xbf16, #tpu.memory_space<vmem>>, vector<128x128xbf16>,
    %c0_77 = arith.constant 0 : index
    %c0_78 = arith.constant 0 : index
    %c1_79 = arith.constant 1 : index
    %c0_80 = arith.constant 0 : index
    %47 = vector.load %arg8[%c0_77, %c0_78, %c1_79, %c0_80] : memref<2x10x16x128xbf16, #tpu.memory_space<vmem>>, vector<2x8x8x128xbf16>
    %48 = vector.shape_cast %47 : vector<2x8x8x128xbf16> to vector<128x128xbf16>
    %c0_81 = arith.constant 0 : index
    %c128_82 = arith.constant 128 : index
    %49 = vector.load %arg9[%c0_81, %c128_82] : memref<128x1152xbf16, #tpu.memory_space<vmem>>, vector<128x128xbf16>
    tpu.vector_store %arg9[%c0_81, %c128_82], %48 {strides = array<i32>} : memref<128x1152xbf16, #tpu.memory_space<vmem>>, vector<128x128xbf16>,
    %c0_83 = arith.constant 0 : index
    %c0_84 = arith.constant 0 : index
    %c2_85 = arith.constant 2 : index
    %c0_86 = arith.constant 0 : index
    %50 = vector.load %arg8[%c0_83, %c0_84, %c2_85, %c0_86] : memref<2x10x16x128xbf16, #tpu.memory_space<vmem>>, vector<2x8x8x128xbf16>
    %51 = vector.shape_cast %50 : vector<2x8x8x128xbf16> to vector<128x128xbf16>
    %c0_87 = arith.constant 0 : index
    %c256_88 = arith.constant 256 : index
    %52 = vector.load %arg9[%c0_87, %c256_88] : memref<128x1152xbf16, #tpu.memory_space<vmem>>, vector<128x128xbf16>
    tpu.vector_store %arg9[%c0_87, %c256_88], %51 {strides = array<i32>} : memref<128x1152xbf16, #tpu.memory_space<vmem>>, vector<128x128xbf16>,
    %c0_89 = arith.constant 0 : index
    %c1_90 = arith.constant 1 : index
    %c0_91 = arith.constant 0 : index
    %c0_92 = arith.constant 0 : index
    %53 = vector.load %arg8[%c0_89, %c1_90, %c0_91, %c0_92] : memref<2x10x16x128xbf16, #tpu.memory_space<vmem>>, vector<2x8x8x128xbf16>
    %54 = vector.shape_cast %53 : vector<2x8x8x128xbf16> to vector<128x128xbf16>
    %c0_93 = arith.constant 0 : index
    %c384_94 = arith.constant 384 : index
    %55 = vector.load %arg9[%c0_93, %c384_94] : memref<128x1152xbf16, #tpu.memory_space<vmem>>, vector<128x128xbf16>
    tpu.vector_store %arg9[%c0_93, %c384_94], %54 {strides = array<i32>} : memref<128x1152xbf16, #tpu.memory_space<vmem>>, vector<128x128xbf16>,
    %c0_95 = arith.constant 0 : index
    %c1_96 = arith.constant 1 : index
    %c1_97 = arith.constant 1 : index
    %c0_98 = arith.constant 0 : index
    %56 = vector.load %arg8[%c0_95, %c1_96, %c1_97, %c0_98] : memref<2x10x16x128xbf16, #tpu.memory_space<vmem>>, vector<2x8x8x128xbf16>
    %57 = vector.shape_cast %56 : vector<2x8x8x128xbf16> to vector<128x128xbf16>
    %c0_99 = arith.constant 0 : index
    %c512_100 = arith.constant 512 : index
    %58 = vector.load %arg9[%c0_99, %c512_100] : memref<128x1152xbf16, #tpu.memory_space<vmem>>, vector<128x128xbf16>
    tpu.vector_store %arg9[%c0_99, %c512_100], %57 {strides = array<i32>} : memref<128x1152xbf16, #tpu.memory_space<vmem>>, vector<128x128xbf16>,
    %c0_101 = arith.constant 0 : index
    %c1_102 = arith.constant 1 : index
    %c2_103 = arith.constant 2 : index
    %c0_104 = arith.constant 0 : index
    %59 = vector.load %arg8[%c0_101, %c1_102, %c2_103, %c0_104] : memref<2x10x16x128xbf16, #tpu.memory_space<vmem>>, vector<2x8x8x128xbf16>
    %60 = vector.shape_cast %59 : vector<2x8x8x128xbf16> to vector<128x128xbf16>
    %c0_105 = arith.constant 0 : index
    %c640_106 = arith.constant 640 : index
    %61 = vector.load %arg9[%c0_105, %c640_106] : memref<128x1152xbf16, #tpu.memory_space<vmem>>, vector<128x128xbf16>
    tpu.vector_store %arg9[%c0_105, %c640_106], %60 {strides = array<i32>} : memref<128x1152xbf16, #tpu.memory_space<vmem>>, vector<128x128xbf16>,
    %c0_107 = arith.constant 0 : index
    %c2_108 = arith.constant 2 : index
    %c0_109 = arith.constant 0 : index
    %c0_110 = arith.constant 0 : index
    %62 = vector.load %arg8[%c0_107, %c2_108, %c0_109, %c0_110] : memref<2x10x16x128xbf16, #tpu.memory_space<vmem>>, vector<2x8x8x128xbf16>
    %63 = vector.shape_cast %62 : vector<2x8x8x128xbf16> to vector<128x128xbf16>
    %c0_111 = arith.constant 0 : index
    %c768_112 = arith.constant 768 : index
    %64 = vector.load %arg9[%c0_111, %c768_112] : memref<128x1152xbf16, #tpu.memory_space<vmem>>, vector<128x128xbf16>
    tpu.vector_store %arg9[%c0_111, %c768_112], %63 {strides = array<i32>} : memref<128x1152xbf16, #tpu.memory_space<vmem>>, vector<128x128xbf16>,
    %c0_113 = arith.constant 0 : index
    %c2_114 = arith.constant 2 : index
    %c1_115 = arith.constant 1 : index
    %c0_116 = arith.constant 0 : index
    %65 = vector.load %arg8[%c0_113, %c2_114, %c1_115, %c0_116] : memref<2x10x16x128xbf16, #tpu.memory_space<vmem>>, vector<2x8x8x128xbf16>
    %66 = vector.shape_cast %65 : vector<2x8x8x128xbf16> to vector<128x128xbf16>
    %c0_117 = arith.constant 0 : index
    %c896_118 = arith.constant 896 : index
    %67 = vector.load %arg9[%c0_117, %c896_118] : memref<128x1152xbf16, #tpu.memory_space<vmem>>, vector<128x128xbf16>
    tpu.vector_store %arg9[%c0_117, %c896_118], %66 {strides = array<i32>} : memref<128x1152xbf16, #tpu.memory_space<vmem>>, vector<128x128xbf16>,
    %c0_119 = arith.constant 0 : index
    %c2_120 = arith.constant 2 : index
    %c2_121 = arith.constant 2 : index
    %c0_122 = arith.constant 0 : index
    %68 = vector.load %arg8[%c0_119, %c2_120, %c2_121, %c0_122] : memref<2x10x16x128xbf16, #tpu.memory_space<vmem>>, vector<2x8x8x128xbf16>
    %69 = vector.shape_cast %68 : vector<2x8x8x128xbf16> to vector<128x128xbf16>
    %c0_123 = arith.constant 0 : index
    %c1024_124 = arith.constant 1024 : index
    %70 = vector.load %arg9[%c0_123, %c1024_124] : memref<128x1152xbf16, #tpu.memory_space<vmem>>, vector<128x128xbf16>
    tpu.vector_store %arg9[%c0_123, %c1024_124], %69 {strides = array<i32>} : memref<128x1152xbf16, #tpu.memory_space<vmem>>, vector<128x128xbf16>,
    %c0_125 = arith.constant 0 : index
    %c0_126 = arith.constant 0 : index
    %71 = vector.load %arg9[%c0_125, %c0_126] : memref<128x1152xbf16, #tpu.memory_space<vmem>>, vector<128x1152xbf16>
    %c0_127 = arith.constant 0 : index
    %c0_128 = arith.constant 0 : index
    %72 = vector.load %arg4[%c0_127, %c0_128] : memref<1152x128xbf16, #tpu.memory_space<vmem>>, vector<1152x128xbf16>
    %cst_129 = arith.constant dense<0.000000e+00> : vector<128x128xf32>
    %73 = tpu.matmul %71, %72, %cst_129 {dimension_numbers = #tpu.dot_dimension_numbers<[1], [0], [0], [1], [0, 0, 1, 1], [], []>} : vector<128x1152xbf16>, vector<1152x128xbf16>, vector<128x128xf32> -> vector<128x128xf32>
    %c0_130 = arith.constant 0 : index
    %c0_131 = arith.constant 0 : index
    %74 = vector.load %arg5[%c0_130, %c0_131] : memref<1x128xf32, #tpu.memory_space<vmem>>, vector<1x128xf32>
    %75 = vector.broadcast %74 : vector<1x128xf32> to vector<128x128xf32>
    %76 = arith.addf %73, %75 : vector<128x128xf32>
    %c0_132 = arith.constant 0 : index
    %c1_133 = arith.constant 1 : index
    %c1_134 = arith.constant 1 : index
    %c0_135 = arith.constant 0 : index
    %77 = vector.load %arg1[%c0_132, %c1_133, %c1_134, %c0_135] : memref<2x10x10x128xbf16, #tpu.memory_space<vmem>>, vector<2x8x8x128xbf16>
    %78 = vector.shape_cast %77 : vector<2x8x8x128xbf16> to vector<128x128xbf16>
    %79 = arith.extf %78 : vector<128x128xbf16> to vector<128x128xf32>
    %80 = arith.addf %76, %79 : vector<128x128xf32>
    %cst_136 = arith.constant 0.000000e+00 : f32
    %81 = vector.broadcast %cst_136 : f32 to vector<128x128xf32>
    %82 = arith.maximumf %80, %81 : vector<128x128xf32>
    %83 = arith.truncf %82 : vector<128x128xf32> to vector<128x128xbf16>
    %84 = vector.shape_cast %83 : vector<128x128xbf16> to vector<2x8x8x128xbf16>
    %c0_137 = arith.constant 0 : index
    %c0_138 = arith.constant 0 : index
    %c0_139 = arith.constant 0 : index
    %c0_140 = arith.constant 0 : index
    %85 = vector.load %arg6[%c0_137, %c0_138, %c0_139, %c0_140] : memref<2x8x8x128xbf16, #tpu.memory_space<vmem>>, vector<2x8x8x128xbf16>
    tpu.vector_store %arg6[%c0_137, %c0_138, %c0_139, %c0_140], %84 {strides = array<i32>} : memref<2x8x8x128xbf16, #tpu.memory_space<vmem>>, vector<2x8x8x128xbf16>,
    return
  }
  func.func @transform_0(%arg0: i32) -> (i32, i32, i32, i32) {
    %c0_i32 = arith.constant 0 : i32
    %c0_i32_0 = arith.constant 0 : i32
    %c0_i32_1 = arith.constant 0 : i32
    %c0_i32_2 = arith.constant 0 : i32
    return %arg0, %c0_i32, %c0_i32_0, %c0_i32_1 : i32, i32, i32, i32
  }
  func.func @transform_1(%arg0: i32) -> (i32, i32) {
    %c0_i32 = arith.constant 0 : i32
    %c0_i32_0 = arith.constant 0 : i32
    %c0_i32_1 = arith.constant 0 : i32
    return %c0_i32, %c0_i32_0 : i32, i32
  }
  func.func @transform_2(%arg0: i32) -> (i32, i32) {
    %c0_i32 = arith.constant 0 : i32
    %c0_i32_0 = arith.constant 0 : i32
    %c0_i32_1 = arith.constant 0 : i32
    return %c0_i32, %c0_i32_0 : i32, i32
  }
  func.func @transform_3(%arg0: i32) -> (i32, i32) {
    %c0_i32 = arith.constant 0 : i32
    %c0_i32_0 = arith.constant 0 : i32
    %c0_i32_1 = arith.constant 0 : i32
    return %c0_i32, %c0_i32_0 : i32, i32
  }
  func.func @transform_4(%arg0: i32) -> (i32, i32) {
    %c0_i32 = arith.constant 0 : i32
    %c0_i32_0 = arith.constant 0 : i32
    %c0_i32_1 = arith.constant 0 : i32
    return %c0_i32, %c0_i32_0 : i32, i32
  }
  func.func @transform_5(%arg0: i32) -> (i32, i32, i32, i32) {
    %c0_i32 = arith.constant 0 : i32
    %c0_i32_0 = arith.constant 0 : i32
    %c0_i32_1 = arith.constant 0 : i32
    %c0_i32_2 = arith.constant 0 : i32
    return %arg0, %c0_i32, %c0_i32_0, %c0_i32_1 : i32, i32, i32, i32
  }
}

</mosaic_0001>

<llo_original>
// kernel: fwd.2
$region0: #{fwd.2}
  #allocation0 [shape = 'u32[]', space=smem, size = 0x4, offset = 0x4, fixed_abs, tag = 'smem constant byte address 0x4 - core index']
  #allocation1 [shape = 'u32[144,128]{1,0:T(1,128)}', space=vmem, size = 0x12000, scoped, tag = 'internal scratch']
  #allocation2 [shape = 'bf16[128,1152]{1,0:T(16,128)(2,1)}', space=vmem, size = 0x48000, scoped, tag = 'scratch operand']
  #allocation3 [shape = 'bf16[2,10,16,128]{3,2,1,0:T(16,128)(2,1)}', space=vmem, size = 0x14000, scoped, tag = 'scratch operand']
  #allocation4 [shape = 'bf16[128,1152]{1,0:T(16,128)(2,1)}', space=vmem, size = 0x48000, scoped, tag = 'scratch operand']
  %s0 = inlined_call_operand.vmem [shape: bf16[2,36,9,128], index: 0, kind: input, shape index: {}]
  %s1 = inlined_call_operand.vmem [shape: bf16[1152,128], index: 1, kind: input, shape index: {}]
  %s2 = inlined_call_operand.vmem [shape: f32[1,128], index: 2, kind: input, shape index: {}]
  %s3 = inlined_call_operand.vmem [shape: bf16[1152,128], index: 3, kind: input, shape index: {}]
  %s4 = inlined_call_operand.vmem [shape: f32[1,128], index: 4, kind: input, shape index: {}]
  %s5 = inlined_call_operand.vmem [shape: bf16[128,128], index: 5, kind: input, shape index: {}]
  %s6 = inlined_call_operand.vmem [shape: f32[1,128], index: 6, kind: input, shape index: {}]
  %s7 = inlined_call_operand.vmem [shape: bf16[2,8,8,128], index: 7, kind: output, shape index: {}]
  %s8 = sld [smem:[#allocation0]]
  $region38: #{fwd.2} parent=0
    _
  %s10 = ssub.s32 1, %s8
  %s11 = scalar_select 0, %s10, %s8
  // Predicated region
  $region2: #{fwd.2} parent=0 // pred_check
    _
  $region3: #{fwd.2} parent=0 // pred_check_branch
    %13 = sbr.rel (0) target = $region5
  $region4: #{fwd.2} parent=0 // pred_region
    _
  $region5: #{fwd.2} parent=0 // pred_fallthru
    _
  // Predicated region
  $region6: #{fwd.2} parent=0 // pred_check
    _
  $region7: #{fwd.2} parent=0 // pred_check_branch
    %15 = sbr.rel (0) target = $region9
  $region8: #{fwd.2} parent=0 // pred_region
    _
  $region9: #{fwd.2} parent=0 // pred_fallthru
    _
  // Predicated region
  $region10: #{fwd.2} parent=0 // pred_check
    _
  $region11: #{fwd.2} parent=0 // pred_check_branch
    %17 = sbr.rel (0) target = $region13
  $region12: #{fwd.2} parent=0 // pred_region
    _
  $region13: #{fwd.2} parent=0 // pred_fallthru
    _
  // Predicated region
  $region14: #{fwd.2} parent=0 // pred_check
    _
  $region15: #{fwd.2} parent=0 // pred_check_branch
    %19 = sbr.rel (0) target = $region17
  $region16: #{fwd.2} parent=0 // pred_region
    _
  $region17: #{fwd.2} parent=0 // pred_fallthru
    _
  // Predicated region
  $region18: #{fwd.2} parent=0 // pred_check
    _
  $region19: #{fwd.2} parent=0 // pred_check_branch
    %21 = sbr.rel (0) target = $region21
  $region20: #{fwd.2} parent=0 // pred_region
    _
  $region21: #{fwd.2} parent=0 // pred_fallthru
    _
  // Predicated region
  $region22: #{fwd.2} parent=0 // pred_check
    _
  $region23: #{fwd.2} parent=0 // pred_check_branch
    %23 = sbr.rel (0) target = $region25
  $region24: #{fwd.2} parent=0 // pred_region
    _
  $region25: #{fwd.2} parent=0 // pred_fallthru
    _
  // Predicated region
  $region26: #{fwd.2} parent=0 // pred_check
    _
  $region27: #{fwd.2} parent=0 // pred_check_branch
    %25 = sbr.rel (0) target = $region29
  $region28: #{fwd.2} parent=0 // pred_region
    _
  $region29: #{fwd.2} parent=0 // pred_fallthru
    _
  %v27 = vld [vmem:[%s0] sm:$0xf]
  %v28 = vld [vmem:[%s0 + $0x8] sm:$0xf]
  %v29 = vld [vmem:[%s0 + $0x10] sm:$0xf]
  %v30 = vld [vmem:[%s0 + $0x18] sm:$0xf]
  %v31 = vld [vmem:[%s0 + $0x20] sm:$0xf]
  %v32 = vld [vmem:[%s0 + $0x28] sm:$0xf]
  %v33 = vld [vmem:[%s0 + $0x30] sm:$0xf]
  %v34 = vld [vmem:[%s0 + $0x38] sm:$0xf]
  %v35 = vld [vmem:[%s0 + $0x120] sm:$0xf]
  %v36 = vld [vmem:[%s0 + $0x128] sm:$0xf]
  %v37 = vld [vmem:[%s0 + $0x130] sm:$0xf]
  %v38 = vld [vmem:[%s0 + $0x138] sm:$0xf]
  %v39 = vld [vmem:[%s0 + $0x140] sm:$0xf]
  %v40 = vld [vmem:[%s0 + $0x148] sm:$0xf]
  %v41 = vld [vmem:[%s0 + $0x150] sm:$0xf]
  %v42 = vld [vmem:[%s0 + $0x158] sm:$0xf]
  %v59 = vunpack.c.l.b16 %v27
  %v60 = vunpack.c.l.b16 %v28
  %v61 = vunpack.c.l.b16 %v29
  %v62 = vunpack.c.l.b16 %v30
  %v63 = vunpack.c.l.b16 %v31
  %v64 = vunpack.c.l.b16 %v32
  %v65 = vunpack.c.l.b16 %v33
  %v66 = vunpack.c.l.b16 %v34
  %v67 = vunpack.c.l.b16 %v35
  %v68 = vunpack.c.l.b16 %v36
  %v69 = vunpack.c.l.b16 %v37
  %v70 = vunpack.c.l.b16 %v38
  %v71 = vunpack.c.l.b16 %v39
  %v72 = vunpack.c.l.b16 %v40
  %v73 = vunpack.c.l.b16 %v41
  %v74 = vunpack.c.l.b16 %v42
  %v75 = vpack.c.b16 %v60, %v59
  %v76 = vpack.c.b16 %v62, %v61
  %v77 = vpack.c.b16 %v64, %v63
  %v78 = vpack.c.b16 %v66, %v65
  %v79 = vpack.c.b16 %v68, %v67
  %v80 = vpack.c.b16 %v70, %v69
  %v81 = vpack.c.b16 %v72, %v71
  %v82 = vpack.c.b16 %v74, %v73
  %91 = vst [vmem:[#allocation2] sm:$0xff] %v75
  %92 = vst [vmem:[#allocation2 + $0x48] sm:$0xff] %v76
  %93 = vst [vmem:[#allocation2 + $0x90] sm:$0xff] %v77
  %94 = vst [vmem:[#allocation2 + $0xd8] sm:$0xff] %v78
  %95 = vst [vmem:[#allocation2 + $0x120] sm:$0xff] %v79
  %96 = vst [vmem:[#allocation2 + $0x168] sm:$0xff] %v80
  %97 = vst [vmem:[#allocation2 + $0x1b0] sm:$0xff] %v81
  %98 = vst [vmem:[#allocation2 + $0x1f8] sm:$0xff] %v82
  %s99 = scalar_lea.vmem %s0, 72
  %v100 = vld [vmem:[%s99] sm:$0xf]
  %v101 = vld [vmem:[%s99 + $0x8] sm:$0xf]
  %v102 = vld [vmem:[%s99 + $0x10] sm:$0xf]
  %v103 = vld [vmem:[%s99 + $0x18] sm:$0xf]
  %v104 = vld [vmem:[%s99 + $0x20] sm:$0xf]
  %v105 = vld [vmem:[%s99 + $0x28] sm:$0xf]
  %v106 = vld [vmem:[%s99 + $0x30] sm:$0xf]
  %v107 = vld [vmem:[%s99 + $0x38] sm:$0xf]
  %v108 = vld [vmem:[%s99 + $0x120] sm:$0xf]
  %v109 = vld [vmem:[%s99 + $0x128] sm:$0xf]
  %v110 = vld [vmem:[%s99 + $0x130] sm:$0xf]
  %v111 = vld [vmem:[%s99 + $0x138] sm:$0xf]
  %v112 = vld [vmem:[%s99 + $0x140] sm:$0xf]
  %v113 = vld [vmem:[%s99 + $0x148] sm:$0xf]
  %v114 = vld [vmem:[%s99 + $0x150] sm:$0xf]
  %v115 = vld [vmem:[%s99 + $0x158] sm:$0xf]
  %v132 = vunpack.c.l.b16 %v100
  %v133 = vunpack.c.l.b16 %v101
  %v134 = vunpack.c.l.b16 %v102
  %v135 = vunpack.c.l.b16 %v103
  %v136 = vunpack.c.l.b16 %v104
  %v137 = vunpack.c.l.b16 %v105
  %v138 = vunpack.c.l.b16 %v106
  %v139 = vunpack.c.l.b16 %v107
  %v140 = vunpack.c.l.b16 %v108
  %v141 = vunpack.c.l.b16 %v109
  %v142 = vunpack.c.l.b16 %v110
  %v143 = vunpack.c.l.b16 %v111
  %v144 = vunpack.c.l.b16 %v112
  %v145 = vunpack.c.l.b16 %v113
  %v146 = vunpack.c.l.b16 %v114
  %v147 = vunpack.c.l.b16 %v115
  %v148 = vpack.c.b16 %v133, %v132
  %v149 = vpack.c.b16 %v135, %v134
  %v150 = vpack.c.b16 %v137, %v136
  %v151 = vpack.c.b16 %v139, %v138
  %v152 = vpack.c.b16 %v141, %v140
  %v153 = vpack.c.b16 %v143, %v142
  %v154 = vpack.c.b16 %v145, %v144
  %v155 = vpack.c.b16 %v147, %v146
  %164 = vst [vmem:[#allocation2 + $0x8] sm:$0xff] %v148
  %165 = vst [vmem:[#allocation2 + $0x50] sm:$0xff] %v149
  %166 = vst [vmem:[#allocation2 + $0x98] sm:$0xff] %v150
  %167 = vst [vmem:[#allocation2 + $0xe0] sm:$0xff] %v151
  %168 = vst [vmem:[#allocation2 + $0x128] sm:$0xff] %v152
  %169 = vst [vmem:[#allocation2 + $0x170] sm:$0xff] %v153
  %170 = vst [vmem:[#allocation2 + $0x1b8] sm:$0xff] %v154
  %171 = vst [vmem:[#allocation2 + $0x200] sm:$0xff] %v155
  %v172 = vld [vmem:[%s0] sm:$0xf]
  %v173 = vld [vmem:[%s0 + $0x4] sm:$0x1]
  %v174 = vld [vmem:[%s0 + $0x8] sm:$0xf]
  %v175 = vld [vmem:[%s0 + $0xc] sm:$0x1]
  %v176 = vld [vmem:[%s0 + $0x10] sm:$0xf]
  %v177 = vld [vmem:[%s0 + $0x14] sm:$0x1]
  %v178 = vld [vmem:[%s0 + $0x18] sm:$0xf]
  %v179 = vld [vmem:[%s0 + $0x1c] sm:$0x1]
  %v180 = vld [vmem:[%s0 + $0x20] sm:$0xf]
  %v181 = vld [vmem:[%s0 + $0x24] sm:$0x1]
  %v182 = vld [vmem:[%s0 + $0x28] sm:$0xf]
  %v183 = vld [vmem:[%s0 + $0x2c] sm:$0x1]
  %v184 = vld [vmem:[%s0 + $0x30] sm:$0xf]
  %v185 = vld [vmem:[%s0 + $0x34] sm:$0x1]
  %v186 = vld [vmem:[%s0 + $0x38] sm:$0xf]
  %v187 = vld [vmem:[%s0 + $0x3c] sm:$0x1]
  %v188 = vld [vmem:[%s0 + $0x120] sm:$0xf]
  %v189 = vld [vmem:[%s0 + $0x124] sm:$0x1]
  %v190 = vld [vmem:[%s0 + $0x128] sm:$0xf]
  %v191 = vld [vmem:[%s0 + $0x12c] sm:$0x1]
  %v192 = vld [vmem:[%s0 + $0x130] sm:$0xf]
  %v193 = vld [vmem:[%s0 + $0x134] sm:$0x1]
  %v194 = vld [vmem:[%s0 + $0x138] sm:$0xf]
  %v195 = vld [vmem:[%s0 + $0x13c] sm:$0x1]
  %v196 = vld [vmem:[%s0 + $0x140] sm:$0xf]
  %v197 = vld [vmem:[%s0 + $0x144] sm:$0x1]
  %v198 = vld [vmem:[%s0 + $0x148] sm:$0xf]
  %v199 = vld [vmem:[%s0 + $0x14c] sm:$0x1]
  %v200 = vld [vmem:[%s0 + $0x150] sm:$0xf]
  %v201 = vld [vmem:[%s0 + $0x154] sm:$0x1]
  %v202 = vld [vmem:[%s0 + $0x158] sm:$0xf]
  %v203 = vld [vmem:[%s0 + $0x15c] sm:$0x1]
  %vm204 = vsmask.f32 3328
  %vm205 = vsmask.f32 7440
  %vm206 = vmor %vm204, %vm205
  %v208 = vshrl.u32 %v172, 16
  %v210 = vrot.slane %v208, 4
  %v211 = vshll.u32 %v172, 16
  %v213 = vrot.slane %v211, 5
  %v214 = vor.u32 %v210, %v213
  %v215 = vrot.slane %v214, 4
  %v217 = vshll.u32 %v173, 16
  %v219 = vrot.slane %v217, 5
  %v220 = vsel %vm206, %v215, %v219
  %v222 = vshrl.u32 %v174, 16
  %v224 = vrot.slane %v222, 4
  %v225 = vshll.u32 %v174, 16
  %v227 = vrot.slane %v225, 5
  %v228 = vor.u32 %v224, %v227
  %v229 = vrot.slane %v228, 4
  %v231 = vshll.u32 %v175, 16
  %v233 = vrot.slane %v231, 5
  %v234 = vsel %vm206, %v229, %v233
  %v236 = vshrl.u32 %v176, 16
  %v238 = vrot.slane %v236, 4
  %v239 = vshll.u32 %v176, 16
  %v241 = vrot.slane %v239, 5
  %v242 = vor.u32 %v238, %v241
  %v243 = vrot.slane %v242, 4
  %v245 = vshll.u32 %v177, 16
  %v247 = vrot.slane %v245, 5
  %v248 = vsel %vm206, %v243, %v247
  %v250 = vshrl.u32 %v178, 16
  %v252 = vrot.slane %v250, 4
  %v253 = vshll.u32 %v178, 16
  %v255 = vrot.slane %v253, 5
  %v256 = vor.u32 %v252, %v255
  %v257 = vrot.slane %v256, 4
  %v259 = vshll.u32 %v179, 16
  %v261 = vrot.slane %v259, 5
  %v262 = vsel %vm206, %v257, %v261
  %v264 = vshrl.u32 %v180, 16
  %v266 = vrot.slane %v264, 4
  %v267 = vshll.u32 %v180, 16
  %v269 = vrot.slane %v267, 5
  %v270 = vor.u32 %v266, %v269
  %v271 = vrot.slane %v270, 4
  %v273 = vshll.u32 %v181, 16
  %v275 = vrot.slane %v273, 5
  %v276 = vsel %vm206, %v271, %v275
  %v278 = vshrl.u32 %v182, 16
  %v280 = vrot.slane %v278, 4
  %v281 = vshll.u32 %v182, 16
  %v283 = vrot.slane %v281, 5
  %v284 = vor.u32 %v280, %v283
  %v285 = vrot.slane %v284, 4
  %v287 = vshll.u32 %v183, 16
  %v289 = vrot.slane %v287, 5
  %v290 = vsel %vm206, %v285, %v289
  %v292 = vshrl.u32 %v184, 16
  %v294 = vrot.slane %v292, 4
  %v295 = vshll.u32 %v184, 16
  %v297 = vrot.slane %v295, 5
  %v298 = vor.u32 %v294, %v297
  %v299 = vrot.slane %v298, 4
  %v301 = vshll.u32 %v185, 16
  %v303 = vrot.slane %v301, 5
  %v304 = vsel %vm206, %v299, %v303
  %v306 = vshrl.u32 %v186, 16
  %v308 = vrot.slane %v306, 4
  %v309 = vshll.u32 %v186, 16
  %v311 = vrot.slane %v309, 5
  %v312 = vor.u32 %v308, %v311
  %v313 = vrot.slane %v312, 4
  %v315 = vshll.u32 %v187, 16
  %v317 = vrot.slane %v315, 5
  %v318 = vsel %vm206, %v313, %v317
  %v320 = vshrl.u32 %v188, 16
  %v322 = vrot.slane %v320, 4
  %v323 = vshll.u32 %v188, 16
  %v325 = vrot.slane %v323, 5
  %v326 = vor.u32 %v322, %v325
  %v327 = vrot.slane %v326, 4
  %v329 = vshll.u32 %v189, 16
  %v331 = vrot.slane %v329, 5
  %v332 = vsel %vm206, %v327, %v331
  %v334 = vshrl.u32 %v190, 16
  %v336 = vrot.slane %v334, 4
  %v337 = vshll.u32 %v190, 16
  %v339 = vrot.slane %v337, 5
  %v340 = vor.u32 %v336, %v339
  %v341 = vrot.slane %v340, 4
  %v343 = vshll.u32 %v191, 16
  %v345 = vrot.slane %v343, 5
  %v346 = vsel %vm206, %v341, %v345
  %v348 = vshrl.u32 %v192, 16
  %v350 = vrot.slane %v348, 4
  %v351 = vshll.u32 %v192, 16
  %v353 = vrot.slane %v351, 5
  %v354 = vor.u32 %v350, %v353
  %v355 = vrot.slane %v354, 4
  %v357 = vshll.u32 %v193, 16
  %v359 = vrot.slane %v357, 5
  %v360 = vsel %vm206, %v355, %v359
  %v362 = vshrl.u32 %v194, 16
  %v364 = vrot.slane %v362, 4
  %v365 = vshll.u32 %v194, 16
  %v367 = vrot.slane %v365, 5
  %v368 = vor.u32 %v364, %v367
  %v369 = vrot.slane %v368, 4
  %v371 = vshll.u32 %v195, 16
  %v373 = vrot.slane %v371, 5
  %v374 = vsel %vm206, %v369, %v373
  %v376 = vshrl.u32 %v196, 16
  %v378 = vrot.slane %v376, 4
  %v379 = vshll.u32 %v196, 16
  %v381 = vrot.slane %v379, 5
  %v382 = vor.u32 %v378, %v381
  %v383 = vrot.slane %v382, 4
  %v385 = vshll.u32 %v197, 16
  %v387 = vrot.slane %v385, 5
  %v388 = vsel %vm206, %v383, %v387
  %v390 = vshrl.u32 %v198, 16
  %v392 = vrot.slane %v390, 4
  %v393 = vshll.u32 %v198, 16
  %v395 = vrot.slane %v393, 5
  %v396 = vor.u32 %v392, %v395
  %v397 = vrot.slane %v396, 4
  %v399 = vshll.u32 %v199, 16
  %v401 = vrot.slane %v399, 5
  %v402 = vsel %vm206, %v397, %v401
  %v404 = vshrl.u32 %v200, 16
  %v406 = vrot.slane %v404, 4
  %v407 = vshll.u32 %v200, 16
  %v409 = vrot.slane %v407, 5
  %v410 = vor.u32 %v406, %v409
  %v411 = vrot.slane %v410, 4
  %v413 = vshll.u32 %v201, 16
  %v415 = vrot.slane %v413, 5
  %v416 = vsel %vm206, %v411, %v415
  %v418 = vshrl.u32 %v202, 16
  %v420 = vrot.slane %v418, 4
  %v421 = vshll.u32 %v202, 16
  %v423 = vrot.slane %v421, 5
  %v424 = vor.u32 %v420, %v423
  %v425 = vrot.slane %v424, 4
  %v427 = vshll.u32 %v203, 16
  %v429 = vrot.slane %v427, 5
  %v430 = vsel %vm206, %v425, %v429
  %v431 = vunpack.c.l.b16 %v220
  %v432 = vunpack.c.l.b16 %v234
  %v433 = vunpack.c.l.b16 %v248
  %v434 = vunpack.c.l.b16 %v262
  %v435 = vunpack.c.l.b16 %v276
  %v436 = vunpack.c.l.b16 %v290
  %v437 = vunpack.c.l.b16 %v304
  %v438 = vunpack.c.l.b16 %v318
  %v439 = vunpack.c.l.b16 %v332
  %v440 = vunpack.c.l.b16 %v346
  %v441 = vunpack.c.l.b16 %v360
  %v442 = vunpack.c.l.b16 %v374
  %v443 = vunpack.c.l.b16 %v388
  %v444 = vunpack.c.l.b16 %v402
  %v445 = vunpack.c.l.b16 %v416
  %v446 = vunpack.c.l.b16 %v430
  %v447 = vpack.c.b16 %v432, %v431
  %v448 = vpack.c.b16 %v434, %v433
  %v449 = vpack.c.b16 %v436, %v435
  %v450 = vpack.c.b16 %v438, %v437
  %v451 = vpack.c.b16 %v440, %v439
  %v452 = vpack.c.b16 %v442, %v441
  %v453 = vpack.c.b16 %v444, %v443
  %v454 = vpack.c.b16 %v446, %v445
  %463 = vst [vmem:[#allocation2 + $0x10] sm:$0xff] %v447
  %464 = vst [vmem:[#allocation2 + $0x58] sm:$0xff] %v448
  %465 = vst [vmem:[#allocation2 + $0xa0] sm:$0xff] %v449
  %466 = vst [vmem:[#allocation2 + $0xe8] sm:$0xff] %v450
  %467 = vst [vmem:[#allocation2 + $0x130] sm:$0xff] %v451
  %468 = vst [vmem:[#allocation2 + $0x178] sm:$0xff] %v452
  %469 = vst [vmem:[#allocation2 + $0x1c0] sm:$0xff] %v453
  %470 = vst [vmem:[#allocation2 + $0x208] sm:$0xff] %v454
  %s471 = scalar_lea.vmem %s0, 144
  %v472 = vld [vmem:[%s471] sm:$0xf]
  %v473 = vld [vmem:[%s471 + $0x8] sm:$0xf]
  %v474 = vld [vmem:[%s471 + $0x10] sm:$0xf]
  %v475 = vld [vmem:[%s471 + $0x18] sm:$0xf]
  %v476 = vld [vmem:[%s471 + $0x20] sm:$0xf]
  %v477 = vld [vmem:[%s471 + $0x28] sm:$0xf]
  %v478 = vld [vmem:[%s471 + $0x30] sm:$0xf]
  %v479 = vld [vmem:[%s471 + $0x38] sm:$0xf]
  %v480 = vld [vmem:[%s471 + $0x120] sm:$0xf]
  %v481 = vld [vmem:[%s471 + $0x128] sm:$0xf]
  %v482 = vld [vmem:[%s471 + $0x130] sm:$0xf]
  %v483 = vld [vmem:[%s471 + $0x138] sm:$0xf]
  %v484 = vld [vmem:[%s471 + $0x140] sm:$0xf]
  %v485 = vld [vmem:[%s471 + $0x148] sm:$0xf]
  %v486 = vld [vmem:[%s471 + $0x150] sm:$0xf]
  %v487 = vld [vmem:[%s471 + $0x158] sm:$0xf]
  %v504 = vunpack.c.l.b16 %v472
  %v505 = vunpack.c.l.b16 %v473
  %v506 = vunpack.c.l.b16 %v474
  %v507 = vunpack.c.l.b16 %v475
  %v508 = vunpack.c.l.b16 %v476
  %v509 = vunpack.c.l.b16 %v477
  %v510 = vunpack.c.l.b16 %v478
  %v511 = vunpack.c.l.b16 %v479
  %v512 = vunpack.c.l.b16 %v480
  %v513 = vunpack.c.l.b16 %v481
  %v514 = vunpack.c.l.b16 %v482
  %v515 = vunpack.c.l.b16 %v483
  %v516 = vunpack.c.l.b16 %v484
  %v517 = vunpack.c.l.b16 %v485
  %v518 = vunpack.c.l.b16 %v486
  %v519 = vunpack.c.l.b16 %v487
  %v520 = vpack.c.b16 %v505, %v504
  %v521 = vpack.c.b16 %v507, %v506
  %v522 = vpack.c.b16 %v509, %v508
  %v523 = vpack.c.b16 %v511, %v510
  %v524 = vpack.c.b16 %v513, %v512
  %v525 = vpack.c.b16 %v515, %v514
  %v526 = vpack.c.b16 %v517, %v516
  %v527 = vpack.c.b16 %v519, %v518
  %536 = vst [vmem:[#allocation2 + $0x18] sm:$0xff] %v520
  %537 = vst [vmem:[#allocation2 + $0x60] sm:$0xff] %v521
  %538 = vst [vmem:[#allocation2 + $0xa8] sm:$0xff] %v522
  %539 = vst [vmem:[#allocation2 + $0xf0] sm:$0xff] %v523
  %540 = vst [vmem:[#allocation2 + $0x138] sm:$0xff] %v524
  %541 = vst [vmem:[#allocation2 + $0x180] sm:$0xff] %v525
  %542 = vst [vmem:[#allocation2 + $0x1c8] sm:$0xff] %v526
  %543 = vst [vmem:[#allocation2 + $0x210] sm:$0xff] %v527
  %s544 = scalar_lea.vmem %s0, 216
  %v545 = vld [vmem:[%s544] sm:$0xf]
  %v546 = vld [vmem:[%s544 + $0x8] sm:$0xf]
  %v547 = vld [vmem:[%s544 + $0x10] sm:$0xf]
  %v548 = vld [vmem:[%s544 + $0x18] sm:$0xf]
  %v549 = vld [vmem:[%s544 + $0x20] sm:$0xf]
  %v550 = vld [vmem:[%s544 + $0x28] sm:$0xf]
  %v551 = vld [vmem:[%s544 + $0x30] sm:$0xf]
  %v552 = vld [vmem:[%s544 + $0x38] sm:$0xf]
  %v553 = vld [vmem:[%s544 + $0x120] sm:$0xf]
  %v554 = vld [vmem:[%s544 + $0x128] sm:$0xf]
  %v555 = vld [vmem:[%s544 + $0x130] sm:$0xf]
  %v556 = vld [vmem:[%s544 + $0x138] sm:$0xf]
  %v557 = vld [vmem:[%s544 + $0x140] sm:$0xf]
  %v558 = vld [vmem:[%s544 + $0x148] sm:$0xf]
  %v559 = vld [vmem:[%s544 + $0x150] sm:$0xf]
  %v560 = vld [vmem:[%s544 + $0x158] sm:$0xf]
  %v577 = vunpack.c.l.b16 %v545
  %v578 = vunpack.c.l.b16 %v546
  %v579 = vunpack.c.l.b16 %v547
  %v580 = vunpack.c.l.b16 %v548
  %v581 = vunpack.c.l.b16 %v549
  %v582 = vunpack.c.l.b16 %v550
  %v583 = vunpack.c.l.b16 %v551
  %v584 = vunpack.c.l.b16 %v552
  %v585 = vunpack.c.l.b16 %v553
  %v586 = vunpack.c.l.b16 %v554
  %v587 = vunpack.c.l.b16 %v555
  %v588 = vunpack.c.l.b16 %v556
  %v589 = vunpack.c.l.b16 %v557
  %v590 = vunpack.c.l.b16 %v558
  %v591 = vunpack.c.l.b16 %v559
  %v592 = vunpack.c.l.b16 %v560
  %v593 = vpack.c.b16 %v578, %v577
  %v594 = vpack.c.b16 %v580, %v579
  %v595 = vpack.c.b16 %v582, %v581
  %v596 = vpack.c.b16 %v584, %v583
  %v597 = vpack.c.b16 %v586, %v585
  %v598 = vpack.c.b16 %v588, %v587
  %v599 = vpack.c.b16 %v590, %v589
  %v600 = vpack.c.b16 %v592, %v591
  %609 = vst [vmem:[#allocation2 + $0x20] sm:$0xff] %v593
  %610 = vst [vmem:[#allocation2 + $0x68] sm:$0xff] %v594
  %611 = vst [vmem:[#allocation2 + $0xb0] sm:$0xff] %v595
  %612 = vst [vmem:[#allocation2 + $0xf8] sm:$0xff] %v596
  %613 = vst [vmem:[#allocation2 + $0x140] sm:$0xff] %v597
  %614 = vst [vmem:[#allocation2 + $0x188] sm:$0xff] %v598
  %615 = vst [vmem:[#allocation2 + $0x1d0] sm:$0xff] %v599
  %616 = vst [vmem:[#allocation2 + $0x218] sm:$0xff] %v600
  %v617 = vld [vmem:[%s471] sm:$0xf]
  %v618 = vld [vmem:[%s471 + $0x4] sm:$0x1]
  %v619 = vld [vmem:[%s471 + $0x8] sm:$0xf]
  %v620 = vld [vmem:[%s471 + $0xc] sm:$0x1]
  %v621 = vld [vmem:[%s471 + $0x10] sm:$0xf]
  %v622 = vld [vmem:[%s471 + $0x14] sm:$0x1]
  %v623 = vld [vmem:[%s471 + $0x18] sm:$0xf]
  %v624 = vld [vmem:[%s471 + $0x1c] sm:$0x1]
  %v625 = vld [vmem:[%s471 + $0x20] sm:$0xf]
  %v626 = vld [vmem:[%s471 + $0x24] sm:$0x1]
  %v627 = vld [vmem:[%s471 + $0x28] sm:$0xf]
  %v628 = vld [vmem:[%s471 + $0x2c] sm:$0x1]
  %v629 = vld [vmem:[%s471 + $0x30] sm:$0xf]
  %v630 = vld [vmem:[%s471 + $0x34] sm:$0x1]
  %v631 = vld [vmem:[%s471 + $0x38] sm:$0xf]
  %v632 = vld [vmem:[%s471 + $0x3c] sm:$0x1]
  %v633 = vld [vmem:[%s471 + $0x120] sm:$0xf]
  %v634 = vld [vmem:[%s471 + $0x124] sm:$0x1]
  %v635 = vld [vmem:[%s471 + $0x128] sm:$0xf]
  %v636 = vld [vmem:[%s471 + $0x12c] sm:$0x1]
  %v637 = vld [vmem:[%s471 + $0x130] sm:$0xf]
  %v638 = vld [vmem:[%s471 + $0x134] sm:$0x1]
  %v639 = vld [vmem:[%s471 + $0x138] sm:$0xf]
  %v640 = vld [vmem:[%s471 + $0x13c] sm:$0x1]
  %v641 = vld [vmem:[%s471 + $0x140] sm:$0xf]
  %v642 = vld [vmem:[%s471 + $0x144] sm:$0x1]
  %v643 = vld [vmem:[%s471 + $0x148] sm:$0xf]
  %v644 = vld [vmem:[%s471 + $0x14c] sm:$0x1]
  %v645 = vld [vmem:[%s471 + $0x150] sm:$0xf]
  %v646 = vld [vmem:[%s471 + $0x154] sm:$0x1]
  %v647 = vld [vmem:[%s471 + $0x158] sm:$0xf]
  %v648 = vld [vmem:[%s471 + $0x15c] sm:$0x1]
  %v650 = vshrl.u32 %v617, 16
  %v652 = vrot.slane %v650, 4
  %v653 = vshll.u32 %v617, 16
  %v655 = vrot.slane %v653, 5
  %v656 = vor.u32 %v652, %v655
  %v657 = vrot.slane %v656, 4
  %v659 = vshll.u32 %v618, 16
  %v661 = vrot.slane %v659, 5
  %v662 = vsel %vm206, %v657, %v661
  %v664 = vshrl.u32 %v619, 16
  %v666 = vrot.slane %v664, 4
  %v667 = vshll.u32 %v619, 16
  %v669 = vrot.slane %v667, 5
  %v670 = vor.u32 %v666, %v669
  %v671 = vrot.slane %v670, 4
  %v673 = vshll.u32 %v620, 16
  %v675 = vrot.slane %v673, 5
  %v676 = vsel %vm206, %v671, %v675
  %v678 = vshrl.u32 %v621, 16
  %v680 = vrot.slane %v678, 4
  %v681 = vshll.u32 %v621, 16
  %v683 = vrot.slane %v681, 5
  %v684 = vor.u32 %v680, %v683
  %v685 = vrot.slane %v684, 4
  %v687 = vshll.u32 %v622, 16
  %v689 = vrot.slane %v687, 5
  %v690 = vsel %vm206, %v685, %v689
  %v692 = vshrl.u32 %v623, 16
  %v694 = vrot.slane %v692, 4
  %v695 = vshll.u32 %v623, 16
  %v697 = vrot.slane %v695, 5
  %v698 = vor.u32 %v694, %v697
  %v699 = vrot.slane %v698, 4
  %v701 = vshll.u32 %v624, 16
  %v703 = vrot.slane %v701, 5
  %v704 = vsel %vm206, %v699, %v703
  %v706 = vshrl.u32 %v625, 16
  %v708 = vrot.slane %v706, 4
  %v709 = vshll.u32 %v625, 16
  %v711 = vrot.slane %v709, 5
  %v712 = vor.u32 %v708, %v711
  %v713 = vrot.slane %v712, 4
  %v715 = vshll.u32 %v626, 16
  %v717 = vrot.slane %v715, 5
  %v718 = vsel %vm206, %v713, %v717
  %v720 = vshrl.u32 %v627, 16
  %v722 = vrot.slane %v720, 4
  %v723 = vshll.u32 %v627, 16
  %v725 = vrot.slane %v723, 5
  %v726 = vor.u32 %v722, %v725
  %v727 = vrot.slane %v726, 4
  %v729 = vshll.u32 %v628, 16
  %v731 = vrot.slane %v729, 5
  %v732 = vsel %vm206, %v727, %v731
  %v734 = vshrl.u32 %v629, 16
  %v736 = vrot.slane %v734, 4
  %v737 = vshll.u32 %v629, 16
  %v739 = vrot.slane %v737, 5
  %v740 = vor.u32 %v736, %v739
  %v741 = vrot.slane %v740, 4
  %v743 = vshll.u32 %v630, 16
  %v745 = vrot.slane %v743, 5
  %v746 = vsel %vm206, %v741, %v745
  %v748 = vshrl.u32 %v631, 16
  %v750 = vrot.slane %v748, 4
  %v751 = vshll.u32 %v631, 16
  %v753 = vrot.slane %v751, 5
  %v754 = vor.u32 %v750, %v753
  %v755 = vrot.slane %v754, 4
  %v757 = vshll.u32 %v632, 16
  %v759 = vrot.slane %v757, 5
  %v760 = vsel %vm206, %v755, %v759
  %v762 = vshrl.u32 %v633, 16
  %v764 = vrot.slane %v762, 4
  %v765 = vshll.u32 %v633, 16
  %v767 = vrot.slane %v765, 5
  %v768 = vor.u32 %v764, %v767
  %v769 = vrot.slane %v768, 4
  %v771 = vshll.u32 %v634, 16
  %v773 = vrot.slane %v771, 5
  %v774 = vsel %vm206, %v769, %v773
  %v776 = vshrl.u32 %v635, 16
  %v778 = vrot.slane %v776, 4
  %v779 = vshll.u32 %v635, 16
  %v781 = vrot.slane %v779, 5
  %v782 = vor.u32 %v778, %v781
  %v783 = vrot.slane %v782, 4
  %v785 = vshll.u32 %v636, 16
  %v787 = vrot.slane %v785, 5
  %v788 = vsel %vm206, %v783, %v787
  %v790 = vshrl.u32 %v637, 16
  %v792 = vrot.slane %v790, 4
  %v793 = vshll.u32 %v637, 16
  %v795 = vrot.slane %v793, 5
  %v796 = vor.u32 %v792, %v795
  %v797 = vrot.slane %v796, 4
  %v799 = vshll.u32 %v638, 16
  %v801 = vrot.slane %v799, 5
  %v802 = vsel %vm206, %v797, %v801
  %v804 = vshrl.u32 %v639, 16
  %v806 = vrot.slane %v804, 4
  %v807 = vshll.u32 %v639, 16
  %v809 = vrot.slane %v807, 5
  %v810 = vor.u32 %v806, %v809
  %v811 = vrot.slane %v810, 4
  %v813 = vshll.u32 %v640, 16
  %v815 = vrot.slane %v813, 5
  %v816 = vsel %vm206, %v811, %v815
  %v818 = vshrl.u32 %v641, 16
  %v820 = vrot.slane %v818, 4
  %v821 = vshll.u32 %v641, 16
  %v823 = vrot.slane %v821, 5
  %v824 = vor.u32 %v820, %v823
  %v825 = vrot.slane %v824, 4
  %v827 = vshll.u32 %v642, 16
  %v829 = vrot.slane %v827, 5
  %v830 = vsel %vm206, %v825, %v829
  %v832 = vshrl.u32 %v643, 16
  %v834 = vrot.slane %v832, 4
  %v835 = vshll.u32 %v643, 16
  %v837 = vrot.slane %v835, 5
  %v838 = vor.u32 %v834, %v837
  %v839 = vrot.slane %v838, 4
  %v841 = vshll.u32 %v644, 16
  %v843 = vrot.slane %v841, 5
  %v844 = vsel %vm206, %v839, %v843
  %v846 = vshrl.u32 %v645, 16
  %v848 = vrot.slane %v846, 4
  %v849 = vshll.u32 %v645, 16
  %v851 = vrot.slane %v849, 5
  %v852 = vor.u32 %v848, %v851
  %v853 = vrot.slane %v852, 4
  %v855 = vshll.u32 %v646, 16
  %v857 = vrot.slane %v855, 5
  %v858 = vsel %vm206, %v853, %v857
  %v860 = vshrl.u32 %v647, 16
  %v862 = vrot.slane %v860, 4
  %v863 = vshll.u32 %v647, 16
  %v865 = vrot.slane %v863, 5
  %v866 = vor.u32 %v862, %v865
  %v867 = vrot.slane %v866, 4
  %v869 = vshll.u32 %v648, 16
  %v871 = vrot.slane %v869, 5
  %v872 = vsel %vm206, %v867, %v871
  %v873 = vunpack.c.l.b16 %v662
  %v874 = vunpack.c.l.b16 %v676
  %v875 = vunpack.c.l.b16 %v690
  %v876 = vunpack.c.l.b16 %v704
  %v877 = vunpack.c.l.b16 %v718
  %v878 = vunpack.c.l.b16 %v732
  %v879 = vunpack.c.l.b16 %v746
  %v880 = vunpack.c.l.b16 %v760
  %v881 = vunpack.c.l.b16 %v774
  %v882 = vunpack.c.l.b16 %v788
  %v883 = vunpack.c.l.b16 %v802
  %v884 = vunpack.c.l.b16 %v816
  %v885 = vunpack.c.l.b16 %v830
  %v886 = vunpack.c.l.b16 %v844
  %v887 = vunpack.c.l.b16 %v858
  %v888 = vunpack.c.l.b16 %v872
  %v889 = vpack.c.b16 %v874, %v873
  %v890 = vpack.c.b16 %v876, %v875
  %v891 = vpack.c.b16 %v878, %v877
  %v892 = vpack.c.b16 %v880, %v879
  %v893 = vpack.c.b16 %v882, %v881
  %v894 = vpack.c.b16 %v884, %v883
  %v895 = vpack.c.b16 %v886, %v885
  %v896 = vpack.c.b16 %v888, %v887
  %905 = vst [vmem:[#allocation2 + $0x28] sm:$0xff] %v889
  %906 = vst [vmem:[#allocation2 + $0x70] sm:$0xff] %v890
  %907 = vst [vmem:[#allocation2 + $0xb8] sm:$0xff] %v891
  %908 = vst [vmem:[#allocation2 + $0x100] sm:$0xff] %v892
  %909 = vst [vmem:[#allocation2 + $0x148] sm:$0xff] %v893
  %910 = vst [vmem:[#allocation2 + $0x190] sm:$0xff] %v894
  %911 = vst [vmem:[#allocation2 + $0x1d8] sm:$0xff] %v895
  %912 = vst [vmem:[#allocation2 + $0x220] sm:$0xff] %v896
  %s913 = scalar_lea.vmem %s0, 8
  %v914 = vld [vmem:[%s913] sm:$0xf]
  %v915 = vld [vmem:[%s913 + $0x8] sm:$0xf]
  %v916 = vld [vmem:[%s913 + $0x10] sm:$0xf]
  %v917 = vld [vmem:[%s913 + $0x18] sm:$0xf]
  %v918 = vld [vmem:[%s913 + $0x20] sm:$0xf]
  %v919 = vld [vmem:[%s913 + $0x28] sm:$0xf]
  %v920 = vld [vmem:[%s913 + $0x30] sm:$0xf]
  %v921 = vld [vmem:[%s913 + $0x38] sm:$0xf]
  %v922 = vld [vmem:[%s913 + $0x120] sm:$0xf]
  %v923 = vld [vmem:[%s913 + $0x128] sm:$0xf]
  %v924 = vld [vmem:[%s913 + $0x130] sm:$0xf]
  %v925 = vld [vmem:[%s913 + $0x138] sm:$0xf]
  %v926 = vld [vmem:[%s913 + $0x140] sm:$0xf]
  %v927 = vld [vmem:[%s913 + $0x148] sm:$0xf]
  %v928 = vld [vmem:[%s913 + $0x150] sm:$0xf]
  %v929 = vld [vmem:[%s913 + $0x158] sm:$0xf]
  %v946 = vunpack.c.l.b16 %v914
  %v947 = vunpack.c.l.b16 %v915
  %v948 = vunpack.c.l.b16 %v916
  %v949 = vunpack.c.l.b16 %v917
  %v950 = vunpack.c.l.b16 %v918
  %v951 = vunpack.c.l.b16 %v919
  %v952 = vunpack.c.l.b16 %v920
  %v953 = vunpack.c.l.b16 %v921
  %v954 = vunpack.c.l.b16 %v922
  %v955 = vunpack.c.l.b16 %v923
  %v956 = vunpack.c.l.b16 %v924
  %v957 = vunpack.c.l.b16 %v925
  %v958 = vunpack.c.l.b16 %v926
  %v959 = vunpack.c.l.b16 %v927
  %v960 = vunpack.c.l.b16 %v928
  %v961 = vunpack.c.l.b16 %v929
  %v962 = vpack.c.b16 %v947, %v946
  %v963 = vpack.c.b16 %v949, %v948
  %v964 = vpack.c.b16 %v951, %v950
  %v965 = vpack.c.b16 %v953, %v952
  %v966 = vpack.c.b16 %v955, %v954
  %v967 = vpack.c.b16 %v957, %v956
  %v968 = vpack.c.b16 %v959, %v958
  %v969 = vpack.c.b16 %v961, %v960
  %978 = vst [vmem:[#allocation2 + $0x30] sm:$0xff] %v962
  %979 = vst [vmem:[#allocation2 + $0x78] sm:$0xff] %v963
  %980 = vst [vmem:[#allocation2 + $0xc0] sm:$0xff] %v964
  %981 = vst [vmem:[#allocation2 + $0x108] sm:$0xff] %v965
  %982 = vst [vmem:[#allocation2 + $0x150] sm:$0xff] %v966
  %983 = vst [vmem:[#allocation2 + $0x198] sm:$0xff] %v967
  %984 = vst [vmem:[#allocation2 + $0x1e0] sm:$0xff] %v968
  %985 = vst [vmem:[#allocation2 + $0x228] sm:$0xff] %v969
  %s986 = scalar_lea.vmem %s0, 80
  %v987 = vld [vmem:[%s986] sm:$0xf]
  %v988 = vld [vmem:[%s986 + $0x8] sm:$0xf]
  %v989 = vld [vmem:[%s986 + $0x10] sm:$0xf]
  %v990 = vld [vmem:[%s986 + $0x18] sm:$0xf]
  %v991 = vld [vmem:[%s986 + $0x20] sm:$0xf]
  %v992 = vld [vmem:[%s986 + $0x28] sm:$0xf]
  %v993 = vld [vmem:[%s986 + $0x30] sm:$0xf]
  %v994 = vld [vmem:[%s986 + $0x38] sm:$0xf]
  %v995 = vld [vmem:[%s986 + $0x120] sm:$0xf]
  %v996 = vld [vmem:[%s986 + $0x128] sm:$0xf]
  %v997 = vld [vmem:[%s986 + $0x130] sm:$0xf]
  %v998 = vld [vmem:[%s986 + $0x138] sm:$0xf]
  %v999 = vld [vmem:[%s986 + $0x140] sm:$0xf]
  %v1000 = vld [vmem:[%s986 + $0x148] sm:$0xf]
  %v1001 = vld [vmem:[%s986 + $0x150] sm:$0xf]
  %v1002 = vld [vmem:[%s986 + $0x158] sm:$0xf]
  %v1019 = vunpack.c.l.b16 %v987
  %v1020 = vunpack.c.l.b16 %v988
  %v1021 = vunpack.c.l.b16 %v989
  %v1022 = vunpack.c.l.b16 %v990
  %v1023 = vunpack.c.l.b16 %v991
  %v1024 = vunpack.c.l.b16 %v992
  %v1025 = vunpack.c.l.b16 %v993
  %v1026 = vunpack.c.l.b16 %v994
  %v1027 = vunpack.c.l.b16 %v995
  %v1028 = vunpack.c.l.b16 %v996
  %v1029 = vunpack.c.l.b16 %v997
  %v1030 = vunpack.c.l.b16 %v998
  %v1031 = vunpack.c.l.b16 %v999
  %v1032 = vunpack.c.l.b16 %v1000
  %v1033 = vunpack.c.l.b16 %v1001
  %v1034 = vunpack.c.l.b16 %v1002
  %v1035 = vpack.c.b16 %v1020, %v1019
  %v1036 = vpack.c.b16 %v1022, %v1021
  %v1037 = vpack.c.b16 %v1024, %v1023
  %v1038 = vpack.c.b16 %v1026, %v1025
  %v1039 = vpack.c.b16 %v1028, %v1027
  %v1040 = vpack.c.b16 %v1030, %v1029
  %v1041 = vpack.c.b16 %v1032, %v1031
  %v1042 = vpack.c.b16 %v1034, %v1033
  %1051 = vst [vmem:[#allocation2 + $0x38] sm:$0xff] %v1035
  %1052 = vst [vmem:[#allocation2 + $0x80] sm:$0xff] %v1036
  %1053 = vst [vmem:[#allocation2 + $0xc8] sm:$0xff] %v1037
  %1054 = vst [vmem:[#allocation2 + $0x110] sm:$0xff] %v1038
  %1055 = vst [vmem:[#allocation2 + $0x158] sm:$0xff] %v1039
  %1056 = vst [vmem:[#allocation2 + $0x1a0] sm:$0xff] %v1040
  %1057 = vst [vmem:[#allocation2 + $0x1e8] sm:$0xff] %v1041
  %1058 = vst [vmem:[#allocation2 + $0x230] sm:$0xff] %v1042
  %v1059 = vld [vmem:[%s913] sm:$0xf]
  %v1060 = vld [vmem:[%s913 + $0x4] sm:$0x1]
  %v1061 = vld [vmem:[%s913 + $0x8] sm:$0xf]
  %v1062 = vld [vmem:[%s913 + $0xc] sm:$0x1]
  %v1063 = vld [vmem:[%s913 + $0x10] sm:$0xf]
  %v1064 = vld [vmem:[%s913 + $0x14] sm:$0x1]
  %v1065 = vld [vmem:[%s913 + $0x18] sm:$0xf]
  %v1066 = vld [vmem:[%s913 + $0x1c] sm:$0x1]
  %v1067 = vld [vmem:[%s913 + $0x20] sm:$0xf]
  %v1068 = vld [vmem:[%s913 + $0x24] sm:$0x1]
  %v1069 = vld [vmem:[%s913 + $0x28] sm:$0xf]
  %v1070 = vld [vmem:[%s913 + $0x2c] sm:$0x1]
  %v1071 = vld [vmem:[%s913 + $0x30] sm:$0xf]
  %v1072 = vld [vmem:[%s913 + $0x34] sm:$0x1]
  %v1073 = vld [vmem:[%s913 + $0x38] sm:$0xf]
  %v1074 = vld [vmem:[%s913 + $0x3c] sm:$0x1]
  %v1075 = vld [vmem:[%s913 + $0x120] sm:$0xf]
  %v1076 = vld [vmem:[%s913 + $0x124] sm:$0x1]
  %v1077 = vld [vmem:[%s913 + $0x128] sm:$0xf]
  %v1078 = vld [vmem:[%s913 + $0x12c] sm:$0x1]
  %v1079 = vld [vmem:[%s913 + $0x130] sm:$0xf]
  %v1080 = vld [vmem:[%s913 + $0x134] sm:$0x1]
  %v1081 = vld [vmem:[%s913 + $0x138] sm:$0xf]
  %v1082 = vld [vmem:[%s913 + $0x13c] sm:$0x1]
  %v1083 = vld [vmem:[%s913 + $0x140] sm:$0xf]
  %v1084 = vld [vmem:[%s913 + $0x144] sm:$0x1]
  %v1085 = vld [vmem:[%s913 + $0x148] sm:$0xf]
  %v1086 = vld [vmem:[%s913 + $0x14c] sm:$0x1]
  %v1087 = vld [vmem:[%s913 + $0x150] sm:$0xf]
  %v1088 = vld [vmem:[%s913 + $0x154] sm:$0x1]
  %v1089 = vld [vmem:[%s913 + $0x158] sm:$0xf]
  %v1090 = vld [vmem:[%s913 + $0x15c] sm:$0x1]
  %v1092 = vshrl.u32 %v1059, 16
  %v1094 = vrot.slane %v1092, 4
  %v1095 = vshll.u32 %v1059, 16
  %v1097 = vrot.slane %v1095, 5
  %v1098 = vor.u32 %v1094, %v1097
  %v1099 = vrot.slane %v1098, 4
  %v1101 = vshll.u32 %v1060, 16
  %v1103 = vrot.slane %v1101, 5
  %v1104 = vsel %vm206, %v1099, %v1103
  %v1106 = vshrl.u32 %v1061, 16
  %v1108 = vrot.slane %v1106, 4
  %v1109 = vshll.u32 %v1061, 16
  %v1111 = vrot.slane %v1109, 5
  %v1112 = vor.u32 %v1108, %v1111
  %v1113 = vrot.slane %v1112, 4
  %v1115 = vshll.u32 %v1062, 16
  %v1117 = vrot.slane %v1115, 5
  %v1118 = vsel %vm206, %v1113, %v1117
  %v1120 = vshrl.u32 %v1063, 16
  %v1122 = vrot.slane %v1120, 4
  %v1123 = vshll.u32 %v1063, 16
  %v1125 = vrot.slane %v1123, 5
  %v1126 = vor.u32 %v1122, %v1125
  %v1127 = vrot.slane %v1126, 4
  %v1129 = vshll.u32 %v1064, 16
  %v1131 = vrot.slane %v1129, 5
  %v1132 = vsel %vm206, %v1127, %v1131
  %v1134 = vshrl.u32 %v1065, 16
  %v1136 = vrot.slane %v1134, 4
  %v1137 = vshll.u32 %v1065, 16
  %v1139 = vrot.slane %v1137, 5
  %v1140 = vor.u32 %v1136, %v1139
  %v1141 = vrot.slane %v1140, 4
  %v1143 = vshll.u32 %v1066, 16
  %v1145 = vrot.slane %v1143, 5
  %v1146 = vsel %vm206, %v1141, %v1145
  %v1148 = vshrl.u32 %v1067, 16
  %v1150 = vrot.slane %v1148, 4
  %v1151 = vshll.u32 %v1067, 16
  %v1153 = vrot.slane %v1151, 5
  %v1154 = vor.u32 %v1150, %v1153
  %v1155 = vrot.slane %v1154, 4
  %v1157 = vshll.u32 %v1068, 16
  %v1159 = vrot.slane %v1157, 5
  %v1160 = vsel %vm206, %v1155, %v1159
  %v1162 = vshrl.u32 %v1069, 16
  %v1164 = vrot.slane %v1162, 4
  %v1165 = vshll.u32 %v1069, 16
  %v1167 = vrot.slane %v1165, 5
  %v1168 = vor.u32 %v1164, %v1167
  %v1169 = vrot.slane %v1168, 4
  %v1171 = vshll.u32 %v1070, 16
  %v1173 = vrot.slane %v1171, 5
  %v1174 = vsel %vm206, %v1169, %v1173
  %v1176 = vshrl.u32 %v1071, 16
  %v1178 = vrot.slane %v1176, 4
  %v1179 = vshll.u32 %v1071, 16
  %v1181 = vrot.slane %v1179, 5
  %v1182 = vor.u32 %v1178, %v1181
  %v1183 = vrot.slane %v1182, 4
  %v1185 = vshll.u32 %v1072, 16
  %v1187 = vrot.slane %v1185, 5
  %v1188 = vsel %vm206, %v1183, %v1187
  %v1190 = vshrl.u32 %v1073, 16
  %v1192 = vrot.slane %v1190, 4
  %v1193 = vshll.u32 %v1073, 16
  %v1195 = vrot.slane %v1193, 5
  %v1196 = vor.u32 %v1192, %v1195
  %v1197 = vrot.slane %v1196, 4
  %v1199 = vshll.u32 %v1074, 16
  %v1201 = vrot.slane %v1199, 5
  %v1202 = vsel %vm206, %v1197, %v1201
  %v1204 = vshrl.u32 %v1075, 16
  %v1206 = vrot.slane %v1204, 4
  %v1207 = vshll.u32 %v1075, 16
  %v1209 = vrot.slane %v1207, 5
  %v1210 = vor.u32 %v1206, %v1209
  %v1211 = vrot.slane %v1210, 4
  %v1213 = vshll.u32 %v1076, 16
  %v1215 = vrot.slane %v1213, 5
  %v1216 = vsel %vm206, %v1211, %v1215
  %v1218 = vshrl.u32 %v1077, 16
  %v1220 = vrot.slane %v1218, 4
  %v1221 = vshll.u32 %v1077, 16
  %v1223 = vrot.slane %v1221, 5
  %v1224 = vor.u32 %v1220, %v1223
  %v1225 = vrot.slane %v1224, 4
  %v1227 = vshll.u32 %v1078, 16
  %v1229 = vrot.slane %v1227, 5
  %v1230 = vsel %vm206, %v1225, %v1229
  %v1232 = vshrl.u32 %v1079, 16
  %v1234 = vrot.slane %v1232, 4
  %v1235 = vshll.u32 %v1079, 16
  %v1237 = vrot.slane %v1235, 5
  %v1238 = vor.u32 %v1234, %v1237
  %v1239 = vrot.slane %v1238, 4
  %v1241 = vshll.u32 %v1080, 16
  %v1243 = vrot.slane %v1241, 5
  %v1244 = vsel %vm206, %v1239, %v1243
  %v1246 = vshrl.u32 %v1081, 16
  %v1248 = vrot.slane %v1246, 4
  %v1249 = vshll.u32 %v1081, 16
  %v1251 = vrot.slane %v1249, 5
  %v1252 = vor.u32 %v1248, %v1251
  %v1253 = vrot.slane %v1252, 4
  %v1255 = vshll.u32 %v1082, 16
  %v1257 = vrot.slane %v1255, 5
  %v1258 = vsel %vm206, %v1253, %v1257
  %v1260 = vshrl.u32 %v1083, 16
  %v1262 = vrot.slane %v1260, 4
  %v1263 = vshll.u32 %v1083, 16
  %v1265 = vrot.slane %v1263, 5
  %v1266 = vor.u32 %v1262, %v1265
  %v1267 = vrot.slane %v1266, 4
  %v1269 = vshll.u32 %v1084, 16
  %v1271 = vrot.slane %v1269, 5
  %v1272 = vsel %vm206, %v1267, %v1271
  %v1274 = vshrl.u32 %v1085, 16
  %v1276 = vrot.slane %v1274, 4
  %v1277 = vshll.u32 %v1085, 16
  %v1279 = vrot.slane %v1277, 5
  %v1280 = vor.u32 %v1276, %v1279
  %v1281 = vrot.slane %v1280, 4
  %v1283 = vshll.u32 %v1086, 16
  %v1285 = vrot.slane %v1283, 5
  %v1286 = vsel %vm206, %v1281, %v1285
  %v1288 = vshrl.u32 %v1087, 16
  %v1290 = vrot.slane %v1288, 4
  %v1291 = vshll.u32 %v1087, 16
  %v1293 = vrot.slane %v1291, 5
  %v1294 = vor.u32 %v1290, %v1293
  %v1295 = vrot.slane %v1294, 4
  %v1297 = vshll.u32 %v1088, 16
  %v1299 = vrot.slane %v1297, 5
  %v1300 = vsel %vm206, %v1295, %v1299
  %v1302 = vshrl.u32 %v1089, 16
  %v1304 = vrot.slane %v1302, 4
  %v1305 = vshll.u32 %v1089, 16
  %v1307 = vrot.slane %v1305, 5
  %v1308 = vor.u32 %v1304, %v1307
  %v1309 = vrot.slane %v1308, 4
  %v1311 = vshll.u32 %v1090, 16
  %v1313 = vrot.slane %v1311, 5
  %v1314 = vsel %vm206, %v1309, %v1313
  %v1315 = vunpack.c.l.b16 %v1104
  %v1316 = vunpack.c.l.b16 %v1118
  %v1317 = vunpack.c.l.b16 %v1132
  %v1318 = vunpack.c.l.b16 %v1146
  %v1319 = vunpack.c.l.b16 %v1160
  %v1320 = vunpack.c.l.b16 %v1174
  %v1321 = vunpack.c.l.b16 %v1188
  %v1322 = vunpack.c.l.b16 %v1202
  %v1323 = vunpack.c.l.b16 %v1216
  %v1324 = vunpack.c.l.b16 %v1230
  %v1325 = vunpack.c.l.b16 %v1244
  %v1326 = vunpack.c.l.b16 %v1258
  %v1327 = vunpack.c.l.b16 %v1272
  %v1328 = vunpack.c.l.b16 %v1286
  %v1329 = vunpack.c.l.b16 %v1300
  %v1330 = vunpack.c.l.b16 %v1314
  %v1331 = vpack.c.b16 %v1316, %v1315
  %v1332 = vpack.c.b16 %v1318, %v1317
  %v1333 = vpack.c.b16 %v1320, %v1319
  %v1334 = vpack.c.b16 %v1322, %v1321
  %v1335 = vpack.c.b16 %v1324, %v1323
  %v1336 = vpack.c.b16 %v1326, %v1325
  %v1337 = vpack.c.b16 %v1328, %v1327
  %v1338 = vpack.c.b16 %v1330, %v1329
  %1347 = vst [vmem:[#allocation2 + $0x40] sm:$0xff] %v1331
  %1348 = vst [vmem:[#allocation2 + $0x88] sm:$0xff] %v1332
  %1349 = vst [vmem:[#allocation2 + $0xd0] sm:$0xff] %v1333
  %1350 = vst [vmem:[#allocation2 + $0x118] sm:$0xff] %v1334
  %1351 = vst [vmem:[#allocation2 + $0x160] sm:$0xff] %v1335
  %1352 = vst [vmem:[#allocation2 + $0x1a8] sm:$0xff] %v1336
  %1353 = vst [vmem:[#allocation2 + $0x1f0] sm:$0xff] %v1337
  %1354 = vst [vmem:[#allocation2 + $0x238] sm:$0xff] %v1338
  %v1355 = vld [vmem:[#allocation2] sm:$0xff]
  %v1356 = vld [vmem:[#allocation2 + $0x8] sm:$0xff]
  %v1357 = vld [vmem:[#allocation2 + $0x10] sm:$0xff]
  %v1358 = vld [vmem:[#allocation2 + $0x18] sm:$0xff]
  %v1359 = vld [vmem:[#allocation2 + $0x20] sm:$0xff]
  %v1360 = vld [vmem:[#allocation2 + $0x28] sm:$0xff]
  %v1361 = vld [vmem:[#allocation2 + $0x30] sm:$0xff]
  %v1362 = vld [vmem:[#allocation2 + $0x38] sm:$0xff]
  %v1363 = vld [vmem:[#allocation2 + $0x40] sm:$0xff]
  %v1364 = vld [vmem:[#allocation2 + $0x48] sm:$0xff]
  %v1365 = vld [vmem:[#allocation2 + $0x50] sm:$0xff]
  %v1366 = vld [vmem:[#allocation2 + $0x58] sm:$0xff]
  %v1367 = vld [vmem:[#allocation2 + $0x60] sm:$0xff]
  %v1368 = vld [vmem:[#allocation2 + $0x68] sm:$0xff]
  %v1369 = vld [vmem:[#allocation2 + $0x70] sm:$0xff]
  %v1370 = vld [vmem:[#allocation2 + $0x78] sm:$0xff]
  %v1371 = vld [vmem:[#allocation2 + $0x80] sm:$0xff]
  %v1372 = vld [vmem:[#allocation2 + $0x88] sm:$0xff]
  %v1373 = vld [vmem:[#allocation2 + $0x90] sm:$0xff]
  %v1374 = vld [vmem:[#allocation2 + $0x98] sm:$0xff]
  %v1375 = vld [vmem:[#allocation2 + $0xa0] sm:$0xff]
  %v1376 = vld [vmem:[#allocation2 + $0xa8] sm:$0xff]
  %v1377 = vld [vmem:[#allocation2 + $0xb0] sm:$0xff]
  %v1378 = vld [vmem:[#allocation2 + $0xb8] sm:$0xff]
  %v1379 = vld [vmem:[#allocation2 + $0xc0] sm:$0xff]
  %v1380 = vld [vmem:[#allocation2 + $0xc8] sm:$0xff]
  %v1381 = vld [vmem:[#allocation2 + $0xd0] sm:$0xff]
  %v1382 = vld [vmem:[#allocation2 + $0xd8] sm:$0xff]
  %v1383 = vld [vmem:[#allocation2 + $0xe0] sm:$0xff]
  %v1384 = vld [vmem:[#allocation2 + $0xe8] sm:$0xff]
  %v1385 = vld [vmem:[#allocation2 + $0xf0] sm:$0xff]
  %v1386 = vld [vmem:[#allocation2 + $0xf8] sm:$0xff]
  %v1387 = vld [vmem:[#allocation2 + $0x100] sm:$0xff]
  %v1388 = vld [vmem:[#allocation2 + $0x108] sm:$0xff]
  %v1389 = vld [vmem:[#allocation2 + $0x110] sm:$0xff]
  %v1390 = vld [vmem:[#allocation2 + $0x118] sm:$0xff]
  %v1391 = vld [vmem:[#allocation2 + $0x120] sm:$0xff]
  %v1392 = vld [vmem:[#allocation2 + $0x128] sm:$0xff]
  %v1393 = vld [vmem:[#allocation2 + $0x130] sm:$0xff]
  %v1394 = vld [vmem:[#allocation2 + $0x138] sm:$0xff]
  %v1395 = vld [vmem:[#allocation2 + $0x140] sm:$0xff]
  %v1396 = vld [vmem:[#allocation2 + $0x148] sm:$0xff]
  %v1397 = vld [vmem:[#allocation2 + $0x150] sm:$0xff]
  %v1398 = vld [vmem:[#allocation2 + $0x158] sm:$0xff]
  %v1399 = vld [vmem:[#allocation2 + $0x160] sm:$0xff]
  %v1400 = vld [vmem:[#allocation2 + $0x168] sm:$0xff]
  %v1401 = vld [vmem:[#allocation2 + $0x170] sm:$0xff]
  %v1402 = vld [vmem:[#allocation2 + $0x178] sm:$0xff]
  %v1403 = vld [vmem:[#allocation2 + $0x180] sm:$0xff]
  %v1404 = vld [vmem:[#allocation2 + $0x188] sm:$0xff]
  %v1405 = vld [vmem:[#allocation2 + $0x190] sm:$0xff]
  %v1406 = vld [vmem:[#allocation2 + $0x198] sm:$0xff]
  %v1407 = vld [vmem:[#allocation2 + $0x1a0] sm:$0xff]
  %v1408 = vld [vmem:[#allocation2 + $0x1a8] sm:$0xff]
  %v1409 = vld [vmem:[#allocation2 + $0x1b0] sm:$0xff]
  %v1410 = vld [vmem:[#allocation2 + $0x1b8] sm:$0xff]
  %v1411 = vld [vmem:[#allocation2 + $0x1c0] sm:$0xff]
  %v1412 = vld [vmem:[#allocation2 + $0x1c8] sm:$0xff]
  %v1413 = vld [vmem:[#allocation2 + $0x1d0] sm:$0xff]
  %v1414 = vld [vmem:[#allocation2 + $0x1d8] sm:$0xff]
  %v1415 = vld [vmem:[#allocation2 + $0x1e0] sm:$0xff]
  %v1416 = vld [vmem:[#allocation2 + $0x1e8] sm:$0xff]
  %v1417 = vld [vmem:[#allocation2 + $0x1f0] sm:$0xff]
  %v1418 = vld [vmem:[#allocation2 + $0x1f8] sm:$0xff]
  %v1419 = vld [vmem:[#allocation2 + $0x200] sm:$0xff]
  %v1420 = vld [vmem:[#allocation2 + $0x208] sm:$0xff]
  %v1421 = vld [vmem:[#allocation2 + $0x210] sm:$0xff]
  %v1422 = vld [vmem:[#allocation2 + $0x218] sm:$0xff]
  %v1423 = vld [vmem:[#allocation2 + $0x220] sm:$0xff]
  %v1424 = vld [vmem:[#allocation2 + $0x228] sm:$0xff]
  %v1425 = vld [vmem:[#allocation2 + $0x230] sm:$0xff]
  %v1426 = vld [vmem:[#allocation2 + $0x238] sm:$0xff]
  %v1427 = vld [vmem:[%s1] sm:$0xf]
  %v1428 = vld [vmem:[%s1 + $0x4] sm:$0xf]
  %v1429 = vld [vmem:[%s1 + $0x8] sm:$0xf]
  %v1430 = vld [vmem:[%s1 + $0xc] sm:$0xf]
  %v1431 = vld [vmem:[%s1 + $0x10] sm:$0xf]
  %v1432 = vld [vmem:[%s1 + $0x14] sm:$0xf]
  %v1433 = vld [vmem:[%s1 + $0x18] sm:$0xf]
  %v1434 = vld [vmem:[%s1 + $0x1c] sm:$0xf]
  %v1435 = vld [vmem:[%s1 + $0x20] sm:$0xf]
  %v1436 = vld [vmem:[%s1 + $0x24] sm:$0xf]
  %v1437 = vld [vmem:[%s1 + $0x28] sm:$0xf]
  %v1438 = vld [vmem:[%s1 + $0x2c] sm:$0xf]
  %v1439 = vld [vmem:[%s1 + $0x30] sm:$0xf]
  %v1440 = vld [vmem:[%s1 + $0x34] sm:$0xf]
  %v1441 = vld [vmem:[%s1 + $0x38] sm:$0xf]
  %v1442 = vld [vmem:[%s1 + $0x3c] sm:$0xf]
  %v1443 = vld [vmem:[%s1 + $0x40] sm:$0xf]
  %v1444 = vld [vmem:[%s1 + $0x44] sm:$0xf]
  %v1445 = vld [vmem:[%s1 + $0x48] sm:$0xf]
  %v1446 = vld [vmem:[%s1 + $0x4c] sm:$0xf]
  %v1447 = vld [vmem:[%s1 + $0x50] sm:$0xf]
  %v1448 = vld [vmem:[%s1 + $0x54] sm:$0xf]
  %v1449 = vld [vmem:[%s1 + $0x58] sm:$0xf]
  %v1450 = vld [vmem:[%s1 + $0x5c] sm:$0xf]
  %v1451 = vld [vmem:[%s1 + $0x60] sm:$0xf]
  %v1452 = vld [vmem:[%s1 + $0x64] sm:$0xf]
  %v1453 = vld [vmem:[%s1 + $0x68] sm:$0xf]
  %v1454 = vld [vmem:[%s1 + $0x6c] sm:$0xf]
  %v1455 = vld [vmem:[%s1 + $0x70] sm:$0xf]
  %v1456 = vld [vmem:[%s1 + $0x74] sm:$0xf]
  %v1457 = vld [vmem:[%s1 + $0x78] sm:$0xf]
  %v1458 = vld [vmem:[%s1 + $0x7c] sm:$0xf]
  %v1459 = vld [vmem:[%s1 + $0x80] sm:$0xf]
  %v1460 = vld [vmem:[%s1 + $0x84] sm:$0xf]
  %v1461 = vld [vmem:[%s1 + $0x88] sm:$0xf]
  %v1462 = vld [vmem:[%s1 + $0x8c] sm:$0xf]
  %v1463 = vld [vmem:[%s1 + $0x90] sm:$0xf]
  %v1464 = vld [vmem:[%s1 + $0x94] sm:$0xf]
  %v1465 = vld [vmem:[%s1 + $0x98] sm:$0xf]
  %v1466 = vld [vmem:[%s1 + $0x9c] sm:$0xf]
  %v1467 = vld [vmem:[%s1 + $0xa0] sm:$0xf]
  %v1468 = vld [vmem:[%s1 + $0xa4] sm:$0xf]
  %v1469 = vld [vmem:[%s1 + $0xa8] sm:$0xf]
  %v1470 = vld [vmem:[%s1 + $0xac] sm:$0xf]
  %v1471 = vld [vmem:[%s1 + $0xb0] sm:$0xf]
  %v1472 = vld [vmem:[%s1 + $0xb4] sm:$0xf]
  %v1473 = vld [vmem:[%s1 + $0xb8] sm:$0xf]
  %v1474 = vld [vmem:[%s1 + $0xbc] sm:$0xf]
  %v1475 = vld [vmem:[%s1 + $0xc0] sm:$0xf]
  %v1476 = vld [vmem:[%s1 + $0xc4] sm:$0xf]
  %v1477 = vld [vmem:[%s1 + $0xc8] sm:$0xf]
  %v1478 = vld [vmem:[%s1 + $0xcc] sm:$0xf]
  %v1479 = vld [vmem:[%s1 + $0xd0] sm:$0xf]
  %v1480 = vld [vmem:[%s1 + $0xd4] sm:$0xf]
  %v1481 = vld [vmem:[%s1 + $0xd8] sm:$0xf]
  %v1482 = vld [vmem:[%s1 + $0xdc] sm:$0xf]
  %v1483 = vld [vmem:[%s1 + $0xe0] sm:$0xf]
  %v1484 = vld [vmem:[%s1 + $0xe4] sm:$0xf]
  %v1485 = vld [vmem:[%s1 + $0xe8] sm:$0xf]
  %v1486 = vld [vmem:[%s1 + $0xec] sm:$0xf]
  %v1487 = vld [vmem:[%s1 + $0xf0] sm:$0xf]
  %v1488 = vld [vmem:[%s1 + $0xf4] sm:$0xf]
  %v1489 = vld [vmem:[%s1 + $0xf8] sm:$0xf]
  %v1490 = vld [vmem:[%s1 + $0xfc] sm:$0xf]
  %v1491 = vld [vmem:[%s1 + $0x100] sm:$0xf]
  %v1492 = vld [vmem:[%s1 + $0x104] sm:$0xf]
  %v1493 = vld [vmem:[%s1 + $0x108] sm:$0xf]
  %v1494 = vld [vmem:[%s1 + $0x10c] sm:$0xf]
  %v1495 = vld [vmem:[%s1 + $0x110] sm:$0xf]
  %v1496 = vld [vmem:[%s1 + $0x114] sm:$0xf]
  %v1497 = vld [vmem:[%s1 + $0x118] sm:$0xf]
  %v1498 = vld [vmem:[%s1 + $0x11c] sm:$0xf]
  %v1499 = vld [vmem:[%s1 + $0x120] sm:$0xf]
  %v1500 = vld [vmem:[%s1 + $0x124] sm:$0xf]
  %v1501 = vld [vmem:[%s1 + $0x128] sm:$0xf]
  %v1502 = vld [vmem:[%s1 + $0x12c] sm:$0xf]
  %v1503 = vld [vmem:[%s1 + $0x130] sm:$0xf]
  %v1504 = vld [vmem:[%s1 + $0x134] sm:$0xf]
  %v1505 = vld [vmem:[%s1 + $0x138] sm:$0xf]
  %v1506 = vld [vmem:[%s1 + $0x13c] sm:$0xf]
  %v1507 = vld [vmem:[%s1 + $0x140] sm:$0xf]
  %v1508 = vld [vmem:[%s1 + $0x144] sm:$0xf]
  %v1509 = vld [vmem:[%s1 + $0x148] sm:$0xf]
  %v1510 = vld [vmem:[%s1 + $0x14c] sm:$0xf]
  %v1511 = vld [vmem:[%s1 + $0x150] sm:$0xf]
  %v1512 = vld [vmem:[%s1 + $0x154] sm:$0xf]
  %v1513 = vld [vmem:[%s1 + $0x158] sm:$0xf]
  %v1514 = vld [vmem:[%s1 + $0x15c] sm:$0xf]
  %v1515 = vld [vmem:[%s1 + $0x160] sm:$0xf]
  %v1516 = vld [vmem:[%s1 + $0x164] sm:$0xf]
  %v1517 = vld [vmem:[%s1 + $0x168] sm:$0xf]
  %v1518 = vld [vmem:[%s1 + $0x16c] sm:$0xf]
  %v1519 = vld [vmem:[%s1 + $0x170] sm:$0xf]
  %v1520 = vld [vmem:[%s1 + $0x174] sm:$0xf]
  %v1521 = vld [vmem:[%s1 + $0x178] sm:$0xf]
  %v1522 = vld [vmem:[%s1 + $0x17c] sm:$0xf]
  %v1523 = vld [vmem:[%s1 + $0x180] sm:$0xf]
  %v1524 = vld [vmem:[%s1 + $0x184] sm:$0xf]
  %v1525 = vld [vmem:[%s1 + $0x188] sm:$0xf]
  %v1526 = vld [vmem:[%s1 + $0x18c] sm:$0xf]
  %v1527 = vld [vmem:[%s1 + $0x190] sm:$0xf]
  %v1528 = vld [vmem:[%s1 + $0x194] sm:$0xf]
  %v1529 = vld [vmem:[%s1 + $0x198] sm:$0xf]
  %v1530 = vld [vmem:[%s1 + $0x19c] sm:$0xf]
  %v1531 = vld [vmem:[%s1 + $0x1a0] sm:$0xf]
  %v1532 = vld [vmem:[%s1 + $0x1a4] sm:$0xf]
  %v1533 = vld [vmem:[%s1 + $0x1a8] sm:$0xf]
  %v1534 = vld [vmem:[%s1 + $0x1ac] sm:$0xf]
  %v1535 = vld [vmem:[%s1 + $0x1b0] sm:$0xf]
  %v1536 = vld [vmem:[%s1 + $0x1b4] sm:$0xf]
  %v1537 = vld [vmem:[%s1 + $0x1b8] sm:$0xf]
  %v1538 = vld [vmem:[%s1 + $0x1bc] sm:$0xf]
  %v1539 = vld [vmem:[%s1 + $0x1c0] sm:$0xf]
  %v1540 = vld [vmem:[%s1 + $0x1c4] sm:$0xf]
  %v1541 = vld [vmem:[%s1 + $0x1c8] sm:$0xf]
  %v1542 = vld [vmem:[%s1 + $0x1cc] sm:$0xf]
  %v1543 = vld [vmem:[%s1 + $0x1d0] sm:$0xf]
  %v1544 = vld [vmem:[%s1 + $0x1d4] sm:$0xf]
  %v1545 = vld [vmem:[%s1 + $0x1d8] sm:$0xf]
  %v1546 = vld [vmem:[%s1 + $0x1dc] sm:$0xf]
  %v1547 = vld [vmem:[%s1 + $0x1e0] sm:$0xf]
  %v1548 = vld [vmem:[%s1 + $0x1e4] sm:$0xf]
  %v1549 = vld [vmem:[%s1 + $0x1e8] sm:$0xf]
  %v1550 = vld [vmem:[%s1 + $0x1ec] sm:$0xf]
  %v1551 = vld [vmem:[%s1 + $0x1f0] sm:$0xf]
  %v1552 = vld [vmem:[%s1 + $0x1f4] sm:$0xf]
  %v1553 = vld [vmem:[%s1 + $0x1f8] sm:$0xf]
  %v1554 = vld [vmem:[%s1 + $0x1fc] sm:$0xf]
  %v1555 = vld [vmem:[%s1 + $0x200] sm:$0xf]
  %v1556 = vld [vmem:[%s1 + $0x204] sm:$0xf]
  %v1557 = vld [vmem:[%s1 + $0x208] sm:$0xf]
  %v1558 = vld [vmem:[%s1 + $0x20c] sm:$0xf]
  %v1559 = vld [vmem:[%s1 + $0x210] sm:$0xf]
  %v1560 = vld [vmem:[%s1 + $0x214] sm:$0xf]
  %v1561 = vld [vmem:[%s1 + $0x218] sm:$0xf]
  %v1562 = vld [vmem:[%s1 + $0x21c] sm:$0xf]
  %v1563 = vld [vmem:[%s1 + $0x220] sm:$0xf]
  %v1564 = vld [vmem:[%s1 + $0x224] sm:$0xf]
  %v1565 = vld [vmem:[%s1 + $0x228] sm:$0xf]
  %v1566 = vld [vmem:[%s1 + $0x22c] sm:$0xf]
  %v1567 = vld [vmem:[%s1 + $0x230] sm:$0xf]
  %v1568 = vld [vmem:[%s1 + $0x234] sm:$0xf]
  %v1569 = vld [vmem:[%s1 + $0x238] sm:$0xf]
  %v1570 = vld [vmem:[%s1 + $0x23c] sm:$0xf]
  %v1571 = vld [vmem:[%s2] sm:$0x1]
  %v1573 = vlaneseq
  %v1574 = vshrl.u32 %v1573, 7
  %v1575 = vsub.s32 0, %v1574
  %v1576 = vrot.slane %v1571, %v1575
  %v1722 = vunpack.c.l.b16 %v1427
  %v1723 = vunpack.c.l.b16 %v1428
  %v1724 = vunpack.c.l.b16 %v1429
  %v1725 = vunpack.c.l.b16 %v1430
  %v1726 = vunpack.c.l.b16 %v1431
  %v1727 = vunpack.c.l.b16 %v1432
  %v1728 = vunpack.c.l.b16 %v1433
  %v1729 = vunpack.c.l.b16 %v1434
  %v1730 = vunpack.c.l.b16 %v1435
  %v1731 = vunpack.c.l.b16 %v1436
  %v1732 = vunpack.c.l.b16 %v1437
  %v1733 = vunpack.c.l.b16 %v1438
  %v1734 = vunpack.c.l.b16 %v1439
  %v1735 = vunpack.c.l.b16 %v1440
  %v1736 = vunpack.c.l.b16 %v1441
  %v1737 = vunpack.c.l.b16 %v1442
  %v1738 = vunpack.c.l.b16 %v1443
  %v1739 = vunpack.c.l.b16 %v1444
  %v1740 = vunpack.c.l.b16 %v1445
  %v1741 = vunpack.c.l.b16 %v1446
  %v1742 = vunpack.c.l.b16 %v1447
  %v1743 = vunpack.c.l.b16 %v1448
  %v1744 = vunpack.c.l.b16 %v1449
  %v1745 = vunpack.c.l.b16 %v1450
  %v1746 = vunpack.c.l.b16 %v1451
  %v1747 = vunpack.c.l.b16 %v1452
  %v1748 = vunpack.c.l.b16 %v1453
  %v1749 = vunpack.c.l.b16 %v1454
  %v1750 = vunpack.c.l.b16 %v1455
  %v1751 = vunpack.c.l.b16 %v1456
  %v1752 = vunpack.c.l.b16 %v1457
  %v1753 = vunpack.c.l.b16 %v1458
  %v1754 = vunpack.c.l.b16 %v1459
  %v1755 = vunpack.c.l.b16 %v1460
  %v1756 = vunpack.c.l.b16 %v1461
  %v1757 = vunpack.c.l.b16 %v1462
  %v1758 = vunpack.c.l.b16 %v1463
  %v1759 = vunpack.c.l.b16 %v1464
  %v1760 = vunpack.c.l.b16 %v1465
  %v1761 = vunpack.c.l.b16 %v1466
  %v1762 = vunpack.c.l.b16 %v1467
  %v1763 = vunpack.c.l.b16 %v1468
  %v1764 = vunpack.c.l.b16 %v1469
  %v1765 = vunpack.c.l.b16 %v1470
  %v1766 = vunpack.c.l.b16 %v1471
  %v1767 = vunpack.c.l.b16 %v1472
  %v1768 = vunpack.c.l.b16 %v1473
  %v1769 = vunpack.c.l.b16 %v1474
  %v1770 = vunpack.c.l.b16 %v1475
  %v1771 = vunpack.c.l.b16 %v1476
  %v1772 = vunpack.c.l.b16 %v1477
  %v1773 = vunpack.c.l.b16 %v1478
  %v1774 = vunpack.c.l.b16 %v1479
  %v1775 = vunpack.c.l.b16 %v1480
  %v1776 = vunpack.c.l.b16 %v1481
  %v1777 = vunpack.c.l.b16 %v1482
  %v1778 = vunpack.c.l.b16 %v1483
  %v1779 = vunpack.c.l.b16 %v1484
  %v1780 = vunpack.c.l.b16 %v1485
  %v1781 = vunpack.c.l.b16 %v1486
  %v1782 = vunpack.c.l.b16 %v1487
  %v1783 = vunpack.c.l.b16 %v1488
  %v1784 = vunpack.c.l.b16 %v1489
  %v1785 = vunpack.c.l.b16 %v1490
  %v1786 = vunpack.c.l.b16 %v1491
  %v1787 = vunpack.c.l.b16 %v1492
  %v1788 = vunpack.c.l.b16 %v1493
  %v1789 = vunpack.c.l.b16 %v1494
  %v1790 = vunpack.c.l.b16 %v1495
  %v1791 = vunpack.c.l.b16 %v1496
  %v1792 = vunpack.c.l.b16 %v1497
  %v1793 = vunpack.c.l.b16 %v1498
  %v1794 = vunpack.c.l.b16 %v1499
  %v1795 = vunpack.c.l.b16 %v1500
  %v1796 = vunpack.c.l.b16 %v1501
  %v1797 = vunpack.c.l.b16 %v1502
  %v1798 = vunpack.c.l.b16 %v1503
  %v1799 = vunpack.c.l.b16 %v1504
  %v1800 = vunpack.c.l.b16 %v1505
  %v1801 = vunpack.c.l.b16 %v1506
  %v1802 = vunpack.c.l.b16 %v1507
  %v1803 = vunpack.c.l.b16 %v1508
  %v1804 = vunpack.c.l.b16 %v1509
  %v1805 = vunpack.c.l.b16 %v1510
  %v1806 = vunpack.c.l.b16 %v1511
  %v1807 = vunpack.c.l.b16 %v1512
  %v1808 = vunpack.c.l.b16 %v1513
  %v1809 = vunpack.c.l.b16 %v1514
  %v1810 = vunpack.c.l.b16 %v1515
  %v1811 = vunpack.c.l.b16 %v1516
  %v1812 = vunpack.c.l.b16 %v1517
  %v1813 = vunpack.c.l.b16 %v1518
  %v1814 = vunpack.c.l.b16 %v1519
  %v1815 = vunpack.c.l.b16 %v1520
  %v1816 = vunpack.c.l.b16 %v1521
  %v1817 = vunpack.c.l.b16 %v1522
  %v1818 = vunpack.c.l.b16 %v1523
  %v1819 = vunpack.c.l.b16 %v1524
  %v1820 = vunpack.c.l.b16 %v1525
  %v1821 = vunpack.c.l.b16 %v1526
  %v1822 = vunpack.c.l.b16 %v1527
  %v1823 = vunpack.c.l.b16 %v1528
  %v1824 = vunpack.c.l.b16 %v1529
  %v1825 = vunpack.c.l.b16 %v1530
  %v1826 = vunpack.c.l.b16 %v1531
  %v1827 = vunpack.c.l.b16 %v1532
  %v1828 = vunpack.c.l.b16 %v1533
  %v1829 = vunpack.c.l.b16 %v1534
  %v1830 = vunpack.c.l.b16 %v1535
  %v1831 = vunpack.c.l.b16 %v1536
  %v1832 = vunpack.c.l.b16 %v1537
  %v1833 = vunpack.c.l.b16 %v1538
  %v1834 = vunpack.c.l.b16 %v1539
  %v1835 = vunpack.c.l.b16 %v1540
  %v1836 = vunpack.c.l.b16 %v1541
  %v1837 = vunpack.c.l.b16 %v1542
  %v1838 = vunpack.c.l.b16 %v1543
  %v1839 = vunpack.c.l.b16 %v1544
  %v1840 = vunpack.c.l.b16 %v1545
  %v1841 = vunpack.c.l.b16 %v1546
  %v1842 = vunpack.c.l.b16 %v1547
  %v1843 = vunpack.c.l.b16 %v1548
  %v1844 = vunpack.c.l.b16 %v1549
  %v1845 = vunpack.c.l.b16 %v1550
  %v1846 = vunpack.c.l.b16 %v1551
  %v1847 = vunpack.c.l.b16 %v1552
  %v1848 = vunpack.c.l.b16 %v1553
  %v1849 = vunpack.c.l.b16 %v1554
  %v1850 = vunpack.c.l.b16 %v1555
  %v1851 = vunpack.c.l.b16 %v1556
  %v1852 = vunpack.c.l.b16 %v1557
  %v1853 = vunpack.c.l.b16 %v1558
  %v1854 = vunpack.c.l.b16 %v1559
  %v1855 = vunpack.c.l.b16 %v1560
  %v1856 = vunpack.c.l.b16 %v1561
  %v1857 = vunpack.c.l.b16 %v1562
  %v1858 = vunpack.c.l.b16 %v1563
  %v1859 = vunpack.c.l.b16 %v1564
  %v1860 = vunpack.c.l.b16 %v1565
  %v1861 = vunpack.c.l.b16 %v1566
  %v1862 = vunpack.c.l.b16 %v1567
  %v1863 = vunpack.c.l.b16 %v1568
  %v1864 = vunpack.c.l.b16 %v1569
  %v1865 = vunpack.c.l.b16 %v1570
  %v1866 = vpack.c.b16 %v1723, %v1722
  %v1867 = vpack.c.b16 %v1725, %v1724
  %v1868 = vpack.c.b16 %v1727, %v1726
  %v1869 = vpack.c.b16 %v1729, %v1728
  %v1870 = vpack.c.b16 %v1731, %v1730
  %v1871 = vpack.c.b16 %v1733, %v1732
  %v1872 = vpack.c.b16 %v1735, %v1734
  %v1873 = vpack.c.b16 %v1737, %v1736
  %v1874 = vpack.c.b16 %v1739, %v1738
  %v1875 = vpack.c.b16 %v1741, %v1740
  %v1876 = vpack.c.b16 %v1743, %v1742
  %v1877 = vpack.c.b16 %v1745, %v1744
  %v1878 = vpack.c.b16 %v1747, %v1746
  %v1879 = vpack.c.b16 %v1749, %v1748
  %v1880 = vpack.c.b16 %v1751, %v1750
  %v1881 = vpack.c.b16 %v1753, %v1752
  %v1882 = vpack.c.b16 %v1755, %v1754
  %v1883 = vpack.c.b16 %v1757, %v1756
  %v1884 = vpack.c.b16 %v1759, %v1758
  %v1885 = vpack.c.b16 %v1761, %v1760
  %v1886 = vpack.c.b16 %v1763, %v1762
  %v1887 = vpack.c.b16 %v1765, %v1764
  %v1888 = vpack.c.b16 %v1767, %v1766
  %v1889 = vpack.c.b16 %v1769, %v1768
  %v1890 = vpack.c.b16 %v1771, %v1770
  %v1891 = vpack.c.b16 %v1773, %v1772
  %v1892 = vpack.c.b16 %v1775, %v1774
  %v1893 = vpack.c.b16 %v1777, %v1776
  %v1894 = vpack.c.b16 %v1779, %v1778
  %v1895 = vpack.c.b16 %v1781, %v1780
  %v1896 = vpack.c.b16 %v1783, %v1782
  %v1897 = vpack.c.b16 %v1785, %v1784
  %v1898 = vpack.c.b16 %v1787, %v1786
  %v1899 = vpack.c.b16 %v1789, %v1788
  %v1900 = vpack.c.b16 %v1791, %v1790
  %v1901 = vpack.c.b16 %v1793, %v1792
  %v1902 = vpack.c.b16 %v1795, %v1794
  %v1903 = vpack.c.b16 %v1797, %v1796
  %v1904 = vpack.c.b16 %v1799, %v1798
  %v1905 = vpack.c.b16 %v1801, %v1800
  %v1906 = vpack.c.b16 %v1803, %v1802
  %v1907 = vpack.c.b16 %v1805, %v1804
  %v1908 = vpack.c.b16 %v1807, %v1806
  %v1909 = vpack.c.b16 %v1809, %v1808
  %v1910 = vpack.c.b16 %v1811, %v1810
  %v1911 = vpack.c.b16 %v1813, %v1812
  %v1912 = vpack.c.b16 %v1815, %v1814
  %v1913 = vpack.c.b16 %v1817, %v1816
  %v1914 = vpack.c.b16 %v1819, %v1818
  %v1915 = vpack.c.b16 %v1821, %v1820
  %v1916 = vpack.c.b16 %v1823, %v1822
  %v1917 = vpack.c.b16 %v1825, %v1824
  %v1918 = vpack.c.b16 %v1827, %v1826
  %v1919 = vpack.c.b16 %v1829, %v1828
  %v1920 = vpack.c.b16 %v1831, %v1830
  %v1921 = vpack.c.b16 %v1833, %v1832
  %v1922 = vpack.c.b16 %v1835, %v1834
  %v1923 = vpack.c.b16 %v1837, %v1836
  %v1924 = vpack.c.b16 %v1839, %v1838
  %v1925 = vpack.c.b16 %v1841, %v1840
  %v1926 = vpack.c.b16 %v1843, %v1842
  %v1927 = vpack.c.b16 %v1845, %v1844
  %v1928 = vpack.c.b16 %v1847, %v1846
  %v1929 = vpack.c.b16 %v1849, %v1848
  %v1930 = vpack.c.b16 %v1851, %v1850
  %v1931 = vpack.c.b16 %v1853, %v1852
  %v1932 = vpack.c.b16 %v1855, %v1854
  %v1933 = vpack.c.b16 %v1857, %v1856
  %v1934 = vpack.c.b16 %v1859, %v1858
  %v1935 = vpack.c.b16 %v1861, %v1860
  %v1936 = vpack.c.b16 %v1863, %v1862
  %v1937 = vpack.c.b16 %v1865, %v1864
  %2010 = vmatprep.subr.bf16.mxu0 0
  %2011 = vmatpush1.bf16.msra.mxu0 %v1866
  %2012 = vmatprep.subr.bf16.mxu0 0
  %2013 = vmatpush1.bf16.msra.mxu0 %v1867
  %2014 = vmatprep.subr.bf16.mxu0 0
  %2015 = vmatpush1.bf16.msra.mxu0 %v1868
  %2016 = vmatprep.subr.bf16.mxu0 0
  %2017 = vmatpush1.bf16.msra.mxu0 %v1869
  %2018 = vmatprep.subr.bf16.mxu0 0
  %2019 = vmatpush1.bf16.msra.mxu0 %v1870
  %2020 = vmatprep.subr.bf16.mxu0 0
  %2021 = vmatpush1.bf16.msra.mxu0 %v1871
  %2022 = vmatprep.subr.bf16.mxu0 0
  %2023 = vmatpush1.bf16.msra.mxu0 %v1872
  %2024 = vmatprep.subr.bf16.mxu0 0
  %2025 = vmatpush1.bf16.msra.mxu0 %v1873
  %2026 = vmatprep.subr.bf16.mxu0 0
  %2027 = vmatpush1.bf16.msra.mxu0 %v1874
  %2028 = vmatprep.subr.bf16.mxu0 0
  %2029 = vmatpush1.bf16.msra.mxu0 %v1875
  %2030 = vmatprep.subr.bf16.mxu0 0
  %2031 = vmatpush1.bf16.msra.mxu0 %v1876
  %2032 = vmatprep.subr.bf16.mxu0 0
  %2033 = vmatpush1.bf16.msra.mxu0 %v1877
  %2034 = vmatprep.subr.bf16.mxu0 0
  %2035 = vmatpush1.bf16.msra.mxu0 %v1878
  %2036 = vmatprep.subr.bf16.mxu0 0
  %2037 = vmatpush1.bf16.msra.mxu0 %v1879
  %2038 = vmatprep.subr.bf16.mxu0 0
  %2039 = vmatpush1.bf16.msra.mxu0 %v1880
  %2040 = vmatprep.subr.bf16.mxu0 0
  %2041 = vmatpush1.bf16.msra.mxu0 %v1881
  %2042 = vmatprep.mubr.bf16.mxu0 %v1356
  %2043 = vmatmul.mubr.bf16.gmra.mrb[0].mxu0 %v1355
  %v2044 = vpop.f32.mrb[0].mxu0
  %v2045 = vadd.f32 %v1576, %v2044
  %v2046 = vpop.f32.mrb[0].mxu0
  %v2047 = vpop.f32.mrb[0].mxu0
  %v2048 = vadd.f32 %v1576, %v2047
  %v2049 = vpop.f32.mrb[0].mxu0
  %2050 = vmatprep.mubr.bf16.mxu0 %v1365
  %2051 = vmatmul.mubr.bf16.gmra.mrb[0].mxu0 %v1364
  %v2052 = vpop.f32.mrb[0].mxu0
  %v2053 = vadd.f32 %v1576, %v2052
  %v2054 = vpop.f32.mrb[0].mxu0
  %v2055 = vpop.f32.mrb[0].mxu0
  %v2056 = vadd.f32 %v1576, %v2055
  %v2057 = vpop.f32.mrb[0].mxu0
  %2058 = vmatprep.mubr.bf16.mxu0 %v1374
  %2059 = vmatmul.mubr.bf16.gmra.mrb[0].mxu0 %v1373
  %v2060 = vpop.f32.mrb[0].mxu0
  %v2061 = vadd.f32 %v1576, %v2060
  %v2062 = vpop.f32.mrb[0].mxu0
  %v2063 = vpop.f32.mrb[0].mxu0
  %v2064 = vadd.f32 %v1576, %v2063
  %v2065 = vpop.f32.mrb[0].mxu0
  %2066 = vmatprep.mubr.bf16.mxu0 %v1383
  %2067 = vmatmul.mubr.bf16.gmra.mrb[0].mxu0 %v1382
  %v2068 = vpop.f32.mrb[0].mxu0
  %v2069 = vadd.f32 %v1576, %v2068
  %v2070 = vpop.f32.mrb[0].mxu0
  %v2071 = vpop.f32.mrb[0].mxu0
  %v2072 = vadd.f32 %v1576, %v2071
  %v2073 = vpop.f32.mrb[0].mxu0
  %2074 = vmatprep.mubr.bf16.mxu0 %v1392
  %2075 = vmatmul.mubr.bf16.gmra.mrb[0].mxu0 %v1391
  %v2076 = vpop.f32.mrb[0].mxu0
  %v2077 = vadd.f32 %v1576, %v2076
  %v2078 = vpop.f32.mrb[0].mxu0
  %v2079 = vpop.f32.mrb[0].mxu0
  %v2080 = vadd.f32 %v1576, %v2079
  %v2081 = vpop.f32.mrb[0].mxu0
  %2082 = vmatprep.mubr.bf16.mxu0 %v1401
  %2083 = vmatmul.mubr.bf16.gmra.mrb[0].mxu0 %v1400
  %v2084 = vpop.f32.mrb[0].mxu0
  %v2085 = vadd.f32 %v1576, %v2084
  %v2086 = vpop.f32.mrb[0].mxu0
  %v2087 = vpop.f32.mrb[0].mxu0
  %v2088 = vadd.f32 %v1576, %v2087
  %v2089 = vpop.f32.mrb[0].mxu0
  %2090 = vmatprep.mubr.bf16.mxu0 %v1410
  %2091 = vmatmul.mubr.bf16.gmra.mrb[0].mxu0 %v1409
  %v2092 = vpop.f32.mrb[0].mxu0
  %v2093 = vadd.f32 %v1576, %v2092
  %v2094 = vpop.f32.mrb[0].mxu0
  %v2095 = vpop.f32.mrb[0].mxu0
  %v2096 = vadd.f32 %v1576, %v2095
  %v2097 = vpop.f32.mrb[0].mxu0
  %2098 = vmatprep.mubr.bf16.mxu0 %v1419
  %2099 = vmatmul.mubr.bf16.gmra.mrb[0].mxu0 %v1418
  %v2100 = vpop.f32.mrb[0].mxu0
  %v2101 = vadd.f32 %v1576, %v2100
  %v2102 = vpop.f32.mrb[0].mxu0
  %v2103 = vpop.f32.mrb[0].mxu0
  %v2104 = vadd.f32 %v1576, %v2103
  %v2105 = vpop.f32.mrb[0].mxu0
  %2106 = vdwg.mxu0
  %2107 = vmatprep.subr.bf16.mxu0 0
  %2108 = vmatpush1.bf16.msra.mxu0 %v1882
  %2109 = vmatprep.subr.bf16.mxu0 0
  %2110 = vmatpush1.bf16.msra.mxu0 %v1883
  %2111 = vmatprep.subr.bf16.mxu0 0
  %2112 = vmatpush1.bf16.msra.mxu0 %v1884
  %2113 = vmatprep.subr.bf16.mxu0 0
  %2114 = vmatpush1.bf16.msra.mxu0 %v1885
  %2115 = vmatprep.subr.bf16.mxu0 0
  %2116 = vmatpush1.bf16.msra.mxu0 %v1886
  %2117 = vmatprep.subr.bf16.mxu0 0
  %2118 = vmatpush1.bf16.msra.mxu0 %v1887
  %2119 = vmatprep.subr.bf16.mxu0 0
  %2120 = vmatpush1.bf16.msra.mxu0 %v1888
  %2121 = vmatprep.subr.bf16.mxu0 0
  %2122 = vmatpush1.bf16.msra.mxu0 %v1889
  %2123 = vmatprep.subr.bf16.mxu0 0
  %2124 = vmatpush1.bf16.msra.mxu0 %v1890
  %2125 = vmatprep.subr.bf16.mxu0 0
  %2126 = vmatpush1.bf16.msra.mxu0 %v1891
  %2127 = vmatprep.subr.bf16.mxu0 0
  %2128 = vmatpush1.bf16.msra.mxu0 %v1892
  %2129 = vmatprep.subr.bf16.mxu0 0
  %2130 = vmatpush1.bf16.msra.mxu0 %v1893
  %2131 = vmatprep.subr.bf16.mxu0 0
  %2132 = vmatpush1.bf16.msra.mxu0 %v1894
  %2133 = vmatprep.subr.bf16.mxu0 0
  %2134 = vmatpush1.bf16.msra.mxu0 %v1895
  %2135 = vmatprep.subr.bf16.mxu0 0
  %2136 = vmatpush1.bf16.msra.mxu0 %v1896
  %2137 = vmatprep.subr.bf16.mxu0 0
  %2138 = vmatpush1.bf16.msra.mxu0 %v1897
  %2139 = vmatprep.mubr.bf16.mxu0 %v1358
  %2140 = vmatmul.mubr.bf16.gmra.mrb[0].mxu0 %v1357
  %v2141 = vpop.f32.mrb[0].mxu0
  %v2142 = vadd.f32 %v2045, %v2141
  %v2143 = vpop.f32.mrb[0].mxu0
  %v2144 = vpop.f32.mrb[0].mxu0
  %v2145 = vadd.f32 %v2048, %v2144
  %v2146 = vpop.f32.mrb[0].mxu0
  %2147 = vmatprep.mubr.bf16.mxu0 %v1367
  %2148 = vmatmul.mubr.bf16.gmra.mrb[0].mxu0 %v1366
  %v2149 = vpop.f32.mrb[0].mxu0
  %v2150 = vadd.f32 %v2053, %v2149
  %v2151 = vpop.f32.mrb[0].mxu0
  %v2152 = vpop.f32.mrb[0].mxu0
  %v2153 = vadd.f32 %v2056, %v2152
  %v2154 = vpop.f32.mrb[0].mxu0
  %2155 = vmatprep.mubr.bf16.mxu0 %v1376
  %2156 = vmatmul.mubr.bf16.gmra.mrb[0].mxu0 %v1375
  %v2157 = vpop.f32.mrb[0].mxu0
  %v2158 = vadd.f32 %v2061, %v2157
  %v2159 = vpop.f32.mrb[0].mxu0
  %v2160 = vpop.f32.mrb[0].mxu0
  %v2161 = vadd.f32 %v2064, %v2160
  %v2162 = vpop.f32.mrb[0].mxu0
  %2163 = vmatprep.mubr.bf16.mxu0 %v1385
  %2164 = vmatmul.mubr.bf16.gmra.mrb[0].mxu0 %v1384
  %v2165 = vpop.f32.mrb[0].mxu0
  %v2166 = vadd.f32 %v2069, %v2165
  %v2167 = vpop.f32.mrb[0].mxu0
  %v2168 = vpop.f32.mrb[0].mxu0
  %v2169 = vadd.f32 %v2072, %v2168
  %v2170 = vpop.f32.mrb[0].mxu0
  %2171 = vmatprep.mubr.bf16.mxu0 %v1394
  %2172 = vmatmul.mubr.bf16.gmra.mrb[0].mxu0 %v1393
  %v2173 = vpop.f32.mrb[0].mxu0
  %v2174 = vadd.f32 %v2077, %v2173
  %v2175 = vpop.f32.mrb[0].mxu0
  %v2176 = vpop.f32.mrb[0].mxu0
  %v2177 = vadd.f32 %v2080, %v2176
  %v2178 = vpop.f32.mrb[0].mxu0
  %2179 = vmatprep.mubr.bf16.mxu0 %v1403
  %2180 = vmatmul.mubr.bf16.gmra.mrb[0].mxu0 %v1402
  %v2181 = vpop.f32.mrb[0].mxu0
  %v2182 = vadd.f32 %v2085, %v2181
  %v2183 = vpop.f32.mrb[0].mxu0
  %v2184 = vpop.f32.mrb[0].mxu0
  %v2185 = vadd.f32 %v2088, %v2184
  %v2186 = vpop.f32.mrb[0].mxu0
  %2187 = vmatprep.mubr.bf16.mxu0 %v1412
  %2188 = vmatmul.mubr.bf16.gmra.mrb[0].mxu0 %v1411
  %v2189 = vpop.f32.mrb[0].mxu0
  %v2190 = vadd.f32 %v2093, %v2189
  %v2191 = vpop.f32.mrb[0].mxu0
  %v2192 = vpop.f32.mrb[0].mxu0
  %v2193 = vadd.f32 %v2096, %v2192
  %v2194 = vpop.f32.mrb[0].mxu0
  %2195 = vmatprep.mubr.bf16.mxu0 %v1421
  %2196 = vmatmul.mubr.bf16.gmra.mrb[0].mxu0 %v1420
  %v2197 = vpop.f32.mrb[0].mxu0
  %v2198 = vadd.f32 %v2101, %v2197
  %v2199 = vpop.f32.mrb[0].mxu0
  %v2200 = vpop.f32.mrb[0].mxu0
  %v2201 = vadd.f32 %v2104, %v2200
  %v2202 = vpop.f32.mrb[0].mxu0
  %2203 = vdwg.mxu0
  %2204 = vmatprep.subr.bf16.mxu0 0
  %2205 = vmatpush1.bf16.msra.mxu0 %v1898
  %2206 = vmatprep.subr.bf16.mxu0 0
  %2207 = vmatpush1.bf16.msra.mxu0 %v1899
  %2208 = vmatprep.subr.bf16.mxu0 0
  %2209 = vmatpush1.bf16.msra.mxu0 %v1900
  %2210 = vmatprep.subr.bf16.mxu0 0
  %2211 = vmatpush1.bf16.msra.mxu0 %v1901
  %2212 = vmatprep.subr.bf16.mxu0 0
  %2213 = vmatpush1.bf16.msra.mxu0 %v1902
  %2214 = vmatprep.subr.bf16.mxu0 0
  %2215 = vmatpush1.bf16.msra.mxu0 %v1903
  %2216 = vmatprep.subr.bf16.mxu0 0
  %2217 = vmatpush1.bf16.msra.mxu0 %v1904
  %2218 = vmatprep.subr.bf16.mxu0 0
  %2219 = vmatpush1.bf16.msra.mxu0 %v1905
  %2220 = vmatprep.subr.bf16.mxu0 0
  %2221 = vmatpush1.bf16.msra.mxu0 %v1906
  %2222 = vmatprep.subr.bf16.mxu0 0
  %2223 = vmatpush1.bf16.msra.mxu0 %v1907
  %2224 = vmatprep.subr.bf16.mxu0 0
  %2225 = vmatpush1.bf16.msra.mxu0 %v1908
  %2226 = vmatprep.subr.bf16.mxu0 0
  %2227 = vmatpush1.bf16.msra.mxu0 %v1909
  %2228 = vmatprep.subr.bf16.mxu0 0
  %2229 = vmatpush1.bf16.msra.mxu0 %v1910
  %2230 = vmatprep.subr.bf16.mxu0 0
  %2231 = vmatpush1.bf16.msra.mxu0 %v1911
  %2232 = vmatprep.subr.bf16.mxu0 0
  %2233 = vmatpush1.bf16.msra.mxu0 %v1912
  %2234 = vmatprep.subr.bf16.mxu0 0
  %2235 = vmatpush1.bf16.msra.mxu0 %v1913
  %2236 = vmatprep.mubr.bf16.mxu0 %v1360
  %2237 = vmatmul.mubr.bf16.gmra.mrb[0].mxu0 %v1359
  %v2238 = vpop.f32.mrb[0].mxu0
  %v2239 = vadd.f32 %v2142, %v2238
  %v2240 = vpop.f32.mrb[0].mxu0
  %v2241 = vpop.f32.mrb[0].mxu0
  %v2242 = vadd.f32 %v2145, %v2241
  %v2243 = vpop.f32.mrb[0].mxu0
  %2244 = vmatprep.mubr.bf16.mxu0 %v1369
  %2245 = vmatmul.mubr.bf16.gmra.mrb[0].mxu0 %v1368
  %v2246 = vpop.f32.mrb[0].mxu0
  %v2247 = vadd.f32 %v2150, %v2246
  %v2248 = vpop.f32.mrb[0].mxu0
  %v2249 = vpop.f32.mrb[0].mxu0
  %v2250 = vadd.f32 %v2153, %v2249
  %v2251 = vpop.f32.mrb[0].mxu0
  %2252 = vmatprep.mubr.bf16.mxu0 %v1378
  %2253 = vmatmul.mubr.bf16.gmra.mrb[0].mxu0 %v1377
  %v2254 = vpop.f32.mrb[0].mxu0
  %v2255 = vadd.f32 %v2158, %v2254
  %v2256 = vpop.f32.mrb[0].mxu0
  %v2257 = vpop.f32.mrb[0].mxu0
  %v2258 = vadd.f32 %v2161, %v2257
  %v2259 = vpop.f32.mrb[0].mxu0
  %2260 = vmatprep.mubr.bf16.mxu0 %v1387
  %2261 = vmatmul.mubr.bf16.gmra.mrb[0].mxu0 %v1386
  %v2262 = vpop.f32.mrb[0].mxu0
  %v2263 = vadd.f32 %v2166, %v2262
  %v2264 = vpop.f32.mrb[0].mxu0
  %v2265 = vpop.f32.mrb[0].mxu0
  %v2266 = vadd.f32 %v2169, %v2265
  %v2267 = vpop.f32.mrb[0].mxu0
  %2268 = vmatprep.mubr.bf16.mxu0 %v1396
  %2269 = vmatmul.mubr.bf16.gmra.mrb[0].mxu0 %v1395
  %v2270 = vpop.f32.mrb[0].mxu0
  %v2271 = vadd.f32 %v2174, %v2270
  %v2272 = vpop.f32.mrb[0].mxu0
  %v2273 = vpop.f32.mrb[0].mxu0
  %v2274 = vadd.f32 %v2177, %v2273
  %v2275 = vpop.f32.mrb[0].mxu0
  %2276 = vmatprep.mubr.bf16.mxu0 %v1405
  %2277 = vmatmul.mubr.bf16.gmra.mrb[0].mxu0 %v1404
  %v2278 = vpop.f32.mrb[0].mxu0
  %v2279 = vadd.f32 %v2182, %v2278
  %v2280 = vpop.f32.mrb[0].mxu0
  %v2281 = vpop.f32.mrb[0].mxu0
  %v2282 = vadd.f32 %v2185, %v2281
  %v2283 = vpop.f32.mrb[0].mxu0
  %2284 = vmatprep.mubr.bf16.mxu0 %v1414
  %2285 = vmatmul.mubr.bf16.gmra.mrb[0].mxu0 %v1413
  %v2286 = vpop.f32.mrb[0].mxu0
  %v2287 = vadd.f32 %v2190, %v2286
  %v2288 = vpop.f32.mrb[0].mxu0
  %v2289 = vpop.f32.mrb[0].mxu0
  %v2290 = vadd.f32 %v2193, %v2289
  %v2291 = vpop.f32.mrb[0].mxu0
  %2292 = vmatprep.mubr.bf16.mxu0 %v1423
  %2293 = vmatmul.mubr.bf16.gmra.mrb[0].mxu0 %v1422
  %v2294 = vpop.f32.mrb[0].mxu0
  %v2295 = vadd.f32 %v2198, %v2294
  %v2296 = vpop.f32.mrb[0].mxu0
  %v2297 = vpop.f32.mrb[0].mxu0
  %v2298 = vadd.f32 %v2201, %v2297
  %v2299 = vpop.f32.mrb[0].mxu0
  %2300 = vdwg.mxu0
  %2301 = vmatprep.subr.bf16.mxu0 0
  %2302 = vmatpush1.bf16.msra.mxu0 %v1914
  %2303 = vmatprep.subr.bf16.mxu0 0
  %2304 = vmatpush1.bf16.msra.mxu0 %v1915
  %2305 = vmatprep.subr.bf16.mxu0 0
  %2306 = vmatpush1.bf16.msra.mxu0 %v1916
  %2307 = vmatprep.subr.bf16.mxu0 0
  %2308 = vmatpush1.bf16.msra.mxu0 %v1917
  %2309 = vmatprep.subr.bf16.mxu0 0
  %2310 = vmatpush1.bf16.msra.mxu0 %v1918
  %2311 = vmatprep.subr.bf16.mxu0 0
  %2312 = vmatpush1.bf16.msra.mxu0 %v1919
  %2313 = vmatprep.subr.bf16.mxu0 0
  %2314 = vmatpush1.bf16.msra.mxu0 %v1920
  %2315 = vmatprep.subr.bf16.mxu0 0
  %2316 = vmatpush1.bf16.msra.mxu0 %v1921
  %2317 = vmatprep.subr.bf16.mxu0 0
  %2318 = vmatpush1.bf16.msra.mxu0 %v1922
  %2319 = vmatprep.subr.bf16.mxu0 0
  %2320 = vmatpush1.bf16.msra.mxu0 %v1923
  %2321 = vmatprep.subr.bf16.mxu0 0
  %2322 = vmatpush1.bf16.msra.mxu0 %v1924
  %2323 = vmatprep.subr.bf16.mxu0 0
  %2324 = vmatpush1.bf16.msra.mxu0 %v1925
  %2325 = vmatprep.subr.bf16.mxu0 0
  %2326 = vmatpush1.bf16.msra.mxu0 %v1926
  %2327 = vmatprep.subr.bf16.mxu0 0
  %2328 = vmatpush1.bf16.msra.mxu0 %v1927
  %2329 = vmatprep.subr.bf16.mxu0 0
  %2330 = vmatpush1.bf16.msra.mxu0 %v1928
  %2331 = vmatprep.subr.bf16.mxu0 0
  %2332 = vmatpush1.bf16.msra.mxu0 %v1929
  %2333 = vmatprep.mubr.bf16.mxu0 %v1362
  %2334 = vmatmul.mubr.bf16.gmra.mrb[0].mxu0 %v1361
  %v2335 = vpop.f32.mrb[0].mxu0
  %v2336 = vadd.f32 %v2239, %v2335
  %v2337 = vpop.f32.mrb[0].mxu0
  %v2338 = vpop.f32.mrb[0].mxu0
  %v2339 = vadd.f32 %v2242, %v2338
  %v2340 = vpop.f32.mrb[0].mxu0
  %2341 = vmatprep.mubr.bf16.mxu0 %v1371
  %2342 = vmatmul.mubr.bf16.gmra.mrb[0].mxu0 %v1370
  %v2343 = vpop.f32.mrb[0].mxu0
  %v2344 = vadd.f32 %v2247, %v2343
  %v2345 = vpop.f32.mrb[0].mxu0
  %v2346 = vpop.f32.mrb[0].mxu0
  %v2347 = vadd.f32 %v2250, %v2346
  %v2348 = vpop.f32.mrb[0].mxu0
  %2349 = vmatprep.mubr.bf16.mxu0 %v1380
  %2350 = vmatmul.mubr.bf16.gmra.mrb[0].mxu0 %v1379
  %v2351 = vpop.f32.mrb[0].mxu0
  %v2352 = vadd.f32 %v2255, %v2351
  %v2353 = vpop.f32.mrb[0].mxu0
  %v2354 = vpop.f32.mrb[0].mxu0
  %v2355 = vadd.f32 %v2258, %v2354
  %v2356 = vpop.f32.mrb[0].mxu0
  %2357 = vmatprep.mubr.bf16.mxu0 %v1389
  %2358 = vmatmul.mubr.bf16.gmra.mrb[0].mxu0 %v1388
  %v2359 = vpop.f32.mrb[0].mxu0
  %v2360 = vadd.f32 %v2263, %v2359
  %v2361 = vpop.f32.mrb[0].mxu0
  %v2362 = vpop.f32.mrb[0].mxu0
  %v2363 = vadd.f32 %v2266, %v2362
  %v2364 = vpop.f32.mrb[0].mxu0
  %2365 = vmatprep.mubr.bf16.mxu0 %v1398
  %2366 = vmatmul.mubr.bf16.gmra.mrb[0].mxu0 %v1397
  %v2367 = vpop.f32.mrb[0].mxu0
  %v2368 = vadd.f32 %v2271, %v2367
  %v2369 = vpop.f32.mrb[0].mxu0
  %v2370 = vpop.f32.mrb[0].mxu0
  %v2371 = vadd.f32 %v2274, %v2370
  %v2372 = vpop.f32.mrb[0].mxu0
  %2373 = vmatprep.mubr.bf16.mxu0 %v1407
  %2374 = vmatmul.mubr.bf16.gmra.mrb[0].mxu0 %v1406
  %v2375 = vpop.f32.mrb[0].mxu0
  %v2376 = vadd.f32 %v2279, %v2375
  %v2377 = vpop.f32.mrb[0].mxu0
  %v2378 = vpop.f32.mrb[0].mxu0
  %v2379 = vadd.f32 %v2282, %v2378
  %v2380 = vpop.f32.mrb[0].mxu0
  %2381 = vmatprep.mubr.bf16.mxu0 %v1416
  %2382 = vmatmul.mubr.bf16.gmra.mrb[0].mxu0 %v1415
  %v2383 = vpop.f32.mrb[0].mxu0
  %v2384 = vadd.f32 %v2287, %v2383
  %v2385 = vpop.f32.mrb[0].mxu0
  %v2386 = vpop.f32.mrb[0].mxu0
  %v2387 = vadd.f32 %v2290, %v2386
  %v2388 = vpop.f32.mrb[0].mxu0
  %2389 = vmatprep.mubr.bf16.mxu0 %v1425
  %2390 = vmatmul.mubr.bf16.gmra.mrb[0].mxu0 %v1424
  %v2391 = vpop.f32.mrb[0].mxu0
  %v2392 = vadd.f32 %v2295, %v2391
  %v2393 = vpop.f32.mrb[0].mxu0
  %v2394 = vpop.f32.mrb[0].mxu0
  %v2395 = vadd.f32 %v2298, %v2394
  %v2396 = vpop.f32.mrb[0].mxu0
  %2397 = vdwg.mxu0
  %2398 = vmatprep.subr.bf16.mxu0 0
  %2399 = vmatpush1.bf16.msra.mxu0 %v1930
  %2400 = vmatprep.subr.bf16.mxu0 0
  %2401 = vmatpush1.bf16.msra.mxu0 %v1931
  %2402 = vmatprep.subr.bf16.mxu0 0
  %2403 = vmatpush1.bf16.msra.mxu0 %v1932
  %2404 = vmatprep.subr.bf16.mxu0 0
  %2405 = vmatpush1.bf16.msra.mxu0 %v1933
  %2406 = vmatprep.subr.bf16.mxu0 0
  %2407 = vmatpush1.bf16.msra.mxu0 %v1934
  %2408 = vmatprep.subr.bf16.mxu0 0
  %2409 = vmatpush1.bf16.msra.mxu0 %v1935
  %2410 = vmatprep.subr.bf16.mxu0 0
  %2411 = vmatpush1.bf16.msra.mxu0 %v1936
  %2412 = vmatprep.subr.bf16.mxu0 0
  %2413 = vmatpush1.bf16.msra.mxu0 %v1937
  %2414 = vmatprep.subr.bf16.mxu0 0
  %2415 = vmatpush1.bf16.msra.mxu0 0
  %2416 = vmatprep.subr.bf16.mxu0 0
  %2417 = vmatpush1.bf16.msra.mxu0 0
  %2418 = vmatprep.subr.bf16.mxu0 0
  %2419 = vmatpush1.bf16.msra.mxu0 0
  %2420 = vmatprep.subr.bf16.mxu0 0
  %2421 = vmatpush1.bf16.msra.mxu0 0
  %2422 = vmatprep.subr.bf16.mxu0 0
  %2423 = vmatpush1.bf16.msra.mxu0 0
  %2424 = vmatprep.subr.bf16.mxu0 0
  %2425 = vmatpush1.bf16.msra.mxu0 0
  %2426 = vmatprep.subr.bf16.mxu0 0
  %2427 = vmatpush1.bf16.msra.mxu0 0
  %2428 = vmatprep.subr.bf16.mxu0 0
  %2429 = vmatpush1.bf16.msra.mxu0 0
  %2430 = vmatprep.mubr.bf16.mxu0 0
  %2431 = vmatmul.mubr.bf16.gmra.mrb[0].mxu0 %v1363
  %v2432 = vpop.f32.mrb[0].mxu0
  %v2433 = vadd.f32 %v2336, %v2432
  %v2434 = vpop.f32.mrb[0].mxu0
  %v2435 = vpop.f32.mrb[0].mxu0
  %v2436 = vadd.f32 %v2339, %v2435
  %v2437 = vpop.f32.mrb[0].mxu0
  %2438 = vmatprep.mubr.bf16.mxu0 0
  %2439 = vmatmul.mubr.bf16.gmra.mrb[0].mxu0 %v1372
  %v2440 = vpop.f32.mrb[0].mxu0
  %v2441 = vadd.f32 %v2344, %v2440
  %v2442 = vpop.f32.mrb[0].mxu0
  %v2443 = vpop.f32.mrb[0].mxu0
  %v2444 = vadd.f32 %v2347, %v2443
  %v2445 = vpop.f32.mrb[0].mxu0
  %2446 = vmatprep.mubr.bf16.mxu0 0
  %2447 = vmatmul.mubr.bf16.gmra.mrb[0].mxu0 %v1381
  %v2448 = vpop.f32.mrb[0].mxu0
  %v2449 = vadd.f32 %v2352, %v2448
  %v2450 = vpop.f32.mrb[0].mxu0
  %v2451 = vpop.f32.mrb[0].mxu0
  %v2452 = vadd.f32 %v2355, %v2451
  %v2453 = vpop.f32.mrb[0].mxu0
  %2454 = vmatprep.mubr.bf16.mxu0 0
  %2455 = vmatmul.mubr.bf16.gmra.mrb[0].mxu0 %v1390
  %v2456 = vpop.f32.mrb[0].mxu0
  %v2457 = vadd.f32 %v2360, %v2456
  %v2458 = vpop.f32.mrb[0].mxu0
  %v2459 = vpop.f32.mrb[0].mxu0
  %v2460 = vadd.f32 %v2363, %v2459
  %v2461 = vpop.f32.mrb[0].mxu0
  %2462 = vmatprep.mubr.bf16.mxu0 0
  %2463 = vmatmul.mubr.bf16.gmra.mrb[0].mxu0 %v1399
  %v2464 = vpop.f32.mrb[0].mxu0
  %v2465 = vadd.f32 %v2368, %v2464
  %v2466 = vpop.f32.mrb[0].mxu0
  %v2467 = vpop.f32.mrb[0].mxu0
  %v2468 = vadd.f32 %v2371, %v2467
  %v2469 = vpop.f32.mrb[0].mxu0
  %2470 = vmatprep.mubr.bf16.mxu0 0
  %2471 = vmatmul.mubr.bf16.gmra.mrb[0].mxu0 %v1408
  %v2472 = vpop.f32.mrb[0].mxu0
  %v2473 = vadd.f32 %v2376, %v2472
  %v2474 = vpop.f32.mrb[0].mxu0
  %v2475 = vpop.f32.mrb[0].mxu0
  %v2476 = vadd.f32 %v2379, %v2475
  %v2477 = vpop.f32.mrb[0].mxu0
  %2478 = vmatprep.mubr.bf16.mxu0 0
  %2479 = vmatmul.mubr.bf16.gmra.mrb[0].mxu0 %v1417
  %v2480 = vpop.f32.mrb[0].mxu0
  %v2481 = vadd.f32 %v2384, %v2480
  %v2482 = vpop.f32.mrb[0].mxu0
  %v2483 = vpop.f32.mrb[0].mxu0
  %v2484 = vadd.f32 %v2387, %v2483
  %v2485 = vpop.f32.mrb[0].mxu0
  %2486 = vmatprep.mubr.bf16.mxu0 0
  %2487 = vmatmul.mubr.bf16.gmra.mrb[0].mxu0 %v1426
  %v2488 = vpop.f32.mrb[0].mxu0
  %v2489 = vadd.f32 %v2392, %v2488
  %v2490 = vpop.f32.mrb[0].mxu0
  %v2491 = vpop.f32.mrb[0].mxu0
  %v2492 = vadd.f32 %v2395, %v2491
  %v2493 = vpop.f32.mrb[0].mxu0
  %2494 = vdwg.mxu0
  %v2495 = vmax.f32 %v2433, 0.0
  %v2496 = vmax.f32 %v2436, 0.0
  %v2497 = vmax.f32 %v2441, 0.0
  %v2498 = vmax.f32 %v2444, 0.0
  %v2499 = vmax.f32 %v2449, 0.0
  %v2500 = vmax.f32 %v2452, 0.0
  %v2501 = vmax.f32 %v2457, 0.0
  %v2502 = vmax.f32 %v2460, 0.0
  %v2503 = vmax.f32 %v2465, 0.0
  %v2504 = vmax.f32 %v2468, 0.0
  %v2505 = vmax.f32 %v2473, 0.0
  %v2506 = vmax.f32 %v2476, 0.0
  %v2507 = vmax.f32 %v2481, 0.0
  %v2508 = vmax.f32 %v2484, 0.0
  %v2509 = vmax.f32 %v2489, 0.0
  %v2510 = vmax.f32 %v2492, 0.0
  %v2511 = vpack.c.bf16 %v2496, %v2495
  %v2512 = vpack.c.bf16 %v2498, %v2497
  %v2513 = vpack.c.bf16 %v2500, %v2499
  %v2514 = vpack.c.bf16 %v2502, %v2501
  %v2515 = vpack.c.bf16 %v2504, %v2503
  %v2516 = vpack.c.bf16 %v2506, %v2505
  %v2517 = vpack.c.bf16 %v2508, %v2507
  %v2518 = vpack.c.bf16 %v2510, %v2509
  %2519 = vst [vmem:[#allocation3] sm:$0xff] 0
  %2520 = vst [vmem:[#allocation3 + $0x50] sm:$0xff] 0
  %s2521 = scalar_lea.vmem [#allocation3], 72
  %2522 = vst [vmem:[%s2521] sm:$0xff] 0
  %2523 = vst [vmem:[%s2521 + $0x50] sm:$0xff] 0
  %s2524 = scalar_lea.vmem [#allocation3], 8
  %vm2525 = vcmask 1040384
  %vm2526 = vsmask.f32 256
  %vm2527 = vmand %vm2525, %vm2526
  %v2528 = vld [vmem:[%s2524] sm:$0x1]
  %v2529 = vsel %vm2527, 0, %v2528
  %2530 = vst [vmem:[%s2524] sm:$0x1] %v2529
  %v2531 = vld [vmem:[%s2524 + $0x8] sm:$0x1]
  %v2532 = vsel %vm2527, 0, %v2531
  %2533 = vst [vmem:[%s2524 + $0x8] sm:$0x1] %v2532
  %v2534 = vld [vmem:[%s2524 + $0x10] sm:$0x1]
  %v2535 = vsel %vm2527, 0, %v2534
  %2536 = vst [vmem:[%s2524 + $0x10] sm:$0x1] %v2535
  %v2537 = vld [vmem:[%s2524 + $0x18] sm:$0x1]
  %v2538 = vsel %vm2527, 0, %v2537
  %2539 = vst [vmem:[%s2524 + $0x18] sm:$0x1] %v2538
  %v2540 = vld [vmem:[%s2524 + $0x20] sm:$0x1]
  %v2541 = vsel %vm2527, 0, %v2540
  %2542 = vst [vmem:[%s2524 + $0x20] sm:$0x1] %v2541
  %v2543 = vld [vmem:[%s2524 + $0x28] sm:$0x1]
  %v2544 = vsel %vm2527, 0, %v2543
  %2545 = vst [vmem:[%s2524 + $0x28] sm:$0x1] %v2544
  %v2546 = vld [vmem:[%s2524 + $0x30] sm:$0x1]
  %v2547 = vsel %vm2527, 0, %v2546
  %2548 = vst [vmem:[%s2524 + $0x30] sm:$0x1] %v2547
  %v2549 = vld [vmem:[%s2524 + $0x38] sm:$0x1]
  %v2550 = vsel %vm2527, 0, %v2549
  %2551 = vst [vmem:[%s2524 + $0x38] sm:$0x1] %v2550
  %v2552 = vld [vmem:[%s2524 + $0x50] sm:$0x1]
  %v2553 = vsel %vm2527, 0, %v2552
  %2554 = vst [vmem:[%s2524 + $0x50] sm:$0x1] %v2553
  %v2555 = vld [vmem:[%s2524 + $0x58] sm:$0x1]
  %v2556 = vsel %vm2527, 0, %v2555
  %2557 = vst [vmem:[%s2524 + $0x58] sm:$0x1] %v2556
  %v2558 = vld [vmem:[%s2524 + $0x60] sm:$0x1]
  %v2559 = vsel %vm2527, 0, %v2558
  %2560 = vst [vmem:[%s2524 + $0x60] sm:$0x1] %v2559
  %v2561 = vld [vmem:[%s2524 + $0x68] sm:$0x1]
  %v2562 = vsel %vm2527, 0, %v2561
  %2563 = vst [vmem:[%s2524 + $0x68] sm:$0x1] %v2562
  %v2564 = vld [vmem:[%s2524 + $0x70] sm:$0x1]
  %v2565 = vsel %vm2527, 0, %v2564
  %2566 = vst [vmem:[%s2524 + $0x70] sm:$0x1] %v2565
  %v2567 = vld [vmem:[%s2524 + $0x78] sm:$0x1]
  %v2568 = vsel %vm2527, 0, %v2567
  %2569 = vst [vmem:[%s2524 + $0x78] sm:$0x1] %v2568
  %v2570 = vld [vmem:[%s2524 + $0x80] sm:$0x1]
  %v2571 = vsel %vm2527, 0, %v2570
  %2572 = vst [vmem:[%s2524 + $0x80] sm:$0x1] %v2571
  %v2573 = vld [vmem:[%s2524 + $0x88] sm:$0x1]
  %v2574 = vsel %vm2527, 0, %v2573
  %2575 = vst [vmem:[%s2524 + $0x88] sm:$0x1] %v2574
  %vm2576 = vcmask 1044484
  %vm2577 = vsmask.f32 7954
  %vm2578 = vmand %vm2576, %vm2577
  %v2579 = vld [vmem:[%s2524] sm:$0x10]
  %v2580 = vsel %vm2578, 0, %v2579
  %2581 = vst [vmem:[%s2524] sm:$0x10] %v2580
  %v2582 = vld [vmem:[%s2524 + $0x8] sm:$0x10]
  %v2583 = vsel %vm2578, 0, %v2582
  %2584 = vst [vmem:[%s2524 + $0x8] sm:$0x10] %v2583
  %v2585 = vld [vmem:[%s2524 + $0x10] sm:$0x10]
  %v2586 = vsel %vm2578, 0, %v2585
  %2587 = vst [vmem:[%s2524 + $0x10] sm:$0x10] %v2586
  %v2588 = vld [vmem:[%s2524 + $0x18] sm:$0x10]
  %v2589 = vsel %vm2578, 0, %v2588
  %2590 = vst [vmem:[%s2524 + $0x18] sm:$0x10] %v2589
  %v2591 = vld [vmem:[%s2524 + $0x20] sm:$0x10]
  %v2592 = vsel %vm2578, 0, %v2591
  %2593 = vst [vmem:[%s2524 + $0x20] sm:$0x10] %v2592
  %v2594 = vld [vmem:[%s2524 + $0x28] sm:$0x10]
  %v2595 = vsel %vm2578, 0, %v2594
  %2596 = vst [vmem:[%s2524 + $0x28] sm:$0x10] %v2595
  %v2597 = vld [vmem:[%s2524 + $0x30] sm:$0x10]
  %v2598 = vsel %vm2578, 0, %v2597
  %2599 = vst [vmem:[%s2524 + $0x30] sm:$0x10] %v2598
  %v2600 = vld [vmem:[%s2524 + $0x38] sm:$0x10]
  %v2601 = vsel %vm2578, 0, %v2600
  %2602 = vst [vmem:[%s2524 + $0x38] sm:$0x10] %v2601
  %v2603 = vld [vmem:[%s2524 + $0x50] sm:$0x10]
  %v2604 = vsel %vm2578, 0, %v2603
  %2605 = vst [vmem:[%s2524 + $0x50] sm:$0x10] %v2604
  %v2606 = vld [vmem:[%s2524 + $0x58] sm:$0x10]
  %v2607 = vsel %vm2578, 0, %v2606
  %2608 = vst [vmem:[%s2524 + $0x58] sm:$0x10] %v2607
  %v2609 = vld [vmem:[%s2524 + $0x60] sm:$0x10]
  %v2610 = vsel %vm2578, 0, %v2609
  %2611 = vst [vmem:[%s2524 + $0x60] sm:$0x10] %v2610
  %v2612 = vld [vmem:[%s2524 + $0x68] sm:$0x10]
  %v2613 = vsel %vm2578, 0, %v2612
  %2614 = vst [vmem:[%s2524 + $0x68] sm:$0x10] %v2613
  %v2615 = vld [vmem:[%s2524 + $0x70] sm:$0x10]
  %v2616 = vsel %vm2578, 0, %v2615
  %2617 = vst [vmem:[%s2524 + $0x70] sm:$0x10] %v2616
  %v2618 = vld [vmem:[%s2524 + $0x78] sm:$0x10]
  %v2619 = vsel %vm2578, 0, %v2618
  %2620 = vst [vmem:[%s2524 + $0x78] sm:$0x10] %v2619
  %v2621 = vld [vmem:[%s2524 + $0x80] sm:$0x10]
  %v2622 = vsel %vm2578, 0, %v2621
  %2623 = vst [vmem:[%s2524 + $0x80] sm:$0x10] %v2622
  %v2624 = vld [vmem:[%s2524 + $0x88] sm:$0x10]
  %v2625 = vsel %vm2578, 0, %v2624
  %2626 = vst [vmem:[%s2524 + $0x88] sm:$0x10] %v2625
  %v2635 = vunpack.c.l.b16 %v2511
  %v2636 = vunpack.c.h.b16 %v2511
  %v2637 = vunpack.c.l.b16 %v2512
  %v2638 = vunpack.c.h.b16 %v2512
  %v2639 = vunpack.c.l.b16 %v2513
  %v2640 = vunpack.c.h.b16 %v2513
  %v2641 = vunpack.c.l.b16 %v2514
  %v2642 = vunpack.c.h.b16 %v2514
  %v2643 = vunpack.c.l.b16 %v2515
  %v2644 = vunpack.c.h.b16 %v2515
  %v2645 = vunpack.c.l.b16 %v2516
  %v2646 = vunpack.c.h.b16 %v2516
  %v2647 = vunpack.c.l.b16 %v2517
  %v2648 = vunpack.c.h.b16 %v2517
  %v2649 = vunpack.c.l.b16 %v2518
  %v2650 = vunpack.c.h.b16 %v2518
  %v2651 = vpack.c.b16 %v2635, %v2635
  %v2652 = vpack.c.b16 %v2636, %v2636
  %v2653 = vpack.c.b16 %v2637, %v2637
  %v2654 = vpack.c.b16 %v2638, %v2638
  %v2655 = vpack.c.b16 %v2639, %v2639
  %v2656 = vpack.c.b16 %v2640, %v2640
  %v2657 = vpack.c.b16 %v2641, %v2641
  %v2658 = vpack.c.b16 %v2642, %v2642
  %v2659 = vpack.c.b16 %v2643, %v2643
  %v2660 = vpack.c.b16 %v2644, %v2644
  %v2661 = vpack.c.b16 %v2645, %v2645
  %v2662 = vpack.c.b16 %v2646, %v2646
  %v2663 = vpack.c.b16 %v2647, %v2647
  %v2664 = vpack.c.b16 %v2648, %v2648
  %v2665 = vpack.c.b16 %v2649, %v2649
  %v2666 = vpack.c.b16 %v2650, %v2650
  %v2668 = vshrl.u32 %v2651, 16
  %v2670 = vrot.slane %v2668, 7
  %v2671 = vshll.u32 %v2651, 16
  %v2673 = vor.u32 %v2670, %v2671
  %v2675 = vshrl.u32 %v2652, 16
  %v2677 = vrot.slane %v2675, 7
  %v2678 = vshll.u32 %v2652, 16
  %v2680 = vor.u32 %v2677, %v2678
  %v2682 = vshrl.u32 %v2653, 16
  %v2684 = vrot.slane %v2682, 7
  %v2685 = vshll.u32 %v2653, 16
  %v2687 = vor.u32 %v2684, %v2685
  %v2689 = vshrl.u32 %v2654, 16
  %v2691 = vrot.slane %v2689, 7
  %v2692 = vshll.u32 %v2654, 16
  %v2694 = vor.u32 %v2691, %v2692
  %v2696 = vshrl.u32 %v2655, 16
  %v2698 = vrot.slane %v2696, 7
  %v2699 = vshll.u32 %v2655, 16
  %v2701 = vor.u32 %v2698, %v2699
  %v2703 = vshrl.u32 %v2656, 16
  %v2705 = vrot.slane %v2703, 7
  %v2706 = vshll.u32 %v2656, 16
  %v2708 = vor.u32 %v2705, %v2706
  %v2710 = vshrl.u32 %v2657, 16
  %v2712 = vrot.slane %v2710, 7
  %v2713 = vshll.u32 %v2657, 16
  %v2715 = vor.u32 %v2712, %v2713
  %v2717 = vshrl.u32 %v2658, 16
  %v2719 = vrot.slane %v2717, 7
  %v2720 = vshll.u32 %v2658, 16
  %v2722 = vor.u32 %v2719, %v2720
  %v2724 = vshrl.u32 %v2659, 16
  %v2726 = vrot.slane %v2724, 7
  %v2727 = vshll.u32 %v2659, 16
  %v2729 = vor.u32 %v2726, %v2727
  %v2731 = vshrl.u32 %v2660, 16
  %v2733 = vrot.slane %v2731, 7
  %v2734 = vshll.u32 %v2660, 16
  %v2736 = vor.u32 %v2733, %v2734
  %v2738 = vshrl.u32 %v2661, 16
  %v2740 = vrot.slane %v2738, 7
  %v2741 = vshll.u32 %v2661, 16
  %v2743 = vor.u32 %v2740, %v2741
  %v2745 = vshrl.u32 %v2662, 16
  %v2747 = vrot.slane %v2745, 7
  %v2748 = vshll.u32 %v2662, 16
  %v2750 = vor.u32 %v2747, %v2748
  %v2752 = vshrl.u32 %v2663, 16
  %v2754 = vrot.slane %v2752, 7
  %v2755 = vshll.u32 %v2663, 16
  %v2757 = vor.u32 %v2754, %v2755
  %v2759 = vshrl.u32 %v2664, 16
  %v2761 = vrot.slane %v2759, 7
  %v2762 = vshll.u32 %v2664, 16
  %v2764 = vor.u32 %v2761, %v2762
  %v2766 = vshrl.u32 %v2665, 16
  %v2768 = vrot.slane %v2766, 7
  %v2769 = vshll.u32 %v2665, 16
  %v2771 = vor.u32 %v2768, %v2769
  %v2773 = vshrl.u32 %v2666, 16
  %v2775 = vrot.slane %v2773, 7
  %v2776 = vshll.u32 %v2666, 16
  %v2778 = vor.u32 %v2775, %v2776
  %vm2795 = vcmask 1044480
  %vm2796 = vsmask.f32 4354
  %vm2797 = vmand %vm2795, %vm2796
  %v2798 = vld [vmem:[%s2524] sm:$0x1f]
  %v2799 = vsel %vm2797, %v2673, %v2798
  %2800 = vst [vmem:[%s2524] sm:$0x1f] %v2799
  %v2801 = vld [vmem:[%s2524 + $0x8] sm:$0x1f]
  %v2802 = vsel %vm2797, %v2680, %v2801
  %2803 = vst [vmem:[%s2524 + $0x8] sm:$0x1f] %v2802
  %v2804 = vld [vmem:[%s2524 + $0x10] sm:$0x1f]
  %v2805 = vsel %vm2797, %v2687, %v2804
  %2806 = vst [vmem:[%s2524 + $0x10] sm:$0x1f] %v2805
  %v2807 = vld [vmem:[%s2524 + $0x18] sm:$0x1f]
  %v2808 = vsel %vm2797, %v2694, %v2807
  %2809 = vst [vmem:[%s2524 + $0x18] sm:$0x1f] %v2808
  %v2810 = vld [vmem:[%s2524 + $0x20] sm:$0x1f]
  %v2811 = vsel %vm2797, %v2701, %v2810
  %2812 = vst [vmem:[%s2524 + $0x20] sm:$0x1f] %v2811
  %v2813 = vld [vmem:[%s2524 + $0x28] sm:$0x1f]
  %v2814 = vsel %vm2797, %v2708, %v2813
  %2815 = vst [vmem:[%s2524 + $0x28] sm:$0x1f] %v2814
  %v2816 = vld [vmem:[%s2524 + $0x30] sm:$0x1f]
  %v2817 = vsel %vm2797, %v2715, %v2816
  %2818 = vst [vmem:[%s2524 + $0x30] sm:$0x1f] %v2817
  %v2819 = vld [vmem:[%s2524 + $0x38] sm:$0x1f]
  %v2820 = vsel %vm2797, %v2722, %v2819
  %2821 = vst [vmem:[%s2524 + $0x38] sm:$0x1f] %v2820
  %v2822 = vld [vmem:[%s2524 + $0x50] sm:$0x1f]
  %v2823 = vsel %vm2797, %v2729, %v2822
  %2824 = vst [vmem:[%s2524 + $0x50] sm:$0x1f] %v2823
  %v2825 = vld [vmem:[%s2524 + $0x58] sm:$0x1f]
  %v2826 = vsel %vm2797, %v2736, %v2825
  %2827 = vst [vmem:[%s2524 + $0x58] sm:$0x1f] %v2826
  %v2828 = vld [vmem:[%s2524 + $0x60] sm:$0x1f]
  %v2829 = vsel %vm2797, %v2743, %v2828
  %2830 = vst [vmem:[%s2524 + $0x60] sm:$0x1f] %v2829
  %v2831 = vld [vmem:[%s2524 + $0x68] sm:$0x1f]
  %v2832 = vsel %vm2797, %v2750, %v2831
  %2833 = vst [vmem:[%s2524 + $0x68] sm:$0x1f] %v2832
  %v2834 = vld [vmem:[%s2524 + $0x70] sm:$0x1f]
  %v2835 = vsel %vm2797, %v2757, %v2834
  %2836 = vst [vmem:[%s2524 + $0x70] sm:$0x1f] %v2835
  %v2837 = vld [vmem:[%s2524 + $0x78] sm:$0x1f]
  %v2838 = vsel %vm2797, %v2764, %v2837
  %2839 = vst [vmem:[%s2524 + $0x78] sm:$0x1f] %v2838
  %v2840 = vld [vmem:[%s2524 + $0x80] sm:$0x1f]
  %v2841 = vsel %vm2797, %v2771, %v2840
  %2842 = vst [vmem:[%s2524 + $0x80] sm:$0x1f] %v2841
  %v2843 = vld [vmem:[%s2524 + $0x88] sm:$0x1f]
  %v2844 = vsel %vm2797, %v2778, %v2843
  %2845 = vst [vmem:[%s2524 + $0x88] sm:$0x1f] %v2844
  %v2846 = vld [vmem:[#allocation3] sm:$0xf]
  %v2847 = vld [vmem:[#allocation3 + $0x8] sm:$0xf]
  %v2848 = vld [vmem:[#allocation3 + $0x10] sm:$0xf]
  %v2849 = vld [vmem:[#allocation3 + $0x18] sm:$0xf]
  %v2850 = vld [vmem:[#allocation3 + $0x20] sm:$0xf]
  %v2851 = vld [vmem:[#allocation3 + $0x28] sm:$0xf]
  %v2852 = vld [vmem:[#allocation3 + $0x30] sm:$0xf]
  %v2853 = vld [vmem:[#allocation3 + $0x38] sm:$0xf]
  %v2854 = vld [vmem:[#allocation3 + $0x50] sm:$0xf]
  %v2855 = vld [vmem:[#allocation3 + $0x58] sm:$0xf]
  %v2856 = vld [vmem:[#allocation3 + $0x60] sm:$0xf]
  %v2857 = vld [vmem:[#allocation3 + $0x68] sm:$0xf]
  %v2858 = vld [vmem:[#allocation3 + $0x70] sm:$0xf]
  %v2859 = vld [vmem:[#allocation3 + $0x78] sm:$0xf]
  %v2860 = vld [vmem:[#allocation3 + $0x80] sm:$0xf]
  %v2861 = vld [vmem:[#allocation3 + $0x88] sm:$0xf]
  %v2878 = vunpack.c.l.b16 %v2846
  %v2879 = vunpack.c.l.b16 %v2847
  %v2880 = vunpack.c.l.b16 %v2848
  %v2881 = vunpack.c.l.b16 %v2849
  %v2882 = vunpack.c.l.b16 %v2850
  %v2883 = vunpack.c.l.b16 %v2851
  %v2884 = vunpack.c.l.b16 %v2852
  %v2885 = vunpack.c.l.b16 %v2853
  %v2886 = vunpack.c.l.b16 %v2854
  %v2887 = vunpack.c.l.b16 %v2855
  %v2888 = vunpack.c.l.b16 %v2856
  %v2889 = vunpack.c.l.b16 %v2857
  %v2890 = vunpack.c.l.b16 %v2858
  %v2891 = vunpack.c.l.b16 %v2859
  %v2892 = vunpack.c.l.b16 %v2860
  %v2893 = vunpack.c.l.b16 %v2861
  %v2894 = vpack.c.b16 %v2879, %v2878
  %v2895 = vpack.c.b16 %v2881, %v2880
  %v2896 = vpack.c.b16 %v2883, %v2882
  %v2897 = vpack.c.b16 %v2885, %v2884
  %v2898 = vpack.c.b16 %v2887, %v2886
  %v2899 = vpack.c.b16 %v2889, %v2888
  %v2900 = vpack.c.b16 %v2891, %v2890
  %v2901 = vpack.c.b16 %v2893, %v2892
  %2910 = vst [vmem:[#allocation4] sm:$0xff] %v2894
  %2911 = vst [vmem:[#allocation4 + $0x48] sm:$0xff] %v2895
  %2912 = vst [vmem:[#allocation4 + $0x90] sm:$0xff] %v2896
  %2913 = vst [vmem:[#allocation4 + $0xd8] sm:$0xff] %v2897
  %2914 = vst [vmem:[#allocation4 + $0x120] sm:$0xff] %v2898
  %2915 = vst [vmem:[#allocation4 + $0x168] sm:$0xff] %v2899
  %2916 = vst [vmem:[#allocation4 + $0x1b0] sm:$0xff] %v2900
  %2917 = vst [vmem:[#allocation4 + $0x1f8] sm:$0xff] %v2901
  %v2918 = vld [vmem:[#allocation3] sm:$0x1f]
  %v2919 = vld [vmem:[#allocation3 + $0x8] sm:$0x1f]
  %v2920 = vld [vmem:[#allocation3 + $0x10] sm:$0x1f]
  %v2921 = vld [vmem:[#allocation3 + $0x18] sm:$0x1f]
  %v2922 = vld [vmem:[#allocation3 + $0x20] sm:$0x1f]
  %v2923 = vld [vmem:[#allocation3 + $0x28] sm:$0x1f]
  %v2924 = vld [vmem:[#allocation3 + $0x30] sm:$0x1f]
  %v2925 = vld [vmem:[#allocation3 + $0x38] sm:$0x1f]
  %v2926 = vld [vmem:[#allocation3 + $0x50] sm:$0x1f]
  %v2927 = vld [vmem:[#allocation3 + $0x58] sm:$0x1f]
  %v2928 = vld [vmem:[#allocation3 + $0x60] sm:$0x1f]
  %v2929 = vld [vmem:[#allocation3 + $0x68] sm:$0x1f]
  %v2930 = vld [vmem:[#allocation3 + $0x70] sm:$0x1f]
  %v2931 = vld [vmem:[#allocation3 + $0x78] sm:$0x1f]
  %v2932 = vld [vmem:[#allocation3 + $0x80] sm:$0x1f]
  %v2933 = vld [vmem:[#allocation3 + $0x88] sm:$0x1f]
  %v2950 = vunpack.c.l.b16 %v2918
  %v2951 = vunpack.c.h.b16 %v2918
  %v2952 = vunpack.c.l.b16 %v2919
  %v2953 = vunpack.c.h.b16 %v2919
  %v2954 = vunpack.c.l.b16 %v2920
  %v2955 = vunpack.c.h.b16 %v2920
  %v2956 = vunpack.c.l.b16 %v2921
  %v2957 = vunpack.c.h.b16 %v2921
  %v2958 = vunpack.c.l.b16 %v2922
  %v2959 = vunpack.c.h.b16 %v2922
  %v2960 = vunpack.c.l.b16 %v2923
  %v2961 = vunpack.c.h.b16 %v2923
  %v2962 = vunpack.c.l.b16 %v2924
  %v2963 = vunpack.c.h.b16 %v2924
  %v2964 = vunpack.c.l.b16 %v2925
  %v2965 = vunpack.c.h.b16 %v2925
  %v2966 = vunpack.c.l.b16 %v2926
  %v2967 = vunpack.c.h.b16 %v2926
  %v2968 = vunpack.c.l.b16 %v2927
  %v2969 = vunpack.c.h.b16 %v2927
  %v2970 = vunpack.c.l.b16 %v2928
  %v2971 = vunpack.c.h.b16 %v2928
  %v2972 = vunpack.c.l.b16 %v2929
  %v2973 = vunpack.c.h.b16 %v2929
  %v2974 = vunpack.c.l.b16 %v2930
  %v2975 = vunpack.c.h.b16 %v2930
  %v2976 = vunpack.c.l.b16 %v2931
  %v2977 = vunpack.c.h.b16 %v2931
  %v2978 = vunpack.c.l.b16 %v2932
  %v2979 = vunpack.c.h.b16 %v2932
  %v2980 = vunpack.c.l.b16 %v2933
  %v2981 = vunpack.c.h.b16 %v2933
  %v2982 = vpack.c.b16 %v2950, %v2950
  %v2983 = vpack.c.b16 %v2951, %v2951
  %v2984 = vpack.c.b16 %v2952, %v2952
  %v2985 = vpack.c.b16 %v2953, %v2953
  %v2986 = vpack.c.b16 %v2954, %v2954
  %v2987 = vpack.c.b16 %v2955, %v2955
  %v2988 = vpack.c.b16 %v2956, %v2956
  %v2989 = vpack.c.b16 %v2957, %v2957
  %v2990 = vpack.c.b16 %v2958, %v2958
  %v2991 = vpack.c.b16 %v2959, %v2959
  %v2992 = vpack.c.b16 %v2960, %v2960
  %v2993 = vpack.c.b16 %v2961, %v2961
  %v2994 = vpack.c.b16 %v2962, %v2962
  %v2995 = vpack.c.b16 %v2963, %v2963
  %v2996 = vpack.c.b16 %v2964, %v2964
  %v2997 = vpack.c.b16 %v2965, %v2965
  %v2998 = vpack.c.b16 %v2966, %v2966
  %v2999 = vpack.c.b16 %v2967, %v2967
  %v3000 = vpack.c.b16 %v2968, %v2968
  %v3001 = vpack.c.b16 %v2969, %v2969
  %v3002 = vpack.c.b16 %v2970, %v2970
  %v3003 = vpack.c.b16 %v2971, %v2971
  %v3004 = vpack.c.b16 %v2972, %v2972
  %v3005 = vpack.c.b16 %v2973, %v2973
  %v3006 = vpack.c.b16 %v2974, %v2974
  %v3007 = vpack.c.b16 %v2975, %v2975
  %v3008 = vpack.c.b16 %v2976, %v2976
  %v3009 = vpack.c.b16 %v2977, %v2977
  %v3010 = vpack.c.b16 %v2978, %v2978
  %v3011 = vpack.c.b16 %v2979, %v2979
  %v3012 = vpack.c.b16 %v2980, %v2980
  %v3013 = vpack.c.b16 %v2981, %v2981
  %v3015 = vshrl.u32 %v2982, 16
  %v3017 = vrot.slane %v3015, 4
  %v3018 = vshll.u32 %v2982, 16
  %v3020 = vrot.slane %v3018, 5
  %v3021 = vor.u32 %v3017, %v3020
  %v3022 = vrot.slane %v3021, 4
  %v3024 = vshll.u32 %v2983, 16
  %v3026 = vrot.slane %v3024, 5
  %v3027 = vsel %vm206, %v3022, %v3026
  %v3029 = vshrl.u32 %v2984, 16
  %v3031 = vrot.slane %v3029, 4
  %v3032 = vshll.u32 %v2984, 16
  %v3034 = vrot.slane %v3032, 5
  %v3035 = vor.u32 %v3031, %v3034
  %v3036 = vrot.slane %v3035, 4
  %v3038 = vshll.u32 %v2985, 16
  %v3040 = vrot.slane %v3038, 5
  %v3041 = vsel %vm206, %v3036, %v3040
  %v3043 = vshrl.u32 %v2986, 16
  %v3045 = vrot.slane %v3043, 4
  %v3046 = vshll.u32 %v2986, 16
  %v3048 = vrot.slane %v3046, 5
  %v3049 = vor.u32 %v3045, %v3048
  %v3050 = vrot.slane %v3049, 4
  %v3052 = vshll.u32 %v2987, 16
  %v3054 = vrot.slane %v3052, 5
  %v3055 = vsel %vm206, %v3050, %v3054
  %v3057 = vshrl.u32 %v2988, 16
  %v3059 = vrot.slane %v3057, 4
  %v3060 = vshll.u32 %v2988, 16
  %v3062 = vrot.slane %v3060, 5
  %v3063 = vor.u32 %v3059, %v3062
  %v3064 = vrot.slane %v3063, 4
  %v3066 = vshll.u32 %v2989, 16
  %v3068 = vrot.slane %v3066, 5
  %v3069 = vsel %vm206, %v3064, %v3068
  %v3071 = vshrl.u32 %v2990, 16
  %v3073 = vrot.slane %v3071, 4
  %v3074 = vshll.u32 %v2990, 16
  %v3076 = vrot.slane %v3074, 5
  %v3077 = vor.u32 %v3073, %v3076
  %v3078 = vrot.slane %v3077, 4
  %v3080 = vshll.u32 %v2991, 16
  %v3082 = vrot.slane %v3080, 5
  %v3083 = vsel %vm206, %v3078, %v3082
  %v3085 = vshrl.u32 %v2992, 16
  %v3087 = vrot.slane %v3085, 4
  %v3088 = vshll.u32 %v2992, 16
  %v3090 = vrot.slane %v3088, 5
  %v3091 = vor.u32 %v3087, %v3090
  %v3092 = vrot.slane %v3091, 4
  %v3094 = vshll.u32 %v2993, 16
  %v3096 = vrot.slane %v3094, 5
  %v3097 = vsel %vm206, %v3092, %v3096
  %v3099 = vshrl.u32 %v2994, 16
  %v3101 = vrot.slane %v3099, 4
  %v3102 = vshll.u32 %v2994, 16
  %v3104 = vrot.slane %v3102, 5
  %v3105 = vor.u32 %v3101, %v3104
  %v3106 = vrot.slane %v3105, 4
  %v3108 = vshll.u32 %v2995, 16
  %v3110 = vrot.slane %v3108, 5
  %v3111 = vsel %vm206, %v3106, %v3110
  %v3113 = vshrl.u32 %v2996, 16
  %v3115 = vrot.slane %v3113, 4
  %v3116 = vshll.u32 %v2996, 16
  %v3118 = vrot.slane %v3116, 5
  %v3119 = vor.u32 %v3115, %v3118
  %v3120 = vrot.slane %v3119, 4
  %v3122 = vshll.u32 %v2997, 16
  %v3124 = vrot.slane %v3122, 5
  %v3125 = vsel %vm206, %v3120, %v3124
  %v3127 = vshrl.u32 %v2998, 16
  %v3129 = vrot.slane %v3127, 4
  %v3130 = vshll.u32 %v2998, 16
  %v3132 = vrot.slane %v3130, 5
  %v3133 = vor.u32 %v3129, %v3132
  %v3134 = vrot.slane %v3133, 4
  %v3136 = vshll.u32 %v2999, 16
  %v3138 = vrot.slane %v3136, 5
  %v3139 = vsel %vm206, %v3134, %v3138
  %v3141 = vshrl.u32 %v3000, 16
  %v3143 = vrot.slane %v3141, 4
  %v3144 = vshll.u32 %v3000, 16
  %v3146 = vrot.slane %v3144, 5
  %v3147 = vor.u32 %v3143, %v3146
  %v3148 = vrot.slane %v3147, 4
  %v3150 = vshll.u32 %v3001, 16
  %v3152 = vrot.slane %v3150, 5
  %v3153 = vsel %vm206, %v3148, %v3152
  %v3155 = vshrl.u32 %v3002, 16
  %v3157 = vrot.slane %v3155, 4
  %v3158 = vshll.u32 %v3002, 16
  %v3160 = vrot.slane %v3158, 5
  %v3161 = vor.u32 %v3157, %v3160
  %v3162 = vrot.slane %v3161, 4
  %v3164 = vshll.u32 %v3003, 16
  %v3166 = vrot.slane %v3164, 5
  %v3167 = vsel %vm206, %v3162, %v3166
  %v3169 = vshrl.u32 %v3004, 16
  %v3171 = vrot.slane %v3169, 4
  %v3172 = vshll.u32 %v3004, 16
  %v3174 = vrot.slane %v3172, 5
  %v3175 = vor.u32 %v3171, %v3174
  %v3176 = vrot.slane %v3175, 4
  %v3178 = vshll.u32 %v3005, 16
  %v3180 = vrot.slane %v3178, 5
  %v3181 = vsel %vm206, %v3176, %v3180
  %v3183 = vshrl.u32 %v3006, 16
  %v3185 = vrot.slane %v3183, 4
  %v3186 = vshll.u32 %v3006, 16
  %v3188 = vrot.slane %v3186, 5
  %v3189 = vor.u32 %v3185, %v3188
  %v3190 = vrot.slane %v3189, 4
  %v3192 = vshll.u32 %v3007, 16
  %v3194 = vrot.slane %v3192, 5
  %v3195 = vsel %vm206, %v3190, %v3194
  %v3197 = vshrl.u32 %v3008, 16
  %v3199 = vrot.slane %v3197, 4
  %v3200 = vshll.u32 %v3008, 16
  %v3202 = vrot.slane %v3200, 5
  %v3203 = vor.u32 %v3199, %v3202
  %v3204 = vrot.slane %v3203, 4
  %v3206 = vshll.u32 %v3009, 16
  %v3208 = vrot.slane %v3206, 5
  %v3209 = vsel %vm206, %v3204, %v3208
  %v3211 = vshrl.u32 %v3010, 16
  %v3213 = vrot.slane %v3211, 4
  %v3214 = vshll.u32 %v3010, 16
  %v3216 = vrot.slane %v3214, 5
  %v3217 = vor.u32 %v3213, %v3216
  %v3218 = vrot.slane %v3217, 4
  %v3220 = vshll.u32 %v3011, 16
  %v3222 = vrot.slane %v3220, 5
  %v3223 = vsel %vm206, %v3218, %v3222
  %v3225 = vshrl.u32 %v3012, 16
  %v3227 = vrot.slane %v3225, 4
  %v3228 = vshll.u32 %v3012, 16
  %v3230 = vrot.slane %v3228, 5
  %v3231 = vor.u32 %v3227, %v3230
  %v3232 = vrot.slane %v3231, 4
  %v3234 = vshll.u32 %v3013, 16
  %v3236 = vrot.slane %v3234, 5
  %v3237 = vsel %vm206, %v3232, %v3236
  %v3238 = vunpack.c.l.b16 %v3027
  %v3239 = vunpack.c.l.b16 %v3041
  %v3240 = vunpack.c.l.b16 %v3055
  %v3241 = vunpack.c.l.b16 %v3069
  %v3242 = vunpack.c.l.b16 %v3083
  %v3243 = vunpack.c.l.b16 %v3097
  %v3244 = vunpack.c.l.b16 %v3111
  %v3245 = vunpack.c.l.b16 %v3125
  %v3246 = vunpack.c.l.b16 %v3139
  %v3247 = vunpack.c.l.b16 %v3153
  %v3248 = vunpack.c.l.b16 %v3167
  %v3249 = vunpack.c.l.b16 %v3181
  %v3250 = vunpack.c.l.b16 %v3195
  %v3251 = vunpack.c.l.b16 %v3209
  %v3252 = vunpack.c.l.b16 %v3223
  %v3253 = vunpack.c.l.b16 %v3237
  %v3254 = vpack.c.b16 %v3239, %v3238
  %v3255 = vpack.c.b16 %v3241, %v3240
  %v3256 = vpack.c.b16 %v3243, %v3242
  %v3257 = vpack.c.b16 %v3245, %v3244
  %v3258 = vpack.c.b16 %v3247, %v3246
  %v3259 = vpack.c.b16 %v3249, %v3248
  %v3260 = vpack.c.b16 %v3251, %v3250
  %v3261 = vpack.c.b16 %v3253, %v3252
  %3270 = vst [vmem:[#allocation4 + $0x8] sm:$0xff] %v3254
  %3271 = vst [vmem:[#allocation4 + $0x50] sm:$0xff] %v3255
  %3272 = vst [vmem:[#allocation4 + $0x98] sm:$0xff] %v3256
  %3273 = vst [vmem:[#allocation4 + $0xe0] sm:$0xff] %v3257
  %3274 = vst [vmem:[#allocation4 + $0x128] sm:$0xff] %v3258
  %3275 = vst [vmem:[#allocation4 + $0x170] sm:$0xff] %v3259
  %3276 = vst [vmem:[#allocation4 + $0x1b8] sm:$0xff] %v3260
  %3277 = vst [vmem:[#allocation4 + $0x200] sm:$0xff] %v3261
  %v3278 = vld [vmem:[#allocation3] sm:$0x1e]
  %v3279 = vld [vmem:[#allocation3 + $0x8] sm:$0x1e]
  %v3280 = vld [vmem:[#allocation3 + $0x10] sm:$0x1e]
  %v3281 = vld [vmem:[#allocation3 + $0x18] sm:$0x1e]
  %v3282 = vld [vmem:[#allocation3 + $0x20] sm:$0x1e]
  %v3283 = vld [vmem:[#allocation3 + $0x28] sm:$0x1e]
  %v3284 = vld [vmem:[#allocation3 + $0x30] sm:$0x1e]
  %v3285 = vld [vmem:[#allocation3 + $0x38] sm:$0x1e]
  %v3286 = vld [vmem:[#allocation3 + $0x50] sm:$0x1e]
  %v3287 = vld [vmem:[#allocation3 + $0x58] sm:$0x1e]
  %v3288 = vld [vmem:[#allocation3 + $0x60] sm:$0x1e]
  %v3289 = vld [vmem:[#allocation3 + $0x68] sm:$0x1e]
  %v3290 = vld [vmem:[#allocation3 + $0x70] sm:$0x1e]
  %v3291 = vld [vmem:[#allocation3 + $0x78] sm:$0x1e]
  %v3292 = vld [vmem:[#allocation3 + $0x80] sm:$0x1e]
  %v3293 = vld [vmem:[#allocation3 + $0x88] sm:$0x1e]
  %v3310 = vunpack.c.l.b16 %v3278
  %v3311 = vunpack.c.h.b16 %v3278
  %v3312 = vunpack.c.l.b16 %v3279
  %v3313 = vunpack.c.h.b16 %v3279
  %v3314 = vunpack.c.l.b16 %v3280
  %v3315 = vunpack.c.h.b16 %v3280
  %v3316 = vunpack.c.l.b16 %v3281
  %v3317 = vunpack.c.h.b16 %v3281
  %v3318 = vunpack.c.l.b16 %v3282
  %v3319 = vunpack.c.h.b16 %v3282
  %v3320 = vunpack.c.l.b16 %v3283
  %v3321 = vunpack.c.h.b16 %v3283
  %v3322 = vunpack.c.l.b16 %v3284
  %v3323 = vunpack.c.h.b16 %v3284
  %v3324 = vunpack.c.l.b16 %v3285
  %v3325 = vunpack.c.h.b16 %v3285
  %v3326 = vunpack.c.l.b16 %v3286
  %v3327 = vunpack.c.h.b16 %v3286
  %v3328 = vunpack.c.l.b16 %v3287
  %v3329 = vunpack.c.h.b16 %v3287
  %v3330 = vunpack.c.l.b16 %v3288
  %v3331 = vunpack.c.h.b16 %v3288
  %v3332 = vunpack.c.l.b16 %v3289
  %v3333 = vunpack.c.h.b16 %v3289
  %v3334 = vunpack.c.l.b16 %v3290
  %v3335 = vunpack.c.h.b16 %v3290
  %v3336 = vunpack.c.l.b16 %v3291
  %v3337 = vunpack.c.h.b16 %v3291
  %v3338 = vunpack.c.l.b16 %v3292
  %v3339 = vunpack.c.h.b16 %v3292
  %v3340 = vunpack.c.l.b16 %v3293
  %v3341 = vunpack.c.h.b16 %v3293
  %v3342 = vpack.c.b16 %v3310, %v3310
  %v3343 = vpack.c.b16 %v3311, %v3311
  %v3344 = vpack.c.b16 %v3312, %v3312
  %v3345 = vpack.c.b16 %v3313, %v3313
  %v3346 = vpack.c.b16 %v3314, %v3314
  %v3347 = vpack.c.b16 %v3315, %v3315
  %v3348 = vpack.c.b16 %v3316, %v3316
  %v3349 = vpack.c.b16 %v3317, %v3317
  %v3350 = vpack.c.b16 %v3318, %v3318
  %v3351 = vpack.c.b16 %v3319, %v3319
  %v3352 = vpack.c.b16 %v3320, %v3320
  %v3353 = vpack.c.b16 %v3321, %v3321
  %v3354 = vpack.c.b16 %v3322, %v3322
  %v3355 = vpack.c.b16 %v3323, %v3323
  %v3356 = vpack.c.b16 %v3324, %v3324
  %v3357 = vpack.c.b16 %v3325, %v3325
  %v3358 = vpack.c.b16 %v3326, %v3326
  %v3359 = vpack.c.b16 %v3327, %v3327
  %v3360 = vpack.c.b16 %v3328, %v3328
  %v3361 = vpack.c.b16 %v3329, %v3329
  %v3362 = vpack.c.b16 %v3330, %v3330
  %v3363 = vpack.c.b16 %v3331, %v3331
  %v3364 = vpack.c.b16 %v3332, %v3332
  %v3365 = vpack.c.b16 %v3333, %v3333
  %v3366 = vpack.c.b16 %v3334, %v3334
  %v3367 = vpack.c.b16 %v3335, %v3335
  %v3368 = vpack.c.b16 %v3336, %v3336
  %v3369 = vpack.c.b16 %v3337, %v3337
  %v3370 = vpack.c.b16 %v3338, %v3338
  %v3371 = vpack.c.b16 %v3339, %v3339
  %v3372 = vpack.c.b16 %v3340, %v3340
  %v3373 = vpack.c.b16 %v3341, %v3341
  %vm3374 = vcmask 1042432
  %vm3375 = vcmask 1046532
  %vm3376 = vmor %vm3374, %vm3375
  %v3377 = vrot.slane %v3342, 5
  %v3378 = vrot.slane %v3377, 4
  %v3379 = vrot.slane %v3343, 5
  %v3380 = vsel %vm3376, %v3378, %v3379
  %v3381 = vrot.slane %v3344, 5
  %v3382 = vrot.slane %v3381, 4
  %v3383 = vrot.slane %v3345, 5
  %v3384 = vsel %vm3376, %v3382, %v3383
  %v3385 = vrot.slane %v3346, 5
  %v3386 = vrot.slane %v3385, 4
  %v3387 = vrot.slane %v3347, 5
  %v3388 = vsel %vm3376, %v3386, %v3387
  %v3389 = vrot.slane %v3348, 5
  %v3390 = vrot.slane %v3389, 4
  %v3391 = vrot.slane %v3349, 5
  %v3392 = vsel %vm3376, %v3390, %v3391
  %v3393 = vrot.slane %v3350, 5
  %v3394 = vrot.slane %v3393, 4
  %v3395 = vrot.slane %v3351, 5
  %v3396 = vsel %vm3376, %v3394, %v3395
  %v3397 = vrot.slane %v3352, 5
  %v3398 = vrot.slane %v3397, 4
  %v3399 = vrot.slane %v3353, 5
  %v3400 = vsel %vm3376, %v3398, %v3399
  %v3401 = vrot.slane %v3354, 5
  %v3402 = vrot.slane %v3401, 4
  %v3403 = vrot.slane %v3355, 5
  %v3404 = vsel %vm3376, %v3402, %v3403
  %v3405 = vrot.slane %v3356, 5
  %v3406 = vrot.slane %v3405, 4
  %v3407 = vrot.slane %v3357, 5
  %v3408 = vsel %vm3376, %v3406, %v3407
  %v3409 = vrot.slane %v3358, 5
  %v3410 = vrot.slane %v3409, 4
  %v3411 = vrot.slane %v3359, 5
  %v3412 = vsel %vm3376, %v3410, %v3411
  %v3413 = vrot.slane %v3360, 5
  %v3414 = vrot.slane %v3413, 4
  %v3415 = vrot.slane %v3361, 5
  %v3416 = vsel %vm3376, %v3414, %v3415
  %v3417 = vrot.slane %v3362, 5
  %v3418 = vrot.slane %v3417, 4
  %v3419 = vrot.slane %v3363, 5
  %v3420 = vsel %vm3376, %v3418, %v3419
  %v3421 = vrot.slane %v3364, 5
  %v3422 = vrot.slane %v3421, 4
  %v3423 = vrot.slane %v3365, 5
  %v3424 = vsel %vm3376, %v3422, %v3423
  %v3425 = vrot.slane %v3366, 5
  %v3426 = vrot.slane %v3425, 4
  %v3427 = vrot.slane %v3367, 5
  %v3428 = vsel %vm3376, %v3426, %v3427
  %v3429 = vrot.slane %v3368, 5
  %v3430 = vrot.slane %v3429, 4
  %v3431 = vrot.slane %v3369, 5
  %v3432 = vsel %vm3376, %v3430, %v3431
  %v3433 = vrot.slane %v3370, 5
  %v3434 = vrot.slane %v3433, 4
  %v3435 = vrot.slane %v3371, 5
  %v3436 = vsel %vm3376, %v3434, %v3435
  %v3437 = vrot.slane %v3372, 5
  %v3438 = vrot.slane %v3437, 4
  %v3439 = vrot.slane %v3373, 5
  %v3440 = vsel %vm3376, %v3438, %v3439
  %v3441 = vunpack.c.l.b16 %v3380
  %v3442 = vunpack.c.l.b16 %v3384
  %v3443 = vunpack.c.l.b16 %v3388
  %v3444 = vunpack.c.l.b16 %v3392
  %v3445 = vunpack.c.l.b16 %v3396
  %v3446 = vunpack.c.l.b16 %v3400
  %v3447 = vunpack.c.l.b16 %v3404
  %v3448 = vunpack.c.l.b16 %v3408
  %v3449 = vunpack.c.l.b16 %v3412
  %v3450 = vunpack.c.l.b16 %v3416
  %v3451 = vunpack.c.l.b16 %v3420
  %v3452 = vunpack.c.l.b16 %v3424
  %v3453 = vunpack.c.l.b16 %v3428
  %v3454 = vunpack.c.l.b16 %v3432
  %v3455 = vunpack.c.l.b16 %v3436
  %v3456 = vunpack.c.l.b16 %v3440
  %v3457 = vpack.c.b16 %v3442, %v3441
  %v3458 = vpack.c.b16 %v3444, %v3443
  %v3459 = vpack.c.b16 %v3446, %v3445
  %v3460 = vpack.c.b16 %v3448, %v3447
  %v3461 = vpack.c.b16 %v3450, %v3449
  %v3462 = vpack.c.b16 %v3452, %v3451
  %v3463 = vpack.c.b16 %v3454, %v3453
  %v3464 = vpack.c.b16 %v3456, %v3455
  %3473 = vst [vmem:[#allocation4 + $0x10] sm:$0xff] %v3457
  %3474 = vst [vmem:[#allocation4 + $0x58] sm:$0xff] %v3458
  %3475 = vst [vmem:[#allocation4 + $0xa0] sm:$0xff] %v3459
  %3476 = vst [vmem:[#allocation4 + $0xe8] sm:$0xff] %v3460
  %3477 = vst [vmem:[#allocation4 + $0x130] sm:$0xff] %v3461
  %3478 = vst [vmem:[#allocation4 + $0x178] sm:$0xff] %v3462
  %3479 = vst [vmem:[#allocation4 + $0x1c0] sm:$0xff] %v3463
  %3480 = vst [vmem:[#allocation4 + $0x208] sm:$0xff] %v3464
  %v3481 = vld [vmem:[%s2524] sm:$0xf]
  %v3482 = vld [vmem:[%s2524 + $0x8] sm:$0xf]
  %v3483 = vld [vmem:[%s2524 + $0x10] sm:$0xf]
  %v3484 = vld [vmem:[%s2524 + $0x18] sm:$0xf]
  %v3485 = vld [vmem:[%s2524 + $0x20] sm:$0xf]
  %v3486 = vld [vmem:[%s2524 + $0x28] sm:$0xf]
  %v3487 = vld [vmem:[%s2524 + $0x30] sm:$0xf]
  %v3488 = vld [vmem:[%s2524 + $0x38] sm:$0xf]
  %v3489 = vld [vmem:[%s2524 + $0x50] sm:$0xf]
  %v3490 = vld [vmem:[%s2524 + $0x58] sm:$0xf]
  %v3491 = vld [vmem:[%s2524 + $0x60] sm:$0xf]
  %v3492 = vld [vmem:[%s2524 + $0x68] sm:$0xf]
  %v3493 = vld [vmem:[%s2524 + $0x70] sm:$0xf]
  %v3494 = vld [vmem:[%s2524 + $0x78] sm:$0xf]
  %v3495 = vld [vmem:[%s2524 + $0x80] sm:$0xf]
  %v3496 = vld [vmem:[%s2524 + $0x88] sm:$0xf]
  %v3513 = vunpack.c.l.b16 %v3481
  %v3514 = vunpack.c.l.b16 %v3482
  %v3515 = vunpack.c.l.b16 %v3483
  %v3516 = vunpack.c.l.b16 %v3484
  %v3517 = vunpack.c.l.b16 %v3485
  %v3518 = vunpack.c.l.b16 %v3486
  %v3519 = vunpack.c.l.b16 %v3487
  %v3520 = vunpack.c.l.b16 %v3488
  %v3521 = vunpack.c.l.b16 %v3489
  %v3522 = vunpack.c.l.b16 %v3490
  %v3523 = vunpack.c.l.b16 %v3491
  %v3524 = vunpack.c.l.b16 %v3492
  %v3525 = vunpack.c.l.b16 %v3493
  %v3526 = vunpack.c.l.b16 %v3494
  %v3527 = vunpack.c.l.b16 %v3495
  %v3528 = vunpack.c.l.b16 %v3496
  %v3529 = vpack.c.b16 %v3514, %v3513
  %v3530 = vpack.c.b16 %v3516, %v3515
  %v3531 = vpack.c.b16 %v3518, %v3517
  %v3532 = vpack.c.b16 %v3520, %v3519
  %v3533 = vpack.c.b16 %v3522, %v3521
  %v3534 = vpack.c.b16 %v3524, %v3523
  %v3535 = vpack.c.b16 %v3526, %v3525
  %v3536 = vpack.c.b16 %v3528, %v3527
  %3545 = vst [vmem:[#allocation4 + $0x18] sm:$0xff] %v3529
  %3546 = vst [vmem:[#allocation4 + $0x60] sm:$0xff] %v3530
  %3547 = vst [vmem:[#allocation4 + $0xa8] sm:$0xff] %v3531
  %3548 = vst [vmem:[#allocation4 + $0xf0] sm:$0xff] %v3532
  %3549 = vst [vmem:[#allocation4 + $0x138] sm:$0xff] %v3533
  %3550 = vst [vmem:[#allocation4 + $0x180] sm:$0xff] %v3534
  %3551 = vst [vmem:[#allocation4 + $0x1c8] sm:$0xff] %v3535
  %3552 = vst [vmem:[#allocation4 + $0x210] sm:$0xff] %v3536
  %v3553 = vld [vmem:[%s2524] sm:$0x1f]
  %v3554 = vld [vmem:[%s2524 + $0x8] sm:$0x1f]
  %v3555 = vld [vmem:[%s2524 + $0x10] sm:$0x1f]
  %v3556 = vld [vmem:[%s2524 + $0x18] sm:$0x1f]
  %v3557 = vld [vmem:[%s2524 + $0x20] sm:$0x1f]
  %v3558 = vld [vmem:[%s2524 + $0x28] sm:$0x1f]
  %v3559 = vld [vmem:[%s2524 + $0x30] sm:$0x1f]
  %v3560 = vld [vmem:[%s2524 + $0x38] sm:$0x1f]
  %v3561 = vld [vmem:[%s2524 + $0x50] sm:$0x1f]
  %v3562 = vld [vmem:[%s2524 + $0x58] sm:$0x1f]
  %v3563 = vld [vmem:[%s2524 + $0x60] sm:$0x1f]
  %v3564 = vld [vmem:[%s2524 + $0x68] sm:$0x1f]
  %v3565 = vld [vmem:[%s2524 + $0x70] sm:$0x1f]
  %v3566 = vld [vmem:[%s2524 + $0x78] sm:$0x1f]
  %v3567 = vld [vmem:[%s2524 + $0x80] sm:$0x1f]
  %v3568 = vld [vmem:[%s2524 + $0x88] sm:$0x1f]
  %v3585 = vunpack.c.l.b16 %v3553
  %v3586 = vunpack.c.h.b16 %v3553
  %v3587 = vunpack.c.l.b16 %v3554
  %v3588 = vunpack.c.h.b16 %v3554
  %v3589 = vunpack.c.l.b16 %v3555
  %v3590 = vunpack.c.h.b16 %v3555
  %v3591 = vunpack.c.l.b16 %v3556
  %v3592 = vunpack.c.h.b16 %v3556
  %v3593 = vunpack.c.l.b16 %v3557
  %v3594 = vunpack.c.h.b16 %v3557
  %v3595 = vunpack.c.l.b16 %v3558
  %v3596 = vunpack.c.h.b16 %v3558
  %v3597 = vunpack.c.l.b16 %v3559
  %v3598 = vunpack.c.h.b16 %v3559
  %v3599 = vunpack.c.l.b16 %v3560
  %v3600 = vunpack.c.h.b16 %v3560
  %v3601 = vunpack.c.l.b16 %v3561
  %v3602 = vunpack.c.h.b16 %v3561
  %v3603 = vunpack.c.l.b16 %v3562
  %v3604 = vunpack.c.h.b16 %v3562
  %v3605 = vunpack.c.l.b16 %v3563
  %v3606 = vunpack.c.h.b16 %v3563
  %v3607 = vunpack.c.l.b16 %v3564
  %v3608 = vunpack.c.h.b16 %v3564
  %v3609 = vunpack.c.l.b16 %v3565
  %v3610 = vunpack.c.h.b16 %v3565
  %v3611 = vunpack.c.l.b16 %v3566
  %v3612 = vunpack.c.h.b16 %v3566
  %v3613 = vunpack.c.l.b16 %v3567
  %v3614 = vunpack.c.h.b16 %v3567
  %v3615 = vunpack.c.l.b16 %v3568
  %v3616 = vunpack.c.h.b16 %v3568
  %v3617 = vpack.c.b16 %v3585, %v3585
  %v3618 = vpack.c.b16 %v3586, %v3586
  %v3619 = vpack.c.b16 %v3587, %v3587
  %v3620 = vpack.c.b16 %v3588, %v3588
  %v3621 = vpack.c.b16 %v3589, %v3589
  %v3622 = vpack.c.b16 %v3590, %v3590
  %v3623 = vpack.c.b16 %v3591, %v3591
  %v3624 = vpack.c.b16 %v3592, %v3592
  %v3625 = vpack.c.b16 %v3593, %v3593
  %v3626 = vpack.c.b16 %v3594, %v3594
  %v3627 = vpack.c.b16 %v3595, %v3595
  %v3628 = vpack.c.b16 %v3596, %v3596
  %v3629 = vpack.c.b16 %v3597, %v3597
  %v3630 = vpack.c.b16 %v3598, %v3598
  %v3631 = vpack.c.b16 %v3599, %v3599
  %v3632 = vpack.c.b16 %v3600, %v3600
  %v3633 = vpack.c.b16 %v3601, %v3601
  %v3634 = vpack.c.b16 %v3602, %v3602
  %v3635 = vpack.c.b16 %v3603, %v3603
  %v3636 = vpack.c.b16 %v3604, %v3604
  %v3637 = vpack.c.b16 %v3605, %v3605
  %v3638 = vpack.c.b16 %v3606, %v3606
  %v3639 = vpack.c.b16 %v3607, %v3607
  %v3640 = vpack.c.b16 %v3608, %v3608
  %v3641 = vpack.c.b16 %v3609, %v3609
  %v3642 = vpack.c.b16 %v3610, %v3610
  %v3643 = vpack.c.b16 %v3611, %v3611
  %v3644 = vpack.c.b16 %v3612, %v3612
  %v3645 = vpack.c.b16 %v3613, %v3613
  %v3646 = vpack.c.b16 %v3614, %v3614
  %v3647 = vpack.c.b16 %v3615, %v3615
  %v3648 = vpack.c.b16 %v3616, %v3616
  %v3650 = vshrl.u32 %v3617, 16
  %v3652 = vrot.slane %v3650, 4
  %v3653 = vshll.u32 %v3617, 16
  %v3655 = vrot.slane %v3653, 5
  %v3656 = vor.u32 %v3652, %v3655
  %v3657 = vrot.slane %v3656, 4
  %v3659 = vshll.u32 %v3618, 16
  %v3661 = vrot.slane %v3659, 5
  %v3662 = vsel %vm206, %v3657, %v3661
  %v3664 = vshrl.u32 %v3619, 16
  %v3666 = vrot.slane %v3664, 4
  %v3667 = vshll.u32 %v3619, 16
  %v3669 = vrot.slane %v3667, 5
  %v3670 = vor.u32 %v3666, %v3669
  %v3671 = vrot.slane %v3670, 4
  %v3673 = vshll.u32 %v3620, 16
  %v3675 = vrot.slane %v3673, 5
  %v3676 = vsel %vm206, %v3671, %v3675
  %v3678 = vshrl.u32 %v3621, 16
  %v3680 = vrot.slane %v3678, 4
  %v3681 = vshll.u32 %v3621, 16
  %v3683 = vrot.slane %v3681, 5
  %v3684 = vor.u32 %v3680, %v3683
  %v3685 = vrot.slane %v3684, 4
  %v3687 = vshll.u32 %v3622, 16
  %v3689 = vrot.slane %v3687, 5
  %v3690 = vsel %vm206, %v3685, %v3689
  %v3692 = vshrl.u32 %v3623, 16
  %v3694 = vrot.slane %v3692, 4
  %v3695 = vshll.u32 %v3623, 16
  %v3697 = vrot.slane %v3695, 5
  %v3698 = vor.u32 %v3694, %v3697
  %v3699 = vrot.slane %v3698, 4
  %v3701 = vshll.u32 %v3624, 16
  %v3703 = vrot.slane %v3701, 5
  %v3704 = vsel %vm206, %v3699, %v3703
  %v3706 = vshrl.u32 %v3625, 16
  %v3708 = vrot.slane %v3706, 4
  %v3709 = vshll.u32 %v3625, 16
  %v3711 = vrot.slane %v3709, 5
  %v3712 = vor.u32 %v3708, %v3711
  %v3713 = vrot.slane %v3712, 4
  %v3715 = vshll.u32 %v3626, 16
  %v3717 = vrot.slane %v3715, 5
  %v3718 = vsel %vm206, %v3713, %v3717
  %v3720 = vshrl.u32 %v3627, 16
  %v3722 = vrot.slane %v3720, 4
  %v3723 = vshll.u32 %v3627, 16
  %v3725 = vrot.slane %v3723, 5
  %v3726 = vor.u32 %v3722, %v3725
  %v3727 = vrot.slane %v3726, 4
  %v3729 = vshll.u32 %v3628, 16
  %v3731 = vrot.slane %v3729, 5
  %v3732 = vsel %vm206, %v3727, %v3731
  %v3734 = vshrl.u32 %v3629, 16
  %v3736 = vrot.slane %v3734, 4
  %v3737 = vshll.u32 %v3629, 16
  %v3739 = vrot.slane %v3737, 5
  %v3740 = vor.u32 %v3736, %v3739
  %v3741 = vrot.slane %v3740, 4
  %v3743 = vshll.u32 %v3630, 16
  %v3745 = vrot.slane %v3743, 5
  %v3746 = vsel %vm206, %v3741, %v3745
  %v3748 = vshrl.u32 %v3631, 16
  %v3750 = vrot.slane %v3748, 4
  %v3751 = vshll.u32 %v3631, 16
  %v3753 = vrot.slane %v3751, 5
  %v3754 = vor.u32 %v3750, %v3753
  %v3755 = vrot.slane %v3754, 4
  %v3757 = vshll.u32 %v3632, 16
  %v3759 = vrot.slane %v3757, 5
  %v3760 = vsel %vm206, %v3755, %v3759
  %v3762 = vshrl.u32 %v3633, 16
  %v3764 = vrot.slane %v3762, 4
  %v3765 = vshll.u32 %v3633, 16
  %v3767 = vrot.slane %v3765, 5
  %v3768 = vor.u32 %v3764, %v3767
  %v3769 = vrot.slane %v3768, 4
  %v3771 = vshll.u32 %v3634, 16
  %v3773 = vrot.slane %v3771, 5
  %v3774 = vsel %vm206, %v3769, %v3773
  %v3776 = vshrl.u32 %v3635, 16
  %v3778 = vrot.slane %v3776, 4
  %v3779 = vshll.u32 %v3635, 16
  %v3781 = vrot.slane %v3779, 5
  %v3782 = vor.u32 %v3778, %v3781
  %v3783 = vrot.slane %v3782, 4
  %v3785 = vshll.u32 %v3636, 16
  %v3787 = vrot.slane %v3785, 5
  %v3788 = vsel %vm206, %v3783, %v3787
  %v3790 = vshrl.u32 %v3637, 16
  %v3792 = vrot.slane %v3790, 4
  %v3793 = vshll.u32 %v3637, 16
  %v3795 = vrot.slane %v3793, 5
  %v3796 = vor.u32 %v3792, %v3795
  %v3797 = vrot.slane %v3796, 4
  %v3799 = vshll.u32 %v3638, 16
  %v3801 = vrot.slane %v3799, 5
  %v3802 = vsel %vm206, %v3797, %v3801
  %v3804 = vshrl.u32 %v3639, 16
  %v3806 = vrot.slane %v3804, 4
  %v3807 = vshll.u32 %v3639, 16
  %v3809 = vrot.slane %v3807, 5
  %v3810 = vor.u32 %v3806, %v3809
  %v3811 = vrot.slane %v3810, 4
  %v3813 = vshll.u32 %v3640, 16
  %v3815 = vrot.slane %v3813, 5
  %v3816 = vsel %vm206, %v3811, %v3815
  %v3818 = vshrl.u32 %v3641, 16
  %v3820 = vrot.slane %v3818, 4
  %v3821 = vshll.u32 %v3641, 16
  %v3823 = vrot.slane %v3821, 5
  %v3824 = vor.u32 %v3820, %v3823
  %v3825 = vrot.slane %v3824, 4
  %v3827 = vshll.u32 %v3642, 16
  %v3829 = vrot.slane %v3827, 5
  %v3830 = vsel %vm206, %v3825, %v3829
  %v3832 = vshrl.u32 %v3643, 16
  %v3834 = vrot.slane %v3832, 4
  %v3835 = vshll.u32 %v3643, 16
  %v3837 = vrot.slane %v3835, 5
  %v3838 = vor.u32 %v3834, %v3837
  %v3839 = vrot.slane %v3838, 4
  %v3841 = vshll.u32 %v3644, 16
  %v3843 = vrot.slane %v3841, 5
  %v3844 = vsel %vm206, %v3839, %v3843
  %v3846 = vshrl.u32 %v3645, 16
  %v3848 = vrot.slane %v3846, 4
  %v3849 = vshll.u32 %v3645, 16
  %v3851 = vrot.slane %v3849, 5
  %v3852 = vor.u32 %v3848, %v3851
  %v3853 = vrot.slane %v3852, 4
  %v3855 = vshll.u32 %v3646, 16
  %v3857 = vrot.slane %v3855, 5
  %v3858 = vsel %vm206, %v3853, %v3857
  %v3860 = vshrl.u32 %v3647, 16
  %v3862 = vrot.slane %v3860, 4
  %v3863 = vshll.u32 %v3647, 16
  %v3865 = vrot.slane %v3863, 5
  %v3866 = vor.u32 %v3862, %v3865
  %v3867 = vrot.slane %v3866, 4
  %v3869 = vshll.u32 %v3648, 16
  %v3871 = vrot.slane %v3869, 5
  %v3872 = vsel %vm206, %v3867, %v3871
  %v3873 = vunpack.c.l.b16 %v3662
  %v3874 = vunpack.c.l.b16 %v3676
  %v3875 = vunpack.c.l.b16 %v3690
  %v3876 = vunpack.c.l.b16 %v3704
  %v3877 = vunpack.c.l.b16 %v3718
  %v3878 = vunpack.c.l.b16 %v3732
  %v3879 = vunpack.c.l.b16 %v3746
  %v3880 = vunpack.c.l.b16 %v3760
  %v3881 = vunpack.c.l.b16 %v3774
  %v3882 = vunpack.c.l.b16 %v3788
  %v3883 = vunpack.c.l.b16 %v3802
  %v3884 = vunpack.c.l.b16 %v3816
  %v3885 = vunpack.c.l.b16 %v3830
  %v3886 = vunpack.c.l.b16 %v3844
  %v3887 = vunpack.c.l.b16 %v3858
  %v3888 = vunpack.c.l.b16 %v3872
  %v3889 = vpack.c.b16 %v3874, %v3873
  %v3890 = vpack.c.b16 %v3876, %v3875
  %v3891 = vpack.c.b16 %v3878, %v3877
  %v3892 = vpack.c.b16 %v3880, %v3879
  %v3893 = vpack.c.b16 %v3882, %v3881
  %v3894 = vpack.c.b16 %v3884, %v3883
  %v3895 = vpack.c.b16 %v3886, %v3885
  %v3896 = vpack.c.b16 %v3888, %v3887
  %3905 = vst [vmem:[#allocation4 + $0x20] sm:$0xff] %v3889
  %3906 = vst [vmem:[#allocation4 + $0x68] sm:$0xff] %v3890
  %3907 = vst [vmem:[#allocation4 + $0xb0] sm:$0xff] %v3891
  %3908 = vst [vmem:[#allocation4 + $0xf8] sm:$0xff] %v3892
  %3909 = vst [vmem:[#allocation4 + $0x140] sm:$0xff] %v3893
  %3910 = vst [vmem:[#allocation4 + $0x188] sm:$0xff] %v3894
  %3911 = vst [vmem:[#allocation4 + $0x1d0] sm:$0xff] %v3895
  %3912 = vst [vmem:[#allocation4 + $0x218] sm:$0xff] %v3896
  %v3913 = vld [vmem:[%s2524] sm:$0x1e]
  %v3914 = vld [vmem:[%s2524 + $0x8] sm:$0x1e]
  %v3915 = vld [vmem:[%s2524 + $0x10] sm:$0x1e]
  %v3916 = vld [vmem:[%s2524 + $0x18] sm:$0x1e]
  %v3917 = vld [vmem:[%s2524 + $0x20] sm:$0x1e]
  %v3918 = vld [vmem:[%s2524 + $0x28] sm:$0x1e]
  %v3919 = vld [vmem:[%s2524 + $0x30] sm:$0x1e]
  %v3920 = vld [vmem:[%s2524 + $0x38] sm:$0x1e]
  %v3921 = vld [vmem:[%s2524 + $0x50] sm:$0x1e]
  %v3922 = vld [vmem:[%s2524 + $0x58] sm:$0x1e]
  %v3923 = vld [vmem:[%s2524 + $0x60] sm:$0x1e]
  %v3924 = vld [vmem:[%s2524 + $0x68] sm:$0x1e]
  %v3925 = vld [vmem:[%s2524 + $0x70] sm:$0x1e]
  %v3926 = vld [vmem:[%s2524 + $0x78] sm:$0x1e]
  %v3927 = vld [vmem:[%s2524 + $0x80] sm:$0x1e]
  %v3928 = vld [vmem:[%s2524 + $0x88] sm:$0x1e]
  %v3945 = vunpack.c.l.b16 %v3913
  %v3946 = vunpack.c.h.b16 %v3913
  %v3947 = vunpack.c.l.b16 %v3914
  %v3948 = vunpack.c.h.b16 %v3914
  %v3949 = vunpack.c.l.b16 %v3915
  %v3950 = vunpack.c.h.b16 %v3915
  %v3951 = vunpack.c.l.b16 %v3916
  %v3952 = vunpack.c.h.b16 %v3916
  %v3953 = vunpack.c.l.b16 %v3917
  %v3954 = vunpack.c.h.b16 %v3917
  %v3955 = vunpack.c.l.b16 %v3918
  %v3956 = vunpack.c.h.b16 %v3918
  %v3957 = vunpack.c.l.b16 %v3919
  %v3958 = vunpack.c.h.b16 %v3919
  %v3959 = vunpack.c.l.b16 %v3920
  %v3960 = vunpack.c.h.b16 %v3920
  %v3961 = vunpack.c.l.b16 %v3921
  %v3962 = vunpack.c.h.b16 %v3921
  %v3963 = vunpack.c.l.b16 %v3922
  %v3964 = vunpack.c.h.b16 %v3922
  %v3965 = vunpack.c.l.b16 %v3923
  %v3966 = vunpack.c.h.b16 %v3923
  %v3967 = vunpack.c.l.b16 %v3924
  %v3968 = vunpack.c.h.b16 %v3924
  %v3969 = vunpack.c.l.b16 %v3925
  %v3970 = vunpack.c.h.b16 %v3925
  %v3971 = vunpack.c.l.b16 %v3926
  %v3972 = vunpack.c.h.b16 %v3926
  %v3973 = vunpack.c.l.b16 %v3927
  %v3974 = vunpack.c.h.b16 %v3927
  %v3975 = vunpack.c.l.b16 %v3928
  %v3976 = vunpack.c.h.b16 %v3928
  %v3977 = vpack.c.b16 %v3945, %v3945
  %v3978 = vpack.c.b16 %v3946, %v3946
  %v3979 = vpack.c.b16 %v3947, %v3947
  %v3980 = vpack.c.b16 %v3948, %v3948
  %v3981 = vpack.c.b16 %v3949, %v3949
  %v3982 = vpack.c.b16 %v3950, %v3950
  %v3983 = vpack.c.b16 %v3951, %v3951
  %v3984 = vpack.c.b16 %v3952, %v3952
  %v3985 = vpack.c.b16 %v3953, %v3953
  %v3986 = vpack.c.b16 %v3954, %v3954
  %v3987 = vpack.c.b16 %v3955, %v3955
  %v3988 = vpack.c.b16 %v3956, %v3956
  %v3989 = vpack.c.b16 %v3957, %v3957
  %v3990 = vpack.c.b16 %v3958, %v3958
  %v3991 = vpack.c.b16 %v3959, %v3959
  %v3992 = vpack.c.b16 %v3960, %v3960
  %v3993 = vpack.c.b16 %v3961, %v3961
  %v3994 = vpack.c.b16 %v3962, %v3962
  %v3995 = vpack.c.b16 %v3963, %v3963
  %v3996 = vpack.c.b16 %v3964, %v3964
  %v3997 = vpack.c.b16 %v3965, %v3965
  %v3998 = vpack.c.b16 %v3966, %v3966
  %v3999 = vpack.c.b16 %v3967, %v3967
  %v4000 = vpack.c.b16 %v3968, %v3968
  %v4001 = vpack.c.b16 %v3969, %v3969
  %v4002 = vpack.c.b16 %v3970, %v3970
  %v4003 = vpack.c.b16 %v3971, %v3971
  %v4004 = vpack.c.b16 %v3972, %v3972
  %v4005 = vpack.c.b16 %v3973, %v3973
  %v4006 = vpack.c.b16 %v3974, %v3974
  %v4007 = vpack.c.b16 %v3975, %v3975
  %v4008 = vpack.c.b16 %v3976, %v3976
  %v4009 = vrot.slane %v3977, 5
  %v4010 = vrot.slane %v4009, 4
  %v4011 = vrot.slane %v3978, 5
  %v4012 = vsel %vm3376, %v4010, %v4011
  %v4013 = vrot.slane %v3979, 5
  %v4014 = vrot.slane %v4013, 4
  %v4015 = vrot.slane %v3980, 5
  %v4016 = vsel %vm3376, %v4014, %v4015
  %v4017 = vrot.slane %v3981, 5
  %v4018 = vrot.slane %v4017, 4
  %v4019 = vrot.slane %v3982, 5
  %v4020 = vsel %vm3376, %v4018, %v4019
  %v4021 = vrot.slane %v3983, 5
  %v4022 = vrot.slane %v4021, 4
  %v4023 = vrot.slane %v3984, 5
  %v4024 = vsel %vm3376, %v4022, %v4023
  %v4025 = vrot.slane %v3985, 5
  %v4026 = vrot.slane %v4025, 4
  %v4027 = vrot.slane %v3986, 5
  %v4028 = vsel %vm3376, %v4026, %v4027
  %v4029 = vrot.slane %v3987, 5
  %v4030 = vrot.slane %v4029, 4
  %v4031 = vrot.slane %v3988, 5
  %v4032 = vsel %vm3376, %v4030, %v4031
  %v4033 = vrot.slane %v3989, 5
  %v4034 = vrot.slane %v4033, 4
  %v4035 = vrot.slane %v3990, 5
  %v4036 = vsel %vm3376, %v4034, %v4035
  %v4037 = vrot.slane %v3991, 5
  %v4038 = vrot.slane %v4037, 4
  %v4039 = vrot.slane %v3992, 5
  %v4040 = vsel %vm3376, %v4038, %v4039
  %v4041 = vrot.slane %v3993, 5
  %v4042 = vrot.slane %v4041, 4
  %v4043 = vrot.slane %v3994, 5
  %v4044 = vsel %vm3376, %v4042, %v4043
  %v4045 = vrot.slane %v3995, 5
  %v4046 = vrot.slane %v4045, 4
  %v4047 = vrot.slane %v3996, 5
  %v4048 = vsel %vm3376, %v4046, %v4047
  %v4049 = vrot.slane %v3997, 5
  %v4050 = vrot.slane %v4049, 4
  %v4051 = vrot.slane %v3998, 5
  %v4052 = vsel %vm3376, %v4050, %v4051
  %v4053 = vrot.slane %v3999, 5
  %v4054 = vrot.slane %v4053, 4
  %v4055 = vrot.slane %v4000, 5
  %v4056 = vsel %vm3376, %v4054, %v4055
  %v4057 = vrot.slane %v4001, 5
  %v4058 = vrot.slane %v4057, 4
  %v4059 = vrot.slane %v4002, 5
  %v4060 = vsel %vm3376, %v4058, %v4059
  %v4061 = vrot.slane %v4003, 5
  %v4062 = vrot.slane %v4061, 4
  %v4063 = vrot.slane %v4004, 5
  %v4064 = vsel %vm3376, %v4062, %v4063
  %v4065 = vrot.slane %v4005, 5
  %v4066 = vrot.slane %v4065, 4
  %v4067 = vrot.slane %v4006, 5
  %v4068 = vsel %vm3376, %v4066, %v4067
  %v4069 = vrot.slane %v4007, 5
  %v4070 = vrot.slane %v4069, 4
  %v4071 = vrot.slane %v4008, 5
  %v4072 = vsel %vm3376, %v4070, %v4071
  %v4073 = vunpack.c.l.b16 %v4012
  %v4074 = vunpack.c.l.b16 %v4016
  %v4075 = vunpack.c.l.b16 %v4020
  %v4076 = vunpack.c.l.b16 %v4024
  %v4077 = vunpack.c.l.b16 %v4028
  %v4078 = vunpack.c.l.b16 %v4032
  %v4079 = vunpack.c.l.b16 %v4036
  %v4080 = vunpack.c.l.b16 %v4040
  %v4081 = vunpack.c.l.b16 %v4044
  %v4082 = vunpack.c.l.b16 %v4048
  %v4083 = vunpack.c.l.b16 %v4052
  %v4084 = vunpack.c.l.b16 %v4056
  %v4085 = vunpack.c.l.b16 %v4060
  %v4086 = vunpack.c.l.b16 %v4064
  %v4087 = vunpack.c.l.b16 %v4068
  %v4088 = vunpack.c.l.b16 %v4072
  %v4089 = vpack.c.b16 %v4074, %v4073
  %v4090 = vpack.c.b16 %v4076, %v4075
  %v4091 = vpack.c.b16 %v4078, %v4077
  %v4092 = vpack.c.b16 %v4080, %v4079
  %v4093 = vpack.c.b16 %v4082, %v4081
  %v4094 = vpack.c.b16 %v4084, %v4083
  %v4095 = vpack.c.b16 %v4086, %v4085
  %v4096 = vpack.c.b16 %v4088, %v4087
  %4105 = vst [vmem:[#allocation4 + $0x28] sm:$0xff] %v4089
  %4106 = vst [vmem:[#allocation4 + $0x70] sm:$0xff] %v4090
  %4107 = vst [vmem:[#allocation4 + $0xb8] sm:$0xff] %v4091
  %4108 = vst [vmem:[#allocation4 + $0x100] sm:$0xff] %v4092
  %4109 = vst [vmem:[#allocation4 + $0x148] sm:$0xff] %v4093
  %4110 = vst [vmem:[#allocation4 + $0x190] sm:$0xff] %v4094
  %4111 = vst [vmem:[#allocation4 + $0x1d8] sm:$0xff] %v4095
  %4112 = vst [vmem:[#allocation4 + $0x220] sm:$0xff] %v4096
  %s4113 = scalar_lea.vmem [#allocation3], 16
  %v4114 = vld [vmem:[%s4113] sm:$0xf]
  %v4115 = vld [vmem:[%s4113 + $0x8] sm:$0xf]
  %v4116 = vld [vmem:[%s4113 + $0x10] sm:$0xf]
  %v4117 = vld [vmem:[%s4113 + $0x18] sm:$0xf]
  %v4118 = vld [vmem:[%s4113 + $0x20] sm:$0xf]
  %v4119 = vld [vmem:[%s4113 + $0x28] sm:$0xf]
  %v4120 = vld [vmem:[%s4113 + $0x30] sm:$0xf]
  %v4121 = vld [vmem:[%s4113 + $0x38] sm:$0xf]
  %v4122 = vld [vmem:[%s4113 + $0x50] sm:$0xf]
  %v4123 = vld [vmem:[%s4113 + $0x58] sm:$0xf]
  %v4124 = vld [vmem:[%s4113 + $0x60] sm:$0xf]
  %v4125 = vld [vmem:[%s4113 + $0x68] sm:$0xf]
  %v4126 = vld [vmem:[%s4113 + $0x70] sm:$0xf]
  %v4127 = vld [vmem:[%s4113 + $0x78] sm:$0xf]
  %v4128 = vld [vmem:[%s4113 + $0x80] sm:$0xf]
  %v4129 = vld [vmem:[%s4113 + $0x88] sm:$0xf]
  %v4146 = vunpack.c.l.b16 %v4114
  %v4147 = vunpack.c.l.b16 %v4115
  %v4148 = vunpack.c.l.b16 %v4116
  %v4149 = vunpack.c.l.b16 %v4117
  %v4150 = vunpack.c.l.b16 %v4118
  %v4151 = vunpack.c.l.b16 %v4119
  %v4152 = vunpack.c.l.b16 %v4120
  %v4153 = vunpack.c.l.b16 %v4121
  %v4154 = vunpack.c.l.b16 %v4122
  %v4155 = vunpack.c.l.b16 %v4123
  %v4156 = vunpack.c.l.b16 %v4124
  %v4157 = vunpack.c.l.b16 %v4125
  %v4158 = vunpack.c.l.b16 %v4126
  %v4159 = vunpack.c.l.b16 %v4127
  %v4160 = vunpack.c.l.b16 %v4128
  %v4161 = vunpack.c.l.b16 %v4129
  %v4162 = vpack.c.b16 %v4147, %v4146
  %v4163 = vpack.c.b16 %v4149, %v4148
  %v4164 = vpack.c.b16 %v4151, %v4150
  %v4165 = vpack.c.b16 %v4153, %v4152
  %v4166 = vpack.c.b16 %v4155, %v4154
  %v4167 = vpack.c.b16 %v4157, %v4156
  %v4168 = vpack.c.b16 %v4159, %v4158
  %v4169 = vpack.c.b16 %v4161, %v4160
  %4178 = vst [vmem:[#allocation4 + $0x30] sm:$0xff] %v4162
  %4179 = vst [vmem:[#allocation4 + $0x78] sm:$0xff] %v4163
  %4180 = vst [vmem:[#allocation4 + $0xc0] sm:$0xff] %v4164
  %4181 = vst [vmem:[#allocation4 + $0x108] sm:$0xff] %v4165
  %4182 = vst [vmem:[#allocation4 + $0x150] sm:$0xff] %v4166
  %4183 = vst [vmem:[#allocation4 + $0x198] sm:$0xff] %v4167
  %4184 = vst [vmem:[#allocation4 + $0x1e0] sm:$0xff] %v4168
  %4185 = vst [vmem:[#allocation4 + $0x228] sm:$0xff] %v4169
  %v4186 = vld [vmem:[%s4113] sm:$0x1f]
  %v4187 = vld [vmem:[%s4113 + $0x8] sm:$0x1f]
  %v4188 = vld [vmem:[%s4113 + $0x10] sm:$0x1f]
  %v4189 = vld [vmem:[%s4113 + $0x18] sm:$0x1f]
  %v4190 = vld [vmem:[%s4113 + $0x20] sm:$0x1f]
  %v4191 = vld [vmem:[%s4113 + $0x28] sm:$0x1f]
  %v4192 = vld [vmem:[%s4113 + $0x30] sm:$0x1f]
  %v4193 = vld [vmem:[%s4113 + $0x38] sm:$0x1f]
  %v4194 = vld [vmem:[%s4113 + $0x50] sm:$0x1f]
  %v4195 = vld [vmem:[%s4113 + $0x58] sm:$0x1f]
  %v4196 = vld [vmem:[%s4113 + $0x60] sm:$0x1f]
  %v4197 = vld [vmem:[%s4113 + $0x68] sm:$0x1f]
  %v4198 = vld [vmem:[%s4113 + $0x70] sm:$0x1f]
  %v4199 = vld [vmem:[%s4113 + $0x78] sm:$0x1f]
  %v4200 = vld [vmem:[%s4113 + $0x80] sm:$0x1f]
  %v4201 = vld [vmem:[%s4113 + $0x88] sm:$0x1f]
  %v4218 = vunpack.c.l.b16 %v4186
  %v4219 = vunpack.c.h.b16 %v4186
  %v4220 = vunpack.c.l.b16 %v4187
  %v4221 = vunpack.c.h.b16 %v4187
  %v4222 = vunpack.c.l.b16 %v4188
  %v4223 = vunpack.c.h.b16 %v4188
  %v4224 = vunpack.c.l.b16 %v4189
  %v4225 = vunpack.c.h.b16 %v4189
  %v4226 = vunpack.c.l.b16 %v4190
  %v4227 = vunpack.c.h.b16 %v4190
  %v4228 = vunpack.c.l.b16 %v4191
  %v4229 = vunpack.c.h.b16 %v4191
  %v4230 = vunpack.c.l.b16 %v4192
  %v4231 = vunpack.c.h.b16 %v4192
  %v4232 = vunpack.c.l.b16 %v4193
  %v4233 = vunpack.c.h.b16 %v4193
  %v4234 = vunpack.c.l.b16 %v4194
  %v4235 = vunpack.c.h.b16 %v4194
  %v4236 = vunpack.c.l.b16 %v4195
  %v4237 = vunpack.c.h.b16 %v4195
  %v4238 = vunpack.c.l.b16 %v4196
  %v4239 = vunpack.c.h.b16 %v4196
  %v4240 = vunpack.c.l.b16 %v4197
  %v4241 = vunpack.c.h.b16 %v4197
  %v4242 = vunpack.c.l.b16 %v4198
  %v4243 = vunpack.c.h.b16 %v4198
  %v4244 = vunpack.c.l.b16 %v4199
  %v4245 = vunpack.c.h.b16 %v4199
  %v4246 = vunpack.c.l.b16 %v4200
  %v4247 = vunpack.c.h.b16 %v4200
  %v4248 = vunpack.c.l.b16 %v4201
  %v4249 = vunpack.c.h.b16 %v4201
  %v4250 = vpack.c.b16 %v4218, %v4218
  %v4251 = vpack.c.b16 %v4219, %v4219
  %v4252 = vpack.c.b16 %v4220, %v4220
  %v4253 = vpack.c.b16 %v4221, %v4221
  %v4254 = vpack.c.b16 %v4222, %v4222
  %v4255 = vpack.c.b16 %v4223, %v4223
  %v4256 = vpack.c.b16 %v4224, %v4224
  %v4257 = vpack.c.b16 %v4225, %v4225
  %v4258 = vpack.c.b16 %v4226, %v4226
  %v4259 = vpack.c.b16 %v4227, %v4227
  %v4260 = vpack.c.b16 %v4228, %v4228
  %v4261 = vpack.c.b16 %v4229, %v4229
  %v4262 = vpack.c.b16 %v4230, %v4230
  %v4263 = vpack.c.b16 %v4231, %v4231
  %v4264 = vpack.c.b16 %v4232, %v4232
  %v4265 = vpack.c.b16 %v4233, %v4233
  %v4266 = vpack.c.b16 %v4234, %v4234
  %v4267 = vpack.c.b16 %v4235, %v4235
  %v4268 = vpack.c.b16 %v4236, %v4236
  %v4269 = vpack.c.b16 %v4237, %v4237
  %v4270 = vpack.c.b16 %v4238, %v4238
  %v4271 = vpack.c.b16 %v4239, %v4239
  %v4272 = vpack.c.b16 %v4240, %v4240
  %v4273 = vpack.c.b16 %v4241, %v4241
  %v4274 = vpack.c.b16 %v4242, %v4242
  %v4275 = vpack.c.b16 %v4243, %v4243
  %v4276 = vpack.c.b16 %v4244, %v4244
  %v4277 = vpack.c.b16 %v4245, %v4245
  %v4278 = vpack.c.b16 %v4246, %v4246
  %v4279 = vpack.c.b16 %v4247, %v4247
  %v4280 = vpack.c.b16 %v4248, %v4248
  %v4281 = vpack.c.b16 %v4249, %v4249
  %v4283 = vshrl.u32 %v4250, 16
  %v4285 = vrot.slane %v4283, 4
  %v4286 = vshll.u32 %v4250, 16
  %v4288 = vrot.slane %v4286, 5
  %v4289 = vor.u32 %v4285, %v4288
  %v4290 = vrot.slane %v4289, 4
  %v4292 = vshll.u32 %v4251, 16
  %v4294 = vrot.slane %v4292, 5
  %v4295 = vsel %vm206, %v4290, %v4294
  %v4297 = vshrl.u32 %v4252, 16
  %v4299 = vrot.slane %v4297, 4
  %v4300 = vshll.u32 %v4252, 16
  %v4302 = vrot.slane %v4300, 5
  %v4303 = vor.u32 %v4299, %v4302
  %v4304 = vrot.slane %v4303, 4
  %v4306 = vshll.u32 %v4253, 16
  %v4308 = vrot.slane %v4306, 5
  %v4309 = vsel %vm206, %v4304, %v4308
  %v4311 = vshrl.u32 %v4254, 16
  %v4313 = vrot.slane %v4311, 4
  %v4314 = vshll.u32 %v4254, 16
  %v4316 = vrot.slane %v4314, 5
  %v4317 = vor.u32 %v4313, %v4316
  %v4318 = vrot.slane %v4317, 4
  %v4320 = vshll.u32 %v4255, 16
  %v4322 = vrot.slane %v4320, 5
  %v4323 = vsel %vm206, %v4318, %v4322
  %v4325 = vshrl.u32 %v4256, 16
  %v4327 = vrot.slane %v4325, 4
  %v4328 = vshll.u32 %v4256, 16
  %v4330 = vrot.slane %v4328, 5
  %v4331 = vor.u32 %v4327, %v4330
  %v4332 = vrot.slane %v4331, 4
  %v4334 = vshll.u32 %v4257, 16
  %v4336 = vrot.slane %v4334, 5
  %v4337 = vsel %vm206, %v4332, %v4336
  %v4339 = vshrl.u32 %v4258, 16
  %v4341 = vrot.slane %v4339, 4
  %v4342 = vshll.u32 %v4258, 16
  %v4344 = vrot.slane %v4342, 5
  %v4345 = vor.u32 %v4341, %v4344
  %v4346 = vrot.slane %v4345, 4
  %v4348 = vshll.u32 %v4259, 16
  %v4350 = vrot.slane %v4348, 5
  %v4351 = vsel %vm206, %v4346, %v4350
  %v4353 = vshrl.u32 %v4260, 16
  %v4355 = vrot.slane %v4353, 4
  %v4356 = vshll.u32 %v4260, 16
  %v4358 = vrot.slane %v4356, 5
  %v4359 = vor.u32 %v4355, %v4358
  %v4360 = vrot.slane %v4359, 4
  %v4362 = vshll.u32 %v4261, 16
  %v4364 = vrot.slane %v4362, 5
  %v4365 = vsel %vm206, %v4360, %v4364
  %v4367 = vshrl.u32 %v4262, 16
  %v4369 = vrot.slane %v4367, 4
  %v4370 = vshll.u32 %v4262, 16
  %v4372 = vrot.slane %v4370, 5
  %v4373 = vor.u32 %v4369, %v4372
  %v4374 = vrot.slane %v4373, 4
  %v4376 = vshll.u32 %v4263, 16
  %v4378 = vrot.slane %v4376, 5
  %v4379 = vsel %vm206, %v4374, %v4378
  %v4381 = vshrl.u32 %v4264, 16
  %v4383 = vrot.slane %v4381, 4
  %v4384 = vshll.u32 %v4264, 16
  %v4386 = vrot.slane %v4384, 5
  %v4387 = vor.u32 %v4383, %v4386
  %v4388 = vrot.slane %v4387, 4
  %v4390 = vshll.u32 %v4265, 16
  %v4392 = vrot.slane %v4390, 5
  %v4393 = vsel %vm206, %v4388, %v4392
  %v4395 = vshrl.u32 %v4266, 16
  %v4397 = vrot.slane %v4395, 4
  %v4398 = vshll.u32 %v4266, 16
  %v4400 = vrot.slane %v4398, 5
  %v4401 = vor.u32 %v4397, %v4400
  %v4402 = vrot.slane %v4401, 4
  %v4404 = vshll.u32 %v4267, 16
  %v4406 = vrot.slane %v4404, 5
  %v4407 = vsel %vm206, %v4402, %v4406
  %v4409 = vshrl.u32 %v4268, 16
  %v4411 = vrot.slane %v4409, 4
  %v4412 = vshll.u32 %v4268, 16
  %v4414 = vrot.slane %v4412, 5
  %v4415 = vor.u32 %v4411, %v4414
  %v4416 = vrot.slane %v4415, 4
  %v4418 = vshll.u32 %v4269, 16
  %v4420 = vrot.slane %v4418, 5
  %v4421 = vsel %vm206, %v4416, %v4420
  %v4423 = vshrl.u32 %v4270, 16
  %v4425 = vrot.slane %v4423, 4
  %v4426 = vshll.u32 %v4270, 16
  %v4428 = vrot.slane %v4426, 5
  %v4429 = vor.u32 %v4425, %v4428
  %v4430 = vrot.slane %v4429, 4
  %v4432 = vshll.u32 %v4271, 16
  %v4434 = vrot.slane %v4432, 5
  %v4435 = vsel %vm206, %v4430, %v4434
  %v4437 = vshrl.u32 %v4272, 16
  %v4439 = vrot.slane %v4437, 4
  %v4440 = vshll.u32 %v4272, 16
  %v4442 = vrot.slane %v4440, 5
  %v4443 = vor.u32 %v4439, %v4442
  %v4444 = vrot.slane %v4443, 4
  %v4446 = vshll.u32 %v4273, 16
  %v4448 = vrot.slane %v4446, 5
  %v4449 = vsel %vm206, %v4444, %v4448
  %v4451 = vshrl.u32 %v4274, 16
  %v4453 = vrot.slane %v4451, 4
  %v4454 = vshll.u32 %v4274, 16
  %v4456 = vrot.slane %v4454, 5
  %v4457 = vor.u32 %v4453, %v4456
  %v4458 = vrot.slane %v4457, 4
  %v4460 = vshll.u32 %v4275, 16
  %v4462 = vrot.slane %v4460, 5
  %v4463 = vsel %vm206, %v4458, %v4462
  %v4465 = vshrl.u32 %v4276, 16
  %v4467 = vrot.slane %v4465, 4
  %v4468 = vshll.u32 %v4276, 16
  %v4470 = vrot.slane %v4468, 5
  %v4471 = vor.u32 %v4467, %v4470
  %v4472 = vrot.slane %v4471, 4
  %v4474 = vshll.u32 %v4277, 16
  %v4476 = vrot.slane %v4474, 5
  %v4477 = vsel %vm206, %v4472, %v4476
  %v4479 = vshrl.u32 %v4278, 16
  %v4481 = vrot.slane %v4479, 4
  %v4482 = vshll.u32 %v4278, 16
  %v4484 = vrot.slane %v4482, 5
  %v4485 = vor.u32 %v4481, %v4484
  %v4486 = vrot.slane %v4485, 4
  %v4488 = vshll.u32 %v4279, 16
  %v4490 = vrot.slane %v4488, 5
  %v4491 = vsel %vm206, %v4486, %v4490
  %v4493 = vshrl.u32 %v4280, 16
  %v4495 = vrot.slane %v4493, 4
  %v4496 = vshll.u32 %v4280, 16
  %v4498 = vrot.slane %v4496, 5
  %v4499 = vor.u32 %v4495, %v4498
  %v4500 = vrot.slane %v4499, 4
  %v4502 = vshll.u32 %v4281, 16
  %v4504 = vrot.slane %v4502, 5
  %v4505 = vsel %vm206, %v4500, %v4504
  %v4506 = vunpack.c.l.b16 %v4295
  %v4507 = vunpack.c.l.b16 %v4309
  %v4508 = vunpack.c.l.b16 %v4323
  %v4509 = vunpack.c.l.b16 %v4337
  %v4510 = vunpack.c.l.b16 %v4351
  %v4511 = vunpack.c.l.b16 %v4365
  %v4512 = vunpack.c.l.b16 %v4379
  %v4513 = vunpack.c.l.b16 %v4393
  %v4514 = vunpack.c.l.b16 %v4407
  %v4515 = vunpack.c.l.b16 %v4421
  %v4516 = vunpack.c.l.b16 %v4435
  %v4517 = vunpack.c.l.b16 %v4449
  %v4518 = vunpack.c.l.b16 %v4463
  %v4519 = vunpack.c.l.b16 %v4477
  %v4520 = vunpack.c.l.b16 %v4491
  %v4521 = vunpack.c.l.b16 %v4505
  %v4522 = vpack.c.b16 %v4507, %v4506
  %v4523 = vpack.c.b16 %v4509, %v4508
  %v4524 = vpack.c.b16 %v4511, %v4510
  %v4525 = vpack.c.b16 %v4513, %v4512
  %v4526 = vpack.c.b16 %v4515, %v4514
  %v4527 = vpack.c.b16 %v4517, %v4516
  %v4528 = vpack.c.b16 %v4519, %v4518
  %v4529 = vpack.c.b16 %v4521, %v4520
  %4538 = vst [vmem:[#allocation4 + $0x38] sm:$0xff] %v4522
  %4539 = vst [vmem:[#allocation4 + $0x80] sm:$0xff] %v4523
  %4540 = vst [vmem:[#allocation4 + $0xc8] sm:$0xff] %v4524
  %4541 = vst [vmem:[#allocation4 + $0x110] sm:$0xff] %v4525
  %4542 = vst [vmem:[#allocation4 + $0x158] sm:$0xff] %v4526
  %4543 = vst [vmem:[#allocation4 + $0x1a0] sm:$0xff] %v4527
  %4544 = vst [vmem:[#allocation4 + $0x1e8] sm:$0xff] %v4528
  %4545 = vst [vmem:[#allocation4 + $0x230] sm:$0xff] %v4529
  %v4546 = vld [vmem:[%s4113] sm:$0x1e]
  %v4547 = vld [vmem:[%s4113 + $0x8] sm:$0x1e]
  %v4548 = vld [vmem:[%s4113 + $0x10] sm:$0x1e]
  %v4549 = vld [vmem:[%s4113 + $0x18] sm:$0x1e]
  %v4550 = vld [vmem:[%s4113 + $0x20] sm:$0x1e]
  %v4551 = vld [vmem:[%s4113 + $0x28] sm:$0x1e]
  %v4552 = vld [vmem:[%s4113 + $0x30] sm:$0x1e]
  %v4553 = vld [vmem:[%s4113 + $0x38] sm:$0x1e]
  %v4554 = vld [vmem:[%s4113 + $0x50] sm:$0x1e]
  %v4555 = vld [vmem:[%s4113 + $0x58] sm:$0x1e]
  %v4556 = vld [vmem:[%s4113 + $0x60] sm:$0x1e]
  %v4557 = vld [vmem:[%s4113 + $0x68] sm:$0x1e]
  %v4558 = vld [vmem:[%s4113 + $0x70] sm:$0x1e]
  %v4559 = vld [vmem:[%s4113 + $0x78] sm:$0x1e]
  %v4560 = vld [vmem:[%s4113 + $0x80] sm:$0x1e]
  %v4561 = vld [vmem:[%s4113 + $0x88] sm:$0x1e]
  %v4578 = vunpack.c.l.b16 %v4546
  %v4579 = vunpack.c.h.b16 %v4546
  %v4580 = vunpack.c.l.b16 %v4547
  %v4581 = vunpack.c.h.b16 %v4547
  %v4582 = vunpack.c.l.b16 %v4548
  %v4583 = vunpack.c.h.b16 %v4548
  %v4584 = vunpack.c.l.b16 %v4549
  %v4585 = vunpack.c.h.b16 %v4549
  %v4586 = vunpack.c.l.b16 %v4550
  %v4587 = vunpack.c.h.b16 %v4550
  %v4588 = vunpack.c.l.b16 %v4551
  %v4589 = vunpack.c.h.b16 %v4551
  %v4590 = vunpack.c.l.b16 %v4552
  %v4591 = vunpack.c.h.b16 %v4552
  %v4592 = vunpack.c.l.b16 %v4553
  %v4593 = vunpack.c.h.b16 %v4553
  %v4594 = vunpack.c.l.b16 %v4554
  %v4595 = vunpack.c.h.b16 %v4554
  %v4596 = vunpack.c.l.b16 %v4555
  %v4597 = vunpack.c.h.b16 %v4555
  %v4598 = vunpack.c.l.b16 %v4556
  %v4599 = vunpack.c.h.b16 %v4556
  %v4600 = vunpack.c.l.b16 %v4557
  %v4601 = vunpack.c.h.b16 %v4557
  %v4602 = vunpack.c.l.b16 %v4558
  %v4603 = vunpack.c.h.b16 %v4558
  %v4604 = vunpack.c.l.b16 %v4559
  %v4605 = vunpack.c.h.b16 %v4559
  %v4606 = vunpack.c.l.b16 %v4560
  %v4607 = vunpack.c.h.b16 %v4560
  %v4608 = vunpack.c.l.b16 %v4561
  %v4609 = vunpack.c.h.b16 %v4561
  %v4610 = vpack.c.b16 %v4578, %v4578
  %v4611 = vpack.c.b16 %v4579, %v4579
  %v4612 = vpack.c.b16 %v4580, %v4580
  %v4613 = vpack.c.b16 %v4581, %v4581
  %v4614 = vpack.c.b16 %v4582, %v4582
  %v4615 = vpack.c.b16 %v4583, %v4583
  %v4616 = vpack.c.b16 %v4584, %v4584
  %v4617 = vpack.c.b16 %v4585, %v4585
  %v4618 = vpack.c.b16 %v4586, %v4586
  %v4619 = vpack.c.b16 %v4587, %v4587
  %v4620 = vpack.c.b16 %v4588, %v4588
  %v4621 = vpack.c.b16 %v4589, %v4589
  %v4622 = vpack.c.b16 %v4590, %v4590
  %v4623 = vpack.c.b16 %v4591, %v4591
  %v4624 = vpack.c.b16 %v4592, %v4592
  %v4625 = vpack.c.b16 %v4593, %v4593
  %v4626 = vpack.c.b16 %v4594, %v4594
  %v4627 = vpack.c.b16 %v4595, %v4595
  %v4628 = vpack.c.b16 %v4596, %v4596
  %v4629 = vpack.c.b16 %v4597, %v4597
  %v4630 = vpack.c.b16 %v4598, %v4598
  %v4631 = vpack.c.b16 %v4599, %v4599
  %v4632 = vpack.c.b16 %v4600, %v4600
  %v4633 = vpack.c.b16 %v4601, %v4601
  %v4634 = vpack.c.b16 %v4602, %v4602
  %v4635 = vpack.c.b16 %v4603, %v4603
  %v4636 = vpack.c.b16 %v4604, %v4604
  %v4637 = vpack.c.b16 %v4605, %v4605
  %v4638 = vpack.c.b16 %v4606, %v4606
  %v4639 = vpack.c.b16 %v4607, %v4607
  %v4640 = vpack.c.b16 %v4608, %v4608
  %v4641 = vpack.c.b16 %v4609, %v4609
  %v4642 = vrot.slane %v4610, 5
  %v4643 = vrot.slane %v4642, 4
  %v4644 = vrot.slane %v4611, 5
  %v4645 = vsel %vm3376, %v4643, %v4644
  %v4646 = vrot.slane %v4612, 5
  %v4647 = vrot.slane %v4646, 4
  %v4648 = vrot.slane %v4613, 5
  %v4649 = vsel %vm3376, %v4647, %v4648
  %v4650 = vrot.slane %v4614, 5
  %v4651 = vrot.slane %v4650, 4
  %v4652 = vrot.slane %v4615, 5
  %v4653 = vsel %vm3376, %v4651, %v4652
  %v4654 = vrot.slane %v4616, 5
  %v4655 = vrot.slane %v4654, 4
  %v4656 = vrot.slane %v4617, 5
  %v4657 = vsel %vm3376, %v4655, %v4656
  %v4658 = vrot.slane %v4618, 5
  %v4659 = vrot.slane %v4658, 4
  %v4660 = vrot.slane %v4619, 5
  %v4661 = vsel %vm3376, %v4659, %v4660
  %v4662 = vrot.slane %v4620, 5
  %v4663 = vrot.slane %v4662, 4
  %v4664 = vrot.slane %v4621, 5
  %v4665 = vsel %vm3376, %v4663, %v4664
  %v4666 = vrot.slane %v4622, 5
  %v4667 = vrot.slane %v4666, 4
  %v4668 = vrot.slane %v4623, 5
  %v4669 = vsel %vm3376, %v4667, %v4668
  %v4670 = vrot.slane %v4624, 5
  %v4671 = vrot.slane %v4670, 4
  %v4672 = vrot.slane %v4625, 5
  %v4673 = vsel %vm3376, %v4671, %v4672
  %v4674 = vrot.slane %v4626, 5
  %v4675 = vrot.slane %v4674, 4
  %v4676 = vrot.slane %v4627, 5
  %v4677 = vsel %vm3376, %v4675, %v4676
  %v4678 = vrot.slane %v4628, 5
  %v4679 = vrot.slane %v4678, 4
  %v4680 = vrot.slane %v4629, 5
  %v4681 = vsel %vm3376, %v4679, %v4680
  %v4682 = vrot.slane %v4630, 5
  %v4683 = vrot.slane %v4682, 4
  %v4684 = vrot.slane %v4631, 5
  %v4685 = vsel %vm3376, %v4683, %v4684
  %v4686 = vrot.slane %v4632, 5
  %v4687 = vrot.slane %v4686, 4
  %v4688 = vrot.slane %v4633, 5
  %v4689 = vsel %vm3376, %v4687, %v4688
  %v4690 = vrot.slane %v4634, 5
  %v4691 = vrot.slane %v4690, 4
  %v4692 = vrot.slane %v4635, 5
  %v4693 = vsel %vm3376, %v4691, %v4692
  %v4694 = vrot.slane %v4636, 5
  %v4695 = vrot.slane %v4694, 4
  %v4696 = vrot.slane %v4637, 5
  %v4697 = vsel %vm3376, %v4695, %v4696
  %v4698 = vrot.slane %v4638, 5
  %v4699 = vrot.slane %v4698, 4
  %v4700 = vrot.slane %v4639, 5
  %v4701 = vsel %vm3376, %v4699, %v4700
  %v4702 = vrot.slane %v4640, 5
  %v4703 = vrot.slane %v4702, 4
  %v4704 = vrot.slane %v4641, 5
  %v4705 = vsel %vm3376, %v4703, %v4704
  %v4706 = vunpack.c.l.b16 %v4645
  %v4707 = vunpack.c.l.b16 %v4649
  %v4708 = vunpack.c.l.b16 %v4653
  %v4709 = vunpack.c.l.b16 %v4657
  %v4710 = vunpack.c.l.b16 %v4661
  %v4711 = vunpack.c.l.b16 %v4665
  %v4712 = vunpack.c.l.b16 %v4669
  %v4713 = vunpack.c.l.b16 %v4673
  %v4714 = vunpack.c.l.b16 %v4677
  %v4715 = vunpack.c.l.b16 %v4681
  %v4716 = vunpack.c.l.b16 %v4685
  %v4717 = vunpack.c.l.b16 %v4689
  %v4718 = vunpack.c.l.b16 %v4693
  %v4719 = vunpack.c.l.b16 %v4697
  %v4720 = vunpack.c.l.b16 %v4701
  %v4721 = vunpack.c.l.b16 %v4705
  %v4722 = vpack.c.b16 %v4707, %v4706
  %v4723 = vpack.c.b16 %v4709, %v4708
  %v4724 = vpack.c.b16 %v4711, %v4710
  %v4725 = vpack.c.b16 %v4713, %v4712
  %v4726 = vpack.c.b16 %v4715, %v4714
  %v4727 = vpack.c.b16 %v4717, %v4716
  %v4728 = vpack.c.b16 %v4719, %v4718
  %v4729 = vpack.c.b16 %v4721, %v4720
  %4738 = vst [vmem:[#allocation4 + $0x40] sm:$0xff] %v4722
  %4739 = vst [vmem:[#allocation4 + $0x88] sm:$0xff] %v4723
  %4740 = vst [vmem:[#allocation4 + $0xd0] sm:$0xff] %v4724
  %4741 = vst [vmem:[#allocation4 + $0x118] sm:$0xff] %v4725
  %4742 = vst [vmem:[#allocation4 + $0x160] sm:$0xff] %v4726
  %4743 = vst [vmem:[#allocation4 + $0x1a8] sm:$0xff] %v4727
  %4744 = vst [vmem:[#allocation4 + $0x1f0] sm:$0xff] %v4728
  %4745 = vst [vmem:[#allocation4 + $0x238] sm:$0xff] %v4729
  %v4746 = vld [vmem:[#allocation4] sm:$0xff]
  %v4747 = vld [vmem:[#allocation4 + $0x8] sm:$0xff]
  %v4748 = vld [vmem:[#allocation4 + $0x10] sm:$0xff]
  %v4749 = vld [vmem:[#allocation4 + $0x18] sm:$0xff]
  %v4750 = vld [vmem:[#allocation4 + $0x20] sm:$0xff]
  %v4751 = vld [vmem:[#allocation4 + $0x28] sm:$0xff]
  %v4752 = vld [vmem:[#allocation4 + $0x30] sm:$0xff]
  %v4753 = vld [vmem:[#allocation4 + $0x38] sm:$0xff]
  %v4754 = vld [vmem:[#allocation4 + $0x40] sm:$0xff]
  %v4755 = vld [vmem:[#allocation4 + $0x48] sm:$0xff]
  %v4756 = vld [vmem:[#allocation4 + $0x50] sm:$0xff]
  %v4757 = vld [vmem:[#allocation4 + $0x58] sm:$0xff]
  %v4758 = vld [vmem:[#allocation4 + $0x60] sm:$0xff]
  %v4759 = vld [vmem:[#allocation4 + $0x68] sm:$0xff]
  %v4760 = vld [vmem:[#allocation4 + $0x70] sm:$0xff]
  %v4761 = vld [vmem:[#allocation4 + $0x78] sm:$0xff]
  %v4762 = vld [vmem:[#allocation4 + $0x80] sm:$0xff]
  %v4763 = vld [vmem:[#allocation4 + $0x88] sm:$0xff]
  %v4764 = vld [vmem:[#allocation4 + $0x90] sm:$0xff]
  %v4765 = vld [vmem:[#allocation4 + $0x98] sm:$0xff]
  %v4766 = vld [vmem:[#allocation4 + $0xa0] sm:$0xff]
  %v4767 = vld [vmem:[#allocation4 + $0xa8] sm:$0xff]
  %v4768 = vld [vmem:[#allocation4 + $0xb0] sm:$0xff]
  %v4769 = vld [vmem:[#allocation4 + $0xb8] sm:$0xff]
  %v4770 = vld [vmem:[#allocation4 + $0xc0] sm:$0xff]
  %v4771 = vld [vmem:[#allocation4 + $0xc8] sm:$0xff]
  %v4772 = vld [vmem:[#allocation4 + $0xd0] sm:$0xff]
  %v4773 = vld [vmem:[#allocation4 + $0xd8] sm:$0xff]
  %v4774 = vld [vmem:[#allocation4 + $0xe0] sm:$0xff]
  %v4775 = vld [vmem:[#allocation4 + $0xe8] sm:$0xff]
  %v4776 = vld [vmem:[#allocation4 + $0xf0] sm:$0xff]
  %v4777 = vld [vmem:[#allocation4 + $0xf8] sm:$0xff]
  %v4778 = vld [vmem:[#allocation4 + $0x100] sm:$0xff]
  %v4779 = vld [vmem:[#allocation4 + $0x108] sm:$0xff]
  %v4780 = vld [vmem:[#allocation4 + $0x110] sm:$0xff]
  %v4781 = vld [vmem:[#allocation4 + $0x118] sm:$0xff]
  %v4782 = vld [vmem:[#allocation4 + $0x120] sm:$0xff]
  %v4783 = vld [vmem:[#allocation4 + $0x128] sm:$0xff]
  %v4784 = vld [vmem:[#allocation4 + $0x130] sm:$0xff]
  %v4785 = vld [vmem:[#allocation4 + $0x138] sm:$0xff]
  %v4786 = vld [vmem:[#allocation4 + $0x140] sm:$0xff]
  %v4787 = vld [vmem:[#allocation4 + $0x148] sm:$0xff]
  %v4788 = vld [vmem:[#allocation4 + $0x150] sm:$0xff]
  %v4789 = vld [vmem:[#allocation4 + $0x158] sm:$0xff]
  %v4790 = vld [vmem:[#allocation4 + $0x160] sm:$0xff]
  %v4791 = vld [vmem:[#allocation4 + $0x168] sm:$0xff]
  %v4792 = vld [vmem:[#allocation4 + $0x170] sm:$0xff]
  %v4793 = vld [vmem:[#allocation4 + $0x178] sm:$0xff]
  %v4794 = vld [vmem:[#allocation4 + $0x180] sm:$0xff]
  %v4795 = vld [vmem:[#allocation4 + $0x188] sm:$0xff]
  %v4796 = vld [vmem:[#allocation4 + $0x190] sm:$0xff]
  %v4797 = vld [vmem:[#allocation4 + $0x198] sm:$0xff]
  %v4798 = vld [vmem:[#allocation4 + $0x1a0] sm:$0xff]
  %v4799 = vld [vmem:[#allocation4 + $0x1a8] sm:$0xff]
  %v4800 = vld [vmem:[#allocation4 + $0x1b0] sm:$0xff]
  %v4801 = vld [vmem:[#allocation4 + $0x1b8] sm:$0xff]
  %v4802 = vld [vmem:[#allocation4 + $0x1c0] sm:$0xff]
  %v4803 = vld [vmem:[#allocation4 + $0x1c8] sm:$0xff]
  %v4804 = vld [vmem:[#allocation4 + $0x1d0] sm:$0xff]
  %v4805 = vld [vmem:[#allocation4 + $0x1d8] sm:$0xff]
  %v4806 = vld [vmem:[#allocation4 + $0x1e0] sm:$0xff]
  %v4807 = vld [vmem:[#allocation4 + $0x1e8] sm:$0xff]
  %v4808 = vld [vmem:[#allocation4 + $0x1f0] sm:$0xff]
  %v4809 = vld [vmem:[#allocation4 + $0x1f8] sm:$0xff]
  %v4810 = vld [vmem:[#allocation4 + $0x200] sm:$0xff]
  %v4811 = vld [vmem:[#allocation4 + $0x208] sm:$0xff]
  %v4812 = vld [vmem:[#allocation4 + $0x210] sm:$0xff]
  %v4813 = vld [vmem:[#allocation4 + $0x218] sm:$0xff]
  %v4814 = vld [vmem:[#allocation4 + $0x220] sm:$0xff]
  %v4815 = vld [vmem:[#allocation4 + $0x228] sm:$0xff]
  %v4816 = vld [vmem:[#allocation4 + $0x230] sm:$0xff]
  %v4817 = vld [vmem:[#allocation4 + $0x238] sm:$0xff]
  %v4818 = vld [vmem:[%s3] sm:$0xf]
  %v4819 = vld [vmem:[%s3 + $0x4] sm:$0xf]
  %v4820 = vld [vmem:[%s3 + $0x8] sm:$0xf]
  %v4821 = vld [vmem:[%s3 + $0xc] sm:$0xf]
  %v4822 = vld [vmem:[%s3 + $0x10] sm:$0xf]
  %v4823 = vld [vmem:[%s3 + $0x14] sm:$0xf]
  %v4824 = vld [vmem:[%s3 + $0x18] sm:$0xf]
  %v4825 = vld [vmem:[%s3 + $0x1c] sm:$0xf]
  %v4826 = vld [vmem:[%s3 + $0x20] sm:$0xf]
  %v4827 = vld [vmem:[%s3 + $0x24] sm:$0xf]
  %v4828 = vld [vmem:[%s3 + $0x28] sm:$0xf]
  %v4829 = vld [vmem:[%s3 + $0x2c] sm:$0xf]
  %v4830 = vld [vmem:[%s3 + $0x30] sm:$0xf]
  %v4831 = vld [vmem:[%s3 + $0x34] sm:$0xf]
  %v4832 = vld [vmem:[%s3 + $0x38] sm:$0xf]
  %v4833 = vld [vmem:[%s3 + $0x3c] sm:$0xf]
  %v4834 = vld [vmem:[%s3 + $0x40] sm:$0xf]
  %v4835 = vld [vmem:[%s3 + $0x44] sm:$0xf]
  %v4836 = vld [vmem:[%s3 + $0x48] sm:$0xf]
  %v4837 = vld [vmem:[%s3 + $0x4c] sm:$0xf]
  %v4838 = vld [vmem:[%s3 + $0x50] sm:$0xf]
  %v4839 = vld [vmem:[%s3 + $0x54] sm:$0xf]
  %v4840 = vld [vmem:[%s3 + $0x58] sm:$0xf]
  %v4841 = vld [vmem:[%s3 + $0x5c] sm:$0xf]
  %v4842 = vld [vmem:[%s3 + $0x60] sm:$0xf]
  %v4843 = vld [vmem:[%s3 + $0x64] sm:$0xf]
  %v4844 = vld [vmem:[%s3 + $0x68] sm:$0xf]
  %v4845 = vld [vmem:[%s3 + $0x6c] sm:$0xf]
  %v4846 = vld [vmem:[%s3 + $0x70] sm:$0xf]
  %v4847 = vld [vmem:[%s3 + $0x74] sm:$0xf]
  %v4848 = vld [vmem:[%s3 + $0x78] sm:$0xf]
  %v4849 = vld [vmem:[%s3 + $0x7c] sm:$0xf]
  %v4850 = vld [vmem:[%s3 + $0x80] sm:$0xf]
  %v4851 = vld [vmem:[%s3 + $0x84] sm:$0xf]
  %v4852 = vld [vmem:[%s3 + $0x88] sm:$0xf]
  %v4853 = vld [vmem:[%s3 + $0x8c] sm:$0xf]
  %v4854 = vld [vmem:[%s3 + $0x90] sm:$0xf]
  %v4855 = vld [vmem:[%s3 + $0x94] sm:$0xf]
  %v4856 = vld [vmem:[%s3 + $0x98] sm:$0xf]
  %v4857 = vld [vmem:[%s3 + $0x9c] sm:$0xf]
  %v4858 = vld [vmem:[%s3 + $0xa0] sm:$0xf]
  %v4859 = vld [vmem:[%s3 + $0xa4] sm:$0xf]
  %v4860 = vld [vmem:[%s3 + $0xa8] sm:$0xf]
  %v4861 = vld [vmem:[%s3 + $0xac] sm:$0xf]
  %v4862 = vld [vmem:[%s3 + $0xb0] sm:$0xf]
  %v4863 = vld [vmem:[%s3 + $0xb4] sm:$0xf]
  %v4864 = vld [vmem:[%s3 + $0xb8] sm:$0xf]
  %v4865 = vld [vmem:[%s3 + $0xbc] sm:$0xf]
  %v4866 = vld [vmem:[%s3 + $0xc0] sm:$0xf]
  %v4867 = vld [vmem:[%s3 + $0xc4] sm:$0xf]
  %v4868 = vld [vmem:[%s3 + $0xc8] sm:$0xf]
  %v4869 = vld [vmem:[%s3 + $0xcc] sm:$0xf]
  %v4870 = vld [vmem:[%s3 + $0xd0] sm:$0xf]
  %v4871 = vld [vmem:[%s3 + $0xd4] sm:$0xf]
  %v4872 = vld [vmem:[%s3 + $0xd8] sm:$0xf]
  %v4873 = vld [vmem:[%s3 + $0xdc] sm:$0xf]
  %v4874 = vld [vmem:[%s3 + $0xe0] sm:$0xf]
  %v4875 = vld [vmem:[%s3 + $0xe4] sm:$0xf]
  %v4876 = vld [vmem:[%s3 + $0xe8] sm:$0xf]
  %v4877 = vld [vmem:[%s3 + $0xec] sm:$0xf]
  %v4878 = vld [vmem:[%s3 + $0xf0] sm:$0xf]
  %v4879 = vld [vmem:[%s3 + $0xf4] sm:$0xf]
  %v4880 = vld [vmem:[%s3 + $0xf8] sm:$0xf]
  %v4881 = vld [vmem:[%s3 + $0xfc] sm:$0xf]
  %v4882 = vld [vmem:[%s3 + $0x100] sm:$0xf]
  %v4883 = vld [vmem:[%s3 + $0x104] sm:$0xf]
  %v4884 = vld [vmem:[%s3 + $0x108] sm:$0xf]
  %v4885 = vld [vmem:[%s3 + $0x10c] sm:$0xf]
  %v4886 = vld [vmem:[%s3 + $0x110] sm:$0xf]
  %v4887 = vld [vmem:[%s3 + $0x114] sm:$0xf]
  %v4888 = vld [vmem:[%s3 + $0x118] sm:$0xf]
  %v4889 = vld [vmem:[%s3 + $0x11c] sm:$0xf]
  %v4890 = vld [vmem:[%s3 + $0x120] sm:$0xf]
  %v4891 = vld [vmem:[%s3 + $0x124] sm:$0xf]
  %v4892 = vld [vmem:[%s3 + $0x128] sm:$0xf]
  %v4893 = vld [vmem:[%s3 + $0x12c] sm:$0xf]
  %v4894 = vld [vmem:[%s3 + $0x130] sm:$0xf]
  %v4895 = vld [vmem:[%s3 + $0x134] sm:$0xf]
  %v4896 = vld [vmem:[%s3 + $0x138] sm:$0xf]
  %v4897 = vld [vmem:[%s3 + $0x13c] sm:$0xf]
  %v4898 = vld [vmem:[%s3 + $0x140] sm:$0xf]
  %v4899 = vld [vmem:[%s3 + $0x144] sm:$0xf]
  %v4900 = vld [vmem:[%s3 + $0x148] sm:$0xf]
  %v4901 = vld [vmem:[%s3 + $0x14c] sm:$0xf]
  %v4902 = vld [vmem:[%s3 + $0x150] sm:$0xf]
  %v4903 = vld [vmem:[%s3 + $0x154] sm:$0xf]
  %v4904 = vld [vmem:[%s3 + $0x158] sm:$0xf]
  %v4905 = vld [vmem:[%s3 + $0x15c] sm:$0xf]
  %v4906 = vld [vmem:[%s3 + $0x160] sm:$0xf]
  %v4907 = vld [vmem:[%s3 + $0x164] sm:$0xf]
  %v4908 = vld [vmem:[%s3 + $0x168] sm:$0xf]
  %v4909 = vld [vmem:[%s3 + $0x16c] sm:$0xf]
  %v4910 = vld [vmem:[%s3 + $0x170] sm:$0xf]
  %v4911 = vld [vmem:[%s3 + $0x174] sm:$0xf]
  %v4912 = vld [vmem:[%s3 + $0x178] sm:$0xf]
  %v4913 = vld [vmem:[%s3 + $0x17c] sm:$0xf]
  %v4914 = vld [vmem:[%s3 + $0x180] sm:$0xf]
  %v4915 = vld [vmem:[%s3 + $0x184] sm:$0xf]
  %v4916 = vld [vmem:[%s3 + $0x188] sm:$0xf]
  %v4917 = vld [vmem:[%s3 + $0x18c] sm:$0xf]
  %v4918 = vld [vmem:[%s3 + $0x190] sm:$0xf]
  %v4919 = vld [vmem:[%s3 + $0x194] sm:$0xf]
  %v4920 = vld [vmem:[%s3 + $0x198] sm:$0xf]
  %v4921 = vld [vmem:[%s3 + $0x19c] sm:$0xf]
  %v4922 = vld [vmem:[%s3 + $0x1a0] sm:$0xf]
  %v4923 = vld [vmem:[%s3 + $0x1a4] sm:$0xf]
  %v4924 = vld [vmem:[%s3 + $0x1a8] sm:$0xf]
  %v4925 = vld [vmem:[%s3 + $0x1ac] sm:$0xf]
  %v4926 = vld [vmem:[%s3 + $0x1b0] sm:$0xf]
  %v4927 = vld [vmem:[%s3 + $0x1b4] sm:$0xf]
  %v4928 = vld [vmem:[%s3 + $0x1b8] sm:$0xf]
  %v4929 = vld [vmem:[%s3 + $0x1bc] sm:$0xf]
  %v4930 = vld [vmem:[%s3 + $0x1c0] sm:$0xf]
  %v4931 = vld [vmem:[%s3 + $0x1c4] sm:$0xf]
  %v4932 = vld [vmem:[%s3 + $0x1c8] sm:$0xf]
  %v4933 = vld [vmem:[%s3 + $0x1cc] sm:$0xf]
  %v4934 = vld [vmem:[%s3 + $0x1d0] sm:$0xf]
  %v4935 = vld [vmem:[%s3 + $0x1d4] sm:$0xf]
  %v4936 = vld [vmem:[%s3 + $0x1d8] sm:$0xf]
  %v4937 = vld [vmem:[%s3 + $0x1dc] sm:$0xf]
  %v4938 = vld [vmem:[%s3 + $0x1e0] sm:$0xf]
  %v4939 = vld [vmem:[%s3 + $0x1e4] sm:$0xf]
  %v4940 = vld [vmem:[%s3 + $0x1e8] sm:$0xf]
  %v4941 = vld [vmem:[%s3 + $0x1ec] sm:$0xf]
  %v4942 = vld [vmem:[%s3 + $0x1f0] sm:$0xf]
  %v4943 = vld [vmem:[%s3 + $0x1f4] sm:$0xf]
  %v4944 = vld [vmem:[%s3 + $0x1f8] sm:$0xf]
  %v4945 = vld [vmem:[%s3 + $0x1fc] sm:$0xf]
  %v4946 = vld [vmem:[%s3 + $0x200] sm:$0xf]
  %v4947 = vld [vmem:[%s3 + $0x204] sm:$0xf]
  %v4948 = vld [vmem:[%s3 + $0x208] sm:$0xf]
  %v4949 = vld [vmem:[%s3 + $0x20c] sm:$0xf]
  %v4950 = vld [vmem:[%s3 + $0x210] sm:$0xf]
  %v4951 = vld [vmem:[%s3 + $0x214] sm:$0xf]
  %v4952 = vld [vmem:[%s3 + $0x218] sm:$0xf]
  %v4953 = vld [vmem:[%s3 + $0x21c] sm:$0xf]
  %v4954 = vld [vmem:[%s3 + $0x220] sm:$0xf]
  %v4955 = vld [vmem:[%s3 + $0x224] sm:$0xf]
  %v4956 = vld [vmem:[%s3 + $0x228] sm:$0xf]
  %v4957 = vld [vmem:[%s3 + $0x22c] sm:$0xf]
  %v4958 = vld [vmem:[%s3 + $0x230] sm:$0xf]
  %v4959 = vld [vmem:[%s3 + $0x234] sm:$0xf]
  %v4960 = vld [vmem:[%s3 + $0x238] sm:$0xf]
  %v4961 = vld [vmem:[%s3 + $0x23c] sm:$0xf]
  %v4962 = vld [vmem:[%s4] sm:$0x1]
  %v4964 = vlaneseq
  %v4965 = vshrl.u32 %v4964, 7
  %v4966 = vsub.s32 0, %v4965
  %v4967 = vrot.slane %v4962, %v4966
  %v5113 = vunpack.c.l.b16 %v4818
  %v5114 = vunpack.c.l.b16 %v4819
  %v5115 = vunpack.c.l.b16 %v4820
  %v5116 = vunpack.c.l.b16 %v4821
  %v5117 = vunpack.c.l.b16 %v4822
  %v5118 = vunpack.c.l.b16 %v4823
  %v5119 = vunpack.c.l.b16 %v4824
  %v5120 = vunpack.c.l.b16 %v4825
  %v5121 = vunpack.c.l.b16 %v4826
  %v5122 = vunpack.c.l.b16 %v4827
  %v5123 = vunpack.c.l.b16 %v4828
  %v5124 = vunpack.c.l.b16 %v4829
  %v5125 = vunpack.c.l.b16 %v4830
  %v5126 = vunpack.c.l.b16 %v4831
  %v5127 = vunpack.c.l.b16 %v4832
  %v5128 = vunpack.c.l.b16 %v4833
  %v5129 = vunpack.c.l.b16 %v4834
  %v5130 = vunpack.c.l.b16 %v4835
  %v5131 = vunpack.c.l.b16 %v4836
  %v5132 = vunpack.c.l.b16 %v4837
  %v5133 = vunpack.c.l.b16 %v4838
  %v5134 = vunpack.c.l.b16 %v4839
  %v5135 = vunpack.c.l.b16 %v4840
  %v5136 = vunpack.c.l.b16 %v4841
  %v5137 = vunpack.c.l.b16 %v4842
  %v5138 = vunpack.c.l.b16 %v4843
  %v5139 = vunpack.c.l.b16 %v4844
  %v5140 = vunpack.c.l.b16 %v4845
  %v5141 = vunpack.c.l.b16 %v4846
  %v5142 = vunpack.c.l.b16 %v4847
  %v5143 = vunpack.c.l.b16 %v4848
  %v5144 = vunpack.c.l.b16 %v4849
  %v5145 = vunpack.c.l.b16 %v4850
  %v5146 = vunpack.c.l.b16 %v4851
  %v5147 = vunpack.c.l.b16 %v4852
  %v5148 = vunpack.c.l.b16 %v4853
  %v5149 = vunpack.c.l.b16 %v4854
  %v5150 = vunpack.c.l.b16 %v4855
  %v5151 = vunpack.c.l.b16 %v4856
  %v5152 = vunpack.c.l.b16 %v4857
  %v5153 = vunpack.c.l.b16 %v4858
  %v5154 = vunpack.c.l.b16 %v4859
  %v5155 = vunpack.c.l.b16 %v4860
  %v5156 = vunpack.c.l.b16 %v4861
  %v5157 = vunpack.c.l.b16 %v4862
  %v5158 = vunpack.c.l.b16 %v4863
  %v5159 = vunpack.c.l.b16 %v4864
  %v5160 = vunpack.c.l.b16 %v4865
  %v5161 = vunpack.c.l.b16 %v4866
  %v5162 = vunpack.c.l.b16 %v4867
  %v5163 = vunpack.c.l.b16 %v4868
  %v5164 = vunpack.c.l.b16 %v4869
  %v5165 = vunpack.c.l.b16 %v4870
  %v5166 = vunpack.c.l.b16 %v4871
  %v5167 = vunpack.c.l.b16 %v4872
  %v5168 = vunpack.c.l.b16 %v4873
  %v5169 = vunpack.c.l.b16 %v4874
  %v5170 = vunpack.c.l.b16 %v4875
  %v5171 = vunpack.c.l.b16 %v4876
  %v5172 = vunpack.c.l.b16 %v4877
  %v5173 = vunpack.c.l.b16 %v4878
  %v5174 = vunpack.c.l.b16 %v4879
  %v5175 = vunpack.c.l.b16 %v4880
  %v5176 = vunpack.c.l.b16 %v4881
  %v5177 = vunpack.c.l.b16 %v4882
  %v5178 = vunpack.c.l.b16 %v4883
  %v5179 = vunpack.c.l.b16 %v4884
  %v5180 = vunpack.c.l.b16 %v4885
  %v5181 = vunpack.c.l.b16 %v4886
  %v5182 = vunpack.c.l.b16 %v4887
  %v5183 = vunpack.c.l.b16 %v4888
  %v5184 = vunpack.c.l.b16 %v4889
  %v5185 = vunpack.c.l.b16 %v4890
  %v5186 = vunpack.c.l.b16 %v4891
  %v5187 = vunpack.c.l.b16 %v4892
  %v5188 = vunpack.c.l.b16 %v4893
  %v5189 = vunpack.c.l.b16 %v4894
  %v5190 = vunpack.c.l.b16 %v4895
  %v5191 = vunpack.c.l.b16 %v4896
  %v5192 = vunpack.c.l.b16 %v4897
  %v5193 = vunpack.c.l.b16 %v4898
  %v5194 = vunpack.c.l.b16 %v4899
  %v5195 = vunpack.c.l.b16 %v4900
  %v5196 = vunpack.c.l.b16 %v4901
  %v5197 = vunpack.c.l.b16 %v4902
  %v5198 = vunpack.c.l.b16 %v4903
  %v5199 = vunpack.c.l.b16 %v4904
  %v5200 = vunpack.c.l.b16 %v4905
  %v5201 = vunpack.c.l.b16 %v4906
  %v5202 = vunpack.c.l.b16 %v4907
  %v5203 = vunpack.c.l.b16 %v4908
  %v5204 = vunpack.c.l.b16 %v4909
  %v5205 = vunpack.c.l.b16 %v4910
  %v5206 = vunpack.c.l.b16 %v4911
  %v5207 = vunpack.c.l.b16 %v4912
  %v5208 = vunpack.c.l.b16 %v4913
  %v5209 = vunpack.c.l.b16 %v4914
  %v5210 = vunpack.c.l.b16 %v4915
  %v5211 = vunpack.c.l.b16 %v4916
  %v5212 = vunpack.c.l.b16 %v4917
  %v5213 = vunpack.c.l.b16 %v4918
  %v5214 = vunpack.c.l.b16 %v4919
  %v5215 = vunpack.c.l.b16 %v4920
  %v5216 = vunpack.c.l.b16 %v4921
  %v5217 = vunpack.c.l.b16 %v4922
  %v5218 = vunpack.c.l.b16 %v4923
  %v5219 = vunpack.c.l.b16 %v4924
  %v5220 = vunpack.c.l.b16 %v4925
  %v5221 = vunpack.c.l.b16 %v4926
  %v5222 = vunpack.c.l.b16 %v4927
  %v5223 = vunpack.c.l.b16 %v4928
  %v5224 = vunpack.c.l.b16 %v4929
  %v5225 = vunpack.c.l.b16 %v4930
  %v5226 = vunpack.c.l.b16 %v4931
  %v5227 = vunpack.c.l.b16 %v4932
  %v5228 = vunpack.c.l.b16 %v4933
  %v5229 = vunpack.c.l.b16 %v4934
  %v5230 = vunpack.c.l.b16 %v4935
  %v5231 = vunpack.c.l.b16 %v4936
  %v5232 = vunpack.c.l.b16 %v4937
  %v5233 = vunpack.c.l.b16 %v4938
  %v5234 = vunpack.c.l.b16 %v4939
  %v5235 = vunpack.c.l.b16 %v4940
  %v5236 = vunpack.c.l.b16 %v4941
  %v5237 = vunpack.c.l.b16 %v4942
  %v5238 = vunpack.c.l.b16 %v4943
  %v5239 = vunpack.c.l.b16 %v4944
  %v5240 = vunpack.c.l.b16 %v4945
  %v5241 = vunpack.c.l.b16 %v4946
  %v5242 = vunpack.c.l.b16 %v4947
  %v5243 = vunpack.c.l.b16 %v4948
  %v5244 = vunpack.c.l.b16 %v4949
  %v5245 = vunpack.c.l.b16 %v4950
  %v5246 = vunpack.c.l.b16 %v4951
  %v5247 = vunpack.c.l.b16 %v4952
  %v5248 = vunpack.c.l.b16 %v4953
  %v5249 = vunpack.c.l.b16 %v4954
  %v5250 = vunpack.c.l.b16 %v4955
  %v5251 = vunpack.c.l.b16 %v4956
  %v5252 = vunpack.c.l.b16 %v4957
  %v5253 = vunpack.c.l.b16 %v4958
  %v5254 = vunpack.c.l.b16 %v4959
  %v5255 = vunpack.c.l.b16 %v4960
  %v5256 = vunpack.c.l.b16 %v4961
  %v5257 = vpack.c.b16 %v5114, %v5113
  %v5258 = vpack.c.b16 %v5116, %v5115
  %v5259 = vpack.c.b16 %v5118, %v5117
  %v5260 = vpack.c.b16 %v5120, %v5119
  %v5261 = vpack.c.b16 %v5122, %v5121
  %v5262 = vpack.c.b16 %v5124, %v5123
  %v5263 = vpack.c.b16 %v5126, %v5125
  %v5264 = vpack.c.b16 %v5128, %v5127
  %v5265 = vpack.c.b16 %v5130, %v5129
  %v5266 = vpack.c.b16 %v5132, %v5131
  %v5267 = vpack.c.b16 %v5134, %v5133
  %v5268 = vpack.c.b16 %v5136, %v5135
  %v5269 = vpack.c.b16 %v5138, %v5137
  %v5270 = vpack.c.b16 %v5140, %v5139
  %v5271 = vpack.c.b16 %v5142, %v5141
  %v5272 = vpack.c.b16 %v5144, %v5143
  %v5273 = vpack.c.b16 %v5146, %v5145
  %v5274 = vpack.c.b16 %v5148, %v5147
  %v5275 = vpack.c.b16 %v5150, %v5149
  %v5276 = vpack.c.b16 %v5152, %v5151
  %v5277 = vpack.c.b16 %v5154, %v5153
  %v5278 = vpack.c.b16 %v5156, %v5155
  %v5279 = vpack.c.b16 %v5158, %v5157
  %v5280 = vpack.c.b16 %v5160, %v5159
  %v5281 = vpack.c.b16 %v5162, %v5161
  %v5282 = vpack.c.b16 %v5164, %v5163
  %v5283 = vpack.c.b16 %v5166, %v5165
  %v5284 = vpack.c.b16 %v5168, %v5167
  %v5285 = vpack.c.b16 %v5170, %v5169
  %v5286 = vpack.c.b16 %v5172, %v5171
  %v5287 = vpack.c.b16 %v5174, %v5173
  %v5288 = vpack.c.b16 %v5176, %v5175
  %v5289 = vpack.c.b16 %v5178, %v5177
  %v5290 = vpack.c.b16 %v5180, %v5179
  %v5291 = vpack.c.b16 %v5182, %v5181
  %v5292 = vpack.c.b16 %v5184, %v5183
  %v5293 = vpack.c.b16 %v5186, %v5185
  %v5294 = vpack.c.b16 %v5188, %v5187
  %v5295 = vpack.c.b16 %v5190, %v5189
  %v5296 = vpack.c.b16 %v5192, %v5191
  %v5297 = vpack.c.b16 %v5194, %v5193
  %v5298 = vpack.c.b16 %v5196, %v5195
  %v5299 = vpack.c.b16 %v5198, %v5197
  %v5300 = vpack.c.b16 %v5200, %v5199
  %v5301 = vpack.c.b16 %v5202, %v5201
  %v5302 = vpack.c.b16 %v5204, %v5203
  %v5303 = vpack.c.b16 %v5206, %v5205
  %v5304 = vpack.c.b16 %v5208, %v5207
  %v5305 = vpack.c.b16 %v5210, %v5209
  %v5306 = vpack.c.b16 %v5212, %v5211
  %v5307 = vpack.c.b16 %v5214, %v5213
  %v5308 = vpack.c.b16 %v5216, %v5215
  %v5309 = vpack.c.b16 %v5218, %v5217
  %v5310 = vpack.c.b16 %v5220, %v5219
  %v5311 = vpack.c.b16 %v5222, %v5221
  %v5312 = vpack.c.b16 %v5224, %v5223
  %v5313 = vpack.c.b16 %v5226, %v5225
  %v5314 = vpack.c.b16 %v5228, %v5227
  %v5315 = vpack.c.b16 %v5230, %v5229
  %v5316 = vpack.c.b16 %v5232, %v5231
  %v5317 = vpack.c.b16 %v5234, %v5233
  %v5318 = vpack.c.b16 %v5236, %v5235
  %v5319 = vpack.c.b16 %v5238, %v5237
  %v5320 = vpack.c.b16 %v5240, %v5239
  %v5321 = vpack.c.b16 %v5242, %v5241
  %v5322 = vpack.c.b16 %v5244, %v5243
  %v5323 = vpack.c.b16 %v5246, %v5245
  %v5324 = vpack.c.b16 %v5248, %v5247
  %v5325 = vpack.c.b16 %v5250, %v5249
  %v5326 = vpack.c.b16 %v5252, %v5251
  %v5327 = vpack.c.b16 %v5254, %v5253
  %v5328 = vpack.c.b16 %v5256, %v5255
  %5401 = vmatprep.subr.bf16.mxu0 0
  %5402 = vmatpush1.bf16.msra.mxu0 %v5257
  %5403 = vmatprep.subr.bf16.mxu0 0
  %5404 = vmatpush1.bf16.msra.mxu0 %v5258
  %5405 = vmatprep.subr.bf16.mxu0 0
  %5406 = vmatpush1.bf16.msra.mxu0 %v5259
  %5407 = vmatprep.subr.bf16.mxu0 0
  %5408 = vmatpush1.bf16.msra.mxu0 %v5260
  %5409 = vmatprep.subr.bf16.mxu0 0
  %5410 = vmatpush1.bf16.msra.mxu0 %v5261
  %5411 = vmatprep.subr.bf16.mxu0 0
  %5412 = vmatpush1.bf16.msra.mxu0 %v5262
  %5413 = vmatprep.subr.bf16.mxu0 0
  %5414 = vmatpush1.bf16.msra.mxu0 %v5263
  %5415 = vmatprep.subr.bf16.mxu0 0
  %5416 = vmatpush1.bf16.msra.mxu0 %v5264
  %5417 = vmatprep.subr.bf16.mxu0 0
  %5418 = vmatpush1.bf16.msra.mxu0 %v5265
  %5419 = vmatprep.subr.bf16.mxu0 0
  %5420 = vmatpush1.bf16.msra.mxu0 %v5266
  %5421 = vmatprep.subr.bf16.mxu0 0
  %5422 = vmatpush1.bf16.msra.mxu0 %v5267
  %5423 = vmatprep.subr.bf16.mxu0 0
  %5424 = vmatpush1.bf16.msra.mxu0 %v5268
  %5425 = vmatprep.subr.bf16.mxu0 0
  %5426 = vmatpush1.bf16.msra.mxu0 %v5269
  %5427 = vmatprep.subr.bf16.mxu0 0
  %5428 = vmatpush1.bf16.msra.mxu0 %v5270
  %5429 = vmatprep.subr.bf16.mxu0 0
  %5430 = vmatpush1.bf16.msra.mxu0 %v5271
  %5431 = vmatprep.subr.bf16.mxu0 0
  %5432 = vmatpush1.bf16.msra.mxu0 %v5272
  %5433 = vmatprep.mubr.bf16.mxu0 %v4747
  %5434 = vmatmul.mubr.bf16.gmra.mrb[0].mxu0 %v4746
  %v5435 = vpop.f32.mrb[0].mxu0
  %v5436 = vadd.f32 %v4967, %v5435
  %v5437 = vpop.f32.mrb[0].mxu0
  %v5438 = vpop.f32.mrb[0].mxu0
  %v5439 = vadd.f32 %v4967, %v5438
  %v5440 = vpop.f32.mrb[0].mxu0
  %5441 = vmatprep.mubr.bf16.mxu0 %v4756
  %5442 = vmatmul.mubr.bf16.gmra.mrb[0].mxu0 %v4755
  %v5443 = vpop.f32.mrb[0].mxu0
  %v5444 = vadd.f32 %v4967, %v5443
  %v5445 = vpop.f32.mrb[0].mxu0
  %v5446 = vpop.f32.mrb[0].mxu0
  %v5447 = vadd.f32 %v4967, %v5446
  %v5448 = vpop.f32.mrb[0].mxu0
  %5449 = vmatprep.mubr.bf16.mxu0 %v4765
  %5450 = vmatmul.mubr.bf16.gmra.mrb[0].mxu0 %v4764
  %v5451 = vpop.f32.mrb[0].mxu0
  %v5452 = vadd.f32 %v4967, %v5451
  %v5453 = vpop.f32.mrb[0].mxu0
  %v5454 = vpop.f32.mrb[0].mxu0
  %v5455 = vadd.f32 %v4967, %v5454
  %v5456 = vpop.f32.mrb[0].mxu0
  %5457 = vmatprep.mubr.bf16.mxu0 %v4774
  %5458 = vmatmul.mubr.bf16.gmra.mrb[0].mxu0 %v4773
  %v5459 = vpop.f32.mrb[0].mxu0
  %v5460 = vadd.f32 %v4967, %v5459
  %v5461 = vpop.f32.mrb[0].mxu0
  %v5462 = vpop.f32.mrb[0].mxu0
  %v5463 = vadd.f32 %v4967, %v5462
  %v5464 = vpop.f32.mrb[0].mxu0
  %5465 = vmatprep.mubr.bf16.mxu0 %v4783
  %5466 = vmatmul.mubr.bf16.gmra.mrb[0].mxu0 %v4782
  %v5467 = vpop.f32.mrb[0].mxu0
  %v5468 = vadd.f32 %v4967, %v5467
  %v5469 = vpop.f32.mrb[0].mxu0
  %v5470 = vpop.f32.mrb[0].mxu0
  %v5471 = vadd.f32 %v4967, %v5470
  %v5472 = vpop.f32.mrb[0].mxu0
  %5473 = vmatprep.mubr.bf16.mxu0 %v4792
  %5474 = vmatmul.mubr.bf16.gmra.mrb[0].mxu0 %v4791
  %v5475 = vpop.f32.mrb[0].mxu0
  %v5476 = vadd.f32 %v4967, %v5475
  %v5477 = vpop.f32.mrb[0].mxu0
  %v5478 = vpop.f32.mrb[0].mxu0
  %v5479 = vadd.f32 %v4967, %v5478
  %v5480 = vpop.f32.mrb[0].mxu0
  %5481 = vmatprep.mubr.bf16.mxu0 %v4801
  %5482 = vmatmul.mubr.bf16.gmra.mrb[0].mxu0 %v4800
  %v5483 = vpop.f32.mrb[0].mxu0
  %v5484 = vadd.f32 %v4967, %v5483
  %v5485 = vpop.f32.mrb[0].mxu0
  %v5486 = vpop.f32.mrb[0].mxu0
  %v5487 = vadd.f32 %v4967, %v5486
  %v5488 = vpop.f32.mrb[0].mxu0
  %5489 = vmatprep.mubr.bf16.mxu0 %v4810
  %5490 = vmatmul.mubr.bf16.gmra.mrb[0].mxu0 %v4809
  %v5491 = vpop.f32.mrb[0].mxu0
  %v5492 = vadd.f32 %v4967, %v5491
  %v5493 = vpop.f32.mrb[0].mxu0
  %v5494 = vpop.f32.mrb[0].mxu0
  %v5495 = vadd.f32 %v4967, %v5494
  %v5496 = vpop.f32.mrb[0].mxu0
  %5497 = vdwg.mxu0
  %5498 = vmatprep.subr.bf16.mxu0 0
  %5499 = vmatpush1.bf16.msra.mxu0 %v5273
  %5500 = vmatprep.subr.bf16.mxu0 0
  %5501 = vmatpush1.bf16.msra.mxu0 %v5274
  %5502 = vmatprep.subr.bf16.mxu0 0
  %5503 = vmatpush1.bf16.msra.mxu0 %v5275
  %5504 = vmatprep.subr.bf16.mxu0 0
  %5505 = vmatpush1.bf16.msra.mxu0 %v5276
  %5506 = vmatprep.subr.bf16.mxu0 0
  %5507 = vmatpush1.bf16.msra.mxu0 %v5277
  %5508 = vmatprep.subr.bf16.mxu0 0
  %5509 = vmatpush1.bf16.msra.mxu0 %v5278
  %5510 = vmatprep.subr.bf16.mxu0 0
  %5511 = vmatpush1.bf16.msra.mxu0 %v5279
  %5512 = vmatprep.subr.bf16.mxu0 0
  %5513 = vmatpush1.bf16.msra.mxu0 %v5280
  %5514 = vmatprep.subr.bf16.mxu0 0
  %5515 = vmatpush1.bf16.msra.mxu0 %v5281
  %5516 = vmatprep.subr.bf16.mxu0 0
  %5517 = vmatpush1.bf16.msra.mxu0 %v5282
  %5518 = vmatprep.subr.bf16.mxu0 0
  %5519 = vmatpush1.bf16.msra.mxu0 %v5283
  %5520 = vmatprep.subr.bf16.mxu0 0
  %5521 = vmatpush1.bf16.msra.mxu0 %v5284
  %5522 = vmatprep.subr.bf16.mxu0 0
  %5523 = vmatpush1.bf16.msra.mxu0 %v5285
  %5524 = vmatprep.subr.bf16.mxu0 0
  %5525 = vmatpush1.bf16.msra.mxu0 %v5286
  %5526 = vmatprep.subr.bf16.mxu0 0
  %5527 = vmatpush1.bf16.msra.mxu0 %v5287
  %5528 = vmatprep.subr.bf16.mxu0 0
  %5529 = vmatpush1.bf16.msra.mxu0 %v5288
  %5530 = vmatprep.mubr.bf16.mxu0 %v4749
  %5531 = vmatmul.mubr.bf16.gmra.mrb[0].mxu0 %v4748
  %v5532 = vpop.f32.mrb[0].mxu0
  %v5533 = vadd.f32 %v5436, %v5532
  %v5534 = vpop.f32.mrb[0].mxu0
  %v5535 = vpop.f32.mrb[0].mxu0
  %v5536 = vadd.f32 %v5439, %v5535
  %v5537 = vpop.f32.mrb[0].mxu0
  %5538 = vmatprep.mubr.bf16.mxu0 %v4758
  %5539 = vmatmul.mubr.bf16.gmra.mrb[0].mxu0 %v4757
  %v5540 = vpop.f32.mrb[0].mxu0
  %v5541 = vadd.f32 %v5444, %v5540
  %v5542 = vpop.f32.mrb[0].mxu0
  %v5543 = vpop.f32.mrb[0].mxu0
  %v5544 = vadd.f32 %v5447, %v5543
  %v5545 = vpop.f32.mrb[0].mxu0
  %5546 = vmatprep.mubr.bf16.mxu0 %v4767
  %5547 = vmatmul.mubr.bf16.gmra.mrb[0].mxu0 %v4766
  %v5548 = vpop.f32.mrb[0].mxu0
  %v5549 = vadd.f32 %v5452, %v5548
  %v5550 = vpop.f32.mrb[0].mxu0
  %v5551 = vpop.f32.mrb[0].mxu0
  %v5552 = vadd.f32 %v5455, %v5551
  %v5553 = vpop.f32.mrb[0].mxu0
  %5554 = vmatprep.mubr.bf16.mxu0 %v4776
  %5555 = vmatmul.mubr.bf16.gmra.mrb[0].mxu0 %v4775
  %v5556 = vpop.f32.mrb[0].mxu0
  %v5557 = vadd.f32 %v5460, %v5556
  %v5558 = vpop.f32.mrb[0].mxu0
  %v5559 = vpop.f32.mrb[0].mxu0
  %v5560 = vadd.f32 %v5463, %v5559
  %v5561 = vpop.f32.mrb[0].mxu0
  %5562 = vmatprep.mubr.bf16.mxu0 %v4785
  %5563 = vmatmul.mubr.bf16.gmra.mrb[0].mxu0 %v4784
  %v5564 = vpop.f32.mrb[0].mxu0
  %v5565 = vadd.f32 %v5468, %v5564
  %v5566 = vpop.f32.mrb[0].mxu0
  %v5567 = vpop.f32.mrb[0].mxu0
  %v5568 = vadd.f32 %v5471, %v5567
  %v5569 = vpop.f32.mrb[0].mxu0
  %5570 = vmatprep.mubr.bf16.mxu0 %v4794
  %5571 = vmatmul.mubr.bf16.gmra.mrb[0].mxu0 %v4793
  %v5572 = vpop.f32.mrb[0].mxu0
  %v5573 = vadd.f32 %v5476, %v5572
  %v5574 = vpop.f32.mrb[0].mxu0
  %v5575 = vpop.f32.mrb[0].mxu0
  %v5576 = vadd.f32 %v5479, %v5575
  %v5577 = vpop.f32.mrb[0].mxu0
  %5578 = vmatprep.mubr.bf16.mxu0 %v4803
  %5579 = vmatmul.mubr.bf16.gmra.mrb[0].mxu0 %v4802
  %v5580 = vpop.f32.mrb[0].mxu0
  %v5581 = vadd.f32 %v5484, %v5580
  %v5582 = vpop.f32.mrb[0].mxu0
  %v5583 = vpop.f32.mrb[0].mxu0
  %v5584 = vadd.f32 %v5487, %v5583
  %v5585 = vpop.f32.mrb[0].mxu0
  %5586 = vmatprep.mubr.bf16.mxu0 %v4812
  %5587 = vmatmul.mubr.bf16.gmra.mrb[0].mxu0 %v4811
  %v5588 = vpop.f32.mrb[0].mxu0
  %v5589 = vadd.f32 %v5492, %v5588
  %v5590 = vpop.f32.mrb[0].mxu0
  %v5591 = vpop.f32.mrb[0].mxu0
  %v5592 = vadd.f32 %v5495, %v5591
  %v5593 = vpop.f32.mrb[0].mxu0
  %5594 = vdwg.mxu0
  %5595 = vmatprep.subr.bf16.mxu0 0
  %5596 = vmatpush1.bf16.msra.mxu0 %v5289
  %5597 = vmatprep.subr.bf16.mxu0 0
  %5598 = vmatpush1.bf16.msra.mxu0 %v5290
  %5599 = vmatprep.subr.bf16.mxu0 0
  %5600 = vmatpush1.bf16.msra.mxu0 %v5291
  %5601 = vmatprep.subr.bf16.mxu0 0
  %5602 = vmatpush1.bf16.msra.mxu0 %v5292
  %5603 = vmatprep.subr.bf16.mxu0 0
  %5604 = vmatpush1.bf16.msra.mxu0 %v5293
  %5605 = vmatprep.subr.bf16.mxu0 0
  %5606 = vmatpush1.bf16.msra.mxu0 %v5294
  %5607 = vmatprep.subr.bf16.mxu0 0
  %5608 = vmatpush1.bf16.msra.mxu0 %v5295
  %5609 = vmatprep.subr.bf16.mxu0 0
  %5610 = vmatpush1.bf16.msra.mxu0 %v5296
  %5611 = vmatprep.subr.bf16.mxu0 0
  %5612 = vmatpush1.bf16.msra.mxu0 %v5297
  %5613 = vmatprep.subr.bf16.mxu0 0
  %5614 = vmatpush1.bf16.msra.mxu0 %v5298
  %5615 = vmatprep.subr.bf16.mxu0 0
  %5616 = vmatpush1.bf16.msra.mxu0 %v5299
  %5617 = vmatprep.subr.bf16.mxu0 0
  %5618 = vmatpush1.bf16.msra.mxu0 %v5300
  %5619 = vmatprep.subr.bf16.mxu0 0
  %5620 = vmatpush1.bf16.msra.mxu0 %v5301
  %5621 = vmatprep.subr.bf16.mxu0 0
  %5622 = vmatpush1.bf16.msra.mxu0 %v5302
  %5623 = vmatprep.subr.bf16.mxu0 0
  %5624 = vmatpush1.bf16.msra.mxu0 %v5303
  %5625 = vmatprep.subr.bf16.mxu0 0
  %5626 = vmatpush1.bf16.msra.mxu0 %v5304
  %5627 = vmatprep.mubr.bf16.mxu0 %v4751
  %5628 = vmatmul.mubr.bf16.gmra.mrb[0].mxu0 %v4750
  %v5629 = vpop.f32.mrb[0].mxu0
  %v5630 = vadd.f32 %v5533, %v5629
  %v5631 = vpop.f32.mrb[0].mxu0
  %v5632 = vpop.f32.mrb[0].mxu0
  %v5633 = vadd.f32 %v5536, %v5632
  %v5634 = vpop.f32.mrb[0].mxu0
  %5635 = vmatprep.mubr.bf16.mxu0 %v4760
  %5636 = vmatmul.mubr.bf16.gmra.mrb[0].mxu0 %v4759
  %v5637 = vpop.f32.mrb[0].mxu0
  %v5638 = vadd.f32 %v5541, %v5637
  %v5639 = vpop.f32.mrb[0].mxu0
  %v5640 = vpop.f32.mrb[0].mxu0
  %v5641 = vadd.f32 %v5544, %v5640
  %v5642 = vpop.f32.mrb[0].mxu0
  %5643 = vmatprep.mubr.bf16.mxu0 %v4769
  %5644 = vmatmul.mubr.bf16.gmra.mrb[0].mxu0 %v4768
  %v5645 = vpop.f32.mrb[0].mxu0
  %v5646 = vadd.f32 %v5549, %v5645
  %v5647 = vpop.f32.mrb[0].mxu0
  %v5648 = vpop.f32.mrb[0].mxu0
  %v5649 = vadd.f32 %v5552, %v5648
  %v5650 = vpop.f32.mrb[0].mxu0
  %5651 = vmatprep.mubr.bf16.mxu0 %v4778
  %5652 = vmatmul.mubr.bf16.gmra.mrb[0].mxu0 %v4777
  %v5653 = vpop.f32.mrb[0].mxu0
  %v5654 = vadd.f32 %v5557, %v5653
  %v5655 = vpop.f32.mrb[0].mxu0
  %v5656 = vpop.f32.mrb[0].mxu0
  %v5657 = vadd.f32 %v5560, %v5656
  %v5658 = vpop.f32.mrb[0].mxu0
  %5659 = vmatprep.mubr.bf16.mxu0 %v4787
  %5660 = vmatmul.mubr.bf16.gmra.mrb[0].mxu0 %v4786
  %v5661 = vpop.f32.mrb[0].mxu0
  %v5662 = vadd.f32 %v5565, %v5661
  %v5663 = vpop.f32.mrb[0].mxu0
  %v5664 = vpop.f32.mrb[0].mxu0
  %v5665 = vadd.f32 %v5568, %v5664
  %v5666 = vpop.f32.mrb[0].mxu0
  %5667 = vmatprep.mubr.bf16.mxu0 %v4796
  %5668 = vmatmul.mubr.bf16.gmra.mrb[0].mxu0 %v4795
  %v5669 = vpop.f32.mrb[0].mxu0
  %v5670 = vadd.f32 %v5573, %v5669
  %v5671 = vpop.f32.mrb[0].mxu0
  %v5672 = vpop.f32.mrb[0].mxu0
  %v5673 = vadd.f32 %v5576, %v5672
  %v5674 = vpop.f32.mrb[0].mxu0
  %5675 = vmatprep.mubr.bf16.mxu0 %v4805
  %5676 = vmatmul.mubr.bf16.gmra.mrb[0].mxu0 %v4804
  %v5677 = vpop.f32.mrb[0].mxu0
  %v5678 = vadd.f32 %v5581, %v5677
  %v5679 = vpop.f32.mrb[0].mxu0
  %v5680 = vpop.f32.mrb[0].mxu0
  %v5681 = vadd.f32 %v5584, %v5680
  %v5682 = vpop.f32.mrb[0].mxu0
  %5683 = vmatprep.mubr.bf16.mxu0 %v4814
  %5684 = vmatmul.mubr.bf16.gmra.mrb[0].mxu0 %v4813
  %v5685 = vpop.f32.mrb[0].mxu0
  %v5686 = vadd.f32 %v5589, %v5685
  %v5687 = vpop.f32.mrb[0].mxu0
  %v5688 = vpop.f32.mrb[0].mxu0
  %v5689 = vadd.f32 %v5592, %v5688
  %v5690 = vpop.f32.mrb[0].mxu0
  %5691 = vdwg.mxu0
  %5692 = vmatprep.subr.bf16.mxu0 0
  %5693 = vmatpush1.bf16.msra.mxu0 %v5305
  %5694 = vmatprep.subr.bf16.mxu0 0
  %5695 = vmatpush1.bf16.msra.mxu0 %v5306
  %5696 = vmatprep.subr.bf16.mxu0 0
  %5697 = vmatpush1.bf16.msra.mxu0 %v5307
  %5698 = vmatprep.subr.bf16.mxu0 0
  %5699 = vmatpush1.bf16.msra.mxu0 %v5308
  %5700 = vmatprep.subr.bf16.mxu0 0
  %5701 = vmatpush1.bf16.msra.mxu0 %v5309
  %5702 = vmatprep.subr.bf16.mxu0 0
  %5703 = vmatpush1.bf16.msra.mxu0 %v5310
  %5704 = vmatprep.subr.bf16.mxu0 0
  %5705 = vmatpush1.bf16.msra.mxu0 %v5311
  %5706 = vmatprep.subr.bf16.mxu0 0
  %5707 = vmatpush1.bf16.msra.mxu0 %v5312
  %5708 = vmatprep.subr.bf16.mxu0 0
  %5709 = vmatpush1.bf16.msra.mxu0 %v5313
  %5710 = vmatprep.subr.bf16.mxu0 0
  %5711 = vmatpush1.bf16.msra.mxu0 %v5314
  %5712 = vmatprep.subr.bf16.mxu0 0
  %5713 = vmatpush1.bf16.msra.mxu0 %v5315
  %5714 = vmatprep.subr.bf16.mxu0 0
  %5715 = vmatpush1.bf16.msra.mxu0 %v5316
  %5716 = vmatprep.subr.bf16.mxu0 0
  %5717 = vmatpush1.bf16.msra.mxu0 %v5317
  %5718 = vmatprep.subr.bf16.mxu0 0
  %5719 = vmatpush1.bf16.msra.mxu0 %v5318
  %5720 = vmatprep.subr.bf16.mxu0 0
  %5721 = vmatpush1.bf16.msra.mxu0 %v5319
  %5722 = vmatprep.subr.bf16.mxu0 0
  %5723 = vmatpush1.bf16.msra.mxu0 %v5320
  %5724 = vmatprep.mubr.bf16.mxu0 %v4753
  %5725 = vmatmul.mubr.bf16.gmra.mrb[0].mxu0 %v4752
  %v5726 = vpop.f32.mrb[0].mxu0
  %v5727 = vadd.f32 %v5630, %v5726
  %v5728 = vpop.f32.mrb[0].mxu0
  %v5729 = vpop.f32.mrb[0].mxu0
  %v5730 = vadd.f32 %v5633, %v5729
  %v5731 = vpop.f32.mrb[0].mxu0
  %5732 = vmatprep.mubr.bf16.mxu0 %v4762
  %5733 = vmatmul.mubr.bf16.gmra.mrb[0].mxu0 %v4761
  %v5734 = vpop.f32.mrb[0].mxu0
  %v5735 = vadd.f32 %v5638, %v5734
  %v5736 = vpop.f32.mrb[0].mxu0
  %v5737 = vpop.f32.mrb[0].mxu0
  %v5738 = vadd.f32 %v5641, %v5737
  %v5739 = vpop.f32.mrb[0].mxu0
  %5740 = vmatprep.mubr.bf16.mxu0 %v4771
  %5741 = vmatmul.mubr.bf16.gmra.mrb[0].mxu0 %v4770
  %v5742 = vpop.f32.mrb[0].mxu0
  %v5743 = vadd.f32 %v5646, %v5742
  %v5744 = vpop.f32.mrb[0].mxu0
  %v5745 = vpop.f32.mrb[0].mxu0
  %v5746 = vadd.f32 %v5649, %v5745
  %v5747 = vpop.f32.mrb[0].mxu0
  %5748 = vmatprep.mubr.bf16.mxu0 %v4780
  %5749 = vmatmul.mubr.bf16.gmra.mrb[0].mxu0 %v4779
  %v5750 = vpop.f32.mrb[0].mxu0
  %v5751 = vadd.f32 %v5654, %v5750
  %v5752 = vpop.f32.mrb[0].mxu0
  %v5753 = vpop.f32.mrb[0].mxu0
  %v5754 = vadd.f32 %v5657, %v5753
  %v5755 = vpop.f32.mrb[0].mxu0
  %5756 = vmatprep.mubr.bf16.mxu0 %v4789
  %5757 = vmatmul.mubr.bf16.gmra.mrb[0].mxu0 %v4788
  %v5758 = vpop.f32.mrb[0].mxu0
  %v5759 = vadd.f32 %v5662, %v5758
  %v5760 = vpop.f32.mrb[0].mxu0
  %v5761 = vpop.f32.mrb[0].mxu0
  %v5762 = vadd.f32 %v5665, %v5761
  %v5763 = vpop.f32.mrb[0].mxu0
  %5764 = vmatprep.mubr.bf16.mxu0 %v4798
  %5765 = vmatmul.mubr.bf16.gmra.mrb[0].mxu0 %v4797
  %v5766 = vpop.f32.mrb[0].mxu0
  %v5767 = vadd.f32 %v5670, %v5766
  %v5768 = vpop.f32.mrb[0].mxu0
  %v5769 = vpop.f32.mrb[0].mxu0
  %v5770 = vadd.f32 %v5673, %v5769
  %v5771 = vpop.f32.mrb[0].mxu0
  %5772 = vmatprep.mubr.bf16.mxu0 %v4807
  %5773 = vmatmul.mubr.bf16.gmra.mrb[0].mxu0 %v4806
  %v5774 = vpop.f32.mrb[0].mxu0
  %v5775 = vadd.f32 %v5678, %v5774
  %v5776 = vpop.f32.mrb[0].mxu0
  %v5777 = vpop.f32.mrb[0].mxu0
  %v5778 = vadd.f32 %v5681, %v5777
  %v5779 = vpop.f32.mrb[0].mxu0
  %5780 = vmatprep.mubr.bf16.mxu0 %v4816
  %5781 = vmatmul.mubr.bf16.gmra.mrb[0].mxu0 %v4815
  %v5782 = vpop.f32.mrb[0].mxu0
  %v5783 = vadd.f32 %v5686, %v5782
  %v5784 = vpop.f32.mrb[0].mxu0
  %v5785 = vpop.f32.mrb[0].mxu0
  %v5786 = vadd.f32 %v5689, %v5785
  %v5787 = vpop.f32.mrb[0].mxu0
  %5788 = vdwg.mxu0
  %5789 = vmatprep.subr.bf16.mxu0 0
  %5790 = vmatpush1.bf16.msra.mxu0 %v5321
  %5791 = vmatprep.subr.bf16.mxu0 0
  %5792 = vmatpush1.bf16.msra.mxu0 %v5322
  %5793 = vmatprep.subr.bf16.mxu0 0
  %5794 = vmatpush1.bf16.msra.mxu0 %v5323
  %5795 = vmatprep.subr.bf16.mxu0 0
  %5796 = vmatpush1.bf16.msra.mxu0 %v5324
  %5797 = vmatprep.subr.bf16.mxu0 0
  %5798 = vmatpush1.bf16.msra.mxu0 %v5325
  %5799 = vmatprep.subr.bf16.mxu0 0
  %5800 = vmatpush1.bf16.msra.mxu0 %v5326
  %5801 = vmatprep.subr.bf16.mxu0 0
  %5802 = vmatpush1.bf16.msra.mxu0 %v5327
  %5803 = vmatprep.subr.bf16.mxu0 0
  %5804 = vmatpush1.bf16.msra.mxu0 %v5328
  %5805 = vmatprep.subr.bf16.mxu0 0
  %5806 = vmatpush1.bf16.msra.mxu0 0
  %5807 = vmatprep.subr.bf16.mxu0 0
  %5808 = vmatpush1.bf16.msra.mxu0 0
  %5809 = vmatprep.subr.bf16.mxu0 0
  %5810 = vmatpush1.bf16.msra.mxu0 0
  %5811 = vmatprep.subr.bf16.mxu0 0
  %5812 = vmatpush1.bf16.msra.mxu0 0
  %5813 = vmatprep.subr.bf16.mxu0 0
  %5814 = vmatpush1.bf16.msra.mxu0 0
  %5815 = vmatprep.subr.bf16.mxu0 0
  %5816 = vmatpush1.bf16.msra.mxu0 0
  %5817 = vmatprep.subr.bf16.mxu0 0
  %5818 = vmatpush1.bf16.msra.mxu0 0
  %5819 = vmatprep.subr.bf16.mxu0 0
  %5820 = vmatpush1.bf16.msra.mxu0 0
  %5821 = vmatprep.mubr.bf16.mxu0 0
  %5822 = vmatmul.mubr.bf16.gmra.mrb[0].mxu0 %v4754
  %v5823 = vpop.f32.mrb[0].mxu0
  %v5824 = vadd.f32 %v5727, %v5823
  %v5825 = vpop.f32.mrb[0].mxu0
  %v5826 = vpop.f32.mrb[0].mxu0
  %v5827 = vadd.f32 %v5730, %v5826
  %v5828 = vpop.f32.mrb[0].mxu0
  %5829 = vmatprep.mubr.bf16.mxu0 0
  %5830 = vmatmul.mubr.bf16.gmra.mrb[0].mxu0 %v4763
  %v5831 = vpop.f32.mrb[0].mxu0
  %v5832 = vadd.f32 %v5735, %v5831
  %v5833 = vpop.f32.mrb[0].mxu0
  %v5834 = vpop.f32.mrb[0].mxu0
  %v5835 = vadd.f32 %v5738, %v5834
  %v5836 = vpop.f32.mrb[0].mxu0
  %5837 = vmatprep.mubr.bf16.mxu0 0
  %5838 = vmatmul.mubr.bf16.gmra.mrb[0].mxu0 %v4772
  %v5839 = vpop.f32.mrb[0].mxu0
  %v5840 = vadd.f32 %v5743, %v5839
  %v5841 = vpop.f32.mrb[0].mxu0
  %v5842 = vpop.f32.mrb[0].mxu0
  %v5843 = vadd.f32 %v5746, %v5842
  %v5844 = vpop.f32.mrb[0].mxu0
  %5845 = vmatprep.mubr.bf16.mxu0 0
  %5846 = vmatmul.mubr.bf16.gmra.mrb[0].mxu0 %v4781
  %v5847 = vpop.f32.mrb[0].mxu0
  %v5848 = vadd.f32 %v5751, %v5847
  %v5849 = vpop.f32.mrb[0].mxu0
  %v5850 = vpop.f32.mrb[0].mxu0
  %v5851 = vadd.f32 %v5754, %v5850
  %v5852 = vpop.f32.mrb[0].mxu0
  %5853 = vmatprep.mubr.bf16.mxu0 0
  %5854 = vmatmul.mubr.bf16.gmra.mrb[0].mxu0 %v4790
  %v5855 = vpop.f32.mrb[0].mxu0
  %v5856 = vadd.f32 %v5759, %v5855
  %v5857 = vpop.f32.mrb[0].mxu0
  %v5858 = vpop.f32.mrb[0].mxu0
  %v5859 = vadd.f32 %v5762, %v5858
  %v5860 = vpop.f32.mrb[0].mxu0
  %5861 = vmatprep.mubr.bf16.mxu0 0
  %5862 = vmatmul.mubr.bf16.gmra.mrb[0].mxu0 %v4799
  %v5863 = vpop.f32.mrb[0].mxu0
  %v5864 = vadd.f32 %v5767, %v5863
  %v5865 = vpop.f32.mrb[0].mxu0
  %v5866 = vpop.f32.mrb[0].mxu0
  %v5867 = vadd.f32 %v5770, %v5866
  %v5868 = vpop.f32.mrb[0].mxu0
  %5869 = vmatprep.mubr.bf16.mxu0 0
  %5870 = vmatmul.mubr.bf16.gmra.mrb[0].mxu0 %v4808
  %v5871 = vpop.f32.mrb[0].mxu0
  %v5872 = vadd.f32 %v5775, %v5871
  %v5873 = vpop.f32.mrb[0].mxu0
  %v5874 = vpop.f32.mrb[0].mxu0
  %v5875 = vadd.f32 %v5778, %v5874
  %v5876 = vpop.f32.mrb[0].mxu0
  %5877 = vmatprep.mubr.bf16.mxu0 0
  %5878 = vmatmul.mubr.bf16.gmra.mrb[0].mxu0 %v4817
  %v5879 = vpop.f32.mrb[0].mxu0
  %v5880 = vadd.f32 %v5783, %v5879
  %v5881 = vpop.f32.mrb[0].mxu0
  %v5882 = vpop.f32.mrb[0].mxu0
  %v5883 = vadd.f32 %v5786, %v5882
  %v5884 = vpop.f32.mrb[0].mxu0
  %5885 = vdwg.mxu0
  %v5886 = vld [vmem:[%s544] sm:$0xf]
  %v5887 = vld [vmem:[%s544 + $0x8] sm:$0xf]
  %v5888 = vld [vmem:[%s544 + $0x10] sm:$0xf]
  %v5889 = vld [vmem:[%s544 + $0x18] sm:$0xf]
  %v5890 = vld [vmem:[%s544 + $0x20] sm:$0xf]
  %v5891 = vld [vmem:[%s544 + $0x28] sm:$0xf]
  %v5892 = vld [vmem:[%s544 + $0x30] sm:$0xf]
  %v5893 = vld [vmem:[%s544 + $0x38] sm:$0xf]
  %v5894 = vld [vmem:[%s544 + $0x120] sm:$0xf]
  %v5895 = vld [vmem:[%s544 + $0x128] sm:$0xf]
  %v5896 = vld [vmem:[%s544 + $0x130] sm:$0xf]
  %v5897 = vld [vmem:[%s544 + $0x138] sm:$0xf]
  %v5898 = vld [vmem:[%s544 + $0x140] sm:$0xf]
  %v5899 = vld [vmem:[%s544 + $0x148] sm:$0xf]
  %v5900 = vld [vmem:[%s544 + $0x150] sm:$0xf]
  %v5901 = vld [vmem:[%s544 + $0x158] sm:$0xf]
  %v5902 = vld [vmem:[%s5] sm:$0xf]
  %v5903 = vld [vmem:[%s5 + $0x4] sm:$0xf]
  %v5904 = vld [vmem:[%s5 + $0x8] sm:$0xf]
  %v5905 = vld [vmem:[%s5 + $0xc] sm:$0xf]
  %v5906 = vld [vmem:[%s5 + $0x10] sm:$0xf]
  %v5907 = vld [vmem:[%s5 + $0x14] sm:$0xf]
  %v5908 = vld [vmem:[%s5 + $0x18] sm:$0xf]
  %v5909 = vld [vmem:[%s5 + $0x1c] sm:$0xf]
  %v5910 = vld [vmem:[%s5 + $0x20] sm:$0xf]
  %v5911 = vld [vmem:[%s5 + $0x24] sm:$0xf]
  %v5912 = vld [vmem:[%s5 + $0x28] sm:$0xf]
  %v5913 = vld [vmem:[%s5 + $0x2c] sm:$0xf]
  %v5914 = vld [vmem:[%s5 + $0x30] sm:$0xf]
  %v5915 = vld [vmem:[%s5 + $0x34] sm:$0xf]
  %v5916 = vld [vmem:[%s5 + $0x38] sm:$0xf]
  %v5917 = vld [vmem:[%s5 + $0x3c] sm:$0xf]
  %v5918 = vld [vmem:[%s6] sm:$0x1]
  %v5920 = vlaneseq
  %v5921 = vshrl.u32 %v5920, 7
  %v5922 = vsub.s32 0, %v5921
  %v5923 = vrot.slane %v5918, %v5922
  %v5941 = vunpack.c.l.b16 %v5886
  %v5942 = vunpack.c.l.b16 %v5887
  %v5943 = vunpack.c.l.b16 %v5888
  %v5944 = vunpack.c.l.b16 %v5889
  %v5945 = vunpack.c.l.b16 %v5890
  %v5946 = vunpack.c.l.b16 %v5891
  %v5947 = vunpack.c.l.b16 %v5892
  %v5948 = vunpack.c.l.b16 %v5893
  %v5949 = vunpack.c.l.b16 %v5894
  %v5950 = vunpack.c.l.b16 %v5895
  %v5951 = vunpack.c.l.b16 %v5896
  %v5952 = vunpack.c.l.b16 %v5897
  %v5953 = vunpack.c.l.b16 %v5898
  %v5954 = vunpack.c.l.b16 %v5899
  %v5955 = vunpack.c.l.b16 %v5900
  %v5956 = vunpack.c.l.b16 %v5901
  %v5957 = vpack.c.b16 %v5942, %v5941
  %v5958 = vpack.c.b16 %v5944, %v5943
  %v5959 = vpack.c.b16 %v5946, %v5945
  %v5960 = vpack.c.b16 %v5948, %v5947
  %v5961 = vpack.c.b16 %v5950, %v5949
  %v5962 = vpack.c.b16 %v5952, %v5951
  %v5963 = vpack.c.b16 %v5954, %v5953
  %v5964 = vpack.c.b16 %v5956, %v5955
  %v5989 = vunpack.c.l.b16 %v5902
  %v5990 = vunpack.c.l.b16 %v5903
  %v5991 = vunpack.c.l.b16 %v5904
  %v5992 = vunpack.c.l.b16 %v5905
  %v5993 = vunpack.c.l.b16 %v5906
  %v5994 = vunpack.c.l.b16 %v5907
  %v5995 = vunpack.c.l.b16 %v5908
  %v5996 = vunpack.c.l.b16 %v5909
  %v5997 = vunpack.c.l.b16 %v5910
  %v5998 = vunpack.c.l.b16 %v5911
  %v5999 = vunpack.c.l.b16 %v5912
  %v6000 = vunpack.c.l.b16 %v5913
  %v6001 = vunpack.c.l.b16 %v5914
  %v6002 = vunpack.c.l.b16 %v5915
  %v6003 = vunpack.c.l.b16 %v5916
  %v6004 = vunpack.c.l.b16 %v5917
  %v6005 = vpack.c.b16 %v5990, %v5989
  %v6006 = vpack.c.b16 %v5992, %v5991
  %v6007 = vpack.c.b16 %v5994, %v5993
  %v6008 = vpack.c.b16 %v5996, %v5995
  %v6009 = vpack.c.b16 %v5998, %v5997
  %v6010 = vpack.c.b16 %v6000, %v5999
  %v6011 = vpack.c.b16 %v6002, %v6001
  %v6012 = vpack.c.b16 %v6004, %v6003
  %6021 = vmatprep.subr.bf16.mxu0 0
  %6022 = vmatpush1.bf16.msra.mxu0 %v6005
  %6023 = vmatprep.subr.bf16.mxu0 0
  %6024 = vmatpush1.bf16.msra.mxu0 %v6006
  %6025 = vmatprep.subr.bf16.mxu0 0
  %6026 = vmatpush1.bf16.msra.mxu0 %v6007
  %6027 = vmatprep.subr.bf16.mxu0 0
  %6028 = vmatpush1.bf16.msra.mxu0 %v6008
  %6029 = vmatprep.subr.bf16.mxu0 0
  %6030 = vmatpush1.bf16.msra.mxu0 %v6009
  %6031 = vmatprep.subr.bf16.mxu0 0
  %6032 = vmatpush1.bf16.msra.mxu0 %v6010
  %6033 = vmatprep.subr.bf16.mxu0 0
  %6034 = vmatpush1.bf16.msra.mxu0 %v6011
  %6035 = vmatprep.subr.bf16.mxu0 0
  %6036 = vmatpush1.bf16.msra.mxu0 %v6012
  %6037 = vmatprep.subr.bf16.mxu0 0
  %6038 = vmatpush1.bf16.msra.mxu0 0
  %6039 = vmatprep.subr.bf16.mxu0 0
  %6040 = vmatpush1.bf16.msra.mxu0 0
  %6041 = vmatprep.subr.bf16.mxu0 0
  %6042 = vmatpush1.bf16.msra.mxu0 0
  %6043 = vmatprep.subr.bf16.mxu0 0
  %6044 = vmatpush1.bf16.msra.mxu0 0
  %6045 = vmatprep.subr.bf16.mxu0 0
  %6046 = vmatpush1.bf16.msra.mxu0 0
  %6047 = vmatprep.subr.bf16.mxu0 0
  %6048 = vmatpush1.bf16.msra.mxu0 0
  %6049 = vmatprep.subr.bf16.mxu0 0
  %6050 = vmatpush1.bf16.msra.mxu0 0
  %6051 = vmatprep.subr.bf16.mxu0 0
  %6052 = vmatpush1.bf16.msra.mxu0 0
  %6053 = vmatprep.mubr.bf16.mxu0 0
  %6054 = vmatmul.mubr.bf16.gmra.mrb[0].mxu0 %v5957
  %v6055 = vpop.f32.mrb[0].mxu0
  %v6056 = vadd.f32 %v5923, %v6055
  %v6057 = vpop.f32.mrb[0].mxu0
  %v6058 = vpop.f32.mrb[0].mxu0
  %v6059 = vadd.f32 %v5923, %v6058
  %v6060 = vpop.f32.mrb[0].mxu0
  %6061 = vmatprep.mubr.bf16.mxu0 0
  %6062 = vmatmul.mubr.bf16.gmra.mrb[0].mxu0 %v5958
  %v6063 = vpop.f32.mrb[0].mxu0
  %v6064 = vadd.f32 %v5923, %v6063
  %v6065 = vpop.f32.mrb[0].mxu0
  %v6066 = vpop.f32.mrb[0].mxu0
  %v6067 = vadd.f32 %v5923, %v6066
  %v6068 = vpop.f32.mrb[0].mxu0
  %6069 = vmatprep.mubr.bf16.mxu0 0
  %6070 = vmatmul.mubr.bf16.gmra.mrb[0].mxu0 %v5959
  %v6071 = vpop.f32.mrb[0].mxu0
  %v6072 = vadd.f32 %v5923, %v6071
  %v6073 = vpop.f32.mrb[0].mxu0
  %v6074 = vpop.f32.mrb[0].mxu0
  %v6075 = vadd.f32 %v5923, %v6074
  %v6076 = vpop.f32.mrb[0].mxu0
  %6077 = vmatprep.mubr.bf16.mxu0 0
  %6078 = vmatmul.mubr.bf16.gmra.mrb[0].mxu0 %v5960
  %v6079 = vpop.f32.mrb[0].mxu0
  %v6080 = vadd.f32 %v5923, %v6079
  %v6081 = vpop.f32.mrb[0].mxu0
  %v6082 = vpop.f32.mrb[0].mxu0
  %v6083 = vadd.f32 %v5923, %v6082
  %v6084 = vpop.f32.mrb[0].mxu0
  %6085 = vmatprep.mubr.bf16.mxu0 0
  %6086 = vmatmul.mubr.bf16.gmra.mrb[0].mxu0 %v5961
  %v6087 = vpop.f32.mrb[0].mxu0
  %v6088 = vadd.f32 %v5923, %v6087
  %v6089 = vpop.f32.mrb[0].mxu0
  %v6090 = vpop.f32.mrb[0].mxu0
  %v6091 = vadd.f32 %v5923, %v6090
  %v6092 = vpop.f32.mrb[0].mxu0
  %6093 = vmatprep.mubr.bf16.mxu0 0
  %6094 = vmatmul.mubr.bf16.gmra.mrb[0].mxu0 %v5962
  %v6095 = vpop.f32.mrb[0].mxu0
  %v6096 = vadd.f32 %v5923, %v6095
  %v6097 = vpop.f32.mrb[0].mxu0
  %v6098 = vpop.f32.mrb[0].mxu0
  %v6099 = vadd.f32 %v5923, %v6098
  %v6100 = vpop.f32.mrb[0].mxu0
  %6101 = vmatprep.mubr.bf16.mxu0 0
  %6102 = vmatmul.mubr.bf16.gmra.mrb[0].mxu0 %v5963
  %v6103 = vpop.f32.mrb[0].mxu0
  %v6104 = vadd.f32 %v5923, %v6103
  %v6105 = vpop.f32.mrb[0].mxu0
  %v6106 = vpop.f32.mrb[0].mxu0
  %v6107 = vadd.f32 %v5923, %v6106
  %v6108 = vpop.f32.mrb[0].mxu0
  %6109 = vmatprep.mubr.bf16.mxu0 0
  %6110 = vmatmul.mubr.bf16.gmra.mrb[0].mxu0 %v5964
  %v6111 = vpop.f32.mrb[0].mxu0
  %v6112 = vadd.f32 %v5923, %v6111
  %v6113 = vpop.f32.mrb[0].mxu0
  %v6114 = vpop.f32.mrb[0].mxu0
  %v6115 = vadd.f32 %v5923, %v6114
  %v6116 = vpop.f32.mrb[0].mxu0
  %6117 = vdwg.mxu0
  %v6118 = vadd.f32 %v5824, %v6056
  %v6119 = vadd.f32 %v5827, %v6059
  %v6120 = vadd.f32 %v5832, %v6064
  %v6121 = vadd.f32 %v5835, %v6067
  %v6122 = vadd.f32 %v5840, %v6072
  %v6123 = vadd.f32 %v5843, %v6075
  %v6124 = vadd.f32 %v5848, %v6080
  %v6125 = vadd.f32 %v5851, %v6083
  %v6126 = vadd.f32 %v5856, %v6088
  %v6127 = vadd.f32 %v5859, %v6091
  %v6128 = vadd.f32 %v5864, %v6096
  %v6129 = vadd.f32 %v5867, %v6099
  %v6130 = vadd.f32 %v5872, %v6104
  %v6131 = vadd.f32 %v5875, %v6107
  %v6132 = vadd.f32 %v5880, %v6112
  %v6133 = vadd.f32 %v5883, %v6115
  %v6134 = vmax.f32 %v6118, 0.0
  %v6135 = vmax.f32 %v6119, 0.0
  %v6136 = vmax.f32 %v6120, 0.0
  %v6137 = vmax.f32 %v6121, 0.0
  %v6138 = vmax.f32 %v6122, 0.0
  %v6139 = vmax.f32 %v6123, 0.0
  %v6140 = vmax.f32 %v6124, 0.0
  %v6141 = vmax.f32 %v6125, 0.0
  %v6142 = vmax.f32 %v6126, 0.0
  %v6143 = vmax.f32 %v6127, 0.0
  %v6144 = vmax.f32 %v6128, 0.0
  %v6145 = vmax.f32 %v6129, 0.0
  %v6146 = vmax.f32 %v6130, 0.0
  %v6147 = vmax.f32 %v6131, 0.0
  %v6148 = vmax.f32 %v6132, 0.0
  %v6149 = vmax.f32 %v6133, 0.0
  %v6150 = vpack.c.bf16 %v6135, %v6134
  %v6151 = vpack.c.bf16 %v6137, %v6136
  %v6152 = vpack.c.bf16 %v6139, %v6138
  %v6153 = vpack.c.bf16 %v6141, %v6140
  %v6154 = vpack.c.bf16 %v6143, %v6142
  %v6155 = vpack.c.bf16 %v6145, %v6144
  %v6156 = vpack.c.bf16 %v6147, %v6146
  %v6157 = vpack.c.bf16 %v6149, %v6148
  %v6166 = vunpack.c.l.b16 %v6150
  %v6167 = vunpack.c.h.b16 %v6150
  %v6168 = vunpack.c.l.b16 %v6151
  %v6169 = vunpack.c.h.b16 %v6151
  %v6170 = vunpack.c.l.b16 %v6152
  %v6171 = vunpack.c.h.b16 %v6152
  %v6172 = vunpack.c.l.b16 %v6153
  %v6173 = vunpack.c.h.b16 %v6153
  %v6174 = vunpack.c.l.b16 %v6154
  %v6175 = vunpack.c.h.b16 %v6154
  %v6176 = vunpack.c.l.b16 %v6155
  %v6177 = vunpack.c.h.b16 %v6155
  %v6178 = vunpack.c.l.b16 %v6156
  %v6179 = vunpack.c.h.b16 %v6156
  %v6180 = vunpack.c.l.b16 %v6157
  %v6181 = vunpack.c.h.b16 %v6157
  %v6182 = vpack.c.b16 %v6166, %v6166
  %v6183 = vpack.c.b16 %v6167, %v6167
  %v6184 = vpack.c.b16 %v6168, %v6168
  %v6185 = vpack.c.b16 %v6169, %v6169
  %v6186 = vpack.c.b16 %v6170, %v6170
  %v6187 = vpack.c.b16 %v6171, %v6171
  %v6188 = vpack.c.b16 %v6172, %v6172
  %v6189 = vpack.c.b16 %v6173, %v6173
  %v6190 = vpack.c.b16 %v6174, %v6174
  %v6191 = vpack.c.b16 %v6175, %v6175
  %v6192 = vpack.c.b16 %v6176, %v6176
  %v6193 = vpack.c.b16 %v6177, %v6177
  %v6194 = vpack.c.b16 %v6178, %v6178
  %v6195 = vpack.c.b16 %v6179, %v6179
  %v6196 = vpack.c.b16 %v6180, %v6180
  %v6197 = vpack.c.b16 %v6181, %v6181
  %6214 = vst [vmem:[%s7] sm:$0xf] %v6182
  %6215 = vst [vmem:[%s7 + $0x4] sm:$0xf] %v6183
  %6216 = vst [vmem:[%s7 + $0x8] sm:$0xf] %v6184
  %6217 = vst [vmem:[%s7 + $0xc] sm:$0xf] %v6185
  %6218 = vst [vmem:[%s7 + $0x10] sm:$0xf] %v6186
  %6219 = vst [vmem:[%s7 + $0x14] sm:$0xf] %v6187
  %6220 = vst [vmem:[%s7 + $0x18] sm:$0xf] %v6188
  %6221 = vst [vmem:[%s7 + $0x1c] sm:$0xf] %v6189
  %6222 = vst [vmem:[%s7 + $0x20] sm:$0xf] %v6190
  %6223 = vst [vmem:[%s7 + $0x24] sm:$0xf] %v6191
  %6224 = vst [vmem:[%s7 + $0x28] sm:$0xf] %v6192
  %6225 = vst [vmem:[%s7 + $0x2c] sm:$0xf] %v6193
  %6226 = vst [vmem:[%s7 + $0x30] sm:$0xf] %v6194
  %6227 = vst [vmem:[%s7 + $0x34] sm:$0xf] %v6195
  %6228 = vst [vmem:[%s7 + $0x38] sm:$0xf] %v6196
  %6229 = vst [vmem:[%s7 + $0x3c] sm:$0xf] %v6197
  // Predicated region
  $region30: #{fwd.2} parent=0 // pred_check
    _
  $region31: #{fwd.2} parent=0 // pred_check_branch
    %6231 = sbr.rel (0) target = $region33
  $region32: #{fwd.2} parent=0 // pred_region
    _
  $region33: #{fwd.2} parent=0 // pred_fallthru
    _
  // Predicated region
  $region34: #{fwd.2} parent=0 // pred_check
    _
  $region35: #{fwd.2} parent=0 // pred_check_branch
    %6233 = sbr.rel (0) target = $region37
  $region36: #{fwd.2} parent=0 // pred_region
    _
  $region37: #{fwd.2} parent=0 // pred_fallthru
    _

// kernel: fwd.3
$region0: #{fwd.3}
  #allocation0 [shape = 'u32[]', space=smem, size = 0x4, offset = 0x4, fixed_abs, tag = 'smem constant byte address 0x4 - core index']
  #allocation1 [shape = 'u32[144,128]{1,0:T(1,128)}', space=vmem, size = 0x12000, scoped, tag = 'internal scratch']
  #allocation2 [shape = 'bf16[128,1152]{1,0:T(16,128)(2,1)}', space=vmem, size = 0x48000, scoped, tag = 'scratch operand']
  #allocation3 [shape = 'bf16[2,10,16,128]{3,2,1,0:T(16,128)(2,1)}', space=vmem, size = 0x14000, scoped, tag = 'scratch operand']
  #allocation4 [shape = 'bf16[128,1152]{1,0:T(16,128)(2,1)}', space=vmem, size = 0x48000, scoped, tag = 'scratch operand']
  %s0 = inlined_call_operand.vmem [shape: bf16[2,10,10,128], index: 0, kind: input, shape index: {}]
  %s1 = inlined_call_operand.vmem [shape: bf16[1152,128], index: 1, kind: input, shape index: {}]
  %s2 = inlined_call_operand.vmem [shape: f32[1,128], index: 2, kind: input, shape index: {}]
  %s3 = inlined_call_operand.vmem [shape: bf16[1152,128], index: 3, kind: input, shape index: {}]
  %s4 = inlined_call_operand.vmem [shape: f32[1,128], index: 4, kind: input, shape index: {}]
  %s5 = inlined_call_operand.vmem [shape: bf16[2,8,8,128], index: 5, kind: output, shape index: {}]
  %s6 = sld [smem:[#allocation0]]
  $region30: #{fwd.3} parent=0
    _
  %s8 = ssub.s32 1, %s6
  %s9 = scalar_select 0, %s8, %s6
  // Predicated region
  $region2: #{fwd.3} parent=0 // pred_check
    _
  $region3: #{fwd.3} parent=0 // pred_check_branch
    %11 = sbr.rel (0) target = $region5
  $region4: #{fwd.3} parent=0 // pred_region
    _
  $region5: #{fwd.3} parent=0 // pred_fallthru
    _
  // Predicated region
  $region6: #{fwd.3} parent=0 // pred_check
    _
  $region7: #{fwd.3} parent=0 // pred_check_branch
    %13 = sbr.rel (0) target = $region9
  $region8: #{fwd.3} parent=0 // pred_region
    _
  $region9: #{fwd.3} parent=0 // pred_fallthru
    _
  // Predicated region
  $region10: #{fwd.3} parent=0 // pred_check
    _
  $region11: #{fwd.3} parent=0 // pred_check_branch
    %15 = sbr.rel (0) target = $region13
  $region12: #{fwd.3} parent=0 // pred_region
    _
  $region13: #{fwd.3} parent=0 // pred_fallthru
    _
  // Predicated region
  $region14: #{fwd.3} parent=0 // pred_check
    _
  $region15: #{fwd.3} parent=0 // pred_check_branch
    %17 = sbr.rel (0) target = $region17
  $region16: #{fwd.3} parent=0 // pred_region
    _
  $region17: #{fwd.3} parent=0 // pred_fallthru
    _
  // Predicated region
  $region18: #{fwd.3} parent=0 // pred_check
    _
  $region19: #{fwd.3} parent=0 // pred_check_branch
    %19 = sbr.rel (0) target = $region21
  $region20: #{fwd.3} parent=0 // pred_region
    _
  $region21: #{fwd.3} parent=0 // pred_fallthru
    _
  %v21 = vld [vmem:[%s0] sm:$0xf]
  %v22 = vld [vmem:[%s0 + $0x8] sm:$0xf]
  %v23 = vld [vmem:[%s0 + $0x10] sm:$0xf]
  %v24 = vld [vmem:[%s0 + $0x18] sm:$0xf]
  %v25 = vld [vmem:[%s0 + $0x20] sm:$0xf]
  %v26 = vld [vmem:[%s0 + $0x28] sm:$0xf]
  %v27 = vld [vmem:[%s0 + $0x30] sm:$0xf]
  %v28 = vld [vmem:[%s0 + $0x38] sm:$0xf]
  %v29 = vld [vmem:[%s0 + $0x50] sm:$0xf]
  %v30 = vld [vmem:[%s0 + $0x58] sm:$0xf]
  %v31 = vld [vmem:[%s0 + $0x60] sm:$0xf]
  %v32 = vld [vmem:[%s0 + $0x68] sm:$0xf]
  %v33 = vld [vmem:[%s0 + $0x70] sm:$0xf]
  %v34 = vld [vmem:[%s0 + $0x78] sm:$0xf]
  %v35 = vld [vmem:[%s0 + $0x80] sm:$0xf]
  %v36 = vld [vmem:[%s0 + $0x88] sm:$0xf]
  %v53 = vunpack.c.l.b16 %v21
  %v54 = vunpack.c.l.b16 %v22
  %v55 = vunpack.c.l.b16 %v23
  %v56 = vunpack.c.l.b16 %v24
  %v57 = vunpack.c.l.b16 %v25
  %v58 = vunpack.c.l.b16 %v26
  %v59 = vunpack.c.l.b16 %v27
  %v60 = vunpack.c.l.b16 %v28
  %v61 = vunpack.c.l.b16 %v29
  %v62 = vunpack.c.l.b16 %v30
  %v63 = vunpack.c.l.b16 %v31
  %v64 = vunpack.c.l.b16 %v32
  %v65 = vunpack.c.l.b16 %v33
  %v66 = vunpack.c.l.b16 %v34
  %v67 = vunpack.c.l.b16 %v35
  %v68 = vunpack.c.l.b16 %v36
  %v69 = vpack.c.b16 %v54, %v53
  %v70 = vpack.c.b16 %v56, %v55
  %v71 = vpack.c.b16 %v58, %v57
  %v72 = vpack.c.b16 %v60, %v59
  %v73 = vpack.c.b16 %v62, %v61
  %v74 = vpack.c.b16 %v64, %v63
  %v75 = vpack.c.b16 %v66, %v65
  %v76 = vpack.c.b16 %v68, %v67
  %85 = vst [vmem:[#allocation2] sm:$0xff] %v69
  %86 = vst [vmem:[#allocation2 + $0x48] sm:$0xff] %v70
  %87 = vst [vmem:[#allocation2 + $0x90] sm:$0xff] %v71
  %88 = vst [vmem:[#allocation2 + $0xd8] sm:$0xff] %v72
  %89 = vst [vmem:[#allocation2 + $0x120] sm:$0xff] %v73
  %90 = vst [vmem:[#allocation2 + $0x168] sm:$0xff] %v74
  %91 = vst [vmem:[#allocation2 + $0x1b0] sm:$0xff] %v75
  %92 = vst [vmem:[#allocation2 + $0x1f8] sm:$0xff] %v76
  %v93 = vld [vmem:[%s0] sm:$0xf]
  %v94 = vld [vmem:[%s0 + $0x4] sm:$0x1]
  %v95 = vld [vmem:[%s0 + $0x8] sm:$0xf]
  %v96 = vld [vmem:[%s0 + $0xc] sm:$0x1]
  %v97 = vld [vmem:[%s0 + $0x10] sm:$0xf]
  %v98 = vld [vmem:[%s0 + $0x14] sm:$0x1]
  %v99 = vld [vmem:[%s0 + $0x18] sm:$0xf]
  %v100 = vld [vmem:[%s0 + $0x1c] sm:$0x1]
  %v101 = vld [vmem:[%s0 + $0x20] sm:$0xf]
  %v102 = vld [vmem:[%s0 + $0x24] sm:$0x1]
  %v103 = vld [vmem:[%s0 + $0x28] sm:$0xf]
  %v104 = vld [vmem:[%s0 + $0x2c] sm:$0x1]
  %v105 = vld [vmem:[%s0 + $0x30] sm:$0xf]
  %v106 = vld [vmem:[%s0 + $0x34] sm:$0x1]
  %v107 = vld [vmem:[%s0 + $0x38] sm:$0xf]
  %v108 = vld [vmem:[%s0 + $0x3c] sm:$0x1]
  %v109 = vld [vmem:[%s0 + $0x50] sm:$0xf]
  %v110 = vld [vmem:[%s0 + $0x54] sm:$0x1]
  %v111 = vld [vmem:[%s0 + $0x58] sm:$0xf]
  %v112 = vld [vmem:[%s0 + $0x5c] sm:$0x1]
  %v113 = vld [vmem:[%s0 + $0x60] sm:$0xf]
  %v114 = vld [vmem:[%s0 + $0x64] sm:$0x1]
  %v115 = vld [vmem:[%s0 + $0x68] sm:$0xf]
  %v116 = vld [vmem:[%s0 + $0x6c] sm:$0x1]
  %v117 = vld [vmem:[%s0 + $0x70] sm:$0xf]
  %v118 = vld [vmem:[%s0 + $0x74] sm:$0x1]
  %v119 = vld [vmem:[%s0 + $0x78] sm:$0xf]
  %v120 = vld [vmem:[%s0 + $0x7c] sm:$0x1]
  %v121 = vld [vmem:[%s0 + $0x80] sm:$0xf]
  %v122 = vld [vmem:[%s0 + $0x84] sm:$0x1]
  %v123 = vld [vmem:[%s0 + $0x88] sm:$0xf]
  %v124 = vld [vmem:[%s0 + $0x8c] sm:$0x1]
  %vm125 = vsmask.f32 3328
  %vm126 = vsmask.f32 7440
  %vm127 = vmor %vm125, %vm126
  %v129 = vshrl.u32 %v93, 16
  %v131 = vrot.slane %v129, 4
  %v132 = vshll.u32 %v93, 16
  %v134 = vrot.slane %v132, 5
  %v135 = vor.u32 %v131, %v134
  %v136 = vrot.slane %v135, 4
  %v138 = vshll.u32 %v94, 16
  %v140 = vrot.slane %v138, 5
  %v141 = vsel %vm127, %v136, %v140
  %v143 = vshrl.u32 %v95, 16
  %v145 = vrot.slane %v143, 4
  %v146 = vshll.u32 %v95, 16
  %v148 = vrot.slane %v146, 5
  %v149 = vor.u32 %v145, %v148
  %v150 = vrot.slane %v149, 4
  %v152 = vshll.u32 %v96, 16
  %v154 = vrot.slane %v152, 5
  %v155 = vsel %vm127, %v150, %v154
  %v157 = vshrl.u32 %v97, 16
  %v159 = vrot.slane %v157, 4
  %v160 = vshll.u32 %v97, 16
  %v162 = vrot.slane %v160, 5
  %v163 = vor.u32 %v159, %v162
  %v164 = vrot.slane %v163, 4
  %v166 = vshll.u32 %v98, 16
  %v168 = vrot.slane %v166, 5
  %v169 = vsel %vm127, %v164, %v168
  %v171 = vshrl.u32 %v99, 16
  %v173 = vrot.slane %v171, 4
  %v174 = vshll.u32 %v99, 16
  %v176 = vrot.slane %v174, 5
  %v177 = vor.u32 %v173, %v176
  %v178 = vrot.slane %v177, 4
  %v180 = vshll.u32 %v100, 16
  %v182 = vrot.slane %v180, 5
  %v183 = vsel %vm127, %v178, %v182
  %v185 = vshrl.u32 %v101, 16
  %v187 = vrot.slane %v185, 4
  %v188 = vshll.u32 %v101, 16
  %v190 = vrot.slane %v188, 5
  %v191 = vor.u32 %v187, %v190
  %v192 = vrot.slane %v191, 4
  %v194 = vshll.u32 %v102, 16
  %v196 = vrot.slane %v194, 5
  %v197 = vsel %vm127, %v192, %v196
  %v199 = vshrl.u32 %v103, 16
  %v201 = vrot.slane %v199, 4
  %v202 = vshll.u32 %v103, 16
  %v204 = vrot.slane %v202, 5
  %v205 = vor.u32 %v201, %v204
  %v206 = vrot.slane %v205, 4
  %v208 = vshll.u32 %v104, 16
  %v210 = vrot.slane %v208, 5
  %v211 = vsel %vm127, %v206, %v210
  %v213 = vshrl.u32 %v105, 16
  %v215 = vrot.slane %v213, 4
  %v216 = vshll.u32 %v105, 16
  %v218 = vrot.slane %v216, 5
  %v219 = vor.u32 %v215, %v218
  %v220 = vrot.slane %v219, 4
  %v222 = vshll.u32 %v106, 16
  %v224 = vrot.slane %v222, 5
  %v225 = vsel %vm127, %v220, %v224
  %v227 = vshrl.u32 %v107, 16
  %v229 = vrot.slane %v227, 4
  %v230 = vshll.u32 %v107, 16
  %v232 = vrot.slane %v230, 5
  %v233 = vor.u32 %v229, %v232
  %v234 = vrot.slane %v233, 4
  %v236 = vshll.u32 %v108, 16
  %v238 = vrot.slane %v236, 5
  %v239 = vsel %vm127, %v234, %v238
  %v241 = vshrl.u32 %v109, 16
  %v243 = vrot.slane %v241, 4
  %v244 = vshll.u32 %v109, 16
  %v246 = vrot.slane %v244, 5
  %v247 = vor.u32 %v243, %v246
  %v248 = vrot.slane %v247, 4
  %v250 = vshll.u32 %v110, 16
  %v252 = vrot.slane %v250, 5
  %v253 = vsel %vm127, %v248, %v252
  %v255 = vshrl.u32 %v111, 16
  %v257 = vrot.slane %v255, 4
  %v258 = vshll.u32 %v111, 16
  %v260 = vrot.slane %v258, 5
  %v261 = vor.u32 %v257, %v260
  %v262 = vrot.slane %v261, 4
  %v264 = vshll.u32 %v112, 16
  %v266 = vrot.slane %v264, 5
  %v267 = vsel %vm127, %v262, %v266
  %v269 = vshrl.u32 %v113, 16
  %v271 = vrot.slane %v269, 4
  %v272 = vshll.u32 %v113, 16
  %v274 = vrot.slane %v272, 5
  %v275 = vor.u32 %v271, %v274
  %v276 = vrot.slane %v275, 4
  %v278 = vshll.u32 %v114, 16
  %v280 = vrot.slane %v278, 5
  %v281 = vsel %vm127, %v276, %v280
  %v283 = vshrl.u32 %v115, 16
  %v285 = vrot.slane %v283, 4
  %v286 = vshll.u32 %v115, 16
  %v288 = vrot.slane %v286, 5
  %v289 = vor.u32 %v285, %v288
  %v290 = vrot.slane %v289, 4
  %v292 = vshll.u32 %v116, 16
  %v294 = vrot.slane %v292, 5
  %v295 = vsel %vm127, %v290, %v294
  %v297 = vshrl.u32 %v117, 16
  %v299 = vrot.slane %v297, 4
  %v300 = vshll.u32 %v117, 16
  %v302 = vrot.slane %v300, 5
  %v303 = vor.u32 %v299, %v302
  %v304 = vrot.slane %v303, 4
  %v306 = vshll.u32 %v118, 16
  %v308 = vrot.slane %v306, 5
  %v309 = vsel %vm127, %v304, %v308
  %v311 = vshrl.u32 %v119, 16
  %v313 = vrot.slane %v311, 4
  %v314 = vshll.u32 %v119, 16
  %v316 = vrot.slane %v314, 5
  %v317 = vor.u32 %v313, %v316
  %v318 = vrot.slane %v317, 4
  %v320 = vshll.u32 %v120, 16
  %v322 = vrot.slane %v320, 5
  %v323 = vsel %vm127, %v318, %v322
  %v325 = vshrl.u32 %v121, 16
  %v327 = vrot.slane %v325, 4
  %v328 = vshll.u32 %v121, 16
  %v330 = vrot.slane %v328, 5
  %v331 = vor.u32 %v327, %v330
  %v332 = vrot.slane %v331, 4
  %v334 = vshll.u32 %v122, 16
  %v336 = vrot.slane %v334, 5
  %v337 = vsel %vm127, %v332, %v336
  %v339 = vshrl.u32 %v123, 16
  %v341 = vrot.slane %v339, 4
  %v342 = vshll.u32 %v123, 16
  %v344 = vrot.slane %v342, 5
  %v345 = vor.u32 %v341, %v344
  %v346 = vrot.slane %v345, 4
  %v348 = vshll.u32 %v124, 16
  %v350 = vrot.slane %v348, 5
  %v351 = vsel %vm127, %v346, %v350
  %v352 = vunpack.c.l.b16 %v141
  %v353 = vunpack.c.l.b16 %v155
  %v354 = vunpack.c.l.b16 %v169
  %v355 = vunpack.c.l.b16 %v183
  %v356 = vunpack.c.l.b16 %v197
  %v357 = vunpack.c.l.b16 %v211
  %v358 = vunpack.c.l.b16 %v225
  %v359 = vunpack.c.l.b16 %v239
  %v360 = vunpack.c.l.b16 %v253
  %v361 = vunpack.c.l.b16 %v267
  %v362 = vunpack.c.l.b16 %v281
  %v363 = vunpack.c.l.b16 %v295
  %v364 = vunpack.c.l.b16 %v309
  %v365 = vunpack.c.l.b16 %v323
  %v366 = vunpack.c.l.b16 %v337
  %v367 = vunpack.c.l.b16 %v351
  %v368 = vpack.c.b16 %v353, %v352
  %v369 = vpack.c.b16 %v355, %v354
  %v370 = vpack.c.b16 %v357, %v356
  %v371 = vpack.c.b16 %v359, %v358
  %v372 = vpack.c.b16 %v361, %v360
  %v373 = vpack.c.b16 %v363, %v362
  %v374 = vpack.c.b16 %v365, %v364
  %v375 = vpack.c.b16 %v367, %v366
  %384 = vst [vmem:[#allocation2 + $0x8] sm:$0xff] %v368
  %385 = vst [vmem:[#allocation2 + $0x50] sm:$0xff] %v369
  %386 = vst [vmem:[#allocation2 + $0x98] sm:$0xff] %v370
  %387 = vst [vmem:[#allocation2 + $0xe0] sm:$0xff] %v371
  %388 = vst [vmem:[#allocation2 + $0x128] sm:$0xff] %v372
  %389 = vst [vmem:[#allocation2 + $0x170] sm:$0xff] %v373
  %390 = vst [vmem:[#allocation2 + $0x1b8] sm:$0xff] %v374
  %391 = vst [vmem:[#allocation2 + $0x200] sm:$0xff] %v375
  %v392 = vld [vmem:[%s0] sm:$0xe]
  %v393 = vld [vmem:[%s0 + $0x4] sm:$0x1]
  %v394 = vld [vmem:[%s0 + $0x8] sm:$0xe]
  %v395 = vld [vmem:[%s0 + $0xc] sm:$0x1]
  %v396 = vld [vmem:[%s0 + $0x10] sm:$0xe]
  %v397 = vld [vmem:[%s0 + $0x14] sm:$0x1]
  %v398 = vld [vmem:[%s0 + $0x18] sm:$0xe]
  %v399 = vld [vmem:[%s0 + $0x1c] sm:$0x1]
  %v400 = vld [vmem:[%s0 + $0x20] sm:$0xe]
  %v401 = vld [vmem:[%s0 + $0x24] sm:$0x1]
  %v402 = vld [vmem:[%s0 + $0x28] sm:$0xe]
  %v403 = vld [vmem:[%s0 + $0x2c] sm:$0x1]
  %v404 = vld [vmem:[%s0 + $0x30] sm:$0xe]
  %v405 = vld [vmem:[%s0 + $0x34] sm:$0x1]
  %v406 = vld [vmem:[%s0 + $0x38] sm:$0xe]
  %v407 = vld [vmem:[%s0 + $0x3c] sm:$0x1]
  %v408 = vld [vmem:[%s0 + $0x50] sm:$0xe]
  %v409 = vld [vmem:[%s0 + $0x54] sm:$0x1]
  %v410 = vld [vmem:[%s0 + $0x58] sm:$0xe]
  %v411 = vld [vmem:[%s0 + $0x5c] sm:$0x1]
  %v412 = vld [vmem:[%s0 + $0x60] sm:$0xe]
  %v413 = vld [vmem:[%s0 + $0x64] sm:$0x1]
  %v414 = vld [vmem:[%s0 + $0x68] sm:$0xe]
  %v415 = vld [vmem:[%s0 + $0x6c] sm:$0x1]
  %v416 = vld [vmem:[%s0 + $0x70] sm:$0xe]
  %v417 = vld [vmem:[%s0 + $0x74] sm:$0x1]
  %v418 = vld [vmem:[%s0 + $0x78] sm:$0xe]
  %v419 = vld [vmem:[%s0 + $0x7c] sm:$0x1]
  %v420 = vld [vmem:[%s0 + $0x80] sm:$0xe]
  %v421 = vld [vmem:[%s0 + $0x84] sm:$0x1]
  %v422 = vld [vmem:[%s0 + $0x88] sm:$0xe]
  %v423 = vld [vmem:[%s0 + $0x8c] sm:$0x1]
  %vm456 = vcmask 1042432
  %vm457 = vcmask 1046532
  %vm458 = vmor %vm456, %vm457
  %v459 = vrot.slane %v392, 5
  %v460 = vrot.slane %v459, 4
  %v461 = vrot.slane %v393, 5
  %v462 = vsel %vm458, %v460, %v461
  %v463 = vrot.slane %v394, 5
  %v464 = vrot.slane %v463, 4
  %v465 = vrot.slane %v395, 5
  %v466 = vsel %vm458, %v464, %v465
  %v467 = vrot.slane %v396, 5
  %v468 = vrot.slane %v467, 4
  %v469 = vrot.slane %v397, 5
  %v470 = vsel %vm458, %v468, %v469
  %v471 = vrot.slane %v398, 5
  %v472 = vrot.slane %v471, 4
  %v473 = vrot.slane %v399, 5
  %v474 = vsel %vm458, %v472, %v473
  %v475 = vrot.slane %v400, 5
  %v476 = vrot.slane %v475, 4
  %v477 = vrot.slane %v401, 5
  %v478 = vsel %vm458, %v476, %v477
  %v479 = vrot.slane %v402, 5
  %v480 = vrot.slane %v479, 4
  %v481 = vrot.slane %v403, 5
  %v482 = vsel %vm458, %v480, %v481
  %v483 = vrot.slane %v404, 5
  %v484 = vrot.slane %v483, 4
  %v485 = vrot.slane %v405, 5
  %v486 = vsel %vm458, %v484, %v485
  %v487 = vrot.slane %v406, 5
  %v488 = vrot.slane %v487, 4
  %v489 = vrot.slane %v407, 5
  %v490 = vsel %vm458, %v488, %v489
  %v491 = vrot.slane %v408, 5
  %v492 = vrot.slane %v491, 4
  %v493 = vrot.slane %v409, 5
  %v494 = vsel %vm458, %v492, %v493
  %v495 = vrot.slane %v410, 5
  %v496 = vrot.slane %v495, 4
  %v497 = vrot.slane %v411, 5
  %v498 = vsel %vm458, %v496, %v497
  %v499 = vrot.slane %v412, 5
  %v500 = vrot.slane %v499, 4
  %v501 = vrot.slane %v413, 5
  %v502 = vsel %vm458, %v500, %v501
  %v503 = vrot.slane %v414, 5
  %v504 = vrot.slane %v503, 4
  %v505 = vrot.slane %v415, 5
  %v506 = vsel %vm458, %v504, %v505
  %v507 = vrot.slane %v416, 5
  %v508 = vrot.slane %v507, 4
  %v509 = vrot.slane %v417, 5
  %v510 = vsel %vm458, %v508, %v509
  %v511 = vrot.slane %v418, 5
  %v512 = vrot.slane %v511, 4
  %v513 = vrot.slane %v419, 5
  %v514 = vsel %vm458, %v512, %v513
  %v515 = vrot.slane %v420, 5
  %v516 = vrot.slane %v515, 4
  %v517 = vrot.slane %v421, 5
  %v518 = vsel %vm458, %v516, %v517
  %v519 = vrot.slane %v422, 5
  %v520 = vrot.slane %v519, 4
  %v521 = vrot.slane %v423, 5
  %v522 = vsel %vm458, %v520, %v521
  %v523 = vunpack.c.l.b16 %v462
  %v524 = vunpack.c.l.b16 %v466
  %v525 = vunpack.c.l.b16 %v470
  %v526 = vunpack.c.l.b16 %v474
  %v527 = vunpack.c.l.b16 %v478
  %v528 = vunpack.c.l.b16 %v482
  %v529 = vunpack.c.l.b16 %v486
  %v530 = vunpack.c.l.b16 %v490
  %v531 = vunpack.c.l.b16 %v494
  %v532 = vunpack.c.l.b16 %v498
  %v533 = vunpack.c.l.b16 %v502
  %v534 = vunpack.c.l.b16 %v506
  %v535 = vunpack.c.l.b16 %v510
  %v536 = vunpack.c.l.b16 %v514
  %v537 = vunpack.c.l.b16 %v518
  %v538 = vunpack.c.l.b16 %v522
  %v539 = vpack.c.b16 %v524, %v523
  %v540 = vpack.c.b16 %v526, %v525
  %v541 = vpack.c.b16 %v528, %v527
  %v542 = vpack.c.b16 %v530, %v529
  %v543 = vpack.c.b16 %v532, %v531
  %v544 = vpack.c.b16 %v534, %v533
  %v545 = vpack.c.b16 %v536, %v535
  %v546 = vpack.c.b16 %v538, %v537
  %555 = vst [vmem:[#allocation2 + $0x10] sm:$0xff] %v539
  %556 = vst [vmem:[#allocation2 + $0x58] sm:$0xff] %v540
  %557 = vst [vmem:[#allocation2 + $0xa0] sm:$0xff] %v541
  %558 = vst [vmem:[#allocation2 + $0xe8] sm:$0xff] %v542
  %559 = vst [vmem:[#allocation2 + $0x130] sm:$0xff] %v543
  %560 = vst [vmem:[#allocation2 + $0x178] sm:$0xff] %v544
  %561 = vst [vmem:[#allocation2 + $0x1c0] sm:$0xff] %v545
  %562 = vst [vmem:[#allocation2 + $0x208] sm:$0xff] %v546
  %s563 = scalar_lea.vmem %s0, 8
  %v564 = vld [vmem:[%s563] sm:$0xf]
  %v565 = vld [vmem:[%s563 + $0x8] sm:$0xf]
  %v566 = vld [vmem:[%s563 + $0x10] sm:$0xf]
  %v567 = vld [vmem:[%s563 + $0x18] sm:$0xf]
  %v568 = vld [vmem:[%s563 + $0x20] sm:$0xf]
  %v569 = vld [vmem:[%s563 + $0x28] sm:$0xf]
  %v570 = vld [vmem:[%s563 + $0x30] sm:$0xf]
  %v571 = vld [vmem:[%s563 + $0x38] sm:$0xf]
  %v572 = vld [vmem:[%s563 + $0x50] sm:$0xf]
  %v573 = vld [vmem:[%s563 + $0x58] sm:$0xf]
  %v574 = vld [vmem:[%s563 + $0x60] sm:$0xf]
  %v575 = vld [vmem:[%s563 + $0x68] sm:$0xf]
  %v576 = vld [vmem:[%s563 + $0x70] sm:$0xf]
  %v577 = vld [vmem:[%s563 + $0x78] sm:$0xf]
  %v578 = vld [vmem:[%s563 + $0x80] sm:$0xf]
  %v579 = vld [vmem:[%s563 + $0x88] sm:$0xf]
  %v596 = vunpack.c.l.b16 %v564
  %v597 = vunpack.c.l.b16 %v565
  %v598 = vunpack.c.l.b16 %v566
  %v599 = vunpack.c.l.b16 %v567
  %v600 = vunpack.c.l.b16 %v568
  %v601 = vunpack.c.l.b16 %v569
  %v602 = vunpack.c.l.b16 %v570
  %v603 = vunpack.c.l.b16 %v571
  %v604 = vunpack.c.l.b16 %v572
  %v605 = vunpack.c.l.b16 %v573
  %v606 = vunpack.c.l.b16 %v574
  %v607 = vunpack.c.l.b16 %v575
  %v608 = vunpack.c.l.b16 %v576
  %v609 = vunpack.c.l.b16 %v577
  %v610 = vunpack.c.l.b16 %v578
  %v611 = vunpack.c.l.b16 %v579
  %v612 = vpack.c.b16 %v597, %v596
  %v613 = vpack.c.b16 %v599, %v598
  %v614 = vpack.c.b16 %v601, %v600
  %v615 = vpack.c.b16 %v603, %v602
  %v616 = vpack.c.b16 %v605, %v604
  %v617 = vpack.c.b16 %v607, %v606
  %v618 = vpack.c.b16 %v609, %v608
  %v619 = vpack.c.b16 %v611, %v610
  %628 = vst [vmem:[#allocation2 + $0x18] sm:$0xff] %v612
  %629 = vst [vmem:[#allocation2 + $0x60] sm:$0xff] %v613
  %630 = vst [vmem:[#allocation2 + $0xa8] sm:$0xff] %v614
  %631 = vst [vmem:[#allocation2 + $0xf0] sm:$0xff] %v615
  %632 = vst [vmem:[#allocation2 + $0x138] sm:$0xff] %v616
  %633 = vst [vmem:[#allocation2 + $0x180] sm:$0xff] %v617
  %634 = vst [vmem:[#allocation2 + $0x1c8] sm:$0xff] %v618
  %635 = vst [vmem:[#allocation2 + $0x210] sm:$0xff] %v619
  %v636 = vld [vmem:[%s563] sm:$0xf]
  %v637 = vld [vmem:[%s563 + $0x4] sm:$0x1]
  %v638 = vld [vmem:[%s563 + $0x8] sm:$0xf]
  %v639 = vld [vmem:[%s563 + $0xc] sm:$0x1]
  %v640 = vld [vmem:[%s563 + $0x10] sm:$0xf]
  %v641 = vld [vmem:[%s563 + $0x14] sm:$0x1]
  %v642 = vld [vmem:[%s563 + $0x18] sm:$0xf]
  %v643 = vld [vmem:[%s563 + $0x1c] sm:$0x1]
  %v644 = vld [vmem:[%s563 + $0x20] sm:$0xf]
  %v645 = vld [vmem:[%s563 + $0x24] sm:$0x1]
  %v646 = vld [vmem:[%s563 + $0x28] sm:$0xf]
  %v647 = vld [vmem:[%s563 + $0x2c] sm:$0x1]
  %v648 = vld [vmem:[%s563 + $0x30] sm:$0xf]
  %v649 = vld [vmem:[%s563 + $0x34] sm:$0x1]
  %v650 = vld [vmem:[%s563 + $0x38] sm:$0xf]
  %v651 = vld [vmem:[%s563 + $0x3c] sm:$0x1]
  %v652 = vld [vmem:[%s563 + $0x50] sm:$0xf]
  %v653 = vld [vmem:[%s563 + $0x54] sm:$0x1]
  %v654 = vld [vmem:[%s563 + $0x58] sm:$0xf]
  %v655 = vld [vmem:[%s563 + $0x5c] sm:$0x1]
  %v656 = vld [vmem:[%s563 + $0x60] sm:$0xf]
  %v657 = vld [vmem:[%s563 + $0x64] sm:$0x1]
  %v658 = vld [vmem:[%s563 + $0x68] sm:$0xf]
  %v659 = vld [vmem:[%s563 + $0x6c] sm:$0x1]
  %v660 = vld [vmem:[%s563 + $0x70] sm:$0xf]
  %v661 = vld [vmem:[%s563 + $0x74] sm:$0x1]
  %v662 = vld [vmem:[%s563 + $0x78] sm:$0xf]
  %v663 = vld [vmem:[%s563 + $0x7c] sm:$0x1]
  %v664 = vld [vmem:[%s563 + $0x80] sm:$0xf]
  %v665 = vld [vmem:[%s563 + $0x84] sm:$0x1]
  %v666 = vld [vmem:[%s563 + $0x88] sm:$0xf]
  %v667 = vld [vmem:[%s563 + $0x8c] sm:$0x1]
  %v669 = vshrl.u32 %v636, 16
  %v671 = vrot.slane %v669, 4
  %v672 = vshll.u32 %v636, 16
  %v674 = vrot.slane %v672, 5
  %v675 = vor.u32 %v671, %v674
  %v676 = vrot.slane %v675, 4
  %v678 = vshll.u32 %v637, 16
  %v680 = vrot.slane %v678, 5
  %v681 = vsel %vm127, %v676, %v680
  %v683 = vshrl.u32 %v638, 16
  %v685 = vrot.slane %v683, 4
  %v686 = vshll.u32 %v638, 16
  %v688 = vrot.slane %v686, 5
  %v689 = vor.u32 %v685, %v688
  %v690 = vrot.slane %v689, 4
  %v692 = vshll.u32 %v639, 16
  %v694 = vrot.slane %v692, 5
  %v695 = vsel %vm127, %v690, %v694
  %v697 = vshrl.u32 %v640, 16
  %v699 = vrot.slane %v697, 4
  %v700 = vshll.u32 %v640, 16
  %v702 = vrot.slane %v700, 5
  %v703 = vor.u32 %v699, %v702
  %v704 = vrot.slane %v703, 4
  %v706 = vshll.u32 %v641, 16
  %v708 = vrot.slane %v706, 5
  %v709 = vsel %vm127, %v704, %v708
  %v711 = vshrl.u32 %v642, 16
  %v713 = vrot.slane %v711, 4
  %v714 = vshll.u32 %v642, 16
  %v716 = vrot.slane %v714, 5
  %v717 = vor.u32 %v713, %v716
  %v718 = vrot.slane %v717, 4
  %v720 = vshll.u32 %v643, 16
  %v722 = vrot.slane %v720, 5
  %v723 = vsel %vm127, %v718, %v722
  %v725 = vshrl.u32 %v644, 16
  %v727 = vrot.slane %v725, 4
  %v728 = vshll.u32 %v644, 16
  %v730 = vrot.slane %v728, 5
  %v731 = vor.u32 %v727, %v730
  %v732 = vrot.slane %v731, 4
  %v734 = vshll.u32 %v645, 16
  %v736 = vrot.slane %v734, 5
  %v737 = vsel %vm127, %v732, %v736
  %v739 = vshrl.u32 %v646, 16
  %v741 = vrot.slane %v739, 4
  %v742 = vshll.u32 %v646, 16
  %v744 = vrot.slane %v742, 5
  %v745 = vor.u32 %v741, %v744
  %v746 = vrot.slane %v745, 4
  %v748 = vshll.u32 %v647, 16
  %v750 = vrot.slane %v748, 5
  %v751 = vsel %vm127, %v746, %v750
  %v753 = vshrl.u32 %v648, 16
  %v755 = vrot.slane %v753, 4
  %v756 = vshll.u32 %v648, 16
  %v758 = vrot.slane %v756, 5
  %v759 = vor.u32 %v755, %v758
  %v760 = vrot.slane %v759, 4
  %v762 = vshll.u32 %v649, 16
  %v764 = vrot.slane %v762, 5
  %v765 = vsel %vm127, %v760, %v764
  %v767 = vshrl.u32 %v650, 16
  %v769 = vrot.slane %v767, 4
  %v770 = vshll.u32 %v650, 16
  %v772 = vrot.slane %v770, 5
  %v773 = vor.u32 %v769, %v772
  %v774 = vrot.slane %v773, 4
  %v776 = vshll.u32 %v651, 16
  %v778 = vrot.slane %v776, 5
  %v779 = vsel %vm127, %v774, %v778
  %v781 = vshrl.u32 %v652, 16
  %v783 = vrot.slane %v781, 4
  %v784 = vshll.u32 %v652, 16
  %v786 = vrot.slane %v784, 5
  %v787 = vor.u32 %v783, %v786
  %v788 = vrot.slane %v787, 4
  %v790 = vshll.u32 %v653, 16
  %v792 = vrot.slane %v790, 5
  %v793 = vsel %vm127, %v788, %v792
  %v795 = vshrl.u32 %v654, 16
  %v797 = vrot.slane %v795, 4
  %v798 = vshll.u32 %v654, 16
  %v800 = vrot.slane %v798, 5
  %v801 = vor.u32 %v797, %v800
  %v802 = vrot.slane %v801, 4
  %v804 = vshll.u32 %v655, 16
  %v806 = vrot.slane %v804, 5
  %v807 = vsel %vm127, %v802, %v806
  %v809 = vshrl.u32 %v656, 16
  %v811 = vrot.slane %v809, 4
  %v812 = vshll.u32 %v656, 16
  %v814 = vrot.slane %v812, 5
  %v815 = vor.u32 %v811, %v814
  %v816 = vrot.slane %v815, 4
  %v818 = vshll.u32 %v657, 16
  %v820 = vrot.slane %v818, 5
  %v821 = vsel %vm127, %v816, %v820
  %v823 = vshrl.u32 %v658, 16
  %v825 = vrot.slane %v823, 4
  %v826 = vshll.u32 %v658, 16
  %v828 = vrot.slane %v826, 5
  %v829 = vor.u32 %v825, %v828
  %v830 = vrot.slane %v829, 4
  %v832 = vshll.u32 %v659, 16
  %v834 = vrot.slane %v832, 5
  %v835 = vsel %vm127, %v830, %v834
  %v837 = vshrl.u32 %v660, 16
  %v839 = vrot.slane %v837, 4
  %v840 = vshll.u32 %v660, 16
  %v842 = vrot.slane %v840, 5
  %v843 = vor.u32 %v839, %v842
  %v844 = vrot.slane %v843, 4
  %v846 = vshll.u32 %v661, 16
  %v848 = vrot.slane %v846, 5
  %v849 = vsel %vm127, %v844, %v848
  %v851 = vshrl.u32 %v662, 16
  %v853 = vrot.slane %v851, 4
  %v854 = vshll.u32 %v662, 16
  %v856 = vrot.slane %v854, 5
  %v857 = vor.u32 %v853, %v856
  %v858 = vrot.slane %v857, 4
  %v860 = vshll.u32 %v663, 16
  %v862 = vrot.slane %v860, 5
  %v863 = vsel %vm127, %v858, %v862
  %v865 = vshrl.u32 %v664, 16
  %v867 = vrot.slane %v865, 4
  %v868 = vshll.u32 %v664, 16
  %v870 = vrot.slane %v868, 5
  %v871 = vor.u32 %v867, %v870
  %v872 = vrot.slane %v871, 4
  %v874 = vshll.u32 %v665, 16
  %v876 = vrot.slane %v874, 5
  %v877 = vsel %vm127, %v872, %v876
  %v879 = vshrl.u32 %v666, 16
  %v881 = vrot.slane %v879, 4
  %v882 = vshll.u32 %v666, 16
  %v884 = vrot.slane %v882, 5
  %v885 = vor.u32 %v881, %v884
  %v886 = vrot.slane %v885, 4
  %v888 = vshll.u32 %v667, 16
  %v890 = vrot.slane %v888, 5
  %v891 = vsel %vm127, %v886, %v890
  %v892 = vunpack.c.l.b16 %v681
  %v893 = vunpack.c.l.b16 %v695
  %v894 = vunpack.c.l.b16 %v709
  %v895 = vunpack.c.l.b16 %v723
  %v896 = vunpack.c.l.b16 %v737
  %v897 = vunpack.c.l.b16 %v751
  %v898 = vunpack.c.l.b16 %v765
  %v899 = vunpack.c.l.b16 %v779
  %v900 = vunpack.c.l.b16 %v793
  %v901 = vunpack.c.l.b16 %v807
  %v902 = vunpack.c.l.b16 %v821
  %v903 = vunpack.c.l.b16 %v835
  %v904 = vunpack.c.l.b16 %v849
  %v905 = vunpack.c.l.b16 %v863
  %v906 = vunpack.c.l.b16 %v877
  %v907 = vunpack.c.l.b16 %v891
  %v908 = vpack.c.b16 %v893, %v892
  %v909 = vpack.c.b16 %v895, %v894
  %v910 = vpack.c.b16 %v897, %v896
  %v911 = vpack.c.b16 %v899, %v898
  %v912 = vpack.c.b16 %v901, %v900
  %v913 = vpack.c.b16 %v903, %v902
  %v914 = vpack.c.b16 %v905, %v904
  %v915 = vpack.c.b16 %v907, %v906
  %924 = vst [vmem:[#allocation2 + $0x20] sm:$0xff] %v908
  %925 = vst [vmem:[#allocation2 + $0x68] sm:$0xff] %v909
  %926 = vst [vmem:[#allocation2 + $0xb0] sm:$0xff] %v910
  %927 = vst [vmem:[#allocation2 + $0xf8] sm:$0xff] %v911
  %928 = vst [vmem:[#allocation2 + $0x140] sm:$0xff] %v912
  %929 = vst [vmem:[#allocation2 + $0x188] sm:$0xff] %v913
  %930 = vst [vmem:[#allocation2 + $0x1d0] sm:$0xff] %v914
  %931 = vst [vmem:[#allocation2 + $0x218] sm:$0xff] %v915
  %v932 = vld [vmem:[%s563] sm:$0xe]
  %v933 = vld [vmem:[%s563 + $0x4] sm:$0x1]
  %v934 = vld [vmem:[%s563 + $0x8] sm:$0xe]
  %v935 = vld [vmem:[%s563 + $0xc] sm:$0x1]
  %v936 = vld [vmem:[%s563 + $0x10] sm:$0xe]
  %v937 = vld [vmem:[%s563 + $0x14] sm:$0x1]
  %v938 = vld [vmem:[%s563 + $0x18] sm:$0xe]
  %v939 = vld [vmem:[%s563 + $0x1c] sm:$0x1]
  %v940 = vld [vmem:[%s563 + $0x20] sm:$0xe]
  %v941 = vld [vmem:[%s563 + $0x24] sm:$0x1]
  %v942 = vld [vmem:[%s563 + $0x28] sm:$0xe]
  %v943 = vld [vmem:[%s563 + $0x2c] sm:$0x1]
  %v944 = vld [vmem:[%s563 + $0x30] sm:$0xe]
  %v945 = vld [vmem:[%s563 + $0x34] sm:$0x1]
  %v946 = vld [vmem:[%s563 + $0x38] sm:$0xe]
  %v947 = vld [vmem:[%s563 + $0x3c] sm:$0x1]
  %v948 = vld [vmem:[%s563 + $0x50] sm:$0xe]
  %v949 = vld [vmem:[%s563 + $0x54] sm:$0x1]
  %v950 = vld [vmem:[%s563 + $0x58] sm:$0xe]
  %v951 = vld [vmem:[%s563 + $0x5c] sm:$0x1]
  %v952 = vld [vmem:[%s563 + $0x60] sm:$0xe]
  %v953 = vld [vmem:[%s563 + $0x64] sm:$0x1]
  %v954 = vld [vmem:[%s563 + $0x68] sm:$0xe]
  %v955 = vld [vmem:[%s563 + $0x6c] sm:$0x1]
  %v956 = vld [vmem:[%s563 + $0x70] sm:$0xe]
  %v957 = vld [vmem:[%s563 + $0x74] sm:$0x1]
  %v958 = vld [vmem:[%s563 + $0x78] sm:$0xe]
  %v959 = vld [vmem:[%s563 + $0x7c] sm:$0x1]
  %v960 = vld [vmem:[%s563 + $0x80] sm:$0xe]
  %v961 = vld [vmem:[%s563 + $0x84] sm:$0x1]
  %v962 = vld [vmem:[%s563 + $0x88] sm:$0xe]
  %v963 = vld [vmem:[%s563 + $0x8c] sm:$0x1]
  %v996 = vrot.slane %v932, 5
  %v997 = vrot.slane %v996, 4
  %v998 = vrot.slane %v933, 5
  %v999 = vsel %vm458, %v997, %v998
  %v1000 = vrot.slane %v934, 5
  %v1001 = vrot.slane %v1000, 4
  %v1002 = vrot.slane %v935, 5
  %v1003 = vsel %vm458, %v1001, %v1002
  %v1004 = vrot.slane %v936, 5
  %v1005 = vrot.slane %v1004, 4
  %v1006 = vrot.slane %v937, 5
  %v1007 = vsel %vm458, %v1005, %v1006
  %v1008 = vrot.slane %v938, 5
  %v1009 = vrot.slane %v1008, 4
  %v1010 = vrot.slane %v939, 5
  %v1011 = vsel %vm458, %v1009, %v1010
  %v1012 = vrot.slane %v940, 5
  %v1013 = vrot.slane %v1012, 4
  %v1014 = vrot.slane %v941, 5
  %v1015 = vsel %vm458, %v1013, %v1014
  %v1016 = vrot.slane %v942, 5
  %v1017 = vrot.slane %v1016, 4
  %v1018 = vrot.slane %v943, 5
  %v1019 = vsel %vm458, %v1017, %v1018
  %v1020 = vrot.slane %v944, 5
  %v1021 = vrot.slane %v1020, 4
  %v1022 = vrot.slane %v945, 5
  %v1023 = vsel %vm458, %v1021, %v1022
  %v1024 = vrot.slane %v946, 5
  %v1025 = vrot.slane %v1024, 4
  %v1026 = vrot.slane %v947, 5
  %v1027 = vsel %vm458, %v1025, %v1026
  %v1028 = vrot.slane %v948, 5
  %v1029 = vrot.slane %v1028, 4
  %v1030 = vrot.slane %v949, 5
  %v1031 = vsel %vm458, %v1029, %v1030
  %v1032 = vrot.slane %v950, 5
  %v1033 = vrot.slane %v1032, 4
  %v1034 = vrot.slane %v951, 5
  %v1035 = vsel %vm458, %v1033, %v1034
  %v1036 = vrot.slane %v952, 5
  %v1037 = vrot.slane %v1036, 4
  %v1038 = vrot.slane %v953, 5
  %v1039 = vsel %vm458, %v1037, %v1038
  %v1040 = vrot.slane %v954, 5
  %v1041 = vrot.slane %v1040, 4
  %v1042 = vrot.slane %v955, 5
  %v1043 = vsel %vm458, %v1041, %v1042
  %v1044 = vrot.slane %v956, 5
  %v1045 = vrot.slane %v1044, 4
  %v1046 = vrot.slane %v957, 5
  %v1047 = vsel %vm458, %v1045, %v1046
  %v1048 = vrot.slane %v958, 5
  %v1049 = vrot.slane %v1048, 4
  %v1050 = vrot.slane %v959, 5
  %v1051 = vsel %vm458, %v1049, %v1050
  %v1052 = vrot.slane %v960, 5
  %v1053 = vrot.slane %v1052, 4
  %v1054 = vrot.slane %v961, 5
  %v1055 = vsel %vm458, %v1053, %v1054
  %v1056 = vrot.slane %v962, 5
  %v1057 = vrot.slane %v1056, 4
  %v1058 = vrot.slane %v963, 5
  %v1059 = vsel %vm458, %v1057, %v1058
  %v1060 = vunpack.c.l.b16 %v999
  %v1061 = vunpack.c.l.b16 %v1003
  %v1062 = vunpack.c.l.b16 %v1007
  %v1063 = vunpack.c.l.b16 %v1011
  %v1064 = vunpack.c.l.b16 %v1015
  %v1065 = vunpack.c.l.b16 %v1019
  %v1066 = vunpack.c.l.b16 %v1023
  %v1067 = vunpack.c.l.b16 %v1027
  %v1068 = vunpack.c.l.b16 %v1031
  %v1069 = vunpack.c.l.b16 %v1035
  %v1070 = vunpack.c.l.b16 %v1039
  %v1071 = vunpack.c.l.b16 %v1043
  %v1072 = vunpack.c.l.b16 %v1047
  %v1073 = vunpack.c.l.b16 %v1051
  %v1074 = vunpack.c.l.b16 %v1055
  %v1075 = vunpack.c.l.b16 %v1059
  %v1076 = vpack.c.b16 %v1061, %v1060
  %v1077 = vpack.c.b16 %v1063, %v1062
  %v1078 = vpack.c.b16 %v1065, %v1064
  %v1079 = vpack.c.b16 %v1067, %v1066
  %v1080 = vpack.c.b16 %v1069, %v1068
  %v1081 = vpack.c.b16 %v1071, %v1070
  %v1082 = vpack.c.b16 %v1073, %v1072
  %v1083 = vpack.c.b16 %v1075, %v1074
  %1092 = vst [vmem:[#allocation2 + $0x28] sm:$0xff] %v1076
  %1093 = vst [vmem:[#allocation2 + $0x70] sm:$0xff] %v1077
  %1094 = vst [vmem:[#allocation2 + $0xb8] sm:$0xff] %v1078
  %1095 = vst [vmem:[#allocation2 + $0x100] sm:$0xff] %v1079
  %1096 = vst [vmem:[#allocation2 + $0x148] sm:$0xff] %v1080
  %1097 = vst [vmem:[#allocation2 + $0x190] sm:$0xff] %v1081
  %1098 = vst [vmem:[#allocation2 + $0x1d8] sm:$0xff] %v1082
  %1099 = vst [vmem:[#allocation2 + $0x220] sm:$0xff] %v1083
  %s1100 = scalar_lea.vmem %s0, 16
  %v1101 = vld [vmem:[%s1100] sm:$0xf]
  %v1102 = vld [vmem:[%s1100 + $0x8] sm:$0xf]
  %v1103 = vld [vmem:[%s1100 + $0x10] sm:$0xf]
  %v1104 = vld [vmem:[%s1100 + $0x18] sm:$0xf]
  %v1105 = vld [vmem:[%s1100 + $0x20] sm:$0xf]
  %v1106 = vld [vmem:[%s1100 + $0x28] sm:$0xf]
  %v1107 = vld [vmem:[%s1100 + $0x30] sm:$0xf]
  %v1108 = vld [vmem:[%s1100 + $0x38] sm:$0xf]
  %v1109 = vld [vmem:[%s1100 + $0x50] sm:$0xf]
  %v1110 = vld [vmem:[%s1100 + $0x58] sm:$0xf]
  %v1111 = vld [vmem:[%s1100 + $0x60] sm:$0xf]
  %v1112 = vld [vmem:[%s1100 + $0x68] sm:$0xf]
  %v1113 = vld [vmem:[%s1100 + $0x70] sm:$0xf]
  %v1114 = vld [vmem:[%s1100 + $0x78] sm:$0xf]
  %v1115 = vld [vmem:[%s1100 + $0x80] sm:$0xf]
  %v1116 = vld [vmem:[%s1100 + $0x88] sm:$0xf]
  %v1133 = vunpack.c.l.b16 %v1101
  %v1134 = vunpack.c.l.b16 %v1102
  %v1135 = vunpack.c.l.b16 %v1103
  %v1136 = vunpack.c.l.b16 %v1104
  %v1137 = vunpack.c.l.b16 %v1105
  %v1138 = vunpack.c.l.b16 %v1106
  %v1139 = vunpack.c.l.b16 %v1107
  %v1140 = vunpack.c.l.b16 %v1108
  %v1141 = vunpack.c.l.b16 %v1109
  %v1142 = vunpack.c.l.b16 %v1110
  %v1143 = vunpack.c.l.b16 %v1111
  %v1144 = vunpack.c.l.b16 %v1112
  %v1145 = vunpack.c.l.b16 %v1113
  %v1146 = vunpack.c.l.b16 %v1114
  %v1147 = vunpack.c.l.b16 %v1115
  %v1148 = vunpack.c.l.b16 %v1116
  %v1149 = vpack.c.b16 %v1134, %v1133
  %v1150 = vpack.c.b16 %v1136, %v1135
  %v1151 = vpack.c.b16 %v1138, %v1137
  %v1152 = vpack.c.b16 %v1140, %v1139
  %v1153 = vpack.c.b16 %v1142, %v1141
  %v1154 = vpack.c.b16 %v1144, %v1143
  %v1155 = vpack.c.b16 %v1146, %v1145
  %v1156 = vpack.c.b16 %v1148, %v1147
  %1165 = vst [vmem:[#allocation2 + $0x30] sm:$0xff] %v1149
  %1166 = vst [vmem:[#allocation2 + $0x78] sm:$0xff] %v1150
  %1167 = vst [vmem:[#allocation2 + $0xc0] sm:$0xff] %v1151
  %1168 = vst [vmem:[#allocation2 + $0x108] sm:$0xff] %v1152
  %1169 = vst [vmem:[#allocation2 + $0x150] sm:$0xff] %v1153
  %1170 = vst [vmem:[#allocation2 + $0x198] sm:$0xff] %v1154
  %1171 = vst [vmem:[#allocation2 + $0x1e0] sm:$0xff] %v1155
  %1172 = vst [vmem:[#allocation2 + $0x228] sm:$0xff] %v1156
  %v1173 = vld [vmem:[%s1100] sm:$0xf]
  %v1174 = vld [vmem:[%s1100 + $0x4] sm:$0x1]
  %v1175 = vld [vmem:[%s1100 + $0x8] sm:$0xf]
  %v1176 = vld [vmem:[%s1100 + $0xc] sm:$0x1]
  %v1177 = vld [vmem:[%s1100 + $0x10] sm:$0xf]
  %v1178 = vld [vmem:[%s1100 + $0x14] sm:$0x1]
  %v1179 = vld [vmem:[%s1100 + $0x18] sm:$0xf]
  %v1180 = vld [vmem:[%s1100 + $0x1c] sm:$0x1]
  %v1181 = vld [vmem:[%s1100 + $0x20] sm:$0xf]
  %v1182 = vld [vmem:[%s1100 + $0x24] sm:$0x1]
  %v1183 = vld [vmem:[%s1100 + $0x28] sm:$0xf]
  %v1184 = vld [vmem:[%s1100 + $0x2c] sm:$0x1]
  %v1185 = vld [vmem:[%s1100 + $0x30] sm:$0xf]
  %v1186 = vld [vmem:[%s1100 + $0x34] sm:$0x1]
  %v1187 = vld [vmem:[%s1100 + $0x38] sm:$0xf]
  %v1188 = vld [vmem:[%s1100 + $0x3c] sm:$0x1]
  %v1189 = vld [vmem:[%s1100 + $0x50] sm:$0xf]
  %v1190 = vld [vmem:[%s1100 + $0x54] sm:$0x1]
  %v1191 = vld [vmem:[%s1100 + $0x58] sm:$0xf]
  %v1192 = vld [vmem:[%s1100 + $0x5c] sm:$0x1]
  %v1193 = vld [vmem:[%s1100 + $0x60] sm:$0xf]
  %v1194 = vld [vmem:[%s1100 + $0x64] sm:$0x1]
  %v1195 = vld [vmem:[%s1100 + $0x68] sm:$0xf]
  %v1196 = vld [vmem:[%s1100 + $0x6c] sm:$0x1]
  %v1197 = vld [vmem:[%s1100 + $0x70] sm:$0xf]
  %v1198 = vld [vmem:[%s1100 + $0x74] sm:$0x1]
  %v1199 = vld [vmem:[%s1100 + $0x78] sm:$0xf]
  %v1200 = vld [vmem:[%s1100 + $0x7c] sm:$0x1]
  %v1201 = vld [vmem:[%s1100 + $0x80] sm:$0xf]
  %v1202 = vld [vmem:[%s1100 + $0x84] sm:$0x1]
  %v1203 = vld [vmem:[%s1100 + $0x88] sm:$0xf]
  %v1204 = vld [vmem:[%s1100 + $0x8c] sm:$0x1]
  %v1206 = vshrl.u32 %v1173, 16
  %v1208 = vrot.slane %v1206, 4
  %v1209 = vshll.u32 %v1173, 16
  %v1211 = vrot.slane %v1209, 5
  %v1212 = vor.u32 %v1208, %v1211
  %v1213 = vrot.slane %v1212, 4
  %v1215 = vshll.u32 %v1174, 16
  %v1217 = vrot.slane %v1215, 5
  %v1218 = vsel %vm127, %v1213, %v1217
  %v1220 = vshrl.u32 %v1175, 16
  %v1222 = vrot.slane %v1220, 4
  %v1223 = vshll.u32 %v1175, 16
  %v1225 = vrot.slane %v1223, 5
  %v1226 = vor.u32 %v1222, %v1225
  %v1227 = vrot.slane %v1226, 4
  %v1229 = vshll.u32 %v1176, 16
  %v1231 = vrot.slane %v1229, 5
  %v1232 = vsel %vm127, %v1227, %v1231
  %v1234 = vshrl.u32 %v1177, 16
  %v1236 = vrot.slane %v1234, 4
  %v1237 = vshll.u32 %v1177, 16
  %v1239 = vrot.slane %v1237, 5
  %v1240 = vor.u32 %v1236, %v1239
  %v1241 = vrot.slane %v1240, 4
  %v1243 = vshll.u32 %v1178, 16
  %v1245 = vrot.slane %v1243, 5
  %v1246 = vsel %vm127, %v1241, %v1245
  %v1248 = vshrl.u32 %v1179, 16
  %v1250 = vrot.slane %v1248, 4
  %v1251 = vshll.u32 %v1179, 16
  %v1253 = vrot.slane %v1251, 5
  %v1254 = vor.u32 %v1250, %v1253
  %v1255 = vrot.slane %v1254, 4
  %v1257 = vshll.u32 %v1180, 16
  %v1259 = vrot.slane %v1257, 5
  %v1260 = vsel %vm127, %v1255, %v1259
  %v1262 = vshrl.u32 %v1181, 16
  %v1264 = vrot.slane %v1262, 4
  %v1265 = vshll.u32 %v1181, 16
  %v1267 = vrot.slane %v1265, 5
  %v1268 = vor.u32 %v1264, %v1267
  %v1269 = vrot.slane %v1268, 4
  %v1271 = vshll.u32 %v1182, 16
  %v1273 = vrot.slane %v1271, 5
  %v1274 = vsel %vm127, %v1269, %v1273
  %v1276 = vshrl.u32 %v1183, 16
  %v1278 = vrot.slane %v1276, 4
  %v1279 = vshll.u32 %v1183, 16
  %v1281 = vrot.slane %v1279, 5
  %v1282 = vor.u32 %v1278, %v1281
  %v1283 = vrot.slane %v1282, 4
  %v1285 = vshll.u32 %v1184, 16
  %v1287 = vrot.slane %v1285, 5
  %v1288 = vsel %vm127, %v1283, %v1287
  %v1290 = vshrl.u32 %v1185, 16
  %v1292 = vrot.slane %v1290, 4
  %v1293 = vshll.u32 %v1185, 16
  %v1295 = vrot.slane %v1293, 5
  %v1296 = vor.u32 %v1292, %v1295
  %v1297 = vrot.slane %v1296, 4
  %v1299 = vshll.u32 %v1186, 16
  %v1301 = vrot.slane %v1299, 5
  %v1302 = vsel %vm127, %v1297, %v1301
  %v1304 = vshrl.u32 %v1187, 16
  %v1306 = vrot.slane %v1304, 4
  %v1307 = vshll.u32 %v1187, 16
  %v1309 = vrot.slane %v1307, 5
  %v1310 = vor.u32 %v1306, %v1309
  %v1311 = vrot.slane %v1310, 4
  %v1313 = vshll.u32 %v1188, 16
  %v1315 = vrot.slane %v1313, 5
  %v1316 = vsel %vm127, %v1311, %v1315
  %v1318 = vshrl.u32 %v1189, 16
  %v1320 = vrot.slane %v1318, 4
  %v1321 = vshll.u32 %v1189, 16
  %v1323 = vrot.slane %v1321, 5
  %v1324 = vor.u32 %v1320, %v1323
  %v1325 = vrot.slane %v1324, 4
  %v1327 = vshll.u32 %v1190, 16
  %v1329 = vrot.slane %v1327, 5
  %v1330 = vsel %vm127, %v1325, %v1329
  %v1332 = vshrl.u32 %v1191, 16
  %v1334 = vrot.slane %v1332, 4
  %v1335 = vshll.u32 %v1191, 16
  %v1337 = vrot.slane %v1335, 5
  %v1338 = vor.u32 %v1334, %v1337
  %v1339 = vrot.slane %v1338, 4
  %v1341 = vshll.u32 %v1192, 16
  %v1343 = vrot.slane %v1341, 5
  %v1344 = vsel %vm127, %v1339, %v1343
  %v1346 = vshrl.u32 %v1193, 16
  %v1348 = vrot.slane %v1346, 4
  %v1349 = vshll.u32 %v1193, 16
  %v1351 = vrot.slane %v1349, 5
  %v1352 = vor.u32 %v1348, %v1351
  %v1353 = vrot.slane %v1352, 4
  %v1355 = vshll.u32 %v1194, 16
  %v1357 = vrot.slane %v1355, 5
  %v1358 = vsel %vm127, %v1353, %v1357
  %v1360 = vshrl.u32 %v1195, 16
  %v1362 = vrot.slane %v1360, 4
  %v1363 = vshll.u32 %v1195, 16
  %v1365 = vrot.slane %v1363, 5
  %v1366 = vor.u32 %v1362, %v1365
  %v1367 = vrot.slane %v1366, 4
  %v1369 = vshll.u32 %v1196, 16
  %v1371 = vrot.slane %v1369, 5
  %v1372 = vsel %vm127, %v1367, %v1371
  %v1374 = vshrl.u32 %v1197, 16
  %v1376 = vrot.slane %v1374, 4
  %v1377 = vshll.u32 %v1197, 16
  %v1379 = vrot.slane %v1377, 5
  %v1380 = vor.u32 %v1376, %v1379
  %v1381 = vrot.slane %v1380, 4
  %v1383 = vshll.u32 %v1198, 16
  %v1385 = vrot.slane %v1383, 5
  %v1386 = vsel %vm127, %v1381, %v1385
  %v1388 = vshrl.u32 %v1199, 16
  %v1390 = vrot.slane %v1388, 4
  %v1391 = vshll.u32 %v1199, 16
  %v1393 = vrot.slane %v1391, 5
  %v1394 = vor.u32 %v1390, %v1393
  %v1395 = vrot.slane %v1394, 4
  %v1397 = vshll.u32 %v1200, 16
  %v1399 = vrot.slane %v1397, 5
  %v1400 = vsel %vm127, %v1395, %v1399
  %v1402 = vshrl.u32 %v1201, 16
  %v1404 = vrot.slane %v1402, 4
  %v1405 = vshll.u32 %v1201, 16
  %v1407 = vrot.slane %v1405, 5
  %v1408 = vor.u32 %v1404, %v1407
  %v1409 = vrot.slane %v1408, 4
  %v1411 = vshll.u32 %v1202, 16
  %v1413 = vrot.slane %v1411, 5
  %v1414 = vsel %vm127, %v1409, %v1413
  %v1416 = vshrl.u32 %v1203, 16
  %v1418 = vrot.slane %v1416, 4
  %v1419 = vshll.u32 %v1203, 16
  %v1421 = vrot.slane %v1419, 5
  %v1422 = vor.u32 %v1418, %v1421
  %v1423 = vrot.slane %v1422, 4
  %v1425 = vshll.u32 %v1204, 16
  %v1427 = vrot.slane %v1425, 5
  %v1428 = vsel %vm127, %v1423, %v1427
  %v1429 = vunpack.c.l.b16 %v1218
  %v1430 = vunpack.c.l.b16 %v1232
  %v1431 = vunpack.c.l.b16 %v1246
  %v1432 = vunpack.c.l.b16 %v1260
  %v1433 = vunpack.c.l.b16 %v1274
  %v1434 = vunpack.c.l.b16 %v1288
  %v1435 = vunpack.c.l.b16 %v1302
  %v1436 = vunpack.c.l.b16 %v1316
  %v1437 = vunpack.c.l.b16 %v1330
  %v1438 = vunpack.c.l.b16 %v1344
  %v1439 = vunpack.c.l.b16 %v1358
  %v1440 = vunpack.c.l.b16 %v1372
  %v1441 = vunpack.c.l.b16 %v1386
  %v1442 = vunpack.c.l.b16 %v1400
  %v1443 = vunpack.c.l.b16 %v1414
  %v1444 = vunpack.c.l.b16 %v1428
  %v1445 = vpack.c.b16 %v1430, %v1429
  %v1446 = vpack.c.b16 %v1432, %v1431
  %v1447 = vpack.c.b16 %v1434, %v1433
  %v1448 = vpack.c.b16 %v1436, %v1435
  %v1449 = vpack.c.b16 %v1438, %v1437
  %v1450 = vpack.c.b16 %v1440, %v1439
  %v1451 = vpack.c.b16 %v1442, %v1441
  %v1452 = vpack.c.b16 %v1444, %v1443
  %1461 = vst [vmem:[#allocation2 + $0x38] sm:$0xff] %v1445
  %1462 = vst [vmem:[#allocation2 + $0x80] sm:$0xff] %v1446
  %1463 = vst [vmem:[#allocation2 + $0xc8] sm:$0xff] %v1447
  %1464 = vst [vmem:[#allocation2 + $0x110] sm:$0xff] %v1448
  %1465 = vst [vmem:[#allocation2 + $0x158] sm:$0xff] %v1449
  %1466 = vst [vmem:[#allocation2 + $0x1a0] sm:$0xff] %v1450
  %1467 = vst [vmem:[#allocation2 + $0x1e8] sm:$0xff] %v1451
  %1468 = vst [vmem:[#allocation2 + $0x230] sm:$0xff] %v1452
  %v1469 = vld [vmem:[%s1100] sm:$0xe]
  %v1470 = vld [vmem:[%s1100 + $0x4] sm:$0x1]
  %v1471 = vld [vmem:[%s1100 + $0x8] sm:$0xe]
  %v1472 = vld [vmem:[%s1100 + $0xc] sm:$0x1]
  %v1473 = vld [vmem:[%s1100 + $0x10] sm:$0xe]
  %v1474 = vld [vmem:[%s1100 + $0x14] sm:$0x1]
  %v1475 = vld [vmem:[%s1100 + $0x18] sm:$0xe]
  %v1476 = vld [vmem:[%s1100 + $0x1c] sm:$0x1]
  %v1477 = vld [vmem:[%s1100 + $0x20] sm:$0xe]
  %v1478 = vld [vmem:[%s1100 + $0x24] sm:$0x1]
  %v1479 = vld [vmem:[%s1100 + $0x28] sm:$0xe]
  %v1480 = vld [vmem:[%s1100 + $0x2c] sm:$0x1]
  %v1481 = vld [vmem:[%s1100 + $0x30] sm:$0xe]
  %v1482 = vld [vmem:[%s1100 + $0x34] sm:$0x1]
  %v1483 = vld [vmem:[%s1100 + $0x38] sm:$0xe]
  %v1484 = vld [vmem:[%s1100 + $0x3c] sm:$0x1]
  %v1485 = vld [vmem:[%s1100 + $0x50] sm:$0xe]
  %v1486 = vld [vmem:[%s1100 + $0x54] sm:$0x1]
  %v1487 = vld [vmem:[%s1100 + $0x58] sm:$0xe]
  %v1488 = vld [vmem:[%s1100 + $0x5c] sm:$0x1]
  %v1489 = vld [vmem:[%s1100 + $0x60] sm:$0xe]
  %v1490 = vld [vmem:[%s1100 + $0x64] sm:$0x1]
  %v1491 = vld [vmem:[%s1100 + $0x68] sm:$0xe]
  %v1492 = vld [vmem:[%s1100 + $0x6c] sm:$0x1]
  %v1493 = vld [vmem:[%s1100 + $0x70] sm:$0xe]
  %v1494 = vld [vmem:[%s1100 + $0x74] sm:$0x1]
  %v1495 = vld [vmem:[%s1100 + $0x78] sm:$0xe]
  %v1496 = vld [vmem:[%s1100 + $0x7c] sm:$0x1]
  %v1497 = vld [vmem:[%s1100 + $0x80] sm:$0xe]
  %v1498 = vld [vmem:[%s1100 + $0x84] sm:$0x1]
  %v1499 = vld [vmem:[%s1100 + $0x88] sm:$0xe]
  %v1500 = vld [vmem:[%s1100 + $0x8c] sm:$0x1]
  %v1533 = vrot.slane %v1469, 5
  %v1534 = vrot.slane %v1533, 4
  %v1535 = vrot.slane %v1470, 5
  %v1536 = vsel %vm458, %v1534, %v1535
  %v1537 = vrot.slane %v1471, 5
  %v1538 = vrot.slane %v1537, 4
  %v1539 = vrot.slane %v1472, 5
  %v1540 = vsel %vm458, %v1538, %v1539
  %v1541 = vrot.slane %v1473, 5
  %v1542 = vrot.slane %v1541, 4
  %v1543 = vrot.slane %v1474, 5
  %v1544 = vsel %vm458, %v1542, %v1543
  %v1545 = vrot.slane %v1475, 5
  %v1546 = vrot.slane %v1545, 4
  %v1547 = vrot.slane %v1476, 5
  %v1548 = vsel %vm458, %v1546, %v1547
  %v1549 = vrot.slane %v1477, 5
  %v1550 = vrot.slane %v1549, 4
  %v1551 = vrot.slane %v1478, 5
  %v1552 = vsel %vm458, %v1550, %v1551
  %v1553 = vrot.slane %v1479, 5
  %v1554 = vrot.slane %v1553, 4
  %v1555 = vrot.slane %v1480, 5
  %v1556 = vsel %vm458, %v1554, %v1555
  %v1557 = vrot.slane %v1481, 5
  %v1558 = vrot.slane %v1557, 4
  %v1559 = vrot.slane %v1482, 5
  %v1560 = vsel %vm458, %v1558, %v1559
  %v1561 = vrot.slane %v1483, 5
  %v1562 = vrot.slane %v1561, 4
  %v1563 = vrot.slane %v1484, 5
  %v1564 = vsel %vm458, %v1562, %v1563
  %v1565 = vrot.slane %v1485, 5
  %v1566 = vrot.slane %v1565, 4
  %v1567 = vrot.slane %v1486, 5
  %v1568 = vsel %vm458, %v1566, %v1567
  %v1569 = vrot.slane %v1487, 5
  %v1570 = vrot.slane %v1569, 4
  %v1571 = vrot.slane %v1488, 5
  %v1572 = vsel %vm458, %v1570, %v1571
  %v1573 = vrot.slane %v1489, 5
  %v1574 = vrot.slane %v1573, 4
  %v1575 = vrot.slane %v1490, 5
  %v1576 = vsel %vm458, %v1574, %v1575
  %v1577 = vrot.slane %v1491, 5
  %v1578 = vrot.slane %v1577, 4
  %v1579 = vrot.slane %v1492, 5
  %v1580 = vsel %vm458, %v1578, %v1579
  %v1581 = vrot.slane %v1493, 5
  %v1582 = vrot.slane %v1581, 4
  %v1583 = vrot.slane %v1494, 5
  %v1584 = vsel %vm458, %v1582, %v1583
  %v1585 = vrot.slane %v1495, 5
  %v1586 = vrot.slane %v1585, 4
  %v1587 = vrot.slane %v1496, 5
  %v1588 = vsel %vm458, %v1586, %v1587
  %v1589 = vrot.slane %v1497, 5
  %v1590 = vrot.slane %v1589, 4
  %v1591 = vrot.slane %v1498, 5
  %v1592 = vsel %vm458, %v1590, %v1591
  %v1593 = vrot.slane %v1499, 5
  %v1594 = vrot.slane %v1593, 4
  %v1595 = vrot.slane %v1500, 5
  %v1596 = vsel %vm458, %v1594, %v1595
  %v1597 = vunpack.c.l.b16 %v1536
  %v1598 = vunpack.c.l.b16 %v1540
  %v1599 = vunpack.c.l.b16 %v1544
  %v1600 = vunpack.c.l.b16 %v1548
  %v1601 = vunpack.c.l.b16 %v1552
  %v1602 = vunpack.c.l.b16 %v1556
  %v1603 = vunpack.c.l.b16 %v1560
  %v1604 = vunpack.c.l.b16 %v1564
  %v1605 = vunpack.c.l.b16 %v1568
  %v1606 = vunpack.c.l.b16 %v1572
  %v1607 = vunpack.c.l.b16 %v1576
  %v1608 = vunpack.c.l.b16 %v1580
  %v1609 = vunpack.c.l.b16 %v1584
  %v1610 = vunpack.c.l.b16 %v1588
  %v1611 = vunpack.c.l.b16 %v1592
  %v1612 = vunpack.c.l.b16 %v1596
  %v1613 = vpack.c.b16 %v1598, %v1597
  %v1614 = vpack.c.b16 %v1600, %v1599
  %v1615 = vpack.c.b16 %v1602, %v1601
  %v1616 = vpack.c.b16 %v1604, %v1603
  %v1617 = vpack.c.b16 %v1606, %v1605
  %v1618 = vpack.c.b16 %v1608, %v1607
  %v1619 = vpack.c.b16 %v1610, %v1609
  %v1620 = vpack.c.b16 %v1612, %v1611
  %1629 = vst [vmem:[#allocation2 + $0x40] sm:$0xff] %v1613
  %1630 = vst [vmem:[#allocation2 + $0x88] sm:$0xff] %v1614
  %1631 = vst [vmem:[#allocation2 + $0xd0] sm:$0xff] %v1615
  %1632 = vst [vmem:[#allocation2 + $0x118] sm:$0xff] %v1616
  %1633 = vst [vmem:[#allocation2 + $0x160] sm:$0xff] %v1617
  %1634 = vst [vmem:[#allocation2 + $0x1a8] sm:$0xff] %v1618
  %1635 = vst [vmem:[#allocation2 + $0x1f0] sm:$0xff] %v1619
  %1636 = vst [vmem:[#allocation2 + $0x238] sm:$0xff] %v1620
  %v1637 = vld [vmem:[#allocation2] sm:$0xff]
  %v1638 = vld [vmem:[#allocation2 + $0x8] sm:$0xff]
  %v1639 = vld [vmem:[#allocation2 + $0x10] sm:$0xff]
  %v1640 = vld [vmem:[#allocation2 + $0x18] sm:$0xff]
  %v1641 = vld [vmem:[#allocation2 + $0x20] sm:$0xff]
  %v1642 = vld [vmem:[#allocation2 + $0x28] sm:$0xff]
  %v1643 = vld [vmem:[#allocation2 + $0x30] sm:$0xff]
  %v1644 = vld [vmem:[#allocation2 + $0x38] sm:$0xff]
  %v1645 = vld [vmem:[#allocation2 + $0x40] sm:$0xff]
  %v1646 = vld [vmem:[#allocation2 + $0x48] sm:$0xff]
  %v1647 = vld [vmem:[#allocation2 + $0x50] sm:$0xff]
  %v1648 = vld [vmem:[#allocation2 + $0x58] sm:$0xff]
  %v1649 = vld [vmem:[#allocation2 + $0x60] sm:$0xff]
  %v1650 = vld [vmem:[#allocation2 + $0x68] sm:$0xff]
  %v1651 = vld [vmem:[#allocation2 + $0x70] sm:$0xff]
  %v1652 = vld [vmem:[#allocation2 + $0x78] sm:$0xff]
  %v1653 = vld [vmem:[#allocation2 + $0x80] sm:$0xff]
  %v1654 = vld [vmem:[#allocation2 + $0x88] sm:$0xff]
  %v1655 = vld [vmem:[#allocation2 + $0x90] sm:$0xff]
  %v1656 = vld [vmem:[#allocation2 + $0x98] sm:$0xff]
  %v1657 = vld [vmem:[#allocation2 + $0xa0] sm:$0xff]
  %v1658 = vld [vmem:[#allocation2 + $0xa8] sm:$0xff]
  %v1659 = vld [vmem:[#allocation2 + $0xb0] sm:$0xff]
  %v1660 = vld [vmem:[#allocation2 + $0xb8] sm:$0xff]
  %v1661 = vld [vmem:[#allocation2 + $0xc0] sm:$0xff]
  %v1662 = vld [vmem:[#allocation2 + $0xc8] sm:$0xff]
  %v1663 = vld [vmem:[#allocation2 + $0xd0] sm:$0xff]
  %v1664 = vld [vmem:[#allocation2 + $0xd8] sm:$0xff]
  %v1665 = vld [vmem:[#allocation2 + $0xe0] sm:$0xff]
  %v1666 = vld [vmem:[#allocation2 + $0xe8] sm:$0xff]
  %v1667 = vld [vmem:[#allocation2 + $0xf0] sm:$0xff]
  %v1668 = vld [vmem:[#allocation2 + $0xf8] sm:$0xff]
  %v1669 = vld [vmem:[#allocation2 + $0x100] sm:$0xff]
  %v1670 = vld [vmem:[#allocation2 + $0x108] sm:$0xff]
  %v1671 = vld [vmem:[#allocation2 + $0x110] sm:$0xff]
  %v1672 = vld [vmem:[#allocation2 + $0x118] sm:$0xff]
  %v1673 = vld [vmem:[#allocation2 + $0x120] sm:$0xff]
  %v1674 = vld [vmem:[#allocation2 + $0x128] sm:$0xff]
  %v1675 = vld [vmem:[#allocation2 + $0x130] sm:$0xff]
  %v1676 = vld [vmem:[#allocation2 + $0x138] sm:$0xff]
  %v1677 = vld [vmem:[#allocation2 + $0x140] sm:$0xff]
  %v1678 = vld [vmem:[#allocation2 + $0x148] sm:$0xff]
  %v1679 = vld [vmem:[#allocation2 + $0x150] sm:$0xff]
  %v1680 = vld [vmem:[#allocation2 + $0x158] sm:$0xff]
  %v1681 = vld [vmem:[#allocation2 + $0x160] sm:$0xff]
  %v1682 = vld [vmem:[#allocation2 + $0x168] sm:$0xff]
  %v1683 = vld [vmem:[#allocation2 + $0x170] sm:$0xff]
  %v1684 = vld [vmem:[#allocation2 + $0x178] sm:$0xff]
  %v1685 = vld [vmem:[#allocation2 + $0x180] sm:$0xff]
  %v1686 = vld [vmem:[#allocation2 + $0x188] sm:$0xff]
  %v1687 = vld [vmem:[#allocation2 + $0x190] sm:$0xff]
  %v1688 = vld [vmem:[#allocation2 + $0x198] sm:$0xff]
  %v1689 = vld [vmem:[#allocation2 + $0x1a0] sm:$0xff]
  %v1690 = vld [vmem:[#allocation2 + $0x1a8] sm:$0xff]
  %v1691 = vld [vmem:[#allocation2 + $0x1b0] sm:$0xff]
  %v1692 = vld [vmem:[#allocation2 + $0x1b8] sm:$0xff]
  %v1693 = vld [vmem:[#allocation2 + $0x1c0] sm:$0xff]
  %v1694 = vld [vmem:[#allocation2 + $0x1c8] sm:$0xff]
  %v1695 = vld [vmem:[#allocation2 + $0x1d0] sm:$0xff]
  %v1696 = vld [vmem:[#allocation2 + $0x1d8] sm:$0xff]
  %v1697 = vld [vmem:[#allocation2 + $0x1e0] sm:$0xff]
  %v1698 = vld [vmem:[#allocation2 + $0x1e8] sm:$0xff]
  %v1699 = vld [vmem:[#allocation2 + $0x1f0] sm:$0xff]
  %v1700 = vld [vmem:[#allocation2 + $0x1f8] sm:$0xff]
  %v1701 = vld [vmem:[#allocation2 + $0x200] sm:$0xff]
  %v1702 = vld [vmem:[#allocation2 + $0x208] sm:$0xff]
  %v1703 = vld [vmem:[#allocation2 + $0x210] sm:$0xff]
  %v1704 = vld [vmem:[#allocation2 + $0x218] sm:$0xff]
  %v1705 = vld [vmem:[#allocation2 + $0x220] sm:$0xff]
  %v1706 = vld [vmem:[#allocation2 + $0x228] sm:$0xff]
  %v1707 = vld [vmem:[#allocation2 + $0x230] sm:$0xff]
  %v1708 = vld [vmem:[#allocation2 + $0x238] sm:$0xff]
  %v1709 = vld [vmem:[%s1] sm:$0xf]
  %v1710 = vld [vmem:[%s1 + $0x4] sm:$0xf]
  %v1711 = vld [vmem:[%s1 + $0x8] sm:$0xf]
  %v1712 = vld [vmem:[%s1 + $0xc] sm:$0xf]
  %v1713 = vld [vmem:[%s1 + $0x10] sm:$0xf]
  %v1714 = vld [vmem:[%s1 + $0x14] sm:$0xf]
  %v1715 = vld [vmem:[%s1 + $0x18] sm:$0xf]
  %v1716 = vld [vmem:[%s1 + $0x1c] sm:$0xf]
  %v1717 = vld [vmem:[%s1 + $0x20] sm:$0xf]
  %v1718 = vld [vmem:[%s1 + $0x24] sm:$0xf]
  %v1719 = vld [vmem:[%s1 + $0x28] sm:$0xf]
  %v1720 = vld [vmem:[%s1 + $0x2c] sm:$0xf]
  %v1721 = vld [vmem:[%s1 + $0x30] sm:$0xf]
  %v1722 = vld [vmem:[%s1 + $0x34] sm:$0xf]
  %v1723 = vld [vmem:[%s1 + $0x38] sm:$0xf]
  %v1724 = vld [vmem:[%s1 + $0x3c] sm:$0xf]
  %v1725 = vld [vmem:[%s1 + $0x40] sm:$0xf]
  %v1726 = vld [vmem:[%s1 + $0x44] sm:$0xf]
  %v1727 = vld [vmem:[%s1 + $0x48] sm:$0xf]
  %v1728 = vld [vmem:[%s1 + $0x4c] sm:$0xf]
  %v1729 = vld [vmem:[%s1 + $0x50] sm:$0xf]
  %v1730 = vld [vmem:[%s1 + $0x54] sm:$0xf]
  %v1731 = vld [vmem:[%s1 + $0x58] sm:$0xf]
  %v1732 = vld [vmem:[%s1 + $0x5c] sm:$0xf]
  %v1733 = vld [vmem:[%s1 + $0x60] sm:$0xf]
  %v1734 = vld [vmem:[%s1 + $0x64] sm:$0xf]
  %v1735 = vld [vmem:[%s1 + $0x68] sm:$0xf]
  %v1736 = vld [vmem:[%s1 + $0x6c] sm:$0xf]
  %v1737 = vld [vmem:[%s1 + $0x70] sm:$0xf]
  %v1738 = vld [vmem:[%s1 + $0x74] sm:$0xf]
  %v1739 = vld [vmem:[%s1 + $0x78] sm:$0xf]
  %v1740 = vld [vmem:[%s1 + $0x7c] sm:$0xf]
  %v1741 = vld [vmem:[%s1 + $0x80] sm:$0xf]
  %v1742 = vld [vmem:[%s1 + $0x84] sm:$0xf]
  %v1743 = vld [vmem:[%s1 + $0x88] sm:$0xf]
  %v1744 = vld [vmem:[%s1 + $0x8c] sm:$0xf]
  %v1745 = vld [vmem:[%s1 + $0x90] sm:$0xf]
  %v1746 = vld [vmem:[%s1 + $0x94] sm:$0xf]
  %v1747 = vld [vmem:[%s1 + $0x98] sm:$0xf]
  %v1748 = vld [vmem:[%s1 + $0x9c] sm:$0xf]
  %v1749 = vld [vmem:[%s1 + $0xa0] sm:$0xf]
  %v1750 = vld [vmem:[%s1 + $0xa4] sm:$0xf]
  %v1751 = vld [vmem:[%s1 + $0xa8] sm:$0xf]
  %v1752 = vld [vmem:[%s1 + $0xac] sm:$0xf]
  %v1753 = vld [vmem:[%s1 + $0xb0] sm:$0xf]
  %v1754 = vld [vmem:[%s1 + $0xb4] sm:$0xf]
  %v1755 = vld [vmem:[%s1 + $0xb8] sm:$0xf]
  %v1756 = vld [vmem:[%s1 + $0xbc] sm:$0xf]
  %v1757 = vld [vmem:[%s1 + $0xc0] sm:$0xf]
  %v1758 = vld [vmem:[%s1 + $0xc4] sm:$0xf]
  %v1759 = vld [vmem:[%s1 + $0xc8] sm:$0xf]
  %v1760 = vld [vmem:[%s1 + $0xcc] sm:$0xf]
  %v1761 = vld [vmem:[%s1 + $0xd0] sm:$0xf]
  %v1762 = vld [vmem:[%s1 + $0xd4] sm:$0xf]
  %v1763 = vld [vmem:[%s1 + $0xd8] sm:$0xf]
  %v1764 = vld [vmem:[%s1 + $0xdc] sm:$0xf]
  %v1765 = vld [vmem:[%s1 + $0xe0] sm:$0xf]
  %v1766 = vld [vmem:[%s1 + $0xe4] sm:$0xf]
  %v1767 = vld [vmem:[%s1 + $0xe8] sm:$0xf]
  %v1768 = vld [vmem:[%s1 + $0xec] sm:$0xf]
  %v1769 = vld [vmem:[%s1 + $0xf0] sm:$0xf]
  %v1770 = vld [vmem:[%s1 + $0xf4] sm:$0xf]
  %v1771 = vld [vmem:[%s1 + $0xf8] sm:$0xf]
  %v1772 = vld [vmem:[%s1 + $0xfc] sm:$0xf]
  %v1773 = vld [vmem:[%s1 + $0x100] sm:$0xf]
  %v1774 = vld [vmem:[%s1 + $0x104] sm:$0xf]
  %v1775 = vld [vmem:[%s1 + $0x108] sm:$0xf]
  %v1776 = vld [vmem:[%s1 + $0x10c] sm:$0xf]
  %v1777 = vld [vmem:[%s1 + $0x110] sm:$0xf]
  %v1778 = vld [vmem:[%s1 + $0x114] sm:$0xf]
  %v1779 = vld [vmem:[%s1 + $0x118] sm:$0xf]
  %v1780 = vld [vmem:[%s1 + $0x11c] sm:$0xf]
  %v1781 = vld [vmem:[%s1 + $0x120] sm:$0xf]
  %v1782 = vld [vmem:[%s1 + $0x124] sm:$0xf]
  %v1783 = vld [vmem:[%s1 + $0x128] sm:$0xf]
  %v1784 = vld [vmem:[%s1 + $0x12c] sm:$0xf]
  %v1785 = vld [vmem:[%s1 + $0x130] sm:$0xf]
  %v1786 = vld [vmem:[%s1 + $0x134] sm:$0xf]
  %v1787 = vld [vmem:[%s1 + $0x138] sm:$0xf]
  %v1788 = vld [vmem:[%s1 + $0x13c] sm:$0xf]
  %v1789 = vld [vmem:[%s1 + $0x140] sm:$0xf]
  %v1790 = vld [vmem:[%s1 + $0x144] sm:$0xf]
  %v1791 = vld [vmem:[%s1 + $0x148] sm:$0xf]
  %v1792 = vld [vmem:[%s1 + $0x14c] sm:$0xf]
  %v1793 = vld [vmem:[%s1 + $0x150] sm:$0xf]
  %v1794 = vld [vmem:[%s1 + $0x154] sm:$0xf]
  %v1795 = vld [vmem:[%s1 + $0x158] sm:$0xf]
  %v1796 = vld [vmem:[%s1 + $0x15c] sm:$0xf]
  %v1797 = vld [vmem:[%s1 + $0x160] sm:$0xf]
  %v1798 = vld [vmem:[%s1 + $0x164] sm:$0xf]
  %v1799 = vld [vmem:[%s1 + $0x168] sm:$0xf]
  %v1800 = vld [vmem:[%s1 + $0x16c] sm:$0xf]
  %v1801 = vld [vmem:[%s1 + $0x170] sm:$0xf]
  %v1802 = vld [vmem:[%s1 + $0x174] sm:$0xf]
  %v1803 = vld [vmem:[%s1 + $0x178] sm:$0xf]
  %v1804 = vld [vmem:[%s1 + $0x17c] sm:$0xf]
  %v1805 = vld [vmem:[%s1 + $0x180] sm:$0xf]
  %v1806 = vld [vmem:[%s1 + $0x184] sm:$0xf]
  %v1807 = vld [vmem:[%s1 + $0x188] sm:$0xf]
  %v1808 = vld [vmem:[%s1 + $0x18c] sm:$0xf]
  %v1809 = vld [vmem:[%s1 + $0x190] sm:$0xf]
  %v1810 = vld [vmem:[%s1 + $0x194] sm:$0xf]
  %v1811 = vld [vmem:[%s1 + $0x198] sm:$0xf]
  %v1812 = vld [vmem:[%s1 + $0x19c] sm:$0xf]
  %v1813 = vld [vmem:[%s1 + $0x1a0] sm:$0xf]
  %v1814 = vld [vmem:[%s1 + $0x1a4] sm:$0xf]
  %v1815 = vld [vmem:[%s1 + $0x1a8] sm:$0xf]
  %v1816 = vld [vmem:[%s1 + $0x1ac] sm:$0xf]
  %v1817 = vld [vmem:[%s1 + $0x1b0] sm:$0xf]
  %v1818 = vld [vmem:[%s1 + $0x1b4] sm:$0xf]
  %v1819 = vld [vmem:[%s1 + $0x1b8] sm:$0xf]
  %v1820 = vld [vmem:[%s1 + $0x1bc] sm:$0xf]
  %v1821 = vld [vmem:[%s1 + $0x1c0] sm:$0xf]
  %v1822 = vld [vmem:[%s1 + $0x1c4] sm:$0xf]
  %v1823 = vld [vmem:[%s1 + $0x1c8] sm:$0xf]
  %v1824 = vld [vmem:[%s1 + $0x1cc] sm:$0xf]
  %v1825 = vld [vmem:[%s1 + $0x1d0] sm:$0xf]
  %v1826 = vld [vmem:[%s1 + $0x1d4] sm:$0xf]
  %v1827 = vld [vmem:[%s1 + $0x1d8] sm:$0xf]
  %v1828 = vld [vmem:[%s1 + $0x1dc] sm:$0xf]
  %v1829 = vld [vmem:[%s1 + $0x1e0] sm:$0xf]
  %v1830 = vld [vmem:[%s1 + $0x1e4] sm:$0xf]
  %v1831 = vld [vmem:[%s1 + $0x1e8] sm:$0xf]
  %v1832 = vld [vmem:[%s1 + $0x1ec] sm:$0xf]
  %v1833 = vld [vmem:[%s1 + $0x1f0] sm:$0xf]
  %v1834 = vld [vmem:[%s1 + $0x1f4] sm:$0xf]
  %v1835 = vld [vmem:[%s1 + $0x1f8] sm:$0xf]
  %v1836 = vld [vmem:[%s1 + $0x1fc] sm:$0xf]
  %v1837 = vld [vmem:[%s1 + $0x200] sm:$0xf]
  %v1838 = vld [vmem:[%s1 + $0x204] sm:$0xf]
  %v1839 = vld [vmem:[%s1 + $0x208] sm:$0xf]
  %v1840 = vld [vmem:[%s1 + $0x20c] sm:$0xf]
  %v1841 = vld [vmem:[%s1 + $0x210] sm:$0xf]
  %v1842 = vld [vmem:[%s1 + $0x214] sm:$0xf]
  %v1843 = vld [vmem:[%s1 + $0x218] sm:$0xf]
  %v1844 = vld [vmem:[%s1 + $0x21c] sm:$0xf]
  %v1845 = vld [vmem:[%s1 + $0x220] sm:$0xf]
  %v1846 = vld [vmem:[%s1 + $0x224] sm:$0xf]
  %v1847 = vld [vmem:[%s1 + $0x228] sm:$0xf]
  %v1848 = vld [vmem:[%s1 + $0x22c] sm:$0xf]
  %v1849 = vld [vmem:[%s1 + $0x230] sm:$0xf]
  %v1850 = vld [vmem:[%s1 + $0x234] sm:$0xf]
  %v1851 = vld [vmem:[%s1 + $0x238] sm:$0xf]
  %v1852 = vld [vmem:[%s1 + $0x23c] sm:$0xf]
  %v1853 = vld [vmem:[%s2] sm:$0x1]
  %v1855 = vlaneseq
  %v1856 = vshrl.u32 %v1855, 7
  %v1857 = vsub.s32 0, %v1856
  %v1858 = vrot.slane %v1853, %v1857
  %v2004 = vunpack.c.l.b16 %v1709
  %v2005 = vunpack.c.l.b16 %v1710
  %v2006 = vunpack.c.l.b16 %v1711
  %v2007 = vunpack.c.l.b16 %v1712
  %v2008 = vunpack.c.l.b16 %v1713
  %v2009 = vunpack.c.l.b16 %v1714
  %v2010 = vunpack.c.l.b16 %v1715
  %v2011 = vunpack.c.l.b16 %v1716
  %v2012 = vunpack.c.l.b16 %v1717
  %v2013 = vunpack.c.l.b16 %v1718
  %v2014 = vunpack.c.l.b16 %v1719
  %v2015 = vunpack.c.l.b16 %v1720
  %v2016 = vunpack.c.l.b16 %v1721
  %v2017 = vunpack.c.l.b16 %v1722
  %v2018 = vunpack.c.l.b16 %v1723
  %v2019 = vunpack.c.l.b16 %v1724
  %v2020 = vunpack.c.l.b16 %v1725
  %v2021 = vunpack.c.l.b16 %v1726
  %v2022 = vunpack.c.l.b16 %v1727
  %v2023 = vunpack.c.l.b16 %v1728
  %v2024 = vunpack.c.l.b16 %v1729
  %v2025 = vunpack.c.l.b16 %v1730
  %v2026 = vunpack.c.l.b16 %v1731
  %v2027 = vunpack.c.l.b16 %v1732
  %v2028 = vunpack.c.l.b16 %v1733
  %v2029 = vunpack.c.l.b16 %v1734
  %v2030 = vunpack.c.l.b16 %v1735
  %v2031 = vunpack.c.l.b16 %v1736
  %v2032 = vunpack.c.l.b16 %v1737
  %v2033 = vunpack.c.l.b16 %v1738
  %v2034 = vunpack.c.l.b16 %v1739
  %v2035 = vunpack.c.l.b16 %v1740
  %v2036 = vunpack.c.l.b16 %v1741
  %v2037 = vunpack.c.l.b16 %v1742
  %v2038 = vunpack.c.l.b16 %v1743
  %v2039 = vunpack.c.l.b16 %v1744
  %v2040 = vunpack.c.l.b16 %v1745
  %v2041 = vunpack.c.l.b16 %v1746
  %v2042 = vunpack.c.l.b16 %v1747
  %v2043 = vunpack.c.l.b16 %v1748
  %v2044 = vunpack.c.l.b16 %v1749
  %v2045 = vunpack.c.l.b16 %v1750
  %v2046 = vunpack.c.l.b16 %v1751
  %v2047 = vunpack.c.l.b16 %v1752
  %v2048 = vunpack.c.l.b16 %v1753
  %v2049 = vunpack.c.l.b16 %v1754
  %v2050 = vunpack.c.l.b16 %v1755
  %v2051 = vunpack.c.l.b16 %v1756
  %v2052 = vunpack.c.l.b16 %v1757
  %v2053 = vunpack.c.l.b16 %v1758
  %v2054 = vunpack.c.l.b16 %v1759
  %v2055 = vunpack.c.l.b16 %v1760
  %v2056 = vunpack.c.l.b16 %v1761
  %v2057 = vunpack.c.l.b16 %v1762
  %v2058 = vunpack.c.l.b16 %v1763
  %v2059 = vunpack.c.l.b16 %v1764
  %v2060 = vunpack.c.l.b16 %v1765
  %v2061 = vunpack.c.l.b16 %v1766
  %v2062 = vunpack.c.l.b16 %v1767
  %v2063 = vunpack.c.l.b16 %v1768
  %v2064 = vunpack.c.l.b16 %v1769
  %v2065 = vunpack.c.l.b16 %v1770
  %v2066 = vunpack.c.l.b16 %v1771
  %v2067 = vunpack.c.l.b16 %v1772
  %v2068 = vunpack.c.l.b16 %v1773
  %v2069 = vunpack.c.l.b16 %v1774
  %v2070 = vunpack.c.l.b16 %v1775
  %v2071 = vunpack.c.l.b16 %v1776
  %v2072 = vunpack.c.l.b16 %v1777
  %v2073 = vunpack.c.l.b16 %v1778
  %v2074 = vunpack.c.l.b16 %v1779
  %v2075 = vunpack.c.l.b16 %v1780
  %v2076 = vunpack.c.l.b16 %v1781
  %v2077 = vunpack.c.l.b16 %v1782
  %v2078 = vunpack.c.l.b16 %v1783
  %v2079 = vunpack.c.l.b16 %v1784
  %v2080 = vunpack.c.l.b16 %v1785
  %v2081 = vunpack.c.l.b16 %v1786
  %v2082 = vunpack.c.l.b16 %v1787
  %v2083 = vunpack.c.l.b16 %v1788
  %v2084 = vunpack.c.l.b16 %v1789
  %v2085 = vunpack.c.l.b16 %v1790
  %v2086 = vunpack.c.l.b16 %v1791
  %v2087 = vunpack.c.l.b16 %v1792
  %v2088 = vunpack.c.l.b16 %v1793
  %v2089 = vunpack.c.l.b16 %v1794
  %v2090 = vunpack.c.l.b16 %v1795
  %v2091 = vunpack.c.l.b16 %v1796
  %v2092 = vunpack.c.l.b16 %v1797
  %v2093 = vunpack.c.l.b16 %v1798
  %v2094 = vunpack.c.l.b16 %v1799
  %v2095 = vunpack.c.l.b16 %v1800
  %v2096 = vunpack.c.l.b16 %v1801
  %v2097 = vunpack.c.l.b16 %v1802
  %v2098 = vunpack.c.l.b16 %v1803
  %v2099 = vunpack.c.l.b16 %v1804
  %v2100 = vunpack.c.l.b16 %v1805
  %v2101 = vunpack.c.l.b16 %v1806
  %v2102 = vunpack.c.l.b16 %v1807
  %v2103 = vunpack.c.l.b16 %v1808
  %v2104 = vunpack.c.l.b16 %v1809
  %v2105 = vunpack.c.l.b16 %v1810
  %v2106 = vunpack.c.l.b16 %v1811
  %v2107 = vunpack.c.l.b16 %v1812
  %v2108 = vunpack.c.l.b16 %v1813
  %v2109 = vunpack.c.l.b16 %v1814
  %v2110 = vunpack.c.l.b16 %v1815
  %v2111 = vunpack.c.l.b16 %v1816
  %v2112 = vunpack.c.l.b16 %v1817
  %v2113 = vunpack.c.l.b16 %v1818
  %v2114 = vunpack.c.l.b16 %v1819
  %v2115 = vunpack.c.l.b16 %v1820
  %v2116 = vunpack.c.l.b16 %v1821
  %v2117 = vunpack.c.l.b16 %v1822
  %v2118 = vunpack.c.l.b16 %v1823
  %v2119 = vunpack.c.l.b16 %v1824
  %v2120 = vunpack.c.l.b16 %v1825
  %v2121 = vunpack.c.l.b16 %v1826
  %v2122 = vunpack.c.l.b16 %v1827
  %v2123 = vunpack.c.l.b16 %v1828
  %v2124 = vunpack.c.l.b16 %v1829
  %v2125 = vunpack.c.l.b16 %v1830
  %v2126 = vunpack.c.l.b16 %v1831
  %v2127 = vunpack.c.l.b16 %v1832
  %v2128 = vunpack.c.l.b16 %v1833
  %v2129 = vunpack.c.l.b16 %v1834
  %v2130 = vunpack.c.l.b16 %v1835
  %v2131 = vunpack.c.l.b16 %v1836
  %v2132 = vunpack.c.l.b16 %v1837
  %v2133 = vunpack.c.l.b16 %v1838
  %v2134 = vunpack.c.l.b16 %v1839
  %v2135 = vunpack.c.l.b16 %v1840
  %v2136 = vunpack.c.l.b16 %v1841
  %v2137 = vunpack.c.l.b16 %v1842
  %v2138 = vunpack.c.l.b16 %v1843
  %v2139 = vunpack.c.l.b16 %v1844
  %v2140 = vunpack.c.l.b16 %v1845
  %v2141 = vunpack.c.l.b16 %v1846
  %v2142 = vunpack.c.l.b16 %v1847
  %v2143 = vunpack.c.l.b16 %v1848
  %v2144 = vunpack.c.l.b16 %v1849
  %v2145 = vunpack.c.l.b16 %v1850
  %v2146 = vunpack.c.l.b16 %v1851
  %v2147 = vunpack.c.l.b16 %v1852
  %v2148 = vpack.c.b16 %v2005, %v2004
  %v2149 = vpack.c.b16 %v2007, %v2006
  %v2150 = vpack.c.b16 %v2009, %v2008
  %v2151 = vpack.c.b16 %v2011, %v2010
  %v2152 = vpack.c.b16 %v2013, %v2012
  %v2153 = vpack.c.b16 %v2015, %v2014
  %v2154 = vpack.c.b16 %v2017, %v2016
  %v2155 = vpack.c.b16 %v2019, %v2018
  %v2156 = vpack.c.b16 %v2021, %v2020
  %v2157 = vpack.c.b16 %v2023, %v2022
  %v2158 = vpack.c.b16 %v2025, %v2024
  %v2159 = vpack.c.b16 %v2027, %v2026
  %v2160 = vpack.c.b16 %v2029, %v2028
  %v2161 = vpack.c.b16 %v2031, %v2030
  %v2162 = vpack.c.b16 %v2033, %v2032
  %v2163 = vpack.c.b16 %v2035, %v2034
  %v2164 = vpack.c.b16 %v2037, %v2036
  %v2165 = vpack.c.b16 %v2039, %v2038
  %v2166 = vpack.c.b16 %v2041, %v2040
  %v2167 = vpack.c.b16 %v2043, %v2042
  %v2168 = vpack.c.b16 %v2045, %v2044
  %v2169 = vpack.c.b16 %v2047, %v2046
  %v2170 = vpack.c.b16 %v2049, %v2048
  %v2171 = vpack.c.b16 %v2051, %v2050
  %v2172 = vpack.c.b16 %v2053, %v2052
  %v2173 = vpack.c.b16 %v2055, %v2054
  %v2174 = vpack.c.b16 %v2057, %v2056
  %v2175 = vpack.c.b16 %v2059, %v2058
  %v2176 = vpack.c.b16 %v2061, %v2060
  %v2177 = vpack.c.b16 %v2063, %v2062
  %v2178 = vpack.c.b16 %v2065, %v2064
  %v2179 = vpack.c.b16 %v2067, %v2066
  %v2180 = vpack.c.b16 %v2069, %v2068
  %v2181 = vpack.c.b16 %v2071, %v2070
  %v2182 = vpack.c.b16 %v2073, %v2072
  %v2183 = vpack.c.b16 %v2075, %v2074
  %v2184 = vpack.c.b16 %v2077, %v2076
  %v2185 = vpack.c.b16 %v2079, %v2078
  %v2186 = vpack.c.b16 %v2081, %v2080
  %v2187 = vpack.c.b16 %v2083, %v2082
  %v2188 = vpack.c.b16 %v2085, %v2084
  %v2189 = vpack.c.b16 %v2087, %v2086
  %v2190 = vpack.c.b16 %v2089, %v2088
  %v2191 = vpack.c.b16 %v2091, %v2090
  %v2192 = vpack.c.b16 %v2093, %v2092
  %v2193 = vpack.c.b16 %v2095, %v2094
  %v2194 = vpack.c.b16 %v2097, %v2096
  %v2195 = vpack.c.b16 %v2099, %v2098
  %v2196 = vpack.c.b16 %v2101, %v2100
  %v2197 = vpack.c.b16 %v2103, %v2102
  %v2198 = vpack.c.b16 %v2105, %v2104
  %v2199 = vpack.c.b16 %v2107, %v2106
  %v2200 = vpack.c.b16 %v2109, %v2108
  %v2201 = vpack.c.b16 %v2111, %v2110
  %v2202 = vpack.c.b16 %v2113, %v2112
  %v2203 = vpack.c.b16 %v2115, %v2114
  %v2204 = vpack.c.b16 %v2117, %v2116
  %v2205 = vpack.c.b16 %v2119, %v2118
  %v2206 = vpack.c.b16 %v2121, %v2120
  %v2207 = vpack.c.b16 %v2123, %v2122
  %v2208 = vpack.c.b16 %v2125, %v2124
  %v2209 = vpack.c.b16 %v2127, %v2126
  %v2210 = vpack.c.b16 %v2129, %v2128
  %v2211 = vpack.c.b16 %v2131, %v2130
  %v2212 = vpack.c.b16 %v2133, %v2132
  %v2213 = vpack.c.b16 %v2135, %v2134
  %v2214 = vpack.c.b16 %v2137, %v2136
  %v2215 = vpack.c.b16 %v2139, %v2138
  %v2216 = vpack.c.b16 %v2141, %v2140
  %v2217 = vpack.c.b16 %v2143, %v2142
  %v2218 = vpack.c.b16 %v2145, %v2144
  %v2219 = vpack.c.b16 %v2147, %v2146
  %2292 = vmatprep.subr.bf16.mxu0 0
  %2293 = vmatpush1.bf16.msra.mxu0 %v2148
  %2294 = vmatprep.subr.bf16.mxu0 0
  %2295 = vmatpush1.bf16.msra.mxu0 %v2149
  %2296 = vmatprep.subr.bf16.mxu0 0
  %2297 = vmatpush1.bf16.msra.mxu0 %v2150
  %2298 = vmatprep.subr.bf16.mxu0 0
  %2299 = vmatpush1.bf16.msra.mxu0 %v2151
  %2300 = vmatprep.subr.bf16.mxu0 0
  %2301 = vmatpush1.bf16.msra.mxu0 %v2152
  %2302 = vmatprep.subr.bf16.mxu0 0
  %2303 = vmatpush1.bf16.msra.mxu0 %v2153
  %2304 = vmatprep.subr.bf16.mxu0 0
  %2305 = vmatpush1.bf16.msra.mxu0 %v2154
  %2306 = vmatprep.subr.bf16.mxu0 0
  %2307 = vmatpush1.bf16.msra.mxu0 %v2155
  %2308 = vmatprep.subr.bf16.mxu0 0
  %2309 = vmatpush1.bf16.msra.mxu0 %v2156
  %2310 = vmatprep.subr.bf16.mxu0 0
  %2311 = vmatpush1.bf16.msra.mxu0 %v2157
  %2312 = vmatprep.subr.bf16.mxu0 0
  %2313 = vmatpush1.bf16.msra.mxu0 %v2158
  %2314 = vmatprep.subr.bf16.mxu0 0
  %2315 = vmatpush1.bf16.msra.mxu0 %v2159
  %2316 = vmatprep.subr.bf16.mxu0 0
  %2317 = vmatpush1.bf16.msra.mxu0 %v2160
  %2318 = vmatprep.subr.bf16.mxu0 0
  %2319 = vmatpush1.bf16.msra.mxu0 %v2161
  %2320 = vmatprep.subr.bf16.mxu0 0
  %2321 = vmatpush1.bf16.msra.mxu0 %v2162
  %2322 = vmatprep.subr.bf16.mxu0 0
  %2323 = vmatpush1.bf16.msra.mxu0 %v2163
  %2324 = vmatprep.mubr.bf16.mxu0 %v1638
  %2325 = vmatmul.mubr.bf16.gmra.mrb[0].mxu0 %v1637
  %v2326 = vpop.f32.mrb[0].mxu0
  %v2327 = vadd.f32 %v1858, %v2326
  %v2328 = vpop.f32.mrb[0].mxu0
  %v2329 = vpop.f32.mrb[0].mxu0
  %v2330 = vadd.f32 %v1858, %v2329
  %v2331 = vpop.f32.mrb[0].mxu0
  %2332 = vmatprep.mubr.bf16.mxu0 %v1647
  %2333 = vmatmul.mubr.bf16.gmra.mrb[0].mxu0 %v1646
  %v2334 = vpop.f32.mrb[0].mxu0
  %v2335 = vadd.f32 %v1858, %v2334
  %v2336 = vpop.f32.mrb[0].mxu0
  %v2337 = vpop.f32.mrb[0].mxu0
  %v2338 = vadd.f32 %v1858, %v2337
  %v2339 = vpop.f32.mrb[0].mxu0
  %2340 = vmatprep.mubr.bf16.mxu0 %v1656
  %2341 = vmatmul.mubr.bf16.gmra.mrb[0].mxu0 %v1655
  %v2342 = vpop.f32.mrb[0].mxu0
  %v2343 = vadd.f32 %v1858, %v2342
  %v2344 = vpop.f32.mrb[0].mxu0
  %v2345 = vpop.f32.mrb[0].mxu0
  %v2346 = vadd.f32 %v1858, %v2345
  %v2347 = vpop.f32.mrb[0].mxu0
  %2348 = vmatprep.mubr.bf16.mxu0 %v1665
  %2349 = vmatmul.mubr.bf16.gmra.mrb[0].mxu0 %v1664
  %v2350 = vpop.f32.mrb[0].mxu0
  %v2351 = vadd.f32 %v1858, %v2350
  %v2352 = vpop.f32.mrb[0].mxu0
  %v2353 = vpop.f32.mrb[0].mxu0
  %v2354 = vadd.f32 %v1858, %v2353
  %v2355 = vpop.f32.mrb[0].mxu0
  %2356 = vmatprep.mubr.bf16.mxu0 %v1674
  %2357 = vmatmul.mubr.bf16.gmra.mrb[0].mxu0 %v1673
  %v2358 = vpop.f32.mrb[0].mxu0
  %v2359 = vadd.f32 %v1858, %v2358
  %v2360 = vpop.f32.mrb[0].mxu0
  %v2361 = vpop.f32.mrb[0].mxu0
  %v2362 = vadd.f32 %v1858, %v2361
  %v2363 = vpop.f32.mrb[0].mxu0
  %2364 = vmatprep.mubr.bf16.mxu0 %v1683
  %2365 = vmatmul.mubr.bf16.gmra.mrb[0].mxu0 %v1682
  %v2366 = vpop.f32.mrb[0].mxu0
  %v2367 = vadd.f32 %v1858, %v2366
  %v2368 = vpop.f32.mrb[0].mxu0
  %v2369 = vpop.f32.mrb[0].mxu0
  %v2370 = vadd.f32 %v1858, %v2369
  %v2371 = vpop.f32.mrb[0].mxu0
  %2372 = vmatprep.mubr.bf16.mxu0 %v1692
  %2373 = vmatmul.mubr.bf16.gmra.mrb[0].mxu0 %v1691
  %v2374 = vpop.f32.mrb[0].mxu0
  %v2375 = vadd.f32 %v1858, %v2374
  %v2376 = vpop.f32.mrb[0].mxu0
  %v2377 = vpop.f32.mrb[0].mxu0
  %v2378 = vadd.f32 %v1858, %v2377
  %v2379 = vpop.f32.mrb[0].mxu0
  %2380 = vmatprep.mubr.bf16.mxu0 %v1701
  %2381 = vmatmul.mubr.bf16.gmra.mrb[0].mxu0 %v1700
  %v2382 = vpop.f32.mrb[0].mxu0
  %v2383 = vadd.f32 %v1858, %v2382
  %v2384 = vpop.f32.mrb[0].mxu0
  %v2385 = vpop.f32.mrb[0].mxu0
  %v2386 = vadd.f32 %v1858, %v2385
  %v2387 = vpop.f32.mrb[0].mxu0
  %2388 = vdwg.mxu0
  %2389 = vmatprep.subr.bf16.mxu0 0
  %2390 = vmatpush1.bf16.msra.mxu0 %v2164
  %2391 = vmatprep.subr.bf16.mxu0 0
  %2392 = vmatpush1.bf16.msra.mxu0 %v2165
  %2393 = vmatprep.subr.bf16.mxu0 0
  %2394 = vmatpush1.bf16.msra.mxu0 %v2166
  %2395 = vmatprep.subr.bf16.mxu0 0
  %2396 = vmatpush1.bf16.msra.mxu0 %v2167
  %2397 = vmatprep.subr.bf16.mxu0 0
  %2398 = vmatpush1.bf16.msra.mxu0 %v2168
  %2399 = vmatprep.subr.bf16.mxu0 0
  %2400 = vmatpush1.bf16.msra.mxu0 %v2169
  %2401 = vmatprep.subr.bf16.mxu0 0
  %2402 = vmatpush1.bf16.msra.mxu0 %v2170
  %2403 = vmatprep.subr.bf16.mxu0 0
  %2404 = vmatpush1.bf16.msra.mxu0 %v2171
  %2405 = vmatprep.subr.bf16.mxu0 0
  %2406 = vmatpush1.bf16.msra.mxu0 %v2172
  %2407 = vmatprep.subr.bf16.mxu0 0
  %2408 = vmatpush1.bf16.msra.mxu0 %v2173
  %2409 = vmatprep.subr.bf16.mxu0 0
  %2410 = vmatpush1.bf16.msra.mxu0 %v2174
  %2411 = vmatprep.subr.bf16.mxu0 0
  %2412 = vmatpush1.bf16.msra.mxu0 %v2175
  %2413 = vmatprep.subr.bf16.mxu0 0
  %2414 = vmatpush1.bf16.msra.mxu0 %v2176
  %2415 = vmatprep.subr.bf16.mxu0 0
  %2416 = vmatpush1.bf16.msra.mxu0 %v2177
  %2417 = vmatprep.subr.bf16.mxu0 0
  %2418 = vmatpush1.bf16.msra.mxu0 %v2178
  %2419 = vmatprep.subr.bf16.mxu0 0
  %2420 = vmatpush1.bf16.msra.mxu0 %v2179
  %2421 = vmatprep.mubr.bf16.mxu0 %v1640
  %2422 = vmatmul.mubr.bf16.gmra.mrb[0].mxu0 %v1639
  %v2423 = vpop.f32.mrb[0].mxu0
  %v2424 = vadd.f32 %v2327, %v2423
  %v2425 = vpop.f32.mrb[0].mxu0
  %v2426 = vpop.f32.mrb[0].mxu0
  %v2427 = vadd.f32 %v2330, %v2426
  %v2428 = vpop.f32.mrb[0].mxu0
  %2429 = vmatprep.mubr.bf16.mxu0 %v1649
  %2430 = vmatmul.mubr.bf16.gmra.mrb[0].mxu0 %v1648
  %v2431 = vpop.f32.mrb[0].mxu0
  %v2432 = vadd.f32 %v2335, %v2431
  %v2433 = vpop.f32.mrb[0].mxu0
  %v2434 = vpop.f32.mrb[0].mxu0
  %v2435 = vadd.f32 %v2338, %v2434
  %v2436 = vpop.f32.mrb[0].mxu0
  %2437 = vmatprep.mubr.bf16.mxu0 %v1658
  %2438 = vmatmul.mubr.bf16.gmra.mrb[0].mxu0 %v1657
  %v2439 = vpop.f32.mrb[0].mxu0
  %v2440 = vadd.f32 %v2343, %v2439
  %v2441 = vpop.f32.mrb[0].mxu0
  %v2442 = vpop.f32.mrb[0].mxu0
  %v2443 = vadd.f32 %v2346, %v2442
  %v2444 = vpop.f32.mrb[0].mxu0
  %2445 = vmatprep.mubr.bf16.mxu0 %v1667
  %2446 = vmatmul.mubr.bf16.gmra.mrb[0].mxu0 %v1666
  %v2447 = vpop.f32.mrb[0].mxu0
  %v2448 = vadd.f32 %v2351, %v2447
  %v2449 = vpop.f32.mrb[0].mxu0
  %v2450 = vpop.f32.mrb[0].mxu0
  %v2451 = vadd.f32 %v2354, %v2450
  %v2452 = vpop.f32.mrb[0].mxu0
  %2453 = vmatprep.mubr.bf16.mxu0 %v1676
  %2454 = vmatmul.mubr.bf16.gmra.mrb[0].mxu0 %v1675
  %v2455 = vpop.f32.mrb[0].mxu0
  %v2456 = vadd.f32 %v2359, %v2455
  %v2457 = vpop.f32.mrb[0].mxu0
  %v2458 = vpop.f32.mrb[0].mxu0
  %v2459 = vadd.f32 %v2362, %v2458
  %v2460 = vpop.f32.mrb[0].mxu0
  %2461 = vmatprep.mubr.bf16.mxu0 %v1685
  %2462 = vmatmul.mubr.bf16.gmra.mrb[0].mxu0 %v1684
  %v2463 = vpop.f32.mrb[0].mxu0
  %v2464 = vadd.f32 %v2367, %v2463
  %v2465 = vpop.f32.mrb[0].mxu0
  %v2466 = vpop.f32.mrb[0].mxu0
  %v2467 = vadd.f32 %v2370, %v2466
  %v2468 = vpop.f32.mrb[0].mxu0
  %2469 = vmatprep.mubr.bf16.mxu0 %v1694
  %2470 = vmatmul.mubr.bf16.gmra.mrb[0].mxu0 %v1693
  %v2471 = vpop.f32.mrb[0].mxu0
  %v2472 = vadd.f32 %v2375, %v2471
  %v2473 = vpop.f32.mrb[0].mxu0
  %v2474 = vpop.f32.mrb[0].mxu0
  %v2475 = vadd.f32 %v2378, %v2474
  %v2476 = vpop.f32.mrb[0].mxu0
  %2477 = vmatprep.mubr.bf16.mxu0 %v1703
  %2478 = vmatmul.mubr.bf16.gmra.mrb[0].mxu0 %v1702
  %v2479 = vpop.f32.mrb[0].mxu0
  %v2480 = vadd.f32 %v2383, %v2479
  %v2481 = vpop.f32.mrb[0].mxu0
  %v2482 = vpop.f32.mrb[0].mxu0
  %v2483 = vadd.f32 %v2386, %v2482
  %v2484 = vpop.f32.mrb[0].mxu0
  %2485 = vdwg.mxu0
  %2486 = vmatprep.subr.bf16.mxu0 0
  %2487 = vmatpush1.bf16.msra.mxu0 %v2180
  %2488 = vmatprep.subr.bf16.mxu0 0
  %2489 = vmatpush1.bf16.msra.mxu0 %v2181
  %2490 = vmatprep.subr.bf16.mxu0 0
  %2491 = vmatpush1.bf16.msra.mxu0 %v2182
  %2492 = vmatprep.subr.bf16.mxu0 0
  %2493 = vmatpush1.bf16.msra.mxu0 %v2183
  %2494 = vmatprep.subr.bf16.mxu0 0
  %2495 = vmatpush1.bf16.msra.mxu0 %v2184
  %2496 = vmatprep.subr.bf16.mxu0 0
  %2497 = vmatpush1.bf16.msra.mxu0 %v2185
  %2498 = vmatprep.subr.bf16.mxu0 0
  %2499 = vmatpush1.bf16.msra.mxu0 %v2186
  %2500 = vmatprep.subr.bf16.mxu0 0
  %2501 = vmatpush1.bf16.msra.mxu0 %v2187
  %2502 = vmatprep.subr.bf16.mxu0 0
  %2503 = vmatpush1.bf16.msra.mxu0 %v2188
  %2504 = vmatprep.subr.bf16.mxu0 0
  %2505 = vmatpush1.bf16.msra.mxu0 %v2189
  %2506 = vmatprep.subr.bf16.mxu0 0
  %2507 = vmatpush1.bf16.msra.mxu0 %v2190
  %2508 = vmatprep.subr.bf16.mxu0 0
  %2509 = vmatpush1.bf16.msra.mxu0 %v2191
  %2510 = vmatprep.subr.bf16.mxu0 0
  %2511 = vmatpush1.bf16.msra.mxu0 %v2192
  %2512 = vmatprep.subr.bf16.mxu0 0
  %2513 = vmatpush1.bf16.msra.mxu0 %v2193
  %2514 = vmatprep.subr.bf16.mxu0 0
  %2515 = vmatpush1.bf16.msra.mxu0 %v2194
  %2516 = vmatprep.subr.bf16.mxu0 0
  %2517 = vmatpush1.bf16.msra.mxu0 %v2195
  %2518 = vmatprep.mubr.bf16.mxu0 %v1642
  %2519 = vmatmul.mubr.bf16.gmra.mrb[0].mxu0 %v1641
  %v2520 = vpop.f32.mrb[0].mxu0
  %v2521 = vadd.f32 %v2424, %v2520
  %v2522 = vpop.f32.mrb[0].mxu0
  %v2523 = vpop.f32.mrb[0].mxu0
  %v2524 = vadd.f32 %v2427, %v2523
  %v2525 = vpop.f32.mrb[0].mxu0
  %2526 = vmatprep.mubr.bf16.mxu0 %v1651
  %2527 = vmatmul.mubr.bf16.gmra.mrb[0].mxu0 %v1650
  %v2528 = vpop.f32.mrb[0].mxu0
  %v2529 = vadd.f32 %v2432, %v2528
  %v2530 = vpop.f32.mrb[0].mxu0
  %v2531 = vpop.f32.mrb[0].mxu0
  %v2532 = vadd.f32 %v2435, %v2531
  %v2533 = vpop.f32.mrb[0].mxu0
  %2534 = vmatprep.mubr.bf16.mxu0 %v1660
  %2535 = vmatmul.mubr.bf16.gmra.mrb[0].mxu0 %v1659
  %v2536 = vpop.f32.mrb[0].mxu0
  %v2537 = vadd.f32 %v2440, %v2536
  %v2538 = vpop.f32.mrb[0].mxu0
  %v2539 = vpop.f32.mrb[0].mxu0
  %v2540 = vadd.f32 %v2443, %v2539
  %v2541 = vpop.f32.mrb[0].mxu0
  %2542 = vmatprep.mubr.bf16.mxu0 %v1669
  %2543 = vmatmul.mubr.bf16.gmra.mrb[0].mxu0 %v1668
  %v2544 = vpop.f32.mrb[0].mxu0
  %v2545 = vadd.f32 %v2448, %v2544
  %v2546 = vpop.f32.mrb[0].mxu0
  %v2547 = vpop.f32.mrb[0].mxu0
  %v2548 = vadd.f32 %v2451, %v2547
  %v2549 = vpop.f32.mrb[0].mxu0
  %2550 = vmatprep.mubr.bf16.mxu0 %v1678
  %2551 = vmatmul.mubr.bf16.gmra.mrb[0].mxu0 %v1677
  %v2552 = vpop.f32.mrb[0].mxu0
  %v2553 = vadd.f32 %v2456, %v2552
  %v2554 = vpop.f32.mrb[0].mxu0
  %v2555 = vpop.f32.mrb[0].mxu0
  %v2556 = vadd.f32 %v2459, %v2555
  %v2557 = vpop.f32.mrb[0].mxu0
  %2558 = vmatprep.mubr.bf16.mxu0 %v1687
  %2559 = vmatmul.mubr.bf16.gmra.mrb[0].mxu0 %v1686
  %v2560 = vpop.f32.mrb[0].mxu0
  %v2561 = vadd.f32 %v2464, %v2560
  %v2562 = vpop.f32.mrb[0].mxu0
  %v2563 = vpop.f32.mrb[0].mxu0
  %v2564 = vadd.f32 %v2467, %v2563
  %v2565 = vpop.f32.mrb[0].mxu0
  %2566 = vmatprep.mubr.bf16.mxu0 %v1696
  %2567 = vmatmul.mubr.bf16.gmra.mrb[0].mxu0 %v1695
  %v2568 = vpop.f32.mrb[0].mxu0
  %v2569 = vadd.f32 %v2472, %v2568
  %v2570 = vpop.f32.mrb[0].mxu0
  %v2571 = vpop.f32.mrb[0].mxu0
  %v2572 = vadd.f32 %v2475, %v2571
  %v2573 = vpop.f32.mrb[0].mxu0
  %2574 = vmatprep.mubr.bf16.mxu0 %v1705
  %2575 = vmatmul.mubr.bf16.gmra.mrb[0].mxu0 %v1704
  %v2576 = vpop.f32.mrb[0].mxu0
  %v2577 = vadd.f32 %v2480, %v2576
  %v2578 = vpop.f32.mrb[0].mxu0
  %v2579 = vpop.f32.mrb[0].mxu0
  %v2580 = vadd.f32 %v2483, %v2579
  %v2581 = vpop.f32.mrb[0].mxu0
  %2582 = vdwg.mxu0
  %2583 = vmatprep.subr.bf16.mxu0 0
  %2584 = vmatpush1.bf16.msra.mxu0 %v2196
  %2585 = vmatprep.subr.bf16.mxu0 0
  %2586 = vmatpush1.bf16.msra.mxu0 %v2197
  %2587 = vmatprep.subr.bf16.mxu0 0
  %2588 = vmatpush1.bf16.msra.mxu0 %v2198
  %2589 = vmatprep.subr.bf16.mxu0 0
  %2590 = vmatpush1.bf16.msra.mxu0 %v2199
  %2591 = vmatprep.subr.bf16.mxu0 0
  %2592 = vmatpush1.bf16.msra.mxu0 %v2200
  %2593 = vmatprep.subr.bf16.mxu0 0
  %2594 = vmatpush1.bf16.msra.mxu0 %v2201
  %2595 = vmatprep.subr.bf16.mxu0 0
  %2596 = vmatpush1.bf16.msra.mxu0 %v2202
  %2597 = vmatprep.subr.bf16.mxu0 0
  %2598 = vmatpush1.bf16.msra.mxu0 %v2203
  %2599 = vmatprep.subr.bf16.mxu0 0
  %2600 = vmatpush1.bf16.msra.mxu0 %v2204
  %2601 = vmatprep.subr.bf16.mxu0 0
  %2602 = vmatpush1.bf16.msra.mxu0 %v2205
  %2603 = vmatprep.subr.bf16.mxu0 0
  %2604 = vmatpush1.bf16.msra.mxu0 %v2206
  %2605 = vmatprep.subr.bf16.mxu0 0
  %2606 = vmatpush1.bf16.msra.mxu0 %v2207
  %2607 = vmatprep.subr.bf16.mxu0 0
  %2608 = vmatpush1.bf16.msra.mxu0 %v2208
  %2609 = vmatprep.subr.bf16.mxu0 0
  %2610 = vmatpush1.bf16.msra.mxu0 %v2209
  %2611 = vmatprep.subr.bf16.mxu0 0
  %2612 = vmatpush1.bf16.msra.mxu0 %v2210
  %2613 = vmatprep.subr.bf16.mxu0 0
  %2614 = vmatpush1.bf16.msra.mxu0 %v2211
  %2615 = vmatprep.mubr.bf16.mxu0 %v1644
  %2616 = vmatmul.mubr.bf16.gmra.mrb[0].mxu0 %v1643
  %v2617 = vpop.f32.mrb[0].mxu0
  %v2618 = vadd.f32 %v2521, %v2617
  %v2619 = vpop.f32.mrb[0].mxu0
  %v2620 = vpop.f32.mrb[0].mxu0
  %v2621 = vadd.f32 %v2524, %v2620
  %v2622 = vpop.f32.mrb[0].mxu0
  %2623 = vmatprep.mubr.bf16.mxu0 %v1653
  %2624 = vmatmul.mubr.bf16.gmra.mrb[0].mxu0 %v1652
  %v2625 = vpop.f32.mrb[0].mxu0
  %v2626 = vadd.f32 %v2529, %v2625
  %v2627 = vpop.f32.mrb[0].mxu0
  %v2628 = vpop.f32.mrb[0].mxu0
  %v2629 = vadd.f32 %v2532, %v2628
  %v2630 = vpop.f32.mrb[0].mxu0
  %2631 = vmatprep.mubr.bf16.mxu0 %v1662
  %2632 = vmatmul.mubr.bf16.gmra.mrb[0].mxu0 %v1661
  %v2633 = vpop.f32.mrb[0].mxu0
  %v2634 = vadd.f32 %v2537, %v2633
  %v2635 = vpop.f32.mrb[0].mxu0
  %v2636 = vpop.f32.mrb[0].mxu0
  %v2637 = vadd.f32 %v2540, %v2636
  %v2638 = vpop.f32.mrb[0].mxu0
  %2639 = vmatprep.mubr.bf16.mxu0 %v1671
  %2640 = vmatmul.mubr.bf16.gmra.mrb[0].mxu0 %v1670
  %v2641 = vpop.f32.mrb[0].mxu0
  %v2642 = vadd.f32 %v2545, %v2641
  %v2643 = vpop.f32.mrb[0].mxu0
  %v2644 = vpop.f32.mrb[0].mxu0
  %v2645 = vadd.f32 %v2548, %v2644
  %v2646 = vpop.f32.mrb[0].mxu0
  %2647 = vmatprep.mubr.bf16.mxu0 %v1680
  %2648 = vmatmul.mubr.bf16.gmra.mrb[0].mxu0 %v1679
  %v2649 = vpop.f32.mrb[0].mxu0
  %v2650 = vadd.f32 %v2553, %v2649
  %v2651 = vpop.f32.mrb[0].mxu0
  %v2652 = vpop.f32.mrb[0].mxu0
  %v2653 = vadd.f32 %v2556, %v2652
  %v2654 = vpop.f32.mrb[0].mxu0
  %2655 = vmatprep.mubr.bf16.mxu0 %v1689
  %2656 = vmatmul.mubr.bf16.gmra.mrb[0].mxu0 %v1688
  %v2657 = vpop.f32.mrb[0].mxu0
  %v2658 = vadd.f32 %v2561, %v2657
  %v2659 = vpop.f32.mrb[0].mxu0
  %v2660 = vpop.f32.mrb[0].mxu0
  %v2661 = vadd.f32 %v2564, %v2660
  %v2662 = vpop.f32.mrb[0].mxu0
  %2663 = vmatprep.mubr.bf16.mxu0 %v1698
  %2664 = vmatmul.mubr.bf16.gmra.mrb[0].mxu0 %v1697
  %v2665 = vpop.f32.mrb[0].mxu0
  %v2666 = vadd.f32 %v2569, %v2665
  %v2667 = vpop.f32.mrb[0].mxu0
  %v2668 = vpop.f32.mrb[0].mxu0
  %v2669 = vadd.f32 %v2572, %v2668
  %v2670 = vpop.f32.mrb[0].mxu0
  %2671 = vmatprep.mubr.bf16.mxu0 %v1707
  %2672 = vmatmul.mubr.bf16.gmra.mrb[0].mxu0 %v1706
  %v2673 = vpop.f32.mrb[0].mxu0
  %v2674 = vadd.f32 %v2577, %v2673
  %v2675 = vpop.f32.mrb[0].mxu0
  %v2676 = vpop.f32.mrb[0].mxu0
  %v2677 = vadd.f32 %v2580, %v2676
  %v2678 = vpop.f32.mrb[0].mxu0
  %2679 = vdwg.mxu0
  %2680 = vmatprep.subr.bf16.mxu0 0
  %2681 = vmatpush1.bf16.msra.mxu0 %v2212
  %2682 = vmatprep.subr.bf16.mxu0 0
  %2683 = vmatpush1.bf16.msra.mxu0 %v2213
  %2684 = vmatprep.subr.bf16.mxu0 0
  %2685 = vmatpush1.bf16.msra.mxu0 %v2214
  %2686 = vmatprep.subr.bf16.mxu0 0
  %2687 = vmatpush1.bf16.msra.mxu0 %v2215
  %2688 = vmatprep.subr.bf16.mxu0 0
  %2689 = vmatpush1.bf16.msra.mxu0 %v2216
  %2690 = vmatprep.subr.bf16.mxu0 0
  %2691 = vmatpush1.bf16.msra.mxu0 %v2217
  %2692 = vmatprep.subr.bf16.mxu0 0
  %2693 = vmatpush1.bf16.msra.mxu0 %v2218
  %2694 = vmatprep.subr.bf16.mxu0 0
  %2695 = vmatpush1.bf16.msra.mxu0 %v2219
  %2696 = vmatprep.subr.bf16.mxu0 0
  %2697 = vmatpush1.bf16.msra.mxu0 0
  %2698 = vmatprep.subr.bf16.mxu0 0
  %2699 = vmatpush1.bf16.msra.mxu0 0
  %2700 = vmatprep.subr.bf16.mxu0 0
  %2701 = vmatpush1.bf16.msra.mxu0 0
  %2702 = vmatprep.subr.bf16.mxu0 0
  %2703 = vmatpush1.bf16.msra.mxu0 0
  %2704 = vmatprep.subr.bf16.mxu0 0
  %2705 = vmatpush1.bf16.msra.mxu0 0
  %2706 = vmatprep.subr.bf16.mxu0 0
  %2707 = vmatpush1.bf16.msra.mxu0 0
  %2708 = vmatprep.subr.bf16.mxu0 0
  %2709 = vmatpush1.bf16.msra.mxu0 0
  %2710 = vmatprep.subr.bf16.mxu0 0
  %2711 = vmatpush1.bf16.msra.mxu0 0
  %2712 = vmatprep.mubr.bf16.mxu0 0
  %2713 = vmatmul.mubr.bf16.gmra.mrb[0].mxu0 %v1645
  %v2714 = vpop.f32.mrb[0].mxu0
  %v2715 = vadd.f32 %v2618, %v2714
  %v2716 = vpop.f32.mrb[0].mxu0
  %v2717 = vpop.f32.mrb[0].mxu0
  %v2718 = vadd.f32 %v2621, %v2717
  %v2719 = vpop.f32.mrb[0].mxu0
  %2720 = vmatprep.mubr.bf16.mxu0 0
  %2721 = vmatmul.mubr.bf16.gmra.mrb[0].mxu0 %v1654
  %v2722 = vpop.f32.mrb[0].mxu0
  %v2723 = vadd.f32 %v2626, %v2722
  %v2724 = vpop.f32.mrb[0].mxu0
  %v2725 = vpop.f32.mrb[0].mxu0
  %v2726 = vadd.f32 %v2629, %v2725
  %v2727 = vpop.f32.mrb[0].mxu0
  %2728 = vmatprep.mubr.bf16.mxu0 0
  %2729 = vmatmul.mubr.bf16.gmra.mrb[0].mxu0 %v1663
  %v2730 = vpop.f32.mrb[0].mxu0
  %v2731 = vadd.f32 %v2634, %v2730
  %v2732 = vpop.f32.mrb[0].mxu0
  %v2733 = vpop.f32.mrb[0].mxu0
  %v2734 = vadd.f32 %v2637, %v2733
  %v2735 = vpop.f32.mrb[0].mxu0
  %2736 = vmatprep.mubr.bf16.mxu0 0
  %2737 = vmatmul.mubr.bf16.gmra.mrb[0].mxu0 %v1672
  %v2738 = vpop.f32.mrb[0].mxu0
  %v2739 = vadd.f32 %v2642, %v2738
  %v2740 = vpop.f32.mrb[0].mxu0
  %v2741 = vpop.f32.mrb[0].mxu0
  %v2742 = vadd.f32 %v2645, %v2741
  %v2743 = vpop.f32.mrb[0].mxu0
  %2744 = vmatprep.mubr.bf16.mxu0 0
  %2745 = vmatmul.mubr.bf16.gmra.mrb[0].mxu0 %v1681
  %v2746 = vpop.f32.mrb[0].mxu0
  %v2747 = vadd.f32 %v2650, %v2746
  %v2748 = vpop.f32.mrb[0].mxu0
  %v2749 = vpop.f32.mrb[0].mxu0
  %v2750 = vadd.f32 %v2653, %v2749
  %v2751 = vpop.f32.mrb[0].mxu0
  %2752 = vmatprep.mubr.bf16.mxu0 0
  %2753 = vmatmul.mubr.bf16.gmra.mrb[0].mxu0 %v1690
  %v2754 = vpop.f32.mrb[0].mxu0
  %v2755 = vadd.f32 %v2658, %v2754
  %v2756 = vpop.f32.mrb[0].mxu0
  %v2757 = vpop.f32.mrb[0].mxu0
  %v2758 = vadd.f32 %v2661, %v2757
  %v2759 = vpop.f32.mrb[0].mxu0
  %2760 = vmatprep.mubr.bf16.mxu0 0
  %2761 = vmatmul.mubr.bf16.gmra.mrb[0].mxu0 %v1699
  %v2762 = vpop.f32.mrb[0].mxu0
  %v2763 = vadd.f32 %v2666, %v2762
  %v2764 = vpop.f32.mrb[0].mxu0
  %v2765 = vpop.f32.mrb[0].mxu0
  %v2766 = vadd.f32 %v2669, %v2765
  %v2767 = vpop.f32.mrb[0].mxu0
  %2768 = vmatprep.mubr.bf16.mxu0 0
  %2769 = vmatmul.mubr.bf16.gmra.mrb[0].mxu0 %v1708
  %v2770 = vpop.f32.mrb[0].mxu0
  %v2771 = vadd.f32 %v2674, %v2770
  %v2772 = vpop.f32.mrb[0].mxu0
  %v2773 = vpop.f32.mrb[0].mxu0
  %v2774 = vadd.f32 %v2677, %v2773
  %v2775 = vpop.f32.mrb[0].mxu0
  %2776 = vdwg.mxu0
  %v2777 = vmax.f32 %v2715, 0.0
  %v2778 = vmax.f32 %v2718, 0.0
  %v2779 = vmax.f32 %v2723, 0.0
  %v2780 = vmax.f32 %v2726, 0.0
  %v2781 = vmax.f32 %v2731, 0.0
  %v2782 = vmax.f32 %v2734, 0.0
  %v2783 = vmax.f32 %v2739, 0.0
  %v2784 = vmax.f32 %v2742, 0.0
  %v2785 = vmax.f32 %v2747, 0.0
  %v2786 = vmax.f32 %v2750, 0.0
  %v2787 = vmax.f32 %v2755, 0.0
  %v2788 = vmax.f32 %v2758, 0.0
  %v2789 = vmax.f32 %v2763, 0.0
  %v2790 = vmax.f32 %v2766, 0.0
  %v2791 = vmax.f32 %v2771, 0.0
  %v2792 = vmax.f32 %v2774, 0.0
  %v2793 = vpack.c.bf16 %v2778, %v2777
  %v2794 = vpack.c.bf16 %v2780, %v2779
  %v2795 = vpack.c.bf16 %v2782, %v2781
  %v2796 = vpack.c.bf16 %v2784, %v2783
  %v2797 = vpack.c.bf16 %v2786, %v2785
  %v2798 = vpack.c.bf16 %v2788, %v2787
  %v2799 = vpack.c.bf16 %v2790, %v2789
  %v2800 = vpack.c.bf16 %v2792, %v2791
  %2801 = vst [vmem:[#allocation3] sm:$0xff] 0
  %2802 = vst [vmem:[#allocation3 + $0x50] sm:$0xff] 0
  %s2803 = scalar_lea.vmem [#allocation3], 72
  %2804 = vst [vmem:[%s2803] sm:$0xff] 0
  %2805 = vst [vmem:[%s2803 + $0x50] sm:$0xff] 0
  %s2806 = scalar_lea.vmem [#allocation3], 8
  %vm2807 = vcmask 1040384
  %vm2808 = vsmask.f32 256
  %vm2809 = vmand %vm2807, %vm2808
  %v2810 = vld [vmem:[%s2806] sm:$0x1]
  %v2811 = vsel %vm2809, 0, %v2810
  %2812 = vst [vmem:[%s2806] sm:$0x1] %v2811
  %v2813 = vld [vmem:[%s2806 + $0x8] sm:$0x1]
  %v2814 = vsel %vm2809, 0, %v2813
  %2815 = vst [vmem:[%s2806 + $0x8] sm:$0x1] %v2814
  %v2816 = vld [vmem:[%s2806 + $0x10] sm:$0x1]
  %v2817 = vsel %vm2809, 0, %v2816
  %2818 = vst [vmem:[%s2806 + $0x10] sm:$0x1] %v2817
  %v2819 = vld [vmem:[%s2806 + $0x18] sm:$0x1]
  %v2820 = vsel %vm2809, 0, %v2819
  %2821 = vst [vmem:[%s2806 + $0x18] sm:$0x1] %v2820
  %v2822 = vld [vmem:[%s2806 + $0x20] sm:$0x1]
  %v2823 = vsel %vm2809, 0, %v2822
  %2824 = vst [vmem:[%s2806 + $0x20] sm:$0x1] %v2823
  %v2825 = vld [vmem:[%s2806 + $0x28] sm:$0x1]
  %v2826 = vsel %vm2809, 0, %v2825
  %2827 = vst [vmem:[%s2806 + $0x28] sm:$0x1] %v2826
  %v2828 = vld [vmem:[%s2806 + $0x30] sm:$0x1]
  %v2829 = vsel %vm2809, 0, %v2828
  %2830 = vst [vmem:[%s2806 + $0x30] sm:$0x1] %v2829
  %v2831 = vld [vmem:[%s2806 + $0x38] sm:$0x1]
  %v2832 = vsel %vm2809, 0, %v2831
  %2833 = vst [vmem:[%s2806 + $0x38] sm:$0x1] %v2832
  %v2834 = vld [vmem:[%s2806 + $0x50] sm:$0x1]
  %v2835 = vsel %vm2809, 0, %v2834
  %2836 = vst [vmem:[%s2806 + $0x50] sm:$0x1] %v2835
  %v2837 = vld [vmem:[%s2806 + $0x58] sm:$0x1]
  %v2838 = vsel %vm2809, 0, %v2837
  %2839 = vst [vmem:[%s2806 + $0x58] sm:$0x1] %v2838
  %v2840 = vld [vmem:[%s2806 + $0x60] sm:$0x1]
  %v2841 = vsel %vm2809, 0, %v2840
  %2842 = vst [vmem:[%s2806 + $0x60] sm:$0x1] %v2841
  %v2843 = vld [vmem:[%s2806 + $0x68] sm:$0x1]
  %v2844 = vsel %vm2809, 0, %v2843
  %2845 = vst [vmem:[%s2806 + $0x68] sm:$0x1] %v2844
  %v2846 = vld [vmem:[%s2806 + $0x70] sm:$0x1]
  %v2847 = vsel %vm2809, 0, %v2846
  %2848 = vst [vmem:[%s2806 + $0x70] sm:$0x1] %v2847
  %v2849 = vld [vmem:[%s2806 + $0x78] sm:$0x1]
  %v2850 = vsel %vm2809, 0, %v2849
  %2851 = vst [vmem:[%s2806 + $0x78] sm:$0x1] %v2850
  %v2852 = vld [vmem:[%s2806 + $0x80] sm:$0x1]
  %v2853 = vsel %vm2809, 0, %v2852
  %2854 = vst [vmem:[%s2806 + $0x80] sm:$0x1] %v2853
  %v2855 = vld [vmem:[%s2806 + $0x88] sm:$0x1]
  %v2856 = vsel %vm2809, 0, %v2855
  %2857 = vst [vmem:[%s2806 + $0x88] sm:$0x1] %v2856
  %vm2858 = vcmask 1044484
  %vm2859 = vsmask.f32 7954
  %vm2860 = vmand %vm2858, %vm2859
  %v2861 = vld [vmem:[%s2806] sm:$0x10]
  %v2862 = vsel %vm2860, 0, %v2861
  %2863 = vst [vmem:[%s2806] sm:$0x10] %v2862
  %v2864 = vld [vmem:[%s2806 + $0x8] sm:$0x10]
  %v2865 = vsel %vm2860, 0, %v2864
  %2866 = vst [vmem:[%s2806 + $0x8] sm:$0x10] %v2865
  %v2867 = vld [vmem:[%s2806 + $0x10] sm:$0x10]
  %v2868 = vsel %vm2860, 0, %v2867
  %2869 = vst [vmem:[%s2806 + $0x10] sm:$0x10] %v2868
  %v2870 = vld [vmem:[%s2806 + $0x18] sm:$0x10]
  %v2871 = vsel %vm2860, 0, %v2870
  %2872 = vst [vmem:[%s2806 + $0x18] sm:$0x10] %v2871
  %v2873 = vld [vmem:[%s2806 + $0x20] sm:$0x10]
  %v2874 = vsel %vm2860, 0, %v2873
  %2875 = vst [vmem:[%s2806 + $0x20] sm:$0x10] %v2874
  %v2876 = vld [vmem:[%s2806 + $0x28] sm:$0x10]
  %v2877 = vsel %vm2860, 0, %v2876
  %2878 = vst [vmem:[%s2806 + $0x28] sm:$0x10] %v2877
  %v2879 = vld [vmem:[%s2806 + $0x30] sm:$0x10]
  %v2880 = vsel %vm2860, 0, %v2879
  %2881 = vst [vmem:[%s2806 + $0x30] sm:$0x10] %v2880
  %v2882 = vld [vmem:[%s2806 + $0x38] sm:$0x10]
  %v2883 = vsel %vm2860, 0, %v2882
  %2884 = vst [vmem:[%s2806 + $0x38] sm:$0x10] %v2883
  %v2885 = vld [vmem:[%s2806 + $0x50] sm:$0x10]
  %v2886 = vsel %vm2860, 0, %v2885
  %2887 = vst [vmem:[%s2806 + $0x50] sm:$0x10] %v2886
  %v2888 = vld [vmem:[%s2806 + $0x58] sm:$0x10]
  %v2889 = vsel %vm2860, 0, %v2888
  %2890 = vst [vmem:[%s2806 + $0x58] sm:$0x10] %v2889
  %v2891 = vld [vmem:[%s2806 + $0x60] sm:$0x10]
  %v2892 = vsel %vm2860, 0, %v2891
  %2893 = vst [vmem:[%s2806 + $0x60] sm:$0x10] %v2892
  %v2894 = vld [vmem:[%s2806 + $0x68] sm:$0x10]
  %v2895 = vsel %vm2860, 0, %v2894
  %2896 = vst [vmem:[%s2806 + $0x68] sm:$0x10] %v2895
  %v2897 = vld [vmem:[%s2806 + $0x70] sm:$0x10]
  %v2898 = vsel %vm2860, 0, %v2897
  %2899 = vst [vmem:[%s2806 + $0x70] sm:$0x10] %v2898
  %v2900 = vld [vmem:[%s2806 + $0x78] sm:$0x10]
  %v2901 = vsel %vm2860, 0, %v2900
  %2902 = vst [vmem:[%s2806 + $0x78] sm:$0x10] %v2901
  %v2903 = vld [vmem:[%s2806 + $0x80] sm:$0x10]
  %v2904 = vsel %vm2860, 0, %v2903
  %2905 = vst [vmem:[%s2806 + $0x80] sm:$0x10] %v2904
  %v2906 = vld [vmem:[%s2806 + $0x88] sm:$0x10]
  %v2907 = vsel %vm2860, 0, %v2906
  %2908 = vst [vmem:[%s2806 + $0x88] sm:$0x10] %v2907
  %v2917 = vunpack.c.l.b16 %v2793
  %v2918 = vunpack.c.h.b16 %v2793
  %v2919 = vunpack.c.l.b16 %v2794
  %v2920 = vunpack.c.h.b16 %v2794
  %v2921 = vunpack.c.l.b16 %v2795
  %v2922 = vunpack.c.h.b16 %v2795
  %v2923 = vunpack.c.l.b16 %v2796
  %v2924 = vunpack.c.h.b16 %v2796
  %v2925 = vunpack.c.l.b16 %v2797
  %v2926 = vunpack.c.h.b16 %v2797
  %v2927 = vunpack.c.l.b16 %v2798
  %v2928 = vunpack.c.h.b16 %v2798
  %v2929 = vunpack.c.l.b16 %v2799
  %v2930 = vunpack.c.h.b16 %v2799
  %v2931 = vunpack.c.l.b16 %v2800
  %v2932 = vunpack.c.h.b16 %v2800
  %v2933 = vpack.c.b16 %v2917, %v2917
  %v2934 = vpack.c.b16 %v2918, %v2918
  %v2935 = vpack.c.b16 %v2919, %v2919
  %v2936 = vpack.c.b16 %v2920, %v2920
  %v2937 = vpack.c.b16 %v2921, %v2921
  %v2938 = vpack.c.b16 %v2922, %v2922
  %v2939 = vpack.c.b16 %v2923, %v2923
  %v2940 = vpack.c.b16 %v2924, %v2924
  %v2941 = vpack.c.b16 %v2925, %v2925
  %v2942 = vpack.c.b16 %v2926, %v2926
  %v2943 = vpack.c.b16 %v2927, %v2927
  %v2944 = vpack.c.b16 %v2928, %v2928
  %v2945 = vpack.c.b16 %v2929, %v2929
  %v2946 = vpack.c.b16 %v2930, %v2930
  %v2947 = vpack.c.b16 %v2931, %v2931
  %v2948 = vpack.c.b16 %v2932, %v2932
  %v2950 = vshrl.u32 %v2933, 16
  %v2952 = vrot.slane %v2950, 7
  %v2953 = vshll.u32 %v2933, 16
  %v2955 = vor.u32 %v2952, %v2953
  %v2957 = vshrl.u32 %v2934, 16
  %v2959 = vrot.slane %v2957, 7
  %v2960 = vshll.u32 %v2934, 16
  %v2962 = vor.u32 %v2959, %v2960
  %v2964 = vshrl.u32 %v2935, 16
  %v2966 = vrot.slane %v2964, 7
  %v2967 = vshll.u32 %v2935, 16
  %v2969 = vor.u32 %v2966, %v2967
  %v2971 = vshrl.u32 %v2936, 16
  %v2973 = vrot.slane %v2971, 7
  %v2974 = vshll.u32 %v2936, 16
  %v2976 = vor.u32 %v2973, %v2974
  %v2978 = vshrl.u32 %v2937, 16
  %v2980 = vrot.slane %v2978, 7
  %v2981 = vshll.u32 %v2937, 16
  %v2983 = vor.u32 %v2980, %v2981
  %v2985 = vshrl.u32 %v2938, 16
  %v2987 = vrot.slane %v2985, 7
  %v2988 = vshll.u32 %v2938, 16
  %v2990 = vor.u32 %v2987, %v2988
  %v2992 = vshrl.u32 %v2939, 16
  %v2994 = vrot.slane %v2992, 7
  %v2995 = vshll.u32 %v2939, 16
  %v2997 = vor.u32 %v2994, %v2995
  %v2999 = vshrl.u32 %v2940, 16
  %v3001 = vrot.slane %v2999, 7
  %v3002 = vshll.u32 %v2940, 16
  %v3004 = vor.u32 %v3001, %v3002
  %v3006 = vshrl.u32 %v2941, 16
  %v3008 = vrot.slane %v3006, 7
  %v3009 = vshll.u32 %v2941, 16
  %v3011 = vor.u32 %v3008, %v3009
  %v3013 = vshrl.u32 %v2942, 16
  %v3015 = vrot.slane %v3013, 7
  %v3016 = vshll.u32 %v2942, 16
  %v3018 = vor.u32 %v3015, %v3016
  %v3020 = vshrl.u32 %v2943, 16
  %v3022 = vrot.slane %v3020, 7
  %v3023 = vshll.u32 %v2943, 16
  %v3025 = vor.u32 %v3022, %v3023
  %v3027 = vshrl.u32 %v2944, 16
  %v3029 = vrot.slane %v3027, 7
  %v3030 = vshll.u32 %v2944, 16
  %v3032 = vor.u32 %v3029, %v3030
  %v3034 = vshrl.u32 %v2945, 16
  %v3036 = vrot.slane %v3034, 7
  %v3037 = vshll.u32 %v2945, 16
  %v3039 = vor.u32 %v3036, %v3037
  %v3041 = vshrl.u32 %v2946, 16
  %v3043 = vrot.slane %v3041, 7
  %v3044 = vshll.u32 %v2946, 16
  %v3046 = vor.u32 %v3043, %v3044
  %v3048 = vshrl.u32 %v2947, 16
  %v3050 = vrot.slane %v3048, 7
  %v3051 = vshll.u32 %v2947, 16
  %v3053 = vor.u32 %v3050, %v3051
  %v3055 = vshrl.u32 %v2948, 16
  %v3057 = vrot.slane %v3055, 7
  %v3058 = vshll.u32 %v2948, 16
  %v3060 = vor.u32 %v3057, %v3058
  %vm3077 = vcmask 1044480
  %vm3078 = vsmask.f32 4354
  %vm3079 = vmand %vm3077, %vm3078
  %v3080 = vld [vmem:[%s2806] sm:$0x1f]
  %v3081 = vsel %vm3079, %v2955, %v3080
  %3082 = vst [vmem:[%s2806] sm:$0x1f] %v3081
  %v3083 = vld [vmem:[%s2806 + $0x8] sm:$0x1f]
  %v3084 = vsel %vm3079, %v2962, %v3083
  %3085 = vst [vmem:[%s2806 + $0x8] sm:$0x1f] %v3084
  %v3086 = vld [vmem:[%s2806 + $0x10] sm:$0x1f]
  %v3087 = vsel %vm3079, %v2969, %v3086
  %3088 = vst [vmem:[%s2806 + $0x10] sm:$0x1f] %v3087
  %v3089 = vld [vmem:[%s2806 + $0x18] sm:$0x1f]
  %v3090 = vsel %vm3079, %v2976, %v3089
  %3091 = vst [vmem:[%s2806 + $0x18] sm:$0x1f] %v3090
  %v3092 = vld [vmem:[%s2806 + $0x20] sm:$0x1f]
  %v3093 = vsel %vm3079, %v2983, %v3092
  %3094 = vst [vmem:[%s2806 + $0x20] sm:$0x1f] %v3093
  %v3095 = vld [vmem:[%s2806 + $0x28] sm:$0x1f]
  %v3096 = vsel %vm3079, %v2990, %v3095
  %3097 = vst [vmem:[%s2806 + $0x28] sm:$0x1f] %v3096
  %v3098 = vld [vmem:[%s2806 + $0x30] sm:$0x1f]
  %v3099 = vsel %vm3079, %v2997, %v3098
  %3100 = vst [vmem:[%s2806 + $0x30] sm:$0x1f] %v3099
  %v3101 = vld [vmem:[%s2806 + $0x38] sm:$0x1f]
  %v3102 = vsel %vm3079, %v3004, %v3101
  %3103 = vst [vmem:[%s2806 + $0x38] sm:$0x1f] %v3102
  %v3104 = vld [vmem:[%s2806 + $0x50] sm:$0x1f]
  %v3105 = vsel %vm3079, %v3011, %v3104
  %3106 = vst [vmem:[%s2806 + $0x50] sm:$0x1f] %v3105
  %v3107 = vld [vmem:[%s2806 + $0x58] sm:$0x1f]
  %v3108 = vsel %vm3079, %v3018, %v3107
  %3109 = vst [vmem:[%s2806 + $0x58] sm:$0x1f] %v3108
  %v3110 = vld [vmem:[%s2806 + $0x60] sm:$0x1f]
  %v3111 = vsel %vm3079, %v3025, %v3110
  %3112 = vst [vmem:[%s2806 + $0x60] sm:$0x1f] %v3111
  %v3113 = vld [vmem:[%s2806 + $0x68] sm:$0x1f]
  %v3114 = vsel %vm3079, %v3032, %v3113
  %3115 = vst [vmem:[%s2806 + $0x68] sm:$0x1f] %v3114
  %v3116 = vld [vmem:[%s2806 + $0x70] sm:$0x1f]
  %v3117 = vsel %vm3079, %v3039, %v3116
  %3118 = vst [vmem:[%s2806 + $0x70] sm:$0x1f] %v3117
  %v3119 = vld [vmem:[%s2806 + $0x78] sm:$0x1f]
  %v3120 = vsel %vm3079, %v3046, %v3119
  %3121 = vst [vmem:[%s2806 + $0x78] sm:$0x1f] %v3120
  %v3122 = vld [vmem:[%s2806 + $0x80] sm:$0x1f]
  %v3123 = vsel %vm3079, %v3053, %v3122
  %3124 = vst [vmem:[%s2806 + $0x80] sm:$0x1f] %v3123
  %v3125 = vld [vmem:[%s2806 + $0x88] sm:$0x1f]
  %v3126 = vsel %vm3079, %v3060, %v3125
  %3127 = vst [vmem:[%s2806 + $0x88] sm:$0x1f] %v3126
  %v3128 = vld [vmem:[#allocation3] sm:$0xf]
  %v3129 = vld [vmem:[#allocation3 + $0x8] sm:$0xf]
  %v3130 = vld [vmem:[#allocation3 + $0x10] sm:$0xf]
  %v3131 = vld [vmem:[#allocation3 + $0x18] sm:$0xf]
  %v3132 = vld [vmem:[#allocation3 + $0x20] sm:$0xf]
  %v3133 = vld [vmem:[#allocation3 + $0x28] sm:$0xf]
  %v3134 = vld [vmem:[#allocation3 + $0x30] sm:$0xf]
  %v3135 = vld [vmem:[#allocation3 + $0x38] sm:$0xf]
  %v3136 = vld [vmem:[#allocation3 + $0x50] sm:$0xf]
  %v3137 = vld [vmem:[#allocation3 + $0x58] sm:$0xf]
  %v3138 = vld [vmem:[#allocation3 + $0x60] sm:$0xf]
  %v3139 = vld [vmem:[#allocation3 + $0x68] sm:$0xf]
  %v3140 = vld [vmem:[#allocation3 + $0x70] sm:$0xf]
  %v3141 = vld [vmem:[#allocation3 + $0x78] sm:$0xf]
  %v3142 = vld [vmem:[#allocation3 + $0x80] sm:$0xf]
  %v3143 = vld [vmem:[#allocation3 + $0x88] sm:$0xf]
  %v3160 = vunpack.c.l.b16 %v3128
  %v3161 = vunpack.c.l.b16 %v3129
  %v3162 = vunpack.c.l.b16 %v3130
  %v3163 = vunpack.c.l.b16 %v3131
  %v3164 = vunpack.c.l.b16 %v3132
  %v3165 = vunpack.c.l.b16 %v3133
  %v3166 = vunpack.c.l.b16 %v3134
  %v3167 = vunpack.c.l.b16 %v3135
  %v3168 = vunpack.c.l.b16 %v3136
  %v3169 = vunpack.c.l.b16 %v3137
  %v3170 = vunpack.c.l.b16 %v3138
  %v3171 = vunpack.c.l.b16 %v3139
  %v3172 = vunpack.c.l.b16 %v3140
  %v3173 = vunpack.c.l.b16 %v3141
  %v3174 = vunpack.c.l.b16 %v3142
  %v3175 = vunpack.c.l.b16 %v3143
  %v3176 = vpack.c.b16 %v3161, %v3160
  %v3177 = vpack.c.b16 %v3163, %v3162
  %v3178 = vpack.c.b16 %v3165, %v3164
  %v3179 = vpack.c.b16 %v3167, %v3166
  %v3180 = vpack.c.b16 %v3169, %v3168
  %v3181 = vpack.c.b16 %v3171, %v3170
  %v3182 = vpack.c.b16 %v3173, %v3172
  %v3183 = vpack.c.b16 %v3175, %v3174
  %3192 = vst [vmem:[#allocation4] sm:$0xff] %v3176
  %3193 = vst [vmem:[#allocation4 + $0x48] sm:$0xff] %v3177
  %3194 = vst [vmem:[#allocation4 + $0x90] sm:$0xff] %v3178
  %3195 = vst [vmem:[#allocation4 + $0xd8] sm:$0xff] %v3179
  %3196 = vst [vmem:[#allocation4 + $0x120] sm:$0xff] %v3180
  %3197 = vst [vmem:[#allocation4 + $0x168] sm:$0xff] %v3181
  %3198 = vst [vmem:[#allocation4 + $0x1b0] sm:$0xff] %v3182
  %3199 = vst [vmem:[#allocation4 + $0x1f8] sm:$0xff] %v3183
  %v3200 = vld [vmem:[#allocation3] sm:$0x1f]
  %v3201 = vld [vmem:[#allocation3 + $0x8] sm:$0x1f]
  %v3202 = vld [vmem:[#allocation3 + $0x10] sm:$0x1f]
  %v3203 = vld [vmem:[#allocation3 + $0x18] sm:$0x1f]
  %v3204 = vld [vmem:[#allocation3 + $0x20] sm:$0x1f]
  %v3205 = vld [vmem:[#allocation3 + $0x28] sm:$0x1f]
  %v3206 = vld [vmem:[#allocation3 + $0x30] sm:$0x1f]
  %v3207 = vld [vmem:[#allocation3 + $0x38] sm:$0x1f]
  %v3208 = vld [vmem:[#allocation3 + $0x50] sm:$0x1f]
  %v3209 = vld [vmem:[#allocation3 + $0x58] sm:$0x1f]
  %v3210 = vld [vmem:[#allocation3 + $0x60] sm:$0x1f]
  %v3211 = vld [vmem:[#allocation3 + $0x68] sm:$0x1f]
  %v3212 = vld [vmem:[#allocation3 + $0x70] sm:$0x1f]
  %v3213 = vld [vmem:[#allocation3 + $0x78] sm:$0x1f]
  %v3214 = vld [vmem:[#allocation3 + $0x80] sm:$0x1f]
  %v3215 = vld [vmem:[#allocation3 + $0x88] sm:$0x1f]
  %v3232 = vunpack.c.l.b16 %v3200
  %v3233 = vunpack.c.h.b16 %v3200
  %v3234 = vunpack.c.l.b16 %v3201
  %v3235 = vunpack.c.h.b16 %v3201
  %v3236 = vunpack.c.l.b16 %v3202
  %v3237 = vunpack.c.h.b16 %v3202
  %v3238 = vunpack.c.l.b16 %v3203
  %v3239 = vunpack.c.h.b16 %v3203
  %v3240 = vunpack.c.l.b16 %v3204
  %v3241 = vunpack.c.h.b16 %v3204
  %v3242 = vunpack.c.l.b16 %v3205
  %v3243 = vunpack.c.h.b16 %v3205
  %v3244 = vunpack.c.l.b16 %v3206
  %v3245 = vunpack.c.h.b16 %v3206
  %v3246 = vunpack.c.l.b16 %v3207
  %v3247 = vunpack.c.h.b16 %v3207
  %v3248 = vunpack.c.l.b16 %v3208
  %v3249 = vunpack.c.h.b16 %v3208
  %v3250 = vunpack.c.l.b16 %v3209
  %v3251 = vunpack.c.h.b16 %v3209
  %v3252 = vunpack.c.l.b16 %v3210
  %v3253 = vunpack.c.h.b16 %v3210
  %v3254 = vunpack.c.l.b16 %v3211
  %v3255 = vunpack.c.h.b16 %v3211
  %v3256 = vunpack.c.l.b16 %v3212
  %v3257 = vunpack.c.h.b16 %v3212
  %v3258 = vunpack.c.l.b16 %v3213
  %v3259 = vunpack.c.h.b16 %v3213
  %v3260 = vunpack.c.l.b16 %v3214
  %v3261 = vunpack.c.h.b16 %v3214
  %v3262 = vunpack.c.l.b16 %v3215
  %v3263 = vunpack.c.h.b16 %v3215
  %v3264 = vpack.c.b16 %v3232, %v3232
  %v3265 = vpack.c.b16 %v3233, %v3233
  %v3266 = vpack.c.b16 %v3234, %v3234
  %v3267 = vpack.c.b16 %v3235, %v3235
  %v3268 = vpack.c.b16 %v3236, %v3236
  %v3269 = vpack.c.b16 %v3237, %v3237
  %v3270 = vpack.c.b16 %v3238, %v3238
  %v3271 = vpack.c.b16 %v3239, %v3239
  %v3272 = vpack.c.b16 %v3240, %v3240
  %v3273 = vpack.c.b16 %v3241, %v3241
  %v3274 = vpack.c.b16 %v3242, %v3242
  %v3275 = vpack.c.b16 %v3243, %v3243
  %v3276 = vpack.c.b16 %v3244, %v3244
  %v3277 = vpack.c.b16 %v3245, %v3245
  %v3278 = vpack.c.b16 %v3246, %v3246
  %v3279 = vpack.c.b16 %v3247, %v3247
  %v3280 = vpack.c.b16 %v3248, %v3248
  %v3281 = vpack.c.b16 %v3249, %v3249
  %v3282 = vpack.c.b16 %v3250, %v3250
  %v3283 = vpack.c.b16 %v3251, %v3251
  %v3284 = vpack.c.b16 %v3252, %v3252
  %v3285 = vpack.c.b16 %v3253, %v3253
  %v3286 = vpack.c.b16 %v3254, %v3254
  %v3287 = vpack.c.b16 %v3255, %v3255
  %v3288 = vpack.c.b16 %v3256, %v3256
  %v3289 = vpack.c.b16 %v3257, %v3257
  %v3290 = vpack.c.b16 %v3258, %v3258
  %v3291 = vpack.c.b16 %v3259, %v3259
  %v3292 = vpack.c.b16 %v3260, %v3260
  %v3293 = vpack.c.b16 %v3261, %v3261
  %v3294 = vpack.c.b16 %v3262, %v3262
  %v3295 = vpack.c.b16 %v3263, %v3263
  %v3297 = vshrl.u32 %v3264, 16
  %v3299 = vrot.slane %v3297, 4
  %v3300 = vshll.u32 %v3264, 16
  %v3302 = vrot.slane %v3300, 5
  %v3303 = vor.u32 %v3299, %v3302
  %v3304 = vrot.slane %v3303, 4
  %v3306 = vshll.u32 %v3265, 16
  %v3308 = vrot.slane %v3306, 5
  %v3309 = vsel %vm127, %v3304, %v3308
  %v3311 = vshrl.u32 %v3266, 16
  %v3313 = vrot.slane %v3311, 4
  %v3314 = vshll.u32 %v3266, 16
  %v3316 = vrot.slane %v3314, 5
  %v3317 = vor.u32 %v3313, %v3316
  %v3318 = vrot.slane %v3317, 4
  %v3320 = vshll.u32 %v3267, 16
  %v3322 = vrot.slane %v3320, 5
  %v3323 = vsel %vm127, %v3318, %v3322
  %v3325 = vshrl.u32 %v3268, 16
  %v3327 = vrot.slane %v3325, 4
  %v3328 = vshll.u32 %v3268, 16
  %v3330 = vrot.slane %v3328, 5
  %v3331 = vor.u32 %v3327, %v3330
  %v3332 = vrot.slane %v3331, 4
  %v3334 = vshll.u32 %v3269, 16
  %v3336 = vrot.slane %v3334, 5
  %v3337 = vsel %vm127, %v3332, %v3336
  %v3339 = vshrl.u32 %v3270, 16
  %v3341 = vrot.slane %v3339, 4
  %v3342 = vshll.u32 %v3270, 16
  %v3344 = vrot.slane %v3342, 5
  %v3345 = vor.u32 %v3341, %v3344
  %v3346 = vrot.slane %v3345, 4
  %v3348 = vshll.u32 %v3271, 16
  %v3350 = vrot.slane %v3348, 5
  %v3351 = vsel %vm127, %v3346, %v3350
  %v3353 = vshrl.u32 %v3272, 16
  %v3355 = vrot.slane %v3353, 4
  %v3356 = vshll.u32 %v3272, 16
  %v3358 = vrot.slane %v3356, 5
  %v3359 = vor.u32 %v3355, %v3358
  %v3360 = vrot.slane %v3359, 4
  %v3362 = vshll.u32 %v3273, 16
  %v3364 = vrot.slane %v3362, 5
  %v3365 = vsel %vm127, %v3360, %v3364
  %v3367 = vshrl.u32 %v3274, 16
  %v3369 = vrot.slane %v3367, 4
  %v3370 = vshll.u32 %v3274, 16
  %v3372 = vrot.slane %v3370, 5
  %v3373 = vor.u32 %v3369, %v3372
  %v3374 = vrot.slane %v3373, 4
  %v3376 = vshll.u32 %v3275, 16
  %v3378 = vrot.slane %v3376, 5
  %v3379 = vsel %vm127, %v3374, %v3378
  %v3381 = vshrl.u32 %v3276, 16
  %v3383 = vrot.slane %v3381, 4
  %v3384 = vshll.u32 %v3276, 16
  %v3386 = vrot.slane %v3384, 5
  %v3387 = vor.u32 %v3383, %v3386
  %v3388 = vrot.slane %v3387, 4
  %v3390 = vshll.u32 %v3277, 16
  %v3392 = vrot.slane %v3390, 5
  %v3393 = vsel %vm127, %v3388, %v3392
  %v3395 = vshrl.u32 %v3278, 16
  %v3397 = vrot.slane %v3395, 4
  %v3398 = vshll.u32 %v3278, 16
  %v3400 = vrot.slane %v3398, 5
  %v3401 = vor.u32 %v3397, %v3400
  %v3402 = vrot.slane %v3401, 4
  %v3404 = vshll.u32 %v3279, 16
  %v3406 = vrot.slane %v3404, 5
  %v3407 = vsel %vm127, %v3402, %v3406
  %v3409 = vshrl.u32 %v3280, 16
  %v3411 = vrot.slane %v3409, 4
  %v3412 = vshll.u32 %v3280, 16
  %v3414 = vrot.slane %v3412, 5
  %v3415 = vor.u32 %v3411, %v3414
  %v3416 = vrot.slane %v3415, 4
  %v3418 = vshll.u32 %v3281, 16
  %v3420 = vrot.slane %v3418, 5
  %v3421 = vsel %vm127, %v3416, %v3420
  %v3423 = vshrl.u32 %v3282, 16
  %v3425 = vrot.slane %v3423, 4
  %v3426 = vshll.u32 %v3282, 16
  %v3428 = vrot.slane %v3426, 5
  %v3429 = vor.u32 %v3425, %v3428
  %v3430 = vrot.slane %v3429, 4
  %v3432 = vshll.u32 %v3283, 16
  %v3434 = vrot.slane %v3432, 5
  %v3435 = vsel %vm127, %v3430, %v3434
  %v3437 = vshrl.u32 %v3284, 16
  %v3439 = vrot.slane %v3437, 4
  %v3440 = vshll.u32 %v3284, 16
  %v3442 = vrot.slane %v3440, 5
  %v3443 = vor.u32 %v3439, %v3442
  %v3444 = vrot.slane %v3443, 4
  %v3446 = vshll.u32 %v3285, 16
  %v3448 = vrot.slane %v3446, 5
  %v3449 = vsel %vm127, %v3444, %v3448
  %v3451 = vshrl.u32 %v3286, 16
  %v3453 = vrot.slane %v3451, 4
  %v3454 = vshll.u32 %v3286, 16
  %v3456 = vrot.slane %v3454, 5
  %v3457 = vor.u32 %v3453, %v3456
  %v3458 = vrot.slane %v3457, 4
  %v3460 = vshll.u32 %v3287, 16
  %v3462 = vrot.slane %v3460, 5
  %v3463 = vsel %vm127, %v3458, %v3462
  %v3465 = vshrl.u32 %v3288, 16
  %v3467 = vrot.slane %v3465, 4
  %v3468 = vshll.u32 %v3288, 16
  %v3470 = vrot.slane %v3468, 5
  %v3471 = vor.u32 %v3467, %v3470
  %v3472 = vrot.slane %v3471, 4
  %v3474 = vshll.u32 %v3289, 16
  %v3476 = vrot.slane %v3474, 5
  %v3477 = vsel %vm127, %v3472, %v3476
  %v3479 = vshrl.u32 %v3290, 16
  %v3481 = vrot.slane %v3479, 4
  %v3482 = vshll.u32 %v3290, 16
  %v3484 = vrot.slane %v3482, 5
  %v3485 = vor.u32 %v3481, %v3484
  %v3486 = vrot.slane %v3485, 4
  %v3488 = vshll.u32 %v3291, 16
  %v3490 = vrot.slane %v3488, 5
  %v3491 = vsel %vm127, %v3486, %v3490
  %v3493 = vshrl.u32 %v3292, 16
  %v3495 = vrot.slane %v3493, 4
  %v3496 = vshll.u32 %v3292, 16
  %v3498 = vrot.slane %v3496, 5
  %v3499 = vor.u32 %v3495, %v3498
  %v3500 = vrot.slane %v3499, 4
  %v3502 = vshll.u32 %v3293, 16
  %v3504 = vrot.slane %v3502, 5
  %v3505 = vsel %vm127, %v3500, %v3504
  %v3507 = vshrl.u32 %v3294, 16
  %v3509 = vrot.slane %v3507, 4
  %v3510 = vshll.u32 %v3294, 16
  %v3512 = vrot.slane %v3510, 5
  %v3513 = vor.u32 %v3509, %v3512
  %v3514 = vrot.slane %v3513, 4
  %v3516 = vshll.u32 %v3295, 16
  %v3518 = vrot.slane %v3516, 5
  %v3519 = vsel %vm127, %v3514, %v3518
  %v3520 = vunpack.c.l.b16 %v3309
  %v3521 = vunpack.c.l.b16 %v3323
  %v3522 = vunpack.c.l.b16 %v3337
  %v3523 = vunpack.c.l.b16 %v3351
  %v3524 = vunpack.c.l.b16 %v3365
  %v3525 = vunpack.c.l.b16 %v3379
  %v3526 = vunpack.c.l.b16 %v3393
  %v3527 = vunpack.c.l.b16 %v3407
  %v3528 = vunpack.c.l.b16 %v3421
  %v3529 = vunpack.c.l.b16 %v3435
  %v3530 = vunpack.c.l.b16 %v3449
  %v3531 = vunpack.c.l.b16 %v3463
  %v3532 = vunpack.c.l.b16 %v3477
  %v3533 = vunpack.c.l.b16 %v3491
  %v3534 = vunpack.c.l.b16 %v3505
  %v3535 = vunpack.c.l.b16 %v3519
  %v3536 = vpack.c.b16 %v3521, %v3520
  %v3537 = vpack.c.b16 %v3523, %v3522
  %v3538 = vpack.c.b16 %v3525, %v3524
  %v3539 = vpack.c.b16 %v3527, %v3526
  %v3540 = vpack.c.b16 %v3529, %v3528
  %v3541 = vpack.c.b16 %v3531, %v3530
  %v3542 = vpack.c.b16 %v3533, %v3532
  %v3543 = vpack.c.b16 %v3535, %v3534
  %3552 = vst [vmem:[#allocation4 + $0x8] sm:$0xff] %v3536
  %3553 = vst [vmem:[#allocation4 + $0x50] sm:$0xff] %v3537
  %3554 = vst [vmem:[#allocation4 + $0x98] sm:$0xff] %v3538
  %3555 = vst [vmem:[#allocation4 + $0xe0] sm:$0xff] %v3539
  %3556 = vst [vmem:[#allocation4 + $0x128] sm:$0xff] %v3540
  %3557 = vst [vmem:[#allocation4 + $0x170] sm:$0xff] %v3541
  %3558 = vst [vmem:[#allocation4 + $0x1b8] sm:$0xff] %v3542
  %3559 = vst [vmem:[#allocation4 + $0x200] sm:$0xff] %v3543
  %v3560 = vld [vmem:[#allocation3] sm:$0x1e]
  %v3561 = vld [vmem:[#allocation3 + $0x8] sm:$0x1e]
  %v3562 = vld [vmem:[#allocation3 + $0x10] sm:$0x1e]
  %v3563 = vld [vmem:[#allocation3 + $0x18] sm:$0x1e]
  %v3564 = vld [vmem:[#allocation3 + $0x20] sm:$0x1e]
  %v3565 = vld [vmem:[#allocation3 + $0x28] sm:$0x1e]
  %v3566 = vld [vmem:[#allocation3 + $0x30] sm:$0x1e]
  %v3567 = vld [vmem:[#allocation3 + $0x38] sm:$0x1e]
  %v3568 = vld [vmem:[#allocation3 + $0x50] sm:$0x1e]
  %v3569 = vld [vmem:[#allocation3 + $0x58] sm:$0x1e]
  %v3570 = vld [vmem:[#allocation3 + $0x60] sm:$0x1e]
  %v3571 = vld [vmem:[#allocation3 + $0x68] sm:$0x1e]
  %v3572 = vld [vmem:[#allocation3 + $0x70] sm:$0x1e]
  %v3573 = vld [vmem:[#allocation3 + $0x78] sm:$0x1e]
  %v3574 = vld [vmem:[#allocation3 + $0x80] sm:$0x1e]
  %v3575 = vld [vmem:[#allocation3 + $0x88] sm:$0x1e]
  %v3592 = vunpack.c.l.b16 %v3560
  %v3593 = vunpack.c.h.b16 %v3560
  %v3594 = vunpack.c.l.b16 %v3561
  %v3595 = vunpack.c.h.b16 %v3561
  %v3596 = vunpack.c.l.b16 %v3562
  %v3597 = vunpack.c.h.b16 %v3562
  %v3598 = vunpack.c.l.b16 %v3563
  %v3599 = vunpack.c.h.b16 %v3563
  %v3600 = vunpack.c.l.b16 %v3564
  %v3601 = vunpack.c.h.b16 %v3564
  %v3602 = vunpack.c.l.b16 %v3565
  %v3603 = vunpack.c.h.b16 %v3565
  %v3604 = vunpack.c.l.b16 %v3566
  %v3605 = vunpack.c.h.b16 %v3566
  %v3606 = vunpack.c.l.b16 %v3567
  %v3607 = vunpack.c.h.b16 %v3567
  %v3608 = vunpack.c.l.b16 %v3568
  %v3609 = vunpack.c.h.b16 %v3568
  %v3610 = vunpack.c.l.b16 %v3569
  %v3611 = vunpack.c.h.b16 %v3569
  %v3612 = vunpack.c.l.b16 %v3570
  %v3613 = vunpack.c.h.b16 %v3570
  %v3614 = vunpack.c.l.b16 %v3571
  %v3615 = vunpack.c.h.b16 %v3571
  %v3616 = vunpack.c.l.b16 %v3572
  %v3617 = vunpack.c.h.b16 %v3572
  %v3618 = vunpack.c.l.b16 %v3573
  %v3619 = vunpack.c.h.b16 %v3573
  %v3620 = vunpack.c.l.b16 %v3574
  %v3621 = vunpack.c.h.b16 %v3574
  %v3622 = vunpack.c.l.b16 %v3575
  %v3623 = vunpack.c.h.b16 %v3575
  %v3624 = vpack.c.b16 %v3592, %v3592
  %v3625 = vpack.c.b16 %v3593, %v3593
  %v3626 = vpack.c.b16 %v3594, %v3594
  %v3627 = vpack.c.b16 %v3595, %v3595
  %v3628 = vpack.c.b16 %v3596, %v3596
  %v3629 = vpack.c.b16 %v3597, %v3597
  %v3630 = vpack.c.b16 %v3598, %v3598
  %v3631 = vpack.c.b16 %v3599, %v3599
  %v3632 = vpack.c.b16 %v3600, %v3600
  %v3633 = vpack.c.b16 %v3601, %v3601
  %v3634 = vpack.c.b16 %v3602, %v3602
  %v3635 = vpack.c.b16 %v3603, %v3603
  %v3636 = vpack.c.b16 %v3604, %v3604
  %v3637 = vpack.c.b16 %v3605, %v3605
  %v3638 = vpack.c.b16 %v3606, %v3606
  %v3639 = vpack.c.b16 %v3607, %v3607
  %v3640 = vpack.c.b16 %v3608, %v3608
  %v3641 = vpack.c.b16 %v3609, %v3609
  %v3642 = vpack.c.b16 %v3610, %v3610
  %v3643 = vpack.c.b16 %v3611, %v3611
  %v3644 = vpack.c.b16 %v3612, %v3612
  %v3645 = vpack.c.b16 %v3613, %v3613
  %v3646 = vpack.c.b16 %v3614, %v3614
  %v3647 = vpack.c.b16 %v3615, %v3615
  %v3648 = vpack.c.b16 %v3616, %v3616
  %v3649 = vpack.c.b16 %v3617, %v3617
  %v3650 = vpack.c.b16 %v3618, %v3618
  %v3651 = vpack.c.b16 %v3619, %v3619
  %v3652 = vpack.c.b16 %v3620, %v3620
  %v3653 = vpack.c.b16 %v3621, %v3621
  %v3654 = vpack.c.b16 %v3622, %v3622
  %v3655 = vpack.c.b16 %v3623, %v3623
  %v3656 = vrot.slane %v3624, 5
  %v3657 = vrot.slane %v3656, 4
  %v3658 = vrot.slane %v3625, 5
  %v3659 = vsel %vm458, %v3657, %v3658
  %v3660 = vrot.slane %v3626, 5
  %v3661 = vrot.slane %v3660, 4
  %v3662 = vrot.slane %v3627, 5
  %v3663 = vsel %vm458, %v3661, %v3662
  %v3664 = vrot.slane %v3628, 5
  %v3665 = vrot.slane %v3664, 4
  %v3666 = vrot.slane %v3629, 5
  %v3667 = vsel %vm458, %v3665, %v3666
  %v3668 = vrot.slane %v3630, 5
  %v3669 = vrot.slane %v3668, 4
  %v3670 = vrot.slane %v3631, 5
  %v3671 = vsel %vm458, %v3669, %v3670
  %v3672 = vrot.slane %v3632, 5
  %v3673 = vrot.slane %v3672, 4
  %v3674 = vrot.slane %v3633, 5
  %v3675 = vsel %vm458, %v3673, %v3674
  %v3676 = vrot.slane %v3634, 5
  %v3677 = vrot.slane %v3676, 4
  %v3678 = vrot.slane %v3635, 5
  %v3679 = vsel %vm458, %v3677, %v3678
  %v3680 = vrot.slane %v3636, 5
  %v3681 = vrot.slane %v3680, 4
  %v3682 = vrot.slane %v3637, 5
  %v3683 = vsel %vm458, %v3681, %v3682
  %v3684 = vrot.slane %v3638, 5
  %v3685 = vrot.slane %v3684, 4
  %v3686 = vrot.slane %v3639, 5
  %v3687 = vsel %vm458, %v3685, %v3686
  %v3688 = vrot.slane %v3640, 5
  %v3689 = vrot.slane %v3688, 4
  %v3690 = vrot.slane %v3641, 5
  %v3691 = vsel %vm458, %v3689, %v3690
  %v3692 = vrot.slane %v3642, 5
  %v3693 = vrot.slane %v3692, 4
  %v3694 = vrot.slane %v3643, 5
  %v3695 = vsel %vm458, %v3693, %v3694
  %v3696 = vrot.slane %v3644, 5
  %v3697 = vrot.slane %v3696, 4
  %v3698 = vrot.slane %v3645, 5
  %v3699 = vsel %vm458, %v3697, %v3698
  %v3700 = vrot.slane %v3646, 5
  %v3701 = vrot.slane %v3700, 4
  %v3702 = vrot.slane %v3647, 5
  %v3703 = vsel %vm458, %v3701, %v3702
  %v3704 = vrot.slane %v3648, 5
  %v3705 = vrot.slane %v3704, 4
  %v3706 = vrot.slane %v3649, 5
  %v3707 = vsel %vm458, %v3705, %v3706
  %v3708 = vrot.slane %v3650, 5
  %v3709 = vrot.slane %v3708, 4
  %v3710 = vrot.slane %v3651, 5
  %v3711 = vsel %vm458, %v3709, %v3710
  %v3712 = vrot.slane %v3652, 5
  %v3713 = vrot.slane %v3712, 4
  %v3714 = vrot.slane %v3653, 5
  %v3715 = vsel %vm458, %v3713, %v3714
  %v3716 = vrot.slane %v3654, 5
  %v3717 = vrot.slane %v3716, 4
  %v3718 = vrot.slane %v3655, 5
  %v3719 = vsel %vm458, %v3717, %v3718
  %v3720 = vunpack.c.l.b16 %v3659
  %v3721 = vunpack.c.l.b16 %v3663
  %v3722 = vunpack.c.l.b16 %v3667
  %v3723 = vunpack.c.l.b16 %v3671
  %v3724 = vunpack.c.l.b16 %v3675
  %v3725 = vunpack.c.l.b16 %v3679
  %v3726 = vunpack.c.l.b16 %v3683
  %v3727 = vunpack.c.l.b16 %v3687
  %v3728 = vunpack.c.l.b16 %v3691
  %v3729 = vunpack.c.l.b16 %v3695
  %v3730 = vunpack.c.l.b16 %v3699
  %v3731 = vunpack.c.l.b16 %v3703
  %v3732 = vunpack.c.l.b16 %v3707
  %v3733 = vunpack.c.l.b16 %v3711
  %v3734 = vunpack.c.l.b16 %v3715
  %v3735 = vunpack.c.l.b16 %v3719
  %v3736 = vpack.c.b16 %v3721, %v3720
  %v3737 = vpack.c.b16 %v3723, %v3722
  %v3738 = vpack.c.b16 %v3725, %v3724
  %v3739 = vpack.c.b16 %v3727, %v3726
  %v3740 = vpack.c.b16 %v3729, %v3728
  %v3741 = vpack.c.b16 %v3731, %v3730
  %v3742 = vpack.c.b16 %v3733, %v3732
  %v3743 = vpack.c.b16 %v3735, %v3734
  %3752 = vst [vmem:[#allocation4 + $0x10] sm:$0xff] %v3736
  %3753 = vst [vmem:[#allocation4 + $0x58] sm:$0xff] %v3737
  %3754 = vst [vmem:[#allocation4 + $0xa0] sm:$0xff] %v3738
  %3755 = vst [vmem:[#allocation4 + $0xe8] sm:$0xff] %v3739
  %3756 = vst [vmem:[#allocation4 + $0x130] sm:$0xff] %v3740
  %3757 = vst [vmem:[#allocation4 + $0x178] sm:$0xff] %v3741
  %3758 = vst [vmem:[#allocation4 + $0x1c0] sm:$0xff] %v3742
  %3759 = vst [vmem:[#allocation4 + $0x208] sm:$0xff] %v3743
  %v3760 = vld [vmem:[%s2806] sm:$0xf]
  %v3761 = vld [vmem:[%s2806 + $0x8] sm:$0xf]
  %v3762 = vld [vmem:[%s2806 + $0x10] sm:$0xf]
  %v3763 = vld [vmem:[%s2806 + $0x18] sm:$0xf]
  %v3764 = vld [vmem:[%s2806 + $0x20] sm:$0xf]
  %v3765 = vld [vmem:[%s2806 + $0x28] sm:$0xf]
  %v3766 = vld [vmem:[%s2806 + $0x30] sm:$0xf]
  %v3767 = vld [vmem:[%s2806 + $0x38] sm:$0xf]
  %v3768 = vld [vmem:[%s2806 + $0x50] sm:$0xf]
  %v3769 = vld [vmem:[%s2806 + $0x58] sm:$0xf]
  %v3770 = vld [vmem:[%s2806 + $0x60] sm:$0xf]
  %v3771 = vld [vmem:[%s2806 + $0x68] sm:$0xf]
  %v3772 = vld [vmem:[%s2806 + $0x70] sm:$0xf]
  %v3773 = vld [vmem:[%s2806 + $0x78] sm:$0xf]
  %v3774 = vld [vmem:[%s2806 + $0x80] sm:$0xf]
  %v3775 = vld [vmem:[%s2806 + $0x88] sm:$0xf]
  %v3792 = vunpack.c.l.b16 %v3760
  %v3793 = vunpack.c.l.b16 %v3761
  %v3794 = vunpack.c.l.b16 %v3762
  %v3795 = vunpack.c.l.b16 %v3763
  %v3796 = vunpack.c.l.b16 %v3764
  %v3797 = vunpack.c.l.b16 %v3765
  %v3798 = vunpack.c.l.b16 %v3766
  %v3799 = vunpack.c.l.b16 %v3767
  %v3800 = vunpack.c.l.b16 %v3768
  %v3801 = vunpack.c.l.b16 %v3769
  %v3802 = vunpack.c.l.b16 %v3770
  %v3803 = vunpack.c.l.b16 %v3771
  %v3804 = vunpack.c.l.b16 %v3772
  %v3805 = vunpack.c.l.b16 %v3773
  %v3806 = vunpack.c.l.b16 %v3774
  %v3807 = vunpack.c.l.b16 %v3775
  %v3808 = vpack.c.b16 %v3793, %v3792
  %v3809 = vpack.c.b16 %v3795, %v3794
  %v3810 = vpack.c.b16 %v3797, %v3796
  %v3811 = vpack.c.b16 %v3799, %v3798
  %v3812 = vpack.c.b16 %v3801, %v3800
  %v3813 = vpack.c.b16 %v3803, %v3802
  %v3814 = vpack.c.b16 %v3805, %v3804
  %v3815 = vpack.c.b16 %v3807, %v3806
  %3824 = vst [vmem:[#allocation4 + $0x18] sm:$0xff] %v3808
  %3825 = vst [vmem:[#allocation4 + $0x60] sm:$0xff] %v3809
  %3826 = vst [vmem:[#allocation4 + $0xa8] sm:$0xff] %v3810
  %3827 = vst [vmem:[#allocation4 + $0xf0] sm:$0xff] %v3811
  %3828 = vst [vmem:[#allocation4 + $0x138] sm:$0xff] %v3812
  %3829 = vst [vmem:[#allocation4 + $0x180] sm:$0xff] %v3813
  %3830 = vst [vmem:[#allocation4 + $0x1c8] sm:$0xff] %v3814
  %3831 = vst [vmem:[#allocation4 + $0x210] sm:$0xff] %v3815
  %v3832 = vld [vmem:[%s2806] sm:$0x1f]
  %v3833 = vld [vmem:[%s2806 + $0x8] sm:$0x1f]
  %v3834 = vld [vmem:[%s2806 + $0x10] sm:$0x1f]
  %v3835 = vld [vmem:[%s2806 + $0x18] sm:$0x1f]
  %v3836 = vld [vmem:[%s2806 + $0x20] sm:$0x1f]
  %v3837 = vld [vmem:[%s2806 + $0x28] sm:$0x1f]
  %v3838 = vld [vmem:[%s2806 + $0x30] sm:$0x1f]
  %v3839 = vld [vmem:[%s2806 + $0x38] sm:$0x1f]
  %v3840 = vld [vmem:[%s2806 + $0x50] sm:$0x1f]
  %v3841 = vld [vmem:[%s2806 + $0x58] sm:$0x1f]
  %v3842 = vld [vmem:[%s2806 + $0x60] sm:$0x1f]
  %v3843 = vld [vmem:[%s2806 + $0x68] sm:$0x1f]
  %v3844 = vld [vmem:[%s2806 + $0x70] sm:$0x1f]
  %v3845 = vld [vmem:[%s2806 + $0x78] sm:$0x1f]
  %v3846 = vld [vmem:[%s2806 + $0x80] sm:$0x1f]
  %v3847 = vld [vmem:[%s2806 + $0x88] sm:$0x1f]
  %v3864 = vunpack.c.l.b16 %v3832
  %v3865 = vunpack.c.h.b16 %v3832
  %v3866 = vunpack.c.l.b16 %v3833
  %v3867 = vunpack.c.h.b16 %v3833
  %v3868 = vunpack.c.l.b16 %v3834
  %v3869 = vunpack.c.h.b16 %v3834
  %v3870 = vunpack.c.l.b16 %v3835
  %v3871 = vunpack.c.h.b16 %v3835
  %v3872 = vunpack.c.l.b16 %v3836
  %v3873 = vunpack.c.h.b16 %v3836
  %v3874 = vunpack.c.l.b16 %v3837
  %v3875 = vunpack.c.h.b16 %v3837
  %v3876 = vunpack.c.l.b16 %v3838
  %v3877 = vunpack.c.h.b16 %v3838
  %v3878 = vunpack.c.l.b16 %v3839
  %v3879 = vunpack.c.h.b16 %v3839
  %v3880 = vunpack.c.l.b16 %v3840
  %v3881 = vunpack.c.h.b16 %v3840
  %v3882 = vunpack.c.l.b16 %v3841
  %v3883 = vunpack.c.h.b16 %v3841
  %v3884 = vunpack.c.l.b16 %v3842
  %v3885 = vunpack.c.h.b16 %v3842
  %v3886 = vunpack.c.l.b16 %v3843
  %v3887 = vunpack.c.h.b16 %v3843
  %v3888 = vunpack.c.l.b16 %v3844
  %v3889 = vunpack.c.h.b16 %v3844
  %v3890 = vunpack.c.l.b16 %v3845
  %v3891 = vunpack.c.h.b16 %v3845
  %v3892 = vunpack.c.l.b16 %v3846
  %v3893 = vunpack.c.h.b16 %v3846
  %v3894 = vunpack.c.l.b16 %v3847
  %v3895 = vunpack.c.h.b16 %v3847
  %v3896 = vpack.c.b16 %v3864, %v3864
  %v3897 = vpack.c.b16 %v3865, %v3865
  %v3898 = vpack.c.b16 %v3866, %v3866
  %v3899 = vpack.c.b16 %v3867, %v3867
  %v3900 = vpack.c.b16 %v3868, %v3868
  %v3901 = vpack.c.b16 %v3869, %v3869
  %v3902 = vpack.c.b16 %v3870, %v3870
  %v3903 = vpack.c.b16 %v3871, %v3871
  %v3904 = vpack.c.b16 %v3872, %v3872
  %v3905 = vpack.c.b16 %v3873, %v3873
  %v3906 = vpack.c.b16 %v3874, %v3874
  %v3907 = vpack.c.b16 %v3875, %v3875
  %v3908 = vpack.c.b16 %v3876, %v3876
  %v3909 = vpack.c.b16 %v3877, %v3877
  %v3910 = vpack.c.b16 %v3878, %v3878
  %v3911 = vpack.c.b16 %v3879, %v3879
  %v3912 = vpack.c.b16 %v3880, %v3880
  %v3913 = vpack.c.b16 %v3881, %v3881
  %v3914 = vpack.c.b16 %v3882, %v3882
  %v3915 = vpack.c.b16 %v3883, %v3883
  %v3916 = vpack.c.b16 %v3884, %v3884
  %v3917 = vpack.c.b16 %v3885, %v3885
  %v3918 = vpack.c.b16 %v3886, %v3886
  %v3919 = vpack.c.b16 %v3887, %v3887
  %v3920 = vpack.c.b16 %v3888, %v3888
  %v3921 = vpack.c.b16 %v3889, %v3889
  %v3922 = vpack.c.b16 %v3890, %v3890
  %v3923 = vpack.c.b16 %v3891, %v3891
  %v3924 = vpack.c.b16 %v3892, %v3892
  %v3925 = vpack.c.b16 %v3893, %v3893
  %v3926 = vpack.c.b16 %v3894, %v3894
  %v3927 = vpack.c.b16 %v3895, %v3895
  %v3929 = vshrl.u32 %v3896, 16
  %v3931 = vrot.slane %v3929, 4
  %v3932 = vshll.u32 %v3896, 16
  %v3934 = vrot.slane %v3932, 5
  %v3935 = vor.u32 %v3931, %v3934
  %v3936 = vrot.slane %v3935, 4
  %v3938 = vshll.u32 %v3897, 16
  %v3940 = vrot.slane %v3938, 5
  %v3941 = vsel %vm127, %v3936, %v3940
  %v3943 = vshrl.u32 %v3898, 16
  %v3945 = vrot.slane %v3943, 4
  %v3946 = vshll.u32 %v3898, 16
  %v3948 = vrot.slane %v3946, 5
  %v3949 = vor.u32 %v3945, %v3948
  %v3950 = vrot.slane %v3949, 4
  %v3952 = vshll.u32 %v3899, 16
  %v3954 = vrot.slane %v3952, 5
  %v3955 = vsel %vm127, %v3950, %v3954
  %v3957 = vshrl.u32 %v3900, 16
  %v3959 = vrot.slane %v3957, 4
  %v3960 = vshll.u32 %v3900, 16
  %v3962 = vrot.slane %v3960, 5
  %v3963 = vor.u32 %v3959, %v3962
  %v3964 = vrot.slane %v3963, 4
  %v3966 = vshll.u32 %v3901, 16
  %v3968 = vrot.slane %v3966, 5
  %v3969 = vsel %vm127, %v3964, %v3968
  %v3971 = vshrl.u32 %v3902, 16
  %v3973 = vrot.slane %v3971, 4
  %v3974 = vshll.u32 %v3902, 16
  %v3976 = vrot.slane %v3974, 5
  %v3977 = vor.u32 %v3973, %v3976
  %v3978 = vrot.slane %v3977, 4
  %v3980 = vshll.u32 %v3903, 16
  %v3982 = vrot.slane %v3980, 5
  %v3983 = vsel %vm127, %v3978, %v3982
  %v3985 = vshrl.u32 %v3904, 16
  %v3987 = vrot.slane %v3985, 4
  %v3988 = vshll.u32 %v3904, 16
  %v3990 = vrot.slane %v3988, 5
  %v3991 = vor.u32 %v3987, %v3990
  %v3992 = vrot.slane %v3991, 4
  %v3994 = vshll.u32 %v3905, 16
  %v3996 = vrot.slane %v3994, 5
  %v3997 = vsel %vm127, %v3992, %v3996
  %v3999 = vshrl.u32 %v3906, 16
  %v4001 = vrot.slane %v3999, 4
  %v4002 = vshll.u32 %v3906, 16
  %v4004 = vrot.slane %v4002, 5
  %v4005 = vor.u32 %v4001, %v4004
  %v4006 = vrot.slane %v4005, 4
  %v4008 = vshll.u32 %v3907, 16
  %v4010 = vrot.slane %v4008, 5
  %v4011 = vsel %vm127, %v4006, %v4010
  %v4013 = vshrl.u32 %v3908, 16
  %v4015 = vrot.slane %v4013, 4
  %v4016 = vshll.u32 %v3908, 16
  %v4018 = vrot.slane %v4016, 5
  %v4019 = vor.u32 %v4015, %v4018
  %v4020 = vrot.slane %v4019, 4
  %v4022 = vshll.u32 %v3909, 16
  %v4024 = vrot.slane %v4022, 5
  %v4025 = vsel %vm127, %v4020, %v4024
  %v4027 = vshrl.u32 %v3910, 16
  %v4029 = vrot.slane %v4027, 4
  %v4030 = vshll.u32 %v3910, 16
  %v4032 = vrot.slane %v4030, 5
  %v4033 = vor.u32 %v4029, %v4032
  %v4034 = vrot.slane %v4033, 4
  %v4036 = vshll.u32 %v3911, 16
  %v4038 = vrot.slane %v4036, 5
  %v4039 = vsel %vm127, %v4034, %v4038
  %v4041 = vshrl.u32 %v3912, 16
  %v4043 = vrot.slane %v4041, 4
  %v4044 = vshll.u32 %v3912, 16
  %v4046 = vrot.slane %v4044, 5
  %v4047 = vor.u32 %v4043, %v4046
  %v4048 = vrot.slane %v4047, 4
  %v4050 = vshll.u32 %v3913, 16
  %v4052 = vrot.slane %v4050, 5
  %v4053 = vsel %vm127, %v4048, %v4052
  %v4055 = vshrl.u32 %v3914, 16
  %v4057 = vrot.slane %v4055, 4
  %v4058 = vshll.u32 %v3914, 16
  %v4060 = vrot.slane %v4058, 5
  %v4061 = vor.u32 %v4057, %v4060
  %v4062 = vrot.slane %v4061, 4
  %v4064 = vshll.u32 %v3915, 16
  %v4066 = vrot.slane %v4064, 5
  %v4067 = vsel %vm127, %v4062, %v4066
  %v4069 = vshrl.u32 %v3916, 16
  %v4071 = vrot.slane %v4069, 4
  %v4072 = vshll.u32 %v3916, 16
  %v4074 = vrot.slane %v4072, 5
  %v4075 = vor.u32 %v4071, %v4074
  %v4076 = vrot.slane %v4075, 4
  %v4078 = vshll.u32 %v3917, 16
  %v4080 = vrot.slane %v4078, 5
  %v4081 = vsel %vm127, %v4076, %v4080
  %v4083 = vshrl.u32 %v3918, 16
  %v4085 = vrot.slane %v4083, 4
  %v4086 = vshll.u32 %v3918, 16
  %v4088 = vrot.slane %v4086, 5
  %v4089 = vor.u32 %v4085, %v4088
  %v4090 = vrot.slane %v4089, 4
  %v4092 = vshll.u32 %v3919, 16
  %v4094 = vrot.slane %v4092, 5
  %v4095 = vsel %vm127, %v4090, %v4094
  %v4097 = vshrl.u32 %v3920, 16
  %v4099 = vrot.slane %v4097, 4
  %v4100 = vshll.u32 %v3920, 16
  %v4102 = vrot.slane %v4100, 5
  %v4103 = vor.u32 %v4099, %v4102
  %v4104 = vrot.slane %v4103, 4
  %v4106 = vshll.u32 %v3921, 16
  %v4108 = vrot.slane %v4106, 5
  %v4109 = vsel %vm127, %v4104, %v4108
  %v4111 = vshrl.u32 %v3922, 16
  %v4113 = vrot.slane %v4111, 4
  %v4114 = vshll.u32 %v3922, 16
  %v4116 = vrot.slane %v4114, 5
  %v4117 = vor.u32 %v4113, %v4116
  %v4118 = vrot.slane %v4117, 4
  %v4120 = vshll.u32 %v3923, 16
  %v4122 = vrot.slane %v4120, 5
  %v4123 = vsel %vm127, %v4118, %v4122
  %v4125 = vshrl.u32 %v3924, 16
  %v4127 = vrot.slane %v4125, 4
  %v4128 = vshll.u32 %v3924, 16
  %v4130 = vrot.slane %v4128, 5
  %v4131 = vor.u32 %v4127, %v4130
  %v4132 = vrot.slane %v4131, 4
  %v4134 = vshll.u32 %v3925, 16
  %v4136 = vrot.slane %v4134, 5
  %v4137 = vsel %vm127, %v4132, %v4136
  %v4139 = vshrl.u32 %v3926, 16
  %v4141 = vrot.slane %v4139, 4
  %v4142 = vshll.u32 %v3926, 16
  %v4144 = vrot.slane %v4142, 5
  %v4145 = vor.u32 %v4141, %v4144
  %v4146 = vrot.slane %v4145, 4
  %v4148 = vshll.u32 %v3927, 16
  %v4150 = vrot.slane %v4148, 5
  %v4151 = vsel %vm127, %v4146, %v4150
  %v4152 = vunpack.c.l.b16 %v3941
  %v4153 = vunpack.c.l.b16 %v3955
  %v4154 = vunpack.c.l.b16 %v3969
  %v4155 = vunpack.c.l.b16 %v3983
  %v4156 = vunpack.c.l.b16 %v3997
  %v4157 = vunpack.c.l.b16 %v4011
  %v4158 = vunpack.c.l.b16 %v4025
  %v4159 = vunpack.c.l.b16 %v4039
  %v4160 = vunpack.c.l.b16 %v4053
  %v4161 = vunpack.c.l.b16 %v4067
  %v4162 = vunpack.c.l.b16 %v4081
  %v4163 = vunpack.c.l.b16 %v4095
  %v4164 = vunpack.c.l.b16 %v4109
  %v4165 = vunpack.c.l.b16 %v4123
  %v4166 = vunpack.c.l.b16 %v4137
  %v4167 = vunpack.c.l.b16 %v4151
  %v4168 = vpack.c.b16 %v4153, %v4152
  %v4169 = vpack.c.b16 %v4155, %v4154
  %v4170 = vpack.c.b16 %v4157, %v4156
  %v4171 = vpack.c.b16 %v4159, %v4158
  %v4172 = vpack.c.b16 %v4161, %v4160
  %v4173 = vpack.c.b16 %v4163, %v4162
  %v4174 = vpack.c.b16 %v4165, %v4164
  %v4175 = vpack.c.b16 %v4167, %v4166
  %4184 = vst [vmem:[#allocation4 + $0x20] sm:$0xff] %v4168
  %4185 = vst [vmem:[#allocation4 + $0x68] sm:$0xff] %v4169
  %4186 = vst [vmem:[#allocation4 + $0xb0] sm:$0xff] %v4170
  %4187 = vst [vmem:[#allocation4 + $0xf8] sm:$0xff] %v4171
  %4188 = vst [vmem:[#allocation4 + $0x140] sm:$0xff] %v4172
  %4189 = vst [vmem:[#allocation4 + $0x188] sm:$0xff] %v4173
  %4190 = vst [vmem:[#allocation4 + $0x1d0] sm:$0xff] %v4174
  %4191 = vst [vmem:[#allocation4 + $0x218] sm:$0xff] %v4175
  %v4192 = vld [vmem:[%s2806] sm:$0x1e]
  %v4193 = vld [vmem:[%s2806 + $0x8] sm:$0x1e]
  %v4194 = vld [vmem:[%s2806 + $0x10] sm:$0x1e]
  %v4195 = vld [vmem:[%s2806 + $0x18] sm:$0x1e]
  %v4196 = vld [vmem:[%s2806 + $0x20] sm:$0x1e]
  %v4197 = vld [vmem:[%s2806 + $0x28] sm:$0x1e]
  %v4198 = vld [vmem:[%s2806 + $0x30] sm:$0x1e]
  %v4199 = vld [vmem:[%s2806 + $0x38] sm:$0x1e]
  %v4200 = vld [vmem:[%s2806 + $0x50] sm:$0x1e]
  %v4201 = vld [vmem:[%s2806 + $0x58] sm:$0x1e]
  %v4202 = vld [vmem:[%s2806 + $0x60] sm:$0x1e]
  %v4203 = vld [vmem:[%s2806 + $0x68] sm:$0x1e]
  %v4204 = vld [vmem:[%s2806 + $0x70] sm:$0x1e]
  %v4205 = vld [vmem:[%s2806 + $0x78] sm:$0x1e]
  %v4206 = vld [vmem:[%s2806 + $0x80] sm:$0x1e]
  %v4207 = vld [vmem:[%s2806 + $0x88] sm:$0x1e]
  %v4224 = vunpack.c.l.b16 %v4192
  %v4225 = vunpack.c.h.b16 %v4192
  %v4226 = vunpack.c.l.b16 %v4193
  %v4227 = vunpack.c.h.b16 %v4193
  %v4228 = vunpack.c.l.b16 %v4194
  %v4229 = vunpack.c.h.b16 %v4194
  %v4230 = vunpack.c.l.b16 %v4195
  %v4231 = vunpack.c.h.b16 %v4195
  %v4232 = vunpack.c.l.b16 %v4196
  %v4233 = vunpack.c.h.b16 %v4196
  %v4234 = vunpack.c.l.b16 %v4197
  %v4235 = vunpack.c.h.b16 %v4197
  %v4236 = vunpack.c.l.b16 %v4198
  %v4237 = vunpack.c.h.b16 %v4198
  %v4238 = vunpack.c.l.b16 %v4199
  %v4239 = vunpack.c.h.b16 %v4199
  %v4240 = vunpack.c.l.b16 %v4200
  %v4241 = vunpack.c.h.b16 %v4200
  %v4242 = vunpack.c.l.b16 %v4201
  %v4243 = vunpack.c.h.b16 %v4201
  %v4244 = vunpack.c.l.b16 %v4202
  %v4245 = vunpack.c.h.b16 %v4202
  %v4246 = vunpack.c.l.b16 %v4203
  %v4247 = vunpack.c.h.b16 %v4203
  %v4248 = vunpack.c.l.b16 %v4204
  %v4249 = vunpack.c.h.b16 %v4204
  %v4250 = vunpack.c.l.b16 %v4205
  %v4251 = vunpack.c.h.b16 %v4205
  %v4252 = vunpack.c.l.b16 %v4206
  %v4253 = vunpack.c.h.b16 %v4206
  %v4254 = vunpack.c.l.b16 %v4207
  %v4255 = vunpack.c.h.b16 %v4207
  %v4256 = vpack.c.b16 %v4224, %v4224
  %v4257 = vpack.c.b16 %v4225, %v4225
  %v4258 = vpack.c.b16 %v4226, %v4226
  %v4259 = vpack.c.b16 %v4227, %v4227
  %v4260 = vpack.c.b16 %v4228, %v4228
  %v4261 = vpack.c.b16 %v4229, %v4229
  %v4262 = vpack.c.b16 %v4230, %v4230
  %v4263 = vpack.c.b16 %v4231, %v4231
  %v4264 = vpack.c.b16 %v4232, %v4232
  %v4265 = vpack.c.b16 %v4233, %v4233
  %v4266 = vpack.c.b16 %v4234, %v4234
  %v4267 = vpack.c.b16 %v4235, %v4235
  %v4268 = vpack.c.b16 %v4236, %v4236
  %v4269 = vpack.c.b16 %v4237, %v4237
  %v4270 = vpack.c.b16 %v4238, %v4238
  %v4271 = vpack.c.b16 %v4239, %v4239
  %v4272 = vpack.c.b16 %v4240, %v4240
  %v4273 = vpack.c.b16 %v4241, %v4241
  %v4274 = vpack.c.b16 %v4242, %v4242
  %v4275 = vpack.c.b16 %v4243, %v4243
  %v4276 = vpack.c.b16 %v4244, %v4244
  %v4277 = vpack.c.b16 %v4245, %v4245
  %v4278 = vpack.c.b16 %v4246, %v4246
  %v4279 = vpack.c.b16 %v4247, %v4247
  %v4280 = vpack.c.b16 %v4248, %v4248
  %v4281 = vpack.c.b16 %v4249, %v4249
  %v4282 = vpack.c.b16 %v4250, %v4250
  %v4283 = vpack.c.b16 %v4251, %v4251
  %v4284 = vpack.c.b16 %v4252, %v4252
  %v4285 = vpack.c.b16 %v4253, %v4253
  %v4286 = vpack.c.b16 %v4254, %v4254
  %v4287 = vpack.c.b16 %v4255, %v4255
  %v4288 = vrot.slane %v4256, 5
  %v4289 = vrot.slane %v4288, 4
  %v4290 = vrot.slane %v4257, 5
  %v4291 = vsel %vm458, %v4289, %v4290
  %v4292 = vrot.slane %v4258, 5
  %v4293 = vrot.slane %v4292, 4
  %v4294 = vrot.slane %v4259, 5
  %v4295 = vsel %vm458, %v4293, %v4294
  %v4296 = vrot.slane %v4260, 5
  %v4297 = vrot.slane %v4296, 4
  %v4298 = vrot.slane %v4261, 5
  %v4299 = vsel %vm458, %v4297, %v4298
  %v4300 = vrot.slane %v4262, 5
  %v4301 = vrot.slane %v4300, 4
  %v4302 = vrot.slane %v4263, 5
  %v4303 = vsel %vm458, %v4301, %v4302
  %v4304 = vrot.slane %v4264, 5
  %v4305 = vrot.slane %v4304, 4
  %v4306 = vrot.slane %v4265, 5
  %v4307 = vsel %vm458, %v4305, %v4306
  %v4308 = vrot.slane %v4266, 5
  %v4309 = vrot.slane %v4308, 4
  %v4310 = vrot.slane %v4267, 5
  %v4311 = vsel %vm458, %v4309, %v4310
  %v4312 = vrot.slane %v4268, 5
  %v4313 = vrot.slane %v4312, 4
  %v4314 = vrot.slane %v4269, 5
  %v4315 = vsel %vm458, %v4313, %v4314
  %v4316 = vrot.slane %v4270, 5
  %v4317 = vrot.slane %v4316, 4
  %v4318 = vrot.slane %v4271, 5
  %v4319 = vsel %vm458, %v4317, %v4318
  %v4320 = vrot.slane %v4272, 5
  %v4321 = vrot.slane %v4320, 4
  %v4322 = vrot.slane %v4273, 5
  %v4323 = vsel %vm458, %v4321, %v4322
  %v4324 = vrot.slane %v4274, 5
  %v4325 = vrot.slane %v4324, 4
  %v4326 = vrot.slane %v4275, 5
  %v4327 = vsel %vm458, %v4325, %v4326
  %v4328 = vrot.slane %v4276, 5
  %v4329 = vrot.slane %v4328, 4
  %v4330 = vrot.slane %v4277, 5
  %v4331 = vsel %vm458, %v4329, %v4330
  %v4332 = vrot.slane %v4278, 5
  %v4333 = vrot.slane %v4332, 4
  %v4334 = vrot.slane %v4279, 5
  %v4335 = vsel %vm458, %v4333, %v4334
  %v4336 = vrot.slane %v4280, 5
  %v4337 = vrot.slane %v4336, 4
  %v4338 = vrot.slane %v4281, 5
  %v4339 = vsel %vm458, %v4337, %v4338
  %v4340 = vrot.slane %v4282, 5
  %v4341 = vrot.slane %v4340, 4
  %v4342 = vrot.slane %v4283, 5
  %v4343 = vsel %vm458, %v4341, %v4342
  %v4344 = vrot.slane %v4284, 5
  %v4345 = vrot.slane %v4344, 4
  %v4346 = vrot.slane %v4285, 5
  %v4347 = vsel %vm458, %v4345, %v4346
  %v4348 = vrot.slane %v4286, 5
  %v4349 = vrot.slane %v4348, 4
  %v4350 = vrot.slane %v4287, 5
  %v4351 = vsel %vm458, %v4349, %v4350
  %v4352 = vunpack.c.l.b16 %v4291
  %v4353 = vunpack.c.l.b16 %v4295
  %v4354 = vunpack.c.l.b16 %v4299
  %v4355 = vunpack.c.l.b16 %v4303
  %v4356 = vunpack.c.l.b16 %v4307
  %v4357 = vunpack.c.l.b16 %v4311
  %v4358 = vunpack.c.l.b16 %v4315
  %v4359 = vunpack.c.l.b16 %v4319
  %v4360 = vunpack.c.l.b16 %v4323
  %v4361 = vunpack.c.l.b16 %v4327
  %v4362 = vunpack.c.l.b16 %v4331
  %v4363 = vunpack.c.l.b16 %v4335
  %v4364 = vunpack.c.l.b16 %v4339
  %v4365 = vunpack.c.l.b16 %v4343
  %v4366 = vunpack.c.l.b16 %v4347
  %v4367 = vunpack.c.l.b16 %v4351
  %v4368 = vpack.c.b16 %v4353, %v4352
  %v4369 = vpack.c.b16 %v4355, %v4354
  %v4370 = vpack.c.b16 %v4357, %v4356
  %v4371 = vpack.c.b16 %v4359, %v4358
  %v4372 = vpack.c.b16 %v4361, %v4360
  %v4373 = vpack.c.b16 %v4363, %v4362
  %v4374 = vpack.c.b16 %v4365, %v4364
  %v4375 = vpack.c.b16 %v4367, %v4366
  %4384 = vst [vmem:[#allocation4 + $0x28] sm:$0xff] %v4368
  %4385 = vst [vmem:[#allocation4 + $0x70] sm:$0xff] %v4369
  %4386 = vst [vmem:[#allocation4 + $0xb8] sm:$0xff] %v4370
  %4387 = vst [vmem:[#allocation4 + $0x100] sm:$0xff] %v4371
  %4388 = vst [vmem:[#allocation4 + $0x148] sm:$0xff] %v4372
  %4389 = vst [vmem:[#allocation4 + $0x190] sm:$0xff] %v4373
  %4390 = vst [vmem:[#allocation4 + $0x1d8] sm:$0xff] %v4374
  %4391 = vst [vmem:[#allocation4 + $0x220] sm:$0xff] %v4375
  %s4392 = scalar_lea.vmem [#allocation3], 16
  %v4393 = vld [vmem:[%s4392] sm:$0xf]
  %v4394 = vld [vmem:[%s4392 + $0x8] sm:$0xf]
  %v4395 = vld [vmem:[%s4392 + $0x10] sm:$0xf]
  %v4396 = vld [vmem:[%s4392 + $0x18] sm:$0xf]
  %v4397 = vld [vmem:[%s4392 + $0x20] sm:$0xf]
  %v4398 = vld [vmem:[%s4392 + $0x28] sm:$0xf]
  %v4399 = vld [vmem:[%s4392 + $0x30] sm:$0xf]
  %v4400 = vld [vmem:[%s4392 + $0x38] sm:$0xf]
  %v4401 = vld [vmem:[%s4392 + $0x50] sm:$0xf]
  %v4402 = vld [vmem:[%s4392 + $0x58] sm:$0xf]
  %v4403 = vld [vmem:[%s4392 + $0x60] sm:$0xf]
  %v4404 = vld [vmem:[%s4392 + $0x68] sm:$0xf]
  %v4405 = vld [vmem:[%s4392 + $0x70] sm:$0xf]
  %v4406 = vld [vmem:[%s4392 + $0x78] sm:$0xf]
  %v4407 = vld [vmem:[%s4392 + $0x80] sm:$0xf]
  %v4408 = vld [vmem:[%s4392 + $0x88] sm:$0xf]
  %v4425 = vunpack.c.l.b16 %v4393
  %v4426 = vunpack.c.l.b16 %v4394
  %v4427 = vunpack.c.l.b16 %v4395
  %v4428 = vunpack.c.l.b16 %v4396
  %v4429 = vunpack.c.l.b16 %v4397
  %v4430 = vunpack.c.l.b16 %v4398
  %v4431 = vunpack.c.l.b16 %v4399
  %v4432 = vunpack.c.l.b16 %v4400
  %v4433 = vunpack.c.l.b16 %v4401
  %v4434 = vunpack.c.l.b16 %v4402
  %v4435 = vunpack.c.l.b16 %v4403
  %v4436 = vunpack.c.l.b16 %v4404
  %v4437 = vunpack.c.l.b16 %v4405
  %v4438 = vunpack.c.l.b16 %v4406
  %v4439 = vunpack.c.l.b16 %v4407
  %v4440 = vunpack.c.l.b16 %v4408
  %v4441 = vpack.c.b16 %v4426, %v4425
  %v4442 = vpack.c.b16 %v4428, %v4427
  %v4443 = vpack.c.b16 %v4430, %v4429
  %v4444 = vpack.c.b16 %v4432, %v4431
  %v4445 = vpack.c.b16 %v4434, %v4433
  %v4446 = vpack.c.b16 %v4436, %v4435
  %v4447 = vpack.c.b16 %v4438, %v4437
  %v4448 = vpack.c.b16 %v4440, %v4439
  %4457 = vst [vmem:[#allocation4 + $0x30] sm:$0xff] %v4441
  %4458 = vst [vmem:[#allocation4 + $0x78] sm:$0xff] %v4442
  %4459 = vst [vmem:[#allocation4 + $0xc0] sm:$0xff] %v4443
  %4460 = vst [vmem:[#allocation4 + $0x108] sm:$0xff] %v4444
  %4461 = vst [vmem:[#allocation4 + $0x150] sm:$0xff] %v4445
  %4462 = vst [vmem:[#allocation4 + $0x198] sm:$0xff] %v4446
  %4463 = vst [vmem:[#allocation4 + $0x1e0] sm:$0xff] %v4447
  %4464 = vst [vmem:[#allocation4 + $0x228] sm:$0xff] %v4448
  %v4465 = vld [vmem:[%s4392] sm:$0x1f]
  %v4466 = vld [vmem:[%s4392 + $0x8] sm:$0x1f]
  %v4467 = vld [vmem:[%s4392 + $0x10] sm:$0x1f]
  %v4468 = vld [vmem:[%s4392 + $0x18] sm:$0x1f]
  %v4469 = vld [vmem:[%s4392 + $0x20] sm:$0x1f]
  %v4470 = vld [vmem:[%s4392 + $0x28] sm:$0x1f]
  %v4471 = vld [vmem:[%s4392 + $0x30] sm:$0x1f]
  %v4472 = vld [vmem:[%s4392 + $0x38] sm:$0x1f]
  %v4473 = vld [vmem:[%s4392 + $0x50] sm:$0x1f]
  %v4474 = vld [vmem:[%s4392 + $0x58] sm:$0x1f]
  %v4475 = vld [vmem:[%s4392 + $0x60] sm:$0x1f]
  %v4476 = vld [vmem:[%s4392 + $0x68] sm:$0x1f]
  %v4477 = vld [vmem:[%s4392 + $0x70] sm:$0x1f]
  %v4478 = vld [vmem:[%s4392 + $0x78] sm:$0x1f]
  %v4479 = vld [vmem:[%s4392 + $0x80] sm:$0x1f]
  %v4480 = vld [vmem:[%s4392 + $0x88] sm:$0x1f]
  %v4497 = vunpack.c.l.b16 %v4465
  %v4498 = vunpack.c.h.b16 %v4465
  %v4499 = vunpack.c.l.b16 %v4466
  %v4500 = vunpack.c.h.b16 %v4466
  %v4501 = vunpack.c.l.b16 %v4467
  %v4502 = vunpack.c.h.b16 %v4467
  %v4503 = vunpack.c.l.b16 %v4468
  %v4504 = vunpack.c.h.b16 %v4468
  %v4505 = vunpack.c.l.b16 %v4469
  %v4506 = vunpack.c.h.b16 %v4469
  %v4507 = vunpack.c.l.b16 %v4470
  %v4508 = vunpack.c.h.b16 %v4470
  %v4509 = vunpack.c.l.b16 %v4471
  %v4510 = vunpack.c.h.b16 %v4471
  %v4511 = vunpack.c.l.b16 %v4472
  %v4512 = vunpack.c.h.b16 %v4472
  %v4513 = vunpack.c.l.b16 %v4473
  %v4514 = vunpack.c.h.b16 %v4473
  %v4515 = vunpack.c.l.b16 %v4474
  %v4516 = vunpack.c.h.b16 %v4474
  %v4517 = vunpack.c.l.b16 %v4475
  %v4518 = vunpack.c.h.b16 %v4475
  %v4519 = vunpack.c.l.b16 %v4476
  %v4520 = vunpack.c.h.b16 %v4476
  %v4521 = vunpack.c.l.b16 %v4477
  %v4522 = vunpack.c.h.b16 %v4477
  %v4523 = vunpack.c.l.b16 %v4478
  %v4524 = vunpack.c.h.b16 %v4478
  %v4525 = vunpack.c.l.b16 %v4479
  %v4526 = vunpack.c.h.b16 %v4479
  %v4527 = vunpack.c.l.b16 %v4480
  %v4528 = vunpack.c.h.b16 %v4480
  %v4529 = vpack.c.b16 %v4497, %v4497
  %v4530 = vpack.c.b16 %v4498, %v4498
  %v4531 = vpack.c.b16 %v4499, %v4499
  %v4532 = vpack.c.b16 %v4500, %v4500
  %v4533 = vpack.c.b16 %v4501, %v4501
  %v4534 = vpack.c.b16 %v4502, %v4502
  %v4535 = vpack.c.b16 %v4503, %v4503
  %v4536 = vpack.c.b16 %v4504, %v4504
  %v4537 = vpack.c.b16 %v4505, %v4505
  %v4538 = vpack.c.b16 %v4506, %v4506
  %v4539 = vpack.c.b16 %v4507, %v4507
  %v4540 = vpack.c.b16 %v4508, %v4508
  %v4541 = vpack.c.b16 %v4509, %v4509
  %v4542 = vpack.c.b16 %v4510, %v4510
  %v4543 = vpack.c.b16 %v4511, %v4511
  %v4544 = vpack.c.b16 %v4512, %v4512
  %v4545 = vpack.c.b16 %v4513, %v4513
  %v4546 = vpack.c.b16 %v4514, %v4514
  %v4547 = vpack.c.b16 %v4515, %v4515
  %v4548 = vpack.c.b16 %v4516, %v4516
  %v4549 = vpack.c.b16 %v4517, %v4517
  %v4550 = vpack.c.b16 %v4518, %v4518
  %v4551 = vpack.c.b16 %v4519, %v4519
  %v4552 = vpack.c.b16 %v4520, %v4520
  %v4553 = vpack.c.b16 %v4521, %v4521
  %v4554 = vpack.c.b16 %v4522, %v4522
  %v4555 = vpack.c.b16 %v4523, %v4523
  %v4556 = vpack.c.b16 %v4524, %v4524
  %v4557 = vpack.c.b16 %v4525, %v4525
  %v4558 = vpack.c.b16 %v4526, %v4526
  %v4559 = vpack.c.b16 %v4527, %v4527
  %v4560 = vpack.c.b16 %v4528, %v4528
  %v4562 = vshrl.u32 %v4529, 16
  %v4564 = vrot.slane %v4562, 4
  %v4565 = vshll.u32 %v4529, 16
  %v4567 = vrot.slane %v4565, 5
  %v4568 = vor.u32 %v4564, %v4567
  %v4569 = vrot.slane %v4568, 4
  %v4571 = vshll.u32 %v4530, 16
  %v4573 = vrot.slane %v4571, 5
  %v4574 = vsel %vm127, %v4569, %v4573
  %v4576 = vshrl.u32 %v4531, 16
  %v4578 = vrot.slane %v4576, 4
  %v4579 = vshll.u32 %v4531, 16
  %v4581 = vrot.slane %v4579, 5
  %v4582 = vor.u32 %v4578, %v4581
  %v4583 = vrot.slane %v4582, 4
  %v4585 = vshll.u32 %v4532, 16
  %v4587 = vrot.slane %v4585, 5
  %v4588 = vsel %vm127, %v4583, %v4587
  %v4590 = vshrl.u32 %v4533, 16
  %v4592 = vrot.slane %v4590, 4
  %v4593 = vshll.u32 %v4533, 16
  %v4595 = vrot.slane %v4593, 5
  %v4596 = vor.u32 %v4592, %v4595
  %v4597 = vrot.slane %v4596, 4
  %v4599 = vshll.u32 %v4534, 16
  %v4601 = vrot.slane %v4599, 5
  %v4602 = vsel %vm127, %v4597, %v4601
  %v4604 = vshrl.u32 %v4535, 16
  %v4606 = vrot.slane %v4604, 4
  %v4607 = vshll.u32 %v4535, 16
  %v4609 = vrot.slane %v4607, 5
  %v4610 = vor.u32 %v4606, %v4609
  %v4611 = vrot.slane %v4610, 4
  %v4613 = vshll.u32 %v4536, 16
  %v4615 = vrot.slane %v4613, 5
  %v4616 = vsel %vm127, %v4611, %v4615
  %v4618 = vshrl.u32 %v4537, 16
  %v4620 = vrot.slane %v4618, 4
  %v4621 = vshll.u32 %v4537, 16
  %v4623 = vrot.slane %v4621, 5
  %v4624 = vor.u32 %v4620, %v4623
  %v4625 = vrot.slane %v4624, 4
  %v4627 = vshll.u32 %v4538, 16
  %v4629 = vrot.slane %v4627, 5
  %v4630 = vsel %vm127, %v4625, %v4629
  %v4632 = vshrl.u32 %v4539, 16
  %v4634 = vrot.slane %v4632, 4
  %v4635 = vshll.u32 %v4539, 16
  %v4637 = vrot.slane %v4635, 5
  %v4638 = vor.u32 %v4634, %v4637
  %v4639 = vrot.slane %v4638, 4
  %v4641 = vshll.u32 %v4540, 16
  %v4643 = vrot.slane %v4641, 5
  %v4644 = vsel %vm127, %v4639, %v4643
  %v4646 = vshrl.u32 %v4541, 16
  %v4648 = vrot.slane %v4646, 4
  %v4649 = vshll.u32 %v4541, 16
  %v4651 = vrot.slane %v4649, 5
  %v4652 = vor.u32 %v4648, %v4651
  %v4653 = vrot.slane %v4652, 4
  %v4655 = vshll.u32 %v4542, 16
  %v4657 = vrot.slane %v4655, 5
  %v4658 = vsel %vm127, %v4653, %v4657
  %v4660 = vshrl.u32 %v4543, 16
  %v4662 = vrot.slane %v4660, 4
  %v4663 = vshll.u32 %v4543, 16
  %v4665 = vrot.slane %v4663, 5
  %v4666 = vor.u32 %v4662, %v4665
  %v4667 = vrot.slane %v4666, 4
  %v4669 = vshll.u32 %v4544, 16
  %v4671 = vrot.slane %v4669, 5
  %v4672 = vsel %vm127, %v4667, %v4671
  %v4674 = vshrl.u32 %v4545, 16
  %v4676 = vrot.slane %v4674, 4
  %v4677 = vshll.u32 %v4545, 16
  %v4679 = vrot.slane %v4677, 5
  %v4680 = vor.u32 %v4676, %v4679
  %v4681 = vrot.slane %v4680, 4
  %v4683 = vshll.u32 %v4546, 16
  %v4685 = vrot.slane %v4683, 5
  %v4686 = vsel %vm127, %v4681, %v4685
  %v4688 = vshrl.u32 %v4547, 16
  %v4690 = vrot.slane %v4688, 4
  %v4691 = vshll.u32 %v4547, 16
  %v4693 = vrot.slane %v4691, 5
  %v4694 = vor.u32 %v4690, %v4693
  %v4695 = vrot.slane %v4694, 4
  %v4697 = vshll.u32 %v4548, 16
  %v4699 = vrot.slane %v4697, 5
  %v4700 = vsel %vm127, %v4695, %v4699
  %v4702 = vshrl.u32 %v4549, 16
  %v4704 = vrot.slane %v4702, 4
  %v4705 = vshll.u32 %v4549, 16
  %v4707 = vrot.slane %v4705, 5
  %v4708 = vor.u32 %v4704, %v4707
  %v4709 = vrot.slane %v4708, 4
  %v4711 = vshll.u32 %v4550, 16
  %v4713 = vrot.slane %v4711, 5
  %v4714 = vsel %vm127, %v4709, %v4713
  %v4716 = vshrl.u32 %v4551, 16
  %v4718 = vrot.slane %v4716, 4
  %v4719 = vshll.u32 %v4551, 16
  %v4721 = vrot.slane %v4719, 5
  %v4722 = vor.u32 %v4718, %v4721
  %v4723 = vrot.slane %v4722, 4
  %v4725 = vshll.u32 %v4552, 16
  %v4727 = vrot.slane %v4725, 5
  %v4728 = vsel %vm127, %v4723, %v4727
  %v4730 = vshrl.u32 %v4553, 16
  %v4732 = vrot.slane %v4730, 4
  %v4733 = vshll.u32 %v4553, 16
  %v4735 = vrot.slane %v4733, 5
  %v4736 = vor.u32 %v4732, %v4735
  %v4737 = vrot.slane %v4736, 4
  %v4739 = vshll.u32 %v4554, 16
  %v4741 = vrot.slane %v4739, 5
  %v4742 = vsel %vm127, %v4737, %v4741
  %v4744 = vshrl.u32 %v4555, 16
  %v4746 = vrot.slane %v4744, 4
  %v4747 = vshll.u32 %v4555, 16
  %v4749 = vrot.slane %v4747, 5
  %v4750 = vor.u32 %v4746, %v4749
  %v4751 = vrot.slane %v4750, 4
  %v4753 = vshll.u32 %v4556, 16
  %v4755 = vrot.slane %v4753, 5
  %v4756 = vsel %vm127, %v4751, %v4755
  %v4758 = vshrl.u32 %v4557, 16
  %v4760 = vrot.slane %v4758, 4
  %v4761 = vshll.u32 %v4557, 16
  %v4763 = vrot.slane %v4761, 5
  %v4764 = vor.u32 %v4760, %v4763
  %v4765 = vrot.slane %v4764, 4
  %v4767 = vshll.u32 %v4558, 16
  %v4769 = vrot.slane %v4767, 5
  %v4770 = vsel %vm127, %v4765, %v4769
  %v4772 = vshrl.u32 %v4559, 16
  %v4774 = vrot.slane %v4772, 4
  %v4775 = vshll.u32 %v4559, 16
  %v4777 = vrot.slane %v4775, 5
  %v4778 = vor.u32 %v4774, %v4777
  %v4779 = vrot.slane %v4778, 4
  %v4781 = vshll.u32 %v4560, 16
  %v4783 = vrot.slane %v4781, 5
  %v4784 = vsel %vm127, %v4779, %v4783
  %v4785 = vunpack.c.l.b16 %v4574
  %v4786 = vunpack.c.l.b16 %v4588
  %v4787 = vunpack.c.l.b16 %v4602
  %v4788 = vunpack.c.l.b16 %v4616
  %v4789 = vunpack.c.l.b16 %v4630
  %v4790 = vunpack.c.l.b16 %v4644
  %v4791 = vunpack.c.l.b16 %v4658
  %v4792 = vunpack.c.l.b16 %v4672
  %v4793 = vunpack.c.l.b16 %v4686
  %v4794 = vunpack.c.l.b16 %v4700
  %v4795 = vunpack.c.l.b16 %v4714
  %v4796 = vunpack.c.l.b16 %v4728
  %v4797 = vunpack.c.l.b16 %v4742
  %v4798 = vunpack.c.l.b16 %v4756
  %v4799 = vunpack.c.l.b16 %v4770
  %v4800 = vunpack.c.l.b16 %v4784
  %v4801 = vpack.c.b16 %v4786, %v4785
  %v4802 = vpack.c.b16 %v4788, %v4787
  %v4803 = vpack.c.b16 %v4790, %v4789
  %v4804 = vpack.c.b16 %v4792, %v4791
  %v4805 = vpack.c.b16 %v4794, %v4793
  %v4806 = vpack.c.b16 %v4796, %v4795
  %v4807 = vpack.c.b16 %v4798, %v4797
  %v4808 = vpack.c.b16 %v4800, %v4799
  %4817 = vst [vmem:[#allocation4 + $0x38] sm:$0xff] %v4801
  %4818 = vst [vmem:[#allocation4 + $0x80] sm:$0xff] %v4802
  %4819 = vst [vmem:[#allocation4 + $0xc8] sm:$0xff] %v4803
  %4820 = vst [vmem:[#allocation4 + $0x110] sm:$0xff] %v4804
  %4821 = vst [vmem:[#allocation4 + $0x158] sm:$0xff] %v4805
  %4822 = vst [vmem:[#allocation4 + $0x1a0] sm:$0xff] %v4806
  %4823 = vst [vmem:[#allocation4 + $0x1e8] sm:$0xff] %v4807
  %4824 = vst [vmem:[#allocation4 + $0x230] sm:$0xff] %v4808
  %v4825 = vld [vmem:[%s4392] sm:$0x1e]
  %v4826 = vld [vmem:[%s4392 + $0x8] sm:$0x1e]
  %v4827 = vld [vmem:[%s4392 + $0x10] sm:$0x1e]
  %v4828 = vld [vmem:[%s4392 + $0x18] sm:$0x1e]
  %v4829 = vld [vmem:[%s4392 + $0x20] sm:$0x1e]
  %v4830 = vld [vmem:[%s4392 + $0x28] sm:$0x1e]
  %v4831 = vld [vmem:[%s4392 + $0x30] sm:$0x1e]
  %v4832 = vld [vmem:[%s4392 + $0x38] sm:$0x1e]
  %v4833 = vld [vmem:[%s4392 + $0x50] sm:$0x1e]
  %v4834 = vld [vmem:[%s4392 + $0x58] sm:$0x1e]
  %v4835 = vld [vmem:[%s4392 + $0x60] sm:$0x1e]
  %v4836 = vld [vmem:[%s4392 + $0x68] sm:$0x1e]
  %v4837 = vld [vmem:[%s4392 + $0x70] sm:$0x1e]
  %v4838 = vld [vmem:[%s4392 + $0x78] sm:$0x1e]
  %v4839 = vld [vmem:[%s4392 + $0x80] sm:$0x1e]
  %v4840 = vld [vmem:[%s4392 + $0x88] sm:$0x1e]
  %v4857 = vunpack.c.l.b16 %v4825
  %v4858 = vunpack.c.h.b16 %v4825
  %v4859 = vunpack.c.l.b16 %v4826
  %v4860 = vunpack.c.h.b16 %v4826
  %v4861 = vunpack.c.l.b16 %v4827
  %v4862 = vunpack.c.h.b16 %v4827
  %v4863 = vunpack.c.l.b16 %v4828
  %v4864 = vunpack.c.h.b16 %v4828
  %v4865 = vunpack.c.l.b16 %v4829
  %v4866 = vunpack.c.h.b16 %v4829
  %v4867 = vunpack.c.l.b16 %v4830
  %v4868 = vunpack.c.h.b16 %v4830
  %v4869 = vunpack.c.l.b16 %v4831
  %v4870 = vunpack.c.h.b16 %v4831
  %v4871 = vunpack.c.l.b16 %v4832
  %v4872 = vunpack.c.h.b16 %v4832
  %v4873 = vunpack.c.l.b16 %v4833
  %v4874 = vunpack.c.h.b16 %v4833
  %v4875 = vunpack.c.l.b16 %v4834
  %v4876 = vunpack.c.h.b16 %v4834
  %v4877 = vunpack.c.l.b16 %v4835
  %v4878 = vunpack.c.h.b16 %v4835
  %v4879 = vunpack.c.l.b16 %v4836
  %v4880 = vunpack.c.h.b16 %v4836
  %v4881 = vunpack.c.l.b16 %v4837
  %v4882 = vunpack.c.h.b16 %v4837
  %v4883 = vunpack.c.l.b16 %v4838
  %v4884 = vunpack.c.h.b16 %v4838
  %v4885 = vunpack.c.l.b16 %v4839
  %v4886 = vunpack.c.h.b16 %v4839
  %v4887 = vunpack.c.l.b16 %v4840
  %v4888 = vunpack.c.h.b16 %v4840
  %v4889 = vpack.c.b16 %v4857, %v4857
  %v4890 = vpack.c.b16 %v4858, %v4858
  %v4891 = vpack.c.b16 %v4859, %v4859
  %v4892 = vpack.c.b16 %v4860, %v4860
  %v4893 = vpack.c.b16 %v4861, %v4861
  %v4894 = vpack.c.b16 %v4862, %v4862
  %v4895 = vpack.c.b16 %v4863, %v4863
  %v4896 = vpack.c.b16 %v4864, %v4864
  %v4897 = vpack.c.b16 %v4865, %v4865
  %v4898 = vpack.c.b16 %v4866, %v4866
  %v4899 = vpack.c.b16 %v4867, %v4867
  %v4900 = vpack.c.b16 %v4868, %v4868
  %v4901 = vpack.c.b16 %v4869, %v4869
  %v4902 = vpack.c.b16 %v4870, %v4870
  %v4903 = vpack.c.b16 %v4871, %v4871
  %v4904 = vpack.c.b16 %v4872, %v4872
  %v4905 = vpack.c.b16 %v4873, %v4873
  %v4906 = vpack.c.b16 %v4874, %v4874
  %v4907 = vpack.c.b16 %v4875, %v4875
  %v4908 = vpack.c.b16 %v4876, %v4876
  %v4909 = vpack.c.b16 %v4877, %v4877
  %v4910 = vpack.c.b16 %v4878, %v4878
  %v4911 = vpack.c.b16 %v4879, %v4879
  %v4912 = vpack.c.b16 %v4880, %v4880
  %v4913 = vpack.c.b16 %v4881, %v4881
  %v4914 = vpack.c.b16 %v4882, %v4882
  %v4915 = vpack.c.b16 %v4883, %v4883
  %v4916 = vpack.c.b16 %v4884, %v4884
  %v4917 = vpack.c.b16 %v4885, %v4885
  %v4918 = vpack.c.b16 %v4886, %v4886
  %v4919 = vpack.c.b16 %v4887, %v4887
  %v4920 = vpack.c.b16 %v4888, %v4888
  %v4921 = vrot.slane %v4889, 5
  %v4922 = vrot.slane %v4921, 4
  %v4923 = vrot.slane %v4890, 5
  %v4924 = vsel %vm458, %v4922, %v4923
  %v4925 = vrot.slane %v4891, 5
  %v4926 = vrot.slane %v4925, 4
  %v4927 = vrot.slane %v4892, 5
  %v4928 = vsel %vm458, %v4926, %v4927
  %v4929 = vrot.slane %v4893, 5
  %v4930 = vrot.slane %v4929, 4
  %v4931 = vrot.slane %v4894, 5
  %v4932 = vsel %vm458, %v4930, %v4931
  %v4933 = vrot.slane %v4895, 5
  %v4934 = vrot.slane %v4933, 4
  %v4935 = vrot.slane %v4896, 5
  %v4936 = vsel %vm458, %v4934, %v4935
  %v4937 = vrot.slane %v4897, 5
  %v4938 = vrot.slane %v4937, 4
  %v4939 = vrot.slane %v4898, 5
  %v4940 = vsel %vm458, %v4938, %v4939
  %v4941 = vrot.slane %v4899, 5
  %v4942 = vrot.slane %v4941, 4
  %v4943 = vrot.slane %v4900, 5
  %v4944 = vsel %vm458, %v4942, %v4943
  %v4945 = vrot.slane %v4901, 5
  %v4946 = vrot.slane %v4945, 4
  %v4947 = vrot.slane %v4902, 5
  %v4948 = vsel %vm458, %v4946, %v4947
  %v4949 = vrot.slane %v4903, 5
  %v4950 = vrot.slane %v4949, 4
  %v4951 = vrot.slane %v4904, 5
  %v4952 = vsel %vm458, %v4950, %v4951
  %v4953 = vrot.slane %v4905, 5
  %v4954 = vrot.slane %v4953, 4
  %v4955 = vrot.slane %v4906, 5
  %v4956 = vsel %vm458, %v4954, %v4955
  %v4957 = vrot.slane %v4907, 5
  %v4958 = vrot.slane %v4957, 4
  %v4959 = vrot.slane %v4908, 5
  %v4960 = vsel %vm458, %v4958, %v4959
  %v4961 = vrot.slane %v4909, 5
  %v4962 = vrot.slane %v4961, 4
  %v4963 = vrot.slane %v4910, 5
  %v4964 = vsel %vm458, %v4962, %v4963
  %v4965 = vrot.slane %v4911, 5
  %v4966 = vrot.slane %v4965, 4
  %v4967 = vrot.slane %v4912, 5
  %v4968 = vsel %vm458, %v4966, %v4967
  %v4969 = vrot.slane %v4913, 5
  %v4970 = vrot.slane %v4969, 4
  %v4971 = vrot.slane %v4914, 5
  %v4972 = vsel %vm458, %v4970, %v4971
  %v4973 = vrot.slane %v4915, 5
  %v4974 = vrot.slane %v4973, 4
  %v4975 = vrot.slane %v4916, 5
  %v4976 = vsel %vm458, %v4974, %v4975
  %v4977 = vrot.slane %v4917, 5
  %v4978 = vrot.slane %v4977, 4
  %v4979 = vrot.slane %v4918, 5
  %v4980 = vsel %vm458, %v4978, %v4979
  %v4981 = vrot.slane %v4919, 5
  %v4982 = vrot.slane %v4981, 4
  %v4983 = vrot.slane %v4920, 5
  %v4984 = vsel %vm458, %v4982, %v4983
  %v4985 = vunpack.c.l.b16 %v4924
  %v4986 = vunpack.c.l.b16 %v4928
  %v4987 = vunpack.c.l.b16 %v4932
  %v4988 = vunpack.c.l.b16 %v4936
  %v4989 = vunpack.c.l.b16 %v4940
  %v4990 = vunpack.c.l.b16 %v4944
  %v4991 = vunpack.c.l.b16 %v4948
  %v4992 = vunpack.c.l.b16 %v4952
  %v4993 = vunpack.c.l.b16 %v4956
  %v4994 = vunpack.c.l.b16 %v4960
  %v4995 = vunpack.c.l.b16 %v4964
  %v4996 = vunpack.c.l.b16 %v4968
  %v4997 = vunpack.c.l.b16 %v4972
  %v4998 = vunpack.c.l.b16 %v4976
  %v4999 = vunpack.c.l.b16 %v4980
  %v5000 = vunpack.c.l.b16 %v4984
  %v5001 = vpack.c.b16 %v4986, %v4985
  %v5002 = vpack.c.b16 %v4988, %v4987
  %v5003 = vpack.c.b16 %v4990, %v4989
  %v5004 = vpack.c.b16 %v4992, %v4991
  %v5005 = vpack.c.b16 %v4994, %v4993
  %v5006 = vpack.c.b16 %v4996, %v4995
  %v5007 = vpack.c.b16 %v4998, %v4997
  %v5008 = vpack.c.b16 %v5000, %v4999
  %5017 = vst [vmem:[#allocation4 + $0x40] sm:$0xff] %v5001
  %5018 = vst [vmem:[#allocation4 + $0x88] sm:$0xff] %v5002
  %5019 = vst [vmem:[#allocation4 + $0xd0] sm:$0xff] %v5003
  %5020 = vst [vmem:[#allocation4 + $0x118] sm:$0xff] %v5004
  %5021 = vst [vmem:[#allocation4 + $0x160] sm:$0xff] %v5005
  %5022 = vst [vmem:[#allocation4 + $0x1a8] sm:$0xff] %v5006
  %5023 = vst [vmem:[#allocation4 + $0x1f0] sm:$0xff] %v5007
  %5024 = vst [vmem:[#allocation4 + $0x238] sm:$0xff] %v5008
  %v5025 = vld [vmem:[#allocation4] sm:$0xff]
  %v5026 = vld [vmem:[#allocation4 + $0x8] sm:$0xff]
  %v5027 = vld [vmem:[#allocation4 + $0x10] sm:$0xff]
  %v5028 = vld [vmem:[#allocation4 + $0x18] sm:$0xff]
  %v5029 = vld [vmem:[#allocation4 + $0x20] sm:$0xff]
  %v5030 = vld [vmem:[#allocation4 + $0x28] sm:$0xff]
  %v5031 = vld [vmem:[#allocation4 + $0x30] sm:$0xff]
  %v5032 = vld [vmem:[#allocation4 + $0x38] sm:$0xff]
  %v5033 = vld [vmem:[#allocation4 + $0x40] sm:$0xff]
  %v5034 = vld [vmem:[#allocation4 + $0x48] sm:$0xff]
  %v5035 = vld [vmem:[#allocation4 + $0x50] sm:$0xff]
  %v5036 = vld [vmem:[#allocation4 + $0x58] sm:$0xff]
  %v5037 = vld [vmem:[#allocation4 + $0x60] sm:$0xff]
  %v5038 = vld [vmem:[#allocation4 + $0x68] sm:$0xff]
  %v5039 = vld [vmem:[#allocation4 + $0x70] sm:$0xff]
  %v5040 = vld [vmem:[#allocation4 + $0x78] sm:$0xff]
  %v5041 = vld [vmem:[#allocation4 + $0x80] sm:$0xff]
  %v5042 = vld [vmem:[#allocation4 + $0x88] sm:$0xff]
  %v5043 = vld [vmem:[#allocation4 + $0x90] sm:$0xff]
  %v5044 = vld [vmem:[#allocation4 + $0x98] sm:$0xff]
  %v5045 = vld [vmem:[#allocation4 + $0xa0] sm:$0xff]
  %v5046 = vld [vmem:[#allocation4 + $0xa8] sm:$0xff]
  %v5047 = vld [vmem:[#allocation4 + $0xb0] sm:$0xff]
  %v5048 = vld [vmem:[#allocation4 + $0xb8] sm:$0xff]
  %v5049 = vld [vmem:[#allocation4 + $0xc0] sm:$0xff]
  %v5050 = vld [vmem:[#allocation4 + $0xc8] sm:$0xff]
  %v5051 = vld [vmem:[#allocation4 + $0xd0] sm:$0xff]
  %v5052 = vld [vmem:[#allocation4 + $0xd8] sm:$0xff]
  %v5053 = vld [vmem:[#allocation4 + $0xe0] sm:$0xff]
  %v5054 = vld [vmem:[#allocation4 + $0xe8] sm:$0xff]
  %v5055 = vld [vmem:[#allocation4 + $0xf0] sm:$0xff]
  %v5056 = vld [vmem:[#allocation4 + $0xf8] sm:$0xff]
  %v5057 = vld [vmem:[#allocation4 + $0x100] sm:$0xff]
  %v5058 = vld [vmem:[#allocation4 + $0x108] sm:$0xff]
  %v5059 = vld [vmem:[#allocation4 + $0x110] sm:$0xff]
  %v5060 = vld [vmem:[#allocation4 + $0x118] sm:$0xff]
  %v5061 = vld [vmem:[#allocation4 + $0x120] sm:$0xff]
  %v5062 = vld [vmem:[#allocation4 + $0x128] sm:$0xff]
  %v5063 = vld [vmem:[#allocation4 + $0x130] sm:$0xff]
  %v5064 = vld [vmem:[#allocation4 + $0x138] sm:$0xff]
  %v5065 = vld [vmem:[#allocation4 + $0x140] sm:$0xff]
  %v5066 = vld [vmem:[#allocation4 + $0x148] sm:$0xff]
  %v5067 = vld [vmem:[#allocation4 + $0x150] sm:$0xff]
  %v5068 = vld [vmem:[#allocation4 + $0x158] sm:$0xff]
  %v5069 = vld [vmem:[#allocation4 + $0x160] sm:$0xff]
  %v5070 = vld [vmem:[#allocation4 + $0x168] sm:$0xff]
  %v5071 = vld [vmem:[#allocation4 + $0x170] sm:$0xff]
  %v5072 = vld [vmem:[#allocation4 + $0x178] sm:$0xff]
  %v5073 = vld [vmem:[#allocation4 + $0x180] sm:$0xff]
  %v5074 = vld [vmem:[#allocation4 + $0x188] sm:$0xff]
  %v5075 = vld [vmem:[#allocation4 + $0x190] sm:$0xff]
  %v5076 = vld [vmem:[#allocation4 + $0x198] sm:$0xff]
  %v5077 = vld [vmem:[#allocation4 + $0x1a0] sm:$0xff]
  %v5078 = vld [vmem:[#allocation4 + $0x1a8] sm:$0xff]
  %v5079 = vld [vmem:[#allocation4 + $0x1b0] sm:$0xff]
  %v5080 = vld [vmem:[#allocation4 + $0x1b8] sm:$0xff]
  %v5081 = vld [vmem:[#allocation4 + $0x1c0] sm:$0xff]
  %v5082 = vld [vmem:[#allocation4 + $0x1c8] sm:$0xff]
  %v5083 = vld [vmem:[#allocation4 + $0x1d0] sm:$0xff]
  %v5084 = vld [vmem:[#allocation4 + $0x1d8] sm:$0xff]
  %v5085 = vld [vmem:[#allocation4 + $0x1e0] sm:$0xff]
  %v5086 = vld [vmem:[#allocation4 + $0x1e8] sm:$0xff]
  %v5087 = vld [vmem:[#allocation4 + $0x1f0] sm:$0xff]
  %v5088 = vld [vmem:[#allocation4 + $0x1f8] sm:$0xff]
  %v5089 = vld [vmem:[#allocation4 + $0x200] sm:$0xff]
  %v5090 = vld [vmem:[#allocation4 + $0x208] sm:$0xff]
  %v5091 = vld [vmem:[#allocation4 + $0x210] sm:$0xff]
  %v5092 = vld [vmem:[#allocation4 + $0x218] sm:$0xff]
  %v5093 = vld [vmem:[#allocation4 + $0x220] sm:$0xff]
  %v5094 = vld [vmem:[#allocation4 + $0x228] sm:$0xff]
  %v5095 = vld [vmem:[#allocation4 + $0x230] sm:$0xff]
  %v5096 = vld [vmem:[#allocation4 + $0x238] sm:$0xff]
  %v5097 = vld [vmem:[%s3] sm:$0xf]
  %v5098 = vld [vmem:[%s3 + $0x4] sm:$0xf]
  %v5099 = vld [vmem:[%s3 + $0x8] sm:$0xf]
  %v5100 = vld [vmem:[%s3 + $0xc] sm:$0xf]
  %v5101 = vld [vmem:[%s3 + $0x10] sm:$0xf]
  %v5102 = vld [vmem:[%s3 + $0x14] sm:$0xf]
  %v5103 = vld [vmem:[%s3 + $0x18] sm:$0xf]
  %v5104 = vld [vmem:[%s3 + $0x1c] sm:$0xf]
  %v5105 = vld [vmem:[%s3 + $0x20] sm:$0xf]
  %v5106 = vld [vmem:[%s3 + $0x24] sm:$0xf]
  %v5107 = vld [vmem:[%s3 + $0x28] sm:$0xf]
  %v5108 = vld [vmem:[%s3 + $0x2c] sm:$0xf]
  %v5109 = vld [vmem:[%s3 + $0x30] sm:$0xf]
  %v5110 = vld [vmem:[%s3 + $0x34] sm:$0xf]
  %v5111 = vld [vmem:[%s3 + $0x38] sm:$0xf]
  %v5112 = vld [vmem:[%s3 + $0x3c] sm:$0xf]
  %v5113 = vld [vmem:[%s3 + $0x40] sm:$0xf]
  %v5114 = vld [vmem:[%s3 + $0x44] sm:$0xf]
  %v5115 = vld [vmem:[%s3 + $0x48] sm:$0xf]
  %v5116 = vld [vmem:[%s3 + $0x4c] sm:$0xf]
  %v5117 = vld [vmem:[%s3 + $0x50] sm:$0xf]
  %v5118 = vld [vmem:[%s3 + $0x54] sm:$0xf]
  %v5119 = vld [vmem:[%s3 + $0x58] sm:$0xf]
  %v5120 = vld [vmem:[%s3 + $0x5c] sm:$0xf]
  %v5121 = vld [vmem:[%s3 + $0x60] sm:$0xf]
  %v5122 = vld [vmem:[%s3 + $0x64] sm:$0xf]
  %v5123 = vld [vmem:[%s3 + $0x68] sm:$0xf]
  %v5124 = vld [vmem:[%s3 + $0x6c] sm:$0xf]
  %v5125 = vld [vmem:[%s3 + $0x70] sm:$0xf]
  %v5126 = vld [vmem:[%s3 + $0x74] sm:$0xf]
  %v5127 = vld [vmem:[%s3 + $0x78] sm:$0xf]
  %v5128 = vld [vmem:[%s3 + $0x7c] sm:$0xf]
  %v5129 = vld [vmem:[%s3 + $0x80] sm:$0xf]
  %v5130 = vld [vmem:[%s3 + $0x84] sm:$0xf]
  %v5131 = vld [vmem:[%s3 + $0x88] sm:$0xf]
  %v5132 = vld [vmem:[%s3 + $0x8c] sm:$0xf]
  %v5133 = vld [vmem:[%s3 + $0x90] sm:$0xf]
  %v5134 = vld [vmem:[%s3 + $0x94] sm:$0xf]
  %v5135 = vld [vmem:[%s3 + $0x98] sm:$0xf]
  %v5136 = vld [vmem:[%s3 + $0x9c] sm:$0xf]
  %v5137 = vld [vmem:[%s3 + $0xa0] sm:$0xf]
  %v5138 = vld [vmem:[%s3 + $0xa4] sm:$0xf]
  %v5139 = vld [vmem:[%s3 + $0xa8] sm:$0xf]
  %v5140 = vld [vmem:[%s3 + $0xac] sm:$0xf]
  %v5141 = vld [vmem:[%s3 + $0xb0] sm:$0xf]
  %v5142 = vld [vmem:[%s3 + $0xb4] sm:$0xf]
  %v5143 = vld [vmem:[%s3 + $0xb8] sm:$0xf]
  %v5144 = vld [vmem:[%s3 + $0xbc] sm:$0xf]
  %v5145 = vld [vmem:[%s3 + $0xc0] sm:$0xf]
  %v5146 = vld [vmem:[%s3 + $0xc4] sm:$0xf]
  %v5147 = vld [vmem:[%s3 + $0xc8] sm:$0xf]
  %v5148 = vld [vmem:[%s3 + $0xcc] sm:$0xf]
  %v5149 = vld [vmem:[%s3 + $0xd0] sm:$0xf]
  %v5150 = vld [vmem:[%s3 + $0xd4] sm:$0xf]
  %v5151 = vld [vmem:[%s3 + $0xd8] sm:$0xf]
  %v5152 = vld [vmem:[%s3 + $0xdc] sm:$0xf]
  %v5153 = vld [vmem:[%s3 + $0xe0] sm:$0xf]
  %v5154 = vld [vmem:[%s3 + $0xe4] sm:$0xf]
  %v5155 = vld [vmem:[%s3 + $0xe8] sm:$0xf]
  %v5156 = vld [vmem:[%s3 + $0xec] sm:$0xf]
  %v5157 = vld [vmem:[%s3 + $0xf0] sm:$0xf]
  %v5158 = vld [vmem:[%s3 + $0xf4] sm:$0xf]
  %v5159 = vld [vmem:[%s3 + $0xf8] sm:$0xf]
  %v5160 = vld [vmem:[%s3 + $0xfc] sm:$0xf]
  %v5161 = vld [vmem:[%s3 + $0x100] sm:$0xf]
  %v5162 = vld [vmem:[%s3 + $0x104] sm:$0xf]
  %v5163 = vld [vmem:[%s3 + $0x108] sm:$0xf]
  %v5164 = vld [vmem:[%s3 + $0x10c] sm:$0xf]
  %v5165 = vld [vmem:[%s3 + $0x110] sm:$0xf]
  %v5166 = vld [vmem:[%s3 + $0x114] sm:$0xf]
  %v5167 = vld [vmem:[%s3 + $0x118] sm:$0xf]
  %v5168 = vld [vmem:[%s3 + $0x11c] sm:$0xf]
  %v5169 = vld [vmem:[%s3 + $0x120] sm:$0xf]
  %v5170 = vld [vmem:[%s3 + $0x124] sm:$0xf]
  %v5171 = vld [vmem:[%s3 + $0x128] sm:$0xf]
  %v5172 = vld [vmem:[%s3 + $0x12c] sm:$0xf]
  %v5173 = vld [vmem:[%s3 + $0x130] sm:$0xf]
  %v5174 = vld [vmem:[%s3 + $0x134] sm:$0xf]
  %v5175 = vld [vmem:[%s3 + $0x138] sm:$0xf]
  %v5176 = vld [vmem:[%s3 + $0x13c] sm:$0xf]
  %v5177 = vld [vmem:[%s3 + $0x140] sm:$0xf]
  %v5178 = vld [vmem:[%s3 + $0x144] sm:$0xf]
  %v5179 = vld [vmem:[%s3 + $0x148] sm:$0xf]
  %v5180 = vld [vmem:[%s3 + $0x14c] sm:$0xf]
  %v5181 = vld [vmem:[%s3 + $0x150] sm:$0xf]
  %v5182 = vld [vmem:[%s3 + $0x154] sm:$0xf]
  %v5183 = vld [vmem:[%s3 + $0x158] sm:$0xf]
  %v5184 = vld [vmem:[%s3 + $0x15c] sm:$0xf]
  %v5185 = vld [vmem:[%s3 + $0x160] sm:$0xf]
  %v5186 = vld [vmem:[%s3 + $0x164] sm:$0xf]
  %v5187 = vld [vmem:[%s3 + $0x168] sm:$0xf]
  %v5188 = vld [vmem:[%s3 + $0x16c] sm:$0xf]
  %v5189 = vld [vmem:[%s3 + $0x170] sm:$0xf]
  %v5190 = vld [vmem:[%s3 + $0x174] sm:$0xf]
  %v5191 = vld [vmem:[%s3 + $0x178] sm:$0xf]
  %v5192 = vld [vmem:[%s3 + $0x17c] sm:$0xf]
  %v5193 = vld [vmem:[%s3 + $0x180] sm:$0xf]
  %v5194 = vld [vmem:[%s3 + $0x184] sm:$0xf]
  %v5195 = vld [vmem:[%s3 + $0x188] sm:$0xf]
  %v5196 = vld [vmem:[%s3 + $0x18c] sm:$0xf]
  %v5197 = vld [vmem:[%s3 + $0x190] sm:$0xf]
  %v5198 = vld [vmem:[%s3 + $0x194] sm:$0xf]
  %v5199 = vld [vmem:[%s3 + $0x198] sm:$0xf]
  %v5200 = vld [vmem:[%s3 + $0x19c] sm:$0xf]
  %v5201 = vld [vmem:[%s3 + $0x1a0] sm:$0xf]
  %v5202 = vld [vmem:[%s3 + $0x1a4] sm:$0xf]
  %v5203 = vld [vmem:[%s3 + $0x1a8] sm:$0xf]
  %v5204 = vld [vmem:[%s3 + $0x1ac] sm:$0xf]
  %v5205 = vld [vmem:[%s3 + $0x1b0] sm:$0xf]
  %v5206 = vld [vmem:[%s3 + $0x1b4] sm:$0xf]
  %v5207 = vld [vmem:[%s3 + $0x1b8] sm:$0xf]
  %v5208 = vld [vmem:[%s3 + $0x1bc] sm:$0xf]
  %v5209 = vld [vmem:[%s3 + $0x1c0] sm:$0xf]
  %v5210 = vld [vmem:[%s3 + $0x1c4] sm:$0xf]
  %v5211 = vld [vmem:[%s3 + $0x1c8] sm:$0xf]
  %v5212 = vld [vmem:[%s3 + $0x1cc] sm:$0xf]
  %v5213 = vld [vmem:[%s3 + $0x1d0] sm:$0xf]
  %v5214 = vld [vmem:[%s3 + $0x1d4] sm:$0xf]
  %v5215 = vld [vmem:[%s3 + $0x1d8] sm:$0xf]
  %v5216 = vld [vmem:[%s3 + $0x1dc] sm:$0xf]
  %v5217 = vld [vmem:[%s3 + $0x1e0] sm:$0xf]
  %v5218 = vld [vmem:[%s3 + $0x1e4] sm:$0xf]
  %v5219 = vld [vmem:[%s3 + $0x1e8] sm:$0xf]
  %v5220 = vld [vmem:[%s3 + $0x1ec] sm:$0xf]
  %v5221 = vld [vmem:[%s3 + $0x1f0] sm:$0xf]
  %v5222 = vld [vmem:[%s3 + $0x1f4] sm:$0xf]
  %v5223 = vld [vmem:[%s3 + $0x1f8] sm:$0xf]
  %v5224 = vld [vmem:[%s3 + $0x1fc] sm:$0xf]
  %v5225 = vld [vmem:[%s3 + $0x200] sm:$0xf]
  %v5226 = vld [vmem:[%s3 + $0x204] sm:$0xf]
  %v5227 = vld [vmem:[%s3 + $0x208] sm:$0xf]
  %v5228 = vld [vmem:[%s3 + $0x20c] sm:$0xf]
  %v5229 = vld [vmem:[%s3 + $0x210] sm:$0xf]
  %v5230 = vld [vmem:[%s3 + $0x214] sm:$0xf]
  %v5231 = vld [vmem:[%s3 + $0x218] sm:$0xf]
  %v5232 = vld [vmem:[%s3 + $0x21c] sm:$0xf]
  %v5233 = vld [vmem:[%s3 + $0x220] sm:$0xf]
  %v5234 = vld [vmem:[%s3 + $0x224] sm:$0xf]
  %v5235 = vld [vmem:[%s3 + $0x228] sm:$0xf]
  %v5236 = vld [vmem:[%s3 + $0x22c] sm:$0xf]
  %v5237 = vld [vmem:[%s3 + $0x230] sm:$0xf]
  %v5238 = vld [vmem:[%s3 + $0x234] sm:$0xf]
  %v5239 = vld [vmem:[%s3 + $0x238] sm:$0xf]
  %v5240 = vld [vmem:[%s3 + $0x23c] sm:$0xf]
  %v5241 = vld [vmem:[%s4] sm:$0x1]
  %v5243 = vlaneseq
  %v5244 = vshrl.u32 %v5243, 7
  %v5245 = vsub.s32 0, %v5244
  %v5246 = vrot.slane %v5241, %v5245
  %v5392 = vunpack.c.l.b16 %v5097
  %v5393 = vunpack.c.l.b16 %v5098
  %v5394 = vunpack.c.l.b16 %v5099
  %v5395 = vunpack.c.l.b16 %v5100
  %v5396 = vunpack.c.l.b16 %v5101
  %v5397 = vunpack.c.l.b16 %v5102
  %v5398 = vunpack.c.l.b16 %v5103
  %v5399 = vunpack.c.l.b16 %v5104
  %v5400 = vunpack.c.l.b16 %v5105
  %v5401 = vunpack.c.l.b16 %v5106
  %v5402 = vunpack.c.l.b16 %v5107
  %v5403 = vunpack.c.l.b16 %v5108
  %v5404 = vunpack.c.l.b16 %v5109
  %v5405 = vunpack.c.l.b16 %v5110
  %v5406 = vunpack.c.l.b16 %v5111
  %v5407 = vunpack.c.l.b16 %v5112
  %v5408 = vunpack.c.l.b16 %v5113
  %v5409 = vunpack.c.l.b16 %v5114
  %v5410 = vunpack.c.l.b16 %v5115
  %v5411 = vunpack.c.l.b16 %v5116
  %v5412 = vunpack.c.l.b16 %v5117
  %v5413 = vunpack.c.l.b16 %v5118
  %v5414 = vunpack.c.l.b16 %v5119
  %v5415 = vunpack.c.l.b16 %v5120
  %v5416 = vunpack.c.l.b16 %v5121
  %v5417 = vunpack.c.l.b16 %v5122
  %v5418 = vunpack.c.l.b16 %v5123
  %v5419 = vunpack.c.l.b16 %v5124
  %v5420 = vunpack.c.l.b16 %v5125
  %v5421 = vunpack.c.l.b16 %v5126
  %v5422 = vunpack.c.l.b16 %v5127
  %v5423 = vunpack.c.l.b16 %v5128
  %v5424 = vunpack.c.l.b16 %v5129
  %v5425 = vunpack.c.l.b16 %v5130
  %v5426 = vunpack.c.l.b16 %v5131
  %v5427 = vunpack.c.l.b16 %v5132
  %v5428 = vunpack.c.l.b16 %v5133
  %v5429 = vunpack.c.l.b16 %v5134
  %v5430 = vunpack.c.l.b16 %v5135
  %v5431 = vunpack.c.l.b16 %v5136
  %v5432 = vunpack.c.l.b16 %v5137
  %v5433 = vunpack.c.l.b16 %v5138
  %v5434 = vunpack.c.l.b16 %v5139
  %v5435 = vunpack.c.l.b16 %v5140
  %v5436 = vunpack.c.l.b16 %v5141
  %v5437 = vunpack.c.l.b16 %v5142
  %v5438 = vunpack.c.l.b16 %v5143
  %v5439 = vunpack.c.l.b16 %v5144
  %v5440 = vunpack.c.l.b16 %v5145
  %v5441 = vunpack.c.l.b16 %v5146
  %v5442 = vunpack.c.l.b16 %v5147
  %v5443 = vunpack.c.l.b16 %v5148
  %v5444 = vunpack.c.l.b16 %v5149
  %v5445 = vunpack.c.l.b16 %v5150
  %v5446 = vunpack.c.l.b16 %v5151
  %v5447 = vunpack.c.l.b16 %v5152
  %v5448 = vunpack.c.l.b16 %v5153
  %v5449 = vunpack.c.l.b16 %v5154
  %v5450 = vunpack.c.l.b16 %v5155
  %v5451 = vunpack.c.l.b16 %v5156
  %v5452 = vunpack.c.l.b16 %v5157
  %v5453 = vunpack.c.l.b16 %v5158
  %v5454 = vunpack.c.l.b16 %v5159
  %v5455 = vunpack.c.l.b16 %v5160
  %v5456 = vunpack.c.l.b16 %v5161
  %v5457 = vunpack.c.l.b16 %v5162
  %v5458 = vunpack.c.l.b16 %v5163
  %v5459 = vunpack.c.l.b16 %v5164
  %v5460 = vunpack.c.l.b16 %v5165
  %v5461 = vunpack.c.l.b16 %v5166
  %v5462 = vunpack.c.l.b16 %v5167
  %v5463 = vunpack.c.l.b16 %v5168
  %v5464 = vunpack.c.l.b16 %v5169
  %v5465 = vunpack.c.l.b16 %v5170
  %v5466 = vunpack.c.l.b16 %v5171
  %v5467 = vunpack.c.l.b16 %v5172
  %v5468 = vunpack.c.l.b16 %v5173
  %v5469 = vunpack.c.l.b16 %v5174
  %v5470 = vunpack.c.l.b16 %v5175
  %v5471 = vunpack.c.l.b16 %v5176
  %v5472 = vunpack.c.l.b16 %v5177
  %v5473 = vunpack.c.l.b16 %v5178
  %v5474 = vunpack.c.l.b16 %v5179
  %v5475 = vunpack.c.l.b16 %v5180
  %v5476 = vunpack.c.l.b16 %v5181
  %v5477 = vunpack.c.l.b16 %v5182
  %v5478 = vunpack.c.l.b16 %v5183
  %v5479 = vunpack.c.l.b16 %v5184
  %v5480 = vunpack.c.l.b16 %v5185
  %v5481 = vunpack.c.l.b16 %v5186
  %v5482 = vunpack.c.l.b16 %v5187
  %v5483 = vunpack.c.l.b16 %v5188
  %v5484 = vunpack.c.l.b16 %v5189
  %v5485 = vunpack.c.l.b16 %v5190
  %v5486 = vunpack.c.l.b16 %v5191
  %v5487 = vunpack.c.l.b16 %v5192
  %v5488 = vunpack.c.l.b16 %v5193
  %v5489 = vunpack.c.l.b16 %v5194
  %v5490 = vunpack.c.l.b16 %v5195
  %v5491 = vunpack.c.l.b16 %v5196
  %v5492 = vunpack.c.l.b16 %v5197
  %v5493 = vunpack.c.l.b16 %v5198
  %v5494 = vunpack.c.l.b16 %v5199
  %v5495 = vunpack.c.l.b16 %v5200
  %v5496 = vunpack.c.l.b16 %v5201
  %v5497 = vunpack.c.l.b16 %v5202
  %v5498 = vunpack.c.l.b16 %v5203
  %v5499 = vunpack.c.l.b16 %v5204
  %v5500 = vunpack.c.l.b16 %v5205
  %v5501 = vunpack.c.l.b16 %v5206
  %v5502 = vunpack.c.l.b16 %v5207
  %v5503 = vunpack.c.l.b16 %v5208
  %v5504 = vunpack.c.l.b16 %v5209
  %v5505 = vunpack.c.l.b16 %v5210
  %v5506 = vunpack.c.l.b16 %v5211
  %v5507 = vunpack.c.l.b16 %v5212
  %v5508 = vunpack.c.l.b16 %v5213
  %v5509 = vunpack.c.l.b16 %v5214
  %v5510 = vunpack.c.l.b16 %v5215
  %v5511 = vunpack.c.l.b16 %v5216
  %v5512 = vunpack.c.l.b16 %v5217
  %v5513 = vunpack.c.l.b16 %v5218
  %v5514 = vunpack.c.l.b16 %v5219
  %v5515 = vunpack.c.l.b16 %v5220
  %v5516 = vunpack.c.l.b16 %v5221
  %v5517 = vunpack.c.l.b16 %v5222
  %v5518 = vunpack.c.l.b16 %v5223
  %v5519 = vunpack.c.l.b16 %v5224
  %v5520 = vunpack.c.l.b16 %v5225
  %v5521 = vunpack.c.l.b16 %v5226
  %v5522 = vunpack.c.l.b16 %v5227
  %v5523 = vunpack.c.l.b16 %v5228
  %v5524 = vunpack.c.l.b16 %v5229
  %v5525 = vunpack.c.l.b16 %v5230
  %v5526 = vunpack.c.l.b16 %v5231
  %v5527 = vunpack.c.l.b16 %v5232
  %v5528 = vunpack.c.l.b16 %v5233
  %v5529 = vunpack.c.l.b16 %v5234
  %v5530 = vunpack.c.l.b16 %v5235
  %v5531 = vunpack.c.l.b16 %v5236
  %v5532 = vunpack.c.l.b16 %v5237
  %v5533 = vunpack.c.l.b16 %v5238
  %v5534 = vunpack.c.l.b16 %v5239
  %v5535 = vunpack.c.l.b16 %v5240
  %v5536 = vpack.c.b16 %v5393, %v5392
  %v5537 = vpack.c.b16 %v5395, %v5394
  %v5538 = vpack.c.b16 %v5397, %v5396
  %v5539 = vpack.c.b16 %v5399, %v5398
  %v5540 = vpack.c.b16 %v5401, %v5400
  %v5541 = vpack.c.b16 %v5403, %v5402
  %v5542 = vpack.c.b16 %v5405, %v5404
  %v5543 = vpack.c.b16 %v5407, %v5406
  %v5544 = vpack.c.b16 %v5409, %v5408
  %v5545 = vpack.c.b16 %v5411, %v5410
  %v5546 = vpack.c.b16 %v5413, %v5412
  %v5547 = vpack.c.b16 %v5415, %v5414
  %v5548 = vpack.c.b16 %v5417, %v5416
  %v5549 = vpack.c.b16 %v5419, %v5418
  %v5550 = vpack.c.b16 %v5421, %v5420
  %v5551 = vpack.c.b16 %v5423, %v5422
  %v5552 = vpack.c.b16 %v5425, %v5424
  %v5553 = vpack.c.b16 %v5427, %v5426
  %v5554 = vpack.c.b16 %v5429, %v5428
  %v5555 = vpack.c.b16 %v5431, %v5430
  %v5556 = vpack.c.b16 %v5433, %v5432
  %v5557 = vpack.c.b16 %v5435, %v5434
  %v5558 = vpack.c.b16 %v5437, %v5436
  %v5559 = vpack.c.b16 %v5439, %v5438
  %v5560 = vpack.c.b16 %v5441, %v5440
  %v5561 = vpack.c.b16 %v5443, %v5442
  %v5562 = vpack.c.b16 %v5445, %v5444
  %v5563 = vpack.c.b16 %v5447, %v5446
  %v5564 = vpack.c.b16 %v5449, %v5448
  %v5565 = vpack.c.b16 %v5451, %v5450
  %v5566 = vpack.c.b16 %v5453, %v5452
  %v5567 = vpack.c.b16 %v5455, %v5454
  %v5568 = vpack.c.b16 %v5457, %v5456
  %v5569 = vpack.c.b16 %v5459, %v5458
  %v5570 = vpack.c.b16 %v5461, %v5460
  %v5571 = vpack.c.b16 %v5463, %v5462
  %v5572 = vpack.c.b16 %v5465, %v5464
  %v5573 = vpack.c.b16 %v5467, %v5466
  %v5574 = vpack.c.b16 %v5469, %v5468
  %v5575 = vpack.c.b16 %v5471, %v5470
  %v5576 = vpack.c.b16 %v5473, %v5472
  %v5577 = vpack.c.b16 %v5475, %v5474
  %v5578 = vpack.c.b16 %v5477, %v5476
  %v5579 = vpack.c.b16 %v5479, %v5478
  %v5580 = vpack.c.b16 %v5481, %v5480
  %v5581 = vpack.c.b16 %v5483, %v5482
  %v5582 = vpack.c.b16 %v5485, %v5484
  %v5583 = vpack.c.b16 %v5487, %v5486
  %v5584 = vpack.c.b16 %v5489, %v5488
  %v5585 = vpack.c.b16 %v5491, %v5490
  %v5586 = vpack.c.b16 %v5493, %v5492
  %v5587 = vpack.c.b16 %v5495, %v5494
  %v5588 = vpack.c.b16 %v5497, %v5496
  %v5589 = vpack.c.b16 %v5499, %v5498
  %v5590 = vpack.c.b16 %v5501, %v5500
  %v5591 = vpack.c.b16 %v5503, %v5502
  %v5592 = vpack.c.b16 %v5505, %v5504
  %v5593 = vpack.c.b16 %v5507, %v5506
  %v5594 = vpack.c.b16 %v5509, %v5508
  %v5595 = vpack.c.b16 %v5511, %v5510
  %v5596 = vpack.c.b16 %v5513, %v5512
  %v5597 = vpack.c.b16 %v5515, %v5514
  %v5598 = vpack.c.b16 %v5517, %v5516
  %v5599 = vpack.c.b16 %v5519, %v5518
  %v5600 = vpack.c.b16 %v5521, %v5520
  %v5601 = vpack.c.b16 %v5523, %v5522
  %v5602 = vpack.c.b16 %v5525, %v5524
  %v5603 = vpack.c.b16 %v5527, %v5526
  %v5604 = vpack.c.b16 %v5529, %v5528
  %v5605 = vpack.c.b16 %v5531, %v5530
  %v5606 = vpack.c.b16 %v5533, %v5532
  %v5607 = vpack.c.b16 %v5535, %v5534
  %5680 = vmatprep.subr.bf16.mxu0 0
  %5681 = vmatpush1.bf16.msra.mxu0 %v5536
  %5682 = vmatprep.subr.bf16.mxu0 0
  %5683 = vmatpush1.bf16.msra.mxu0 %v5537
  %5684 = vmatprep.subr.bf16.mxu0 0
  %5685 = vmatpush1.bf16.msra.mxu0 %v5538
  %5686 = vmatprep.subr.bf16.mxu0 0
  %5687 = vmatpush1.bf16.msra.mxu0 %v5539
  %5688 = vmatprep.subr.bf16.mxu0 0
  %5689 = vmatpush1.bf16.msra.mxu0 %v5540
  %5690 = vmatprep.subr.bf16.mxu0 0
  %5691 = vmatpush1.bf16.msra.mxu0 %v5541
  %5692 = vmatprep.subr.bf16.mxu0 0
  %5693 = vmatpush1.bf16.msra.mxu0 %v5542
  %5694 = vmatprep.subr.bf16.mxu0 0
  %5695 = vmatpush1.bf16.msra.mxu0 %v5543
  %5696 = vmatprep.subr.bf16.mxu0 0
  %5697 = vmatpush1.bf16.msra.mxu0 %v5544
  %5698 = vmatprep.subr.bf16.mxu0 0
  %5699 = vmatpush1.bf16.msra.mxu0 %v5545
  %5700 = vmatprep.subr.bf16.mxu0 0
  %5701 = vmatpush1.bf16.msra.mxu0 %v5546
  %5702 = vmatprep.subr.bf16.mxu0 0
  %5703 = vmatpush1.bf16.msra.mxu0 %v5547
  %5704 = vmatprep.subr.bf16.mxu0 0
  %5705 = vmatpush1.bf16.msra.mxu0 %v5548
  %5706 = vmatprep.subr.bf16.mxu0 0
  %5707 = vmatpush1.bf16.msra.mxu0 %v5549
  %5708 = vmatprep.subr.bf16.mxu0 0
  %5709 = vmatpush1.bf16.msra.mxu0 %v5550
  %5710 = vmatprep.subr.bf16.mxu0 0
  %5711 = vmatpush1.bf16.msra.mxu0 %v5551
  %5712 = vmatprep.mubr.bf16.mxu0 %v5026
  %5713 = vmatmul.mubr.bf16.gmra.mrb[0].mxu0 %v5025
  %v5714 = vpop.f32.mrb[0].mxu0
  %v5715 = vadd.f32 %v5246, %v5714
  %v5716 = vpop.f32.mrb[0].mxu0
  %v5717 = vpop.f32.mrb[0].mxu0
  %v5718 = vadd.f32 %v5246, %v5717
  %v5719 = vpop.f32.mrb[0].mxu0
  %5720 = vmatprep.mubr.bf16.mxu0 %v5035
  %5721 = vmatmul.mubr.bf16.gmra.mrb[0].mxu0 %v5034
  %v5722 = vpop.f32.mrb[0].mxu0
  %v5723 = vadd.f32 %v5246, %v5722
  %v5724 = vpop.f32.mrb[0].mxu0
  %v5725 = vpop.f32.mrb[0].mxu0
  %v5726 = vadd.f32 %v5246, %v5725
  %v5727 = vpop.f32.mrb[0].mxu0
  %5728 = vmatprep.mubr.bf16.mxu0 %v5044
  %5729 = vmatmul.mubr.bf16.gmra.mrb[0].mxu0 %v5043
  %v5730 = vpop.f32.mrb[0].mxu0
  %v5731 = vadd.f32 %v5246, %v5730
  %v5732 = vpop.f32.mrb[0].mxu0
  %v5733 = vpop.f32.mrb[0].mxu0
  %v5734 = vadd.f32 %v5246, %v5733
  %v5735 = vpop.f32.mrb[0].mxu0
  %5736 = vmatprep.mubr.bf16.mxu0 %v5053
  %5737 = vmatmul.mubr.bf16.gmra.mrb[0].mxu0 %v5052
  %v5738 = vpop.f32.mrb[0].mxu0
  %v5739 = vadd.f32 %v5246, %v5738
  %v5740 = vpop.f32.mrb[0].mxu0
  %v5741 = vpop.f32.mrb[0].mxu0
  %v5742 = vadd.f32 %v5246, %v5741
  %v5743 = vpop.f32.mrb[0].mxu0
  %5744 = vmatprep.mubr.bf16.mxu0 %v5062
  %5745 = vmatmul.mubr.bf16.gmra.mrb[0].mxu0 %v5061
  %v5746 = vpop.f32.mrb[0].mxu0
  %v5747 = vadd.f32 %v5246, %v5746
  %v5748 = vpop.f32.mrb[0].mxu0
  %v5749 = vpop.f32.mrb[0].mxu0
  %v5750 = vadd.f32 %v5246, %v5749
  %v5751 = vpop.f32.mrb[0].mxu0
  %5752 = vmatprep.mubr.bf16.mxu0 %v5071
  %5753 = vmatmul.mubr.bf16.gmra.mrb[0].mxu0 %v5070
  %v5754 = vpop.f32.mrb[0].mxu0
  %v5755 = vadd.f32 %v5246, %v5754
  %v5756 = vpop.f32.mrb[0].mxu0
  %v5757 = vpop.f32.mrb[0].mxu0
  %v5758 = vadd.f32 %v5246, %v5757
  %v5759 = vpop.f32.mrb[0].mxu0
  %5760 = vmatprep.mubr.bf16.mxu0 %v5080
  %5761 = vmatmul.mubr.bf16.gmra.mrb[0].mxu0 %v5079
  %v5762 = vpop.f32.mrb[0].mxu0
  %v5763 = vadd.f32 %v5246, %v5762
  %v5764 = vpop.f32.mrb[0].mxu0
  %v5765 = vpop.f32.mrb[0].mxu0
  %v5766 = vadd.f32 %v5246, %v5765
  %v5767 = vpop.f32.mrb[0].mxu0
  %5768 = vmatprep.mubr.bf16.mxu0 %v5089
  %5769 = vmatmul.mubr.bf16.gmra.mrb[0].mxu0 %v5088
  %v5770 = vpop.f32.mrb[0].mxu0
  %v5771 = vadd.f32 %v5246, %v5770
  %v5772 = vpop.f32.mrb[0].mxu0
  %v5773 = vpop.f32.mrb[0].mxu0
  %v5774 = vadd.f32 %v5246, %v5773
  %v5775 = vpop.f32.mrb[0].mxu0
  %5776 = vdwg.mxu0
  %5777 = vmatprep.subr.bf16.mxu0 0
  %5778 = vmatpush1.bf16.msra.mxu0 %v5552
  %5779 = vmatprep.subr.bf16.mxu0 0
  %5780 = vmatpush1.bf16.msra.mxu0 %v5553
  %5781 = vmatprep.subr.bf16.mxu0 0
  %5782 = vmatpush1.bf16.msra.mxu0 %v5554
  %5783 = vmatprep.subr.bf16.mxu0 0
  %5784 = vmatpush1.bf16.msra.mxu0 %v5555
  %5785 = vmatprep.subr.bf16.mxu0 0
  %5786 = vmatpush1.bf16.msra.mxu0 %v5556
  %5787 = vmatprep.subr.bf16.mxu0 0
  %5788 = vmatpush1.bf16.msra.mxu0 %v5557
  %5789 = vmatprep.subr.bf16.mxu0 0
  %5790 = vmatpush1.bf16.msra.mxu0 %v5558
  %5791 = vmatprep.subr.bf16.mxu0 0
  %5792 = vmatpush1.bf16.msra.mxu0 %v5559
  %5793 = vmatprep.subr.bf16.mxu0 0
  %5794 = vmatpush1.bf16.msra.mxu0 %v5560
  %5795 = vmatprep.subr.bf16.mxu0 0
  %5796 = vmatpush1.bf16.msra.mxu0 %v5561
  %5797 = vmatprep.subr.bf16.mxu0 0
  %5798 = vmatpush1.bf16.msra.mxu0 %v5562
  %5799 = vmatprep.subr.bf16.mxu0 0
  %5800 = vmatpush1.bf16.msra.mxu0 %v5563
  %5801 = vmatprep.subr.bf16.mxu0 0
  %5802 = vmatpush1.bf16.msra.mxu0 %v5564
  %5803 = vmatprep.subr.bf16.mxu0 0
  %5804 = vmatpush1.bf16.msra.mxu0 %v5565
  %5805 = vmatprep.subr.bf16.mxu0 0
  %5806 = vmatpush1.bf16.msra.mxu0 %v5566
  %5807 = vmatprep.subr.bf16.mxu0 0
  %5808 = vmatpush1.bf16.msra.mxu0 %v5567
  %5809 = vmatprep.mubr.bf16.mxu0 %v5028
  %5810 = vmatmul.mubr.bf16.gmra.mrb[0].mxu0 %v5027
  %v5811 = vpop.f32.mrb[0].mxu0
  %v5812 = vadd.f32 %v5715, %v5811
  %v5813 = vpop.f32.mrb[0].mxu0
  %v5814 = vpop.f32.mrb[0].mxu0
  %v5815 = vadd.f32 %v5718, %v5814
  %v5816 = vpop.f32.mrb[0].mxu0
  %5817 = vmatprep.mubr.bf16.mxu0 %v5037
  %5818 = vmatmul.mubr.bf16.gmra.mrb[0].mxu0 %v5036
  %v5819 = vpop.f32.mrb[0].mxu0
  %v5820 = vadd.f32 %v5723, %v5819
  %v5821 = vpop.f32.mrb[0].mxu0
  %v5822 = vpop.f32.mrb[0].mxu0
  %v5823 = vadd.f32 %v5726, %v5822
  %v5824 = vpop.f32.mrb[0].mxu0
  %5825 = vmatprep.mubr.bf16.mxu0 %v5046
  %5826 = vmatmul.mubr.bf16.gmra.mrb[0].mxu0 %v5045
  %v5827 = vpop.f32.mrb[0].mxu0
  %v5828 = vadd.f32 %v5731, %v5827
  %v5829 = vpop.f32.mrb[0].mxu0
  %v5830 = vpop.f32.mrb[0].mxu0
  %v5831 = vadd.f32 %v5734, %v5830
  %v5832 = vpop.f32.mrb[0].mxu0
  %5833 = vmatprep.mubr.bf16.mxu0 %v5055
  %5834 = vmatmul.mubr.bf16.gmra.mrb[0].mxu0 %v5054
  %v5835 = vpop.f32.mrb[0].mxu0
  %v5836 = vadd.f32 %v5739, %v5835
  %v5837 = vpop.f32.mrb[0].mxu0
  %v5838 = vpop.f32.mrb[0].mxu0
  %v5839 = vadd.f32 %v5742, %v5838
  %v5840 = vpop.f32.mrb[0].mxu0
  %5841 = vmatprep.mubr.bf16.mxu0 %v5064
  %5842 = vmatmul.mubr.bf16.gmra.mrb[0].mxu0 %v5063
  %v5843 = vpop.f32.mrb[0].mxu0
  %v5844 = vadd.f32 %v5747, %v5843
  %v5845 = vpop.f32.mrb[0].mxu0
  %v5846 = vpop.f32.mrb[0].mxu0
  %v5847 = vadd.f32 %v5750, %v5846
  %v5848 = vpop.f32.mrb[0].mxu0
  %5849 = vmatprep.mubr.bf16.mxu0 %v5073
  %5850 = vmatmul.mubr.bf16.gmra.mrb[0].mxu0 %v5072
  %v5851 = vpop.f32.mrb[0].mxu0
  %v5852 = vadd.f32 %v5755, %v5851
  %v5853 = vpop.f32.mrb[0].mxu0
  %v5854 = vpop.f32.mrb[0].mxu0
  %v5855 = vadd.f32 %v5758, %v5854
  %v5856 = vpop.f32.mrb[0].mxu0
  %5857 = vmatprep.mubr.bf16.mxu0 %v5082
  %5858 = vmatmul.mubr.bf16.gmra.mrb[0].mxu0 %v5081
  %v5859 = vpop.f32.mrb[0].mxu0
  %v5860 = vadd.f32 %v5763, %v5859
  %v5861 = vpop.f32.mrb[0].mxu0
  %v5862 = vpop.f32.mrb[0].mxu0
  %v5863 = vadd.f32 %v5766, %v5862
  %v5864 = vpop.f32.mrb[0].mxu0
  %5865 = vmatprep.mubr.bf16.mxu0 %v5091
  %5866 = vmatmul.mubr.bf16.gmra.mrb[0].mxu0 %v5090
  %v5867 = vpop.f32.mrb[0].mxu0
  %v5868 = vadd.f32 %v5771, %v5867
  %v5869 = vpop.f32.mrb[0].mxu0
  %v5870 = vpop.f32.mrb[0].mxu0
  %v5871 = vadd.f32 %v5774, %v5870
  %v5872 = vpop.f32.mrb[0].mxu0
  %5873 = vdwg.mxu0
  %5874 = vmatprep.subr.bf16.mxu0 0
  %5875 = vmatpush1.bf16.msra.mxu0 %v5568
  %5876 = vmatprep.subr.bf16.mxu0 0
  %5877 = vmatpush1.bf16.msra.mxu0 %v5569
  %5878 = vmatprep.subr.bf16.mxu0 0
  %5879 = vmatpush1.bf16.msra.mxu0 %v5570
  %5880 = vmatprep.subr.bf16.mxu0 0
  %5881 = vmatpush1.bf16.msra.mxu0 %v5571
  %5882 = vmatprep.subr.bf16.mxu0 0
  %5883 = vmatpush1.bf16.msra.mxu0 %v5572
  %5884 = vmatprep.subr.bf16.mxu0 0
  %5885 = vmatpush1.bf16.msra.mxu0 %v5573
  %5886 = vmatprep.subr.bf16.mxu0 0
  %5887 = vmatpush1.bf16.msra.mxu0 %v5574
  %5888 = vmatprep.subr.bf16.mxu0 0
  %5889 = vmatpush1.bf16.msra.mxu0 %v5575
  %5890 = vmatprep.subr.bf16.mxu0 0
  %5891 = vmatpush1.bf16.msra.mxu0 %v5576
  %5892 = vmatprep.subr.bf16.mxu0 0
  %5893 = vmatpush1.bf16.msra.mxu0 %v5577
  %5894 = vmatprep.subr.bf16.mxu0 0
  %5895 = vmatpush1.bf16.msra.mxu0 %v5578
  %5896 = vmatprep.subr.bf16.mxu0 0
  %5897 = vmatpush1.bf16.msra.mxu0 %v5579
  %5898 = vmatprep.subr.bf16.mxu0 0
  %5899 = vmatpush1.bf16.msra.mxu0 %v5580
  %5900 = vmatprep.subr.bf16.mxu0 0
  %5901 = vmatpush1.bf16.msra.mxu0 %v5581
  %5902 = vmatprep.subr.bf16.mxu0 0
  %5903 = vmatpush1.bf16.msra.mxu0 %v5582
  %5904 = vmatprep.subr.bf16.mxu0 0
  %5905 = vmatpush1.bf16.msra.mxu0 %v5583
  %5906 = vmatprep.mubr.bf16.mxu0 %v5030
  %5907 = vmatmul.mubr.bf16.gmra.mrb[0].mxu0 %v5029
  %v5908 = vpop.f32.mrb[0].mxu0
  %v5909 = vadd.f32 %v5812, %v5908
  %v5910 = vpop.f32.mrb[0].mxu0
  %v5911 = vpop.f32.mrb[0].mxu0
  %v5912 = vadd.f32 %v5815, %v5911
  %v5913 = vpop.f32.mrb[0].mxu0
  %5914 = vmatprep.mubr.bf16.mxu0 %v5039
  %5915 = vmatmul.mubr.bf16.gmra.mrb[0].mxu0 %v5038
  %v5916 = vpop.f32.mrb[0].mxu0
  %v5917 = vadd.f32 %v5820, %v5916
  %v5918 = vpop.f32.mrb[0].mxu0
  %v5919 = vpop.f32.mrb[0].mxu0
  %v5920 = vadd.f32 %v5823, %v5919
  %v5921 = vpop.f32.mrb[0].mxu0
  %5922 = vmatprep.mubr.bf16.mxu0 %v5048
  %5923 = vmatmul.mubr.bf16.gmra.mrb[0].mxu0 %v5047
  %v5924 = vpop.f32.mrb[0].mxu0
  %v5925 = vadd.f32 %v5828, %v5924
  %v5926 = vpop.f32.mrb[0].mxu0
  %v5927 = vpop.f32.mrb[0].mxu0
  %v5928 = vadd.f32 %v5831, %v5927
  %v5929 = vpop.f32.mrb[0].mxu0
  %5930 = vmatprep.mubr.bf16.mxu0 %v5057
  %5931 = vmatmul.mubr.bf16.gmra.mrb[0].mxu0 %v5056
  %v5932 = vpop.f32.mrb[0].mxu0
  %v5933 = vadd.f32 %v5836, %v5932
  %v5934 = vpop.f32.mrb[0].mxu0
  %v5935 = vpop.f32.mrb[0].mxu0
  %v5936 = vadd.f32 %v5839, %v5935
  %v5937 = vpop.f32.mrb[0].mxu0
  %5938 = vmatprep.mubr.bf16.mxu0 %v5066
  %5939 = vmatmul.mubr.bf16.gmra.mrb[0].mxu0 %v5065
  %v5940 = vpop.f32.mrb[0].mxu0
  %v5941 = vadd.f32 %v5844, %v5940
  %v5942 = vpop.f32.mrb[0].mxu0
  %v5943 = vpop.f32.mrb[0].mxu0
  %v5944 = vadd.f32 %v5847, %v5943
  %v5945 = vpop.f32.mrb[0].mxu0
  %5946 = vmatprep.mubr.bf16.mxu0 %v5075
  %5947 = vmatmul.mubr.bf16.gmra.mrb[0].mxu0 %v5074
  %v5948 = vpop.f32.mrb[0].mxu0
  %v5949 = vadd.f32 %v5852, %v5948
  %v5950 = vpop.f32.mrb[0].mxu0
  %v5951 = vpop.f32.mrb[0].mxu0
  %v5952 = vadd.f32 %v5855, %v5951
  %v5953 = vpop.f32.mrb[0].mxu0
  %5954 = vmatprep.mubr.bf16.mxu0 %v5084
  %5955 = vmatmul.mubr.bf16.gmra.mrb[0].mxu0 %v5083
  %v5956 = vpop.f32.mrb[0].mxu0
  %v5957 = vadd.f32 %v5860, %v5956
  %v5958 = vpop.f32.mrb[0].mxu0
  %v5959 = vpop.f32.mrb[0].mxu0
  %v5960 = vadd.f32 %v5863, %v5959
  %v5961 = vpop.f32.mrb[0].mxu0
  %5962 = vmatprep.mubr.bf16.mxu0 %v5093
  %5963 = vmatmul.mubr.bf16.gmra.mrb[0].mxu0 %v5092
  %v5964 = vpop.f32.mrb[0].mxu0
  %v5965 = vadd.f32 %v5868, %v5964
  %v5966 = vpop.f32.mrb[0].mxu0
  %v5967 = vpop.f32.mrb[0].mxu0
  %v5968 = vadd.f32 %v5871, %v5967
  %v5969 = vpop.f32.mrb[0].mxu0
  %5970 = vdwg.mxu0
  %5971 = vmatprep.subr.bf16.mxu0 0
  %5972 = vmatpush1.bf16.msra.mxu0 %v5584
  %5973 = vmatprep.subr.bf16.mxu0 0
  %5974 = vmatpush1.bf16.msra.mxu0 %v5585
  %5975 = vmatprep.subr.bf16.mxu0 0
  %5976 = vmatpush1.bf16.msra.mxu0 %v5586
  %5977 = vmatprep.subr.bf16.mxu0 0
  %5978 = vmatpush1.bf16.msra.mxu0 %v5587
  %5979 = vmatprep.subr.bf16.mxu0 0
  %5980 = vmatpush1.bf16.msra.mxu0 %v5588
  %5981 = vmatprep.subr.bf16.mxu0 0
  %5982 = vmatpush1.bf16.msra.mxu0 %v5589
  %5983 = vmatprep.subr.bf16.mxu0 0
  %5984 = vmatpush1.bf16.msra.mxu0 %v5590
  %5985 = vmatprep.subr.bf16.mxu0 0
  %5986 = vmatpush1.bf16.msra.mxu0 %v5591
  %5987 = vmatprep.subr.bf16.mxu0 0
  %5988 = vmatpush1.bf16.msra.mxu0 %v5592
  %5989 = vmatprep.subr.bf16.mxu0 0
  %5990 = vmatpush1.bf16.msra.mxu0 %v5593
  %5991 = vmatprep.subr.bf16.mxu0 0
  %5992 = vmatpush1.bf16.msra.mxu0 %v5594
  %5993 = vmatprep.subr.bf16.mxu0 0
  %5994 = vmatpush1.bf16.msra.mxu0 %v5595
  %5995 = vmatprep.subr.bf16.mxu0 0
  %5996 = vmatpush1.bf16.msra.mxu0 %v5596
  %5997 = vmatprep.subr.bf16.mxu0 0
  %5998 = vmatpush1.bf16.msra.mxu0 %v5597
  %5999 = vmatprep.subr.bf16.mxu0 0
  %6000 = vmatpush1.bf16.msra.mxu0 %v5598
  %6001 = vmatprep.subr.bf16.mxu0 0
  %6002 = vmatpush1.bf16.msra.mxu0 %v5599
  %6003 = vmatprep.mubr.bf16.mxu0 %v5032
  %6004 = vmatmul.mubr.bf16.gmra.mrb[0].mxu0 %v5031
  %v6005 = vpop.f32.mrb[0].mxu0
  %v6006 = vadd.f32 %v5909, %v6005
  %v6007 = vpop.f32.mrb[0].mxu0
  %v6008 = vpop.f32.mrb[0].mxu0
  %v6009 = vadd.f32 %v5912, %v6008
  %v6010 = vpop.f32.mrb[0].mxu0
  %6011 = vmatprep.mubr.bf16.mxu0 %v5041
  %6012 = vmatmul.mubr.bf16.gmra.mrb[0].mxu0 %v5040
  %v6013 = vpop.f32.mrb[0].mxu0
  %v6014 = vadd.f32 %v5917, %v6013
  %v6015 = vpop.f32.mrb[0].mxu0
  %v6016 = vpop.f32.mrb[0].mxu0
  %v6017 = vadd.f32 %v5920, %v6016
  %v6018 = vpop.f32.mrb[0].mxu0
  %6019 = vmatprep.mubr.bf16.mxu0 %v5050
  %6020 = vmatmul.mubr.bf16.gmra.mrb[0].mxu0 %v5049
  %v6021 = vpop.f32.mrb[0].mxu0
  %v6022 = vadd.f32 %v5925, %v6021
  %v6023 = vpop.f32.mrb[0].mxu0
  %v6024 = vpop.f32.mrb[0].mxu0
  %v6025 = vadd.f32 %v5928, %v6024
  %v6026 = vpop.f32.mrb[0].mxu0
  %6027 = vmatprep.mubr.bf16.mxu0 %v5059
  %6028 = vmatmul.mubr.bf16.gmra.mrb[0].mxu0 %v5058
  %v6029 = vpop.f32.mrb[0].mxu0
  %v6030 = vadd.f32 %v5933, %v6029
  %v6031 = vpop.f32.mrb[0].mxu0
  %v6032 = vpop.f32.mrb[0].mxu0
  %v6033 = vadd.f32 %v5936, %v6032
  %v6034 = vpop.f32.mrb[0].mxu0
  %6035 = vmatprep.mubr.bf16.mxu0 %v5068
  %6036 = vmatmul.mubr.bf16.gmra.mrb[0].mxu0 %v5067
  %v6037 = vpop.f32.mrb[0].mxu0
  %v6038 = vadd.f32 %v5941, %v6037
  %v6039 = vpop.f32.mrb[0].mxu0
  %v6040 = vpop.f32.mrb[0].mxu0
  %v6041 = vadd.f32 %v5944, %v6040
  %v6042 = vpop.f32.mrb[0].mxu0
  %6043 = vmatprep.mubr.bf16.mxu0 %v5077
  %6044 = vmatmul.mubr.bf16.gmra.mrb[0].mxu0 %v5076
  %v6045 = vpop.f32.mrb[0].mxu0
  %v6046 = vadd.f32 %v5949, %v6045
  %v6047 = vpop.f32.mrb[0].mxu0
  %v6048 = vpop.f32.mrb[0].mxu0
  %v6049 = vadd.f32 %v5952, %v6048
  %v6050 = vpop.f32.mrb[0].mxu0
  %6051 = vmatprep.mubr.bf16.mxu0 %v5086
  %6052 = vmatmul.mubr.bf16.gmra.mrb[0].mxu0 %v5085
  %v6053 = vpop.f32.mrb[0].mxu0
  %v6054 = vadd.f32 %v5957, %v6053
  %v6055 = vpop.f32.mrb[0].mxu0
  %v6056 = vpop.f32.mrb[0].mxu0
  %v6057 = vadd.f32 %v5960, %v6056
  %v6058 = vpop.f32.mrb[0].mxu0
  %6059 = vmatprep.mubr.bf16.mxu0 %v5095
  %6060 = vmatmul.mubr.bf16.gmra.mrb[0].mxu0 %v5094
  %v6061 = vpop.f32.mrb[0].mxu0
  %v6062 = vadd.f32 %v5965, %v6061
  %v6063 = vpop.f32.mrb[0].mxu0
  %v6064 = vpop.f32.mrb[0].mxu0
  %v6065 = vadd.f32 %v5968, %v6064
  %v6066 = vpop.f32.mrb[0].mxu0
  %6067 = vdwg.mxu0
  %6068 = vmatprep.subr.bf16.mxu0 0
  %6069 = vmatpush1.bf16.msra.mxu0 %v5600
  %6070 = vmatprep.subr.bf16.mxu0 0
  %6071 = vmatpush1.bf16.msra.mxu0 %v5601
  %6072 = vmatprep.subr.bf16.mxu0 0
  %6073 = vmatpush1.bf16.msra.mxu0 %v5602
  %6074 = vmatprep.subr.bf16.mxu0 0
  %6075 = vmatpush1.bf16.msra.mxu0 %v5603
  %6076 = vmatprep.subr.bf16.mxu0 0
  %6077 = vmatpush1.bf16.msra.mxu0 %v5604
  %6078 = vmatprep.subr.bf16.mxu0 0
  %6079 = vmatpush1.bf16.msra.mxu0 %v5605
  %6080 = vmatprep.subr.bf16.mxu0 0
  %6081 = vmatpush1.bf16.msra.mxu0 %v5606
  %6082 = vmatprep.subr.bf16.mxu0 0
  %6083 = vmatpush1.bf16.msra.mxu0 %v5607
  %6084 = vmatprep.subr.bf16.mxu0 0
  %6085 = vmatpush1.bf16.msra.mxu0 0
  %6086 = vmatprep.subr.bf16.mxu0 0
  %6087 = vmatpush1.bf16.msra.mxu0 0
  %6088 = vmatprep.subr.bf16.mxu0 0
  %6089 = vmatpush1.bf16.msra.mxu0 0
  %6090 = vmatprep.subr.bf16.mxu0 0
  %6091 = vmatpush1.bf16.msra.mxu0 0
  %6092 = vmatprep.subr.bf16.mxu0 0
  %6093 = vmatpush1.bf16.msra.mxu0 0
  %6094 = vmatprep.subr.bf16.mxu0 0
  %6095 = vmatpush1.bf16.msra.mxu0 0
  %6096 = vmatprep.subr.bf16.mxu0 0
  %6097 = vmatpush1.bf16.msra.mxu0 0
  %6098 = vmatprep.subr.bf16.mxu0 0
  %6099 = vmatpush1.bf16.msra.mxu0 0
  %6100 = vmatprep.mubr.bf16.mxu0 0
  %6101 = vmatmul.mubr.bf16.gmra.mrb[0].mxu0 %v5033
  %v6102 = vpop.f32.mrb[0].mxu0
  %v6103 = vadd.f32 %v6006, %v6102
  %v6104 = vpop.f32.mrb[0].mxu0
  %v6105 = vpop.f32.mrb[0].mxu0
  %v6106 = vadd.f32 %v6009, %v6105
  %v6107 = vpop.f32.mrb[0].mxu0
  %6108 = vmatprep.mubr.bf16.mxu0 0
  %6109 = vmatmul.mubr.bf16.gmra.mrb[0].mxu0 %v5042
  %v6110 = vpop.f32.mrb[0].mxu0
  %v6111 = vadd.f32 %v6014, %v6110
  %v6112 = vpop.f32.mrb[0].mxu0
  %v6113 = vpop.f32.mrb[0].mxu0
  %v6114 = vadd.f32 %v6017, %v6113
  %v6115 = vpop.f32.mrb[0].mxu0
  %6116 = vmatprep.mubr.bf16.mxu0 0
  %6117 = vmatmul.mubr.bf16.gmra.mrb[0].mxu0 %v5051
  %v6118 = vpop.f32.mrb[0].mxu0
  %v6119 = vadd.f32 %v6022, %v6118
  %v6120 = vpop.f32.mrb[0].mxu0
  %v6121 = vpop.f32.mrb[0].mxu0
  %v6122 = vadd.f32 %v6025, %v6121
  %v6123 = vpop.f32.mrb[0].mxu0
  %6124 = vmatprep.mubr.bf16.mxu0 0
  %6125 = vmatmul.mubr.bf16.gmra.mrb[0].mxu0 %v5060
  %v6126 = vpop.f32.mrb[0].mxu0
  %v6127 = vadd.f32 %v6030, %v6126
  %v6128 = vpop.f32.mrb[0].mxu0
  %v6129 = vpop.f32.mrb[0].mxu0
  %v6130 = vadd.f32 %v6033, %v6129
  %v6131 = vpop.f32.mrb[0].mxu0
  %6132 = vmatprep.mubr.bf16.mxu0 0
  %6133 = vmatmul.mubr.bf16.gmra.mrb[0].mxu0 %v5069
  %v6134 = vpop.f32.mrb[0].mxu0
  %v6135 = vadd.f32 %v6038, %v6134
  %v6136 = vpop.f32.mrb[0].mxu0
  %v6137 = vpop.f32.mrb[0].mxu0
  %v6138 = vadd.f32 %v6041, %v6137
  %v6139 = vpop.f32.mrb[0].mxu0
  %6140 = vmatprep.mubr.bf16.mxu0 0
  %6141 = vmatmul.mubr.bf16.gmra.mrb[0].mxu0 %v5078
  %v6142 = vpop.f32.mrb[0].mxu0
  %v6143 = vadd.f32 %v6046, %v6142
  %v6144 = vpop.f32.mrb[0].mxu0
  %v6145 = vpop.f32.mrb[0].mxu0
  %v6146 = vadd.f32 %v6049, %v6145
  %v6147 = vpop.f32.mrb[0].mxu0
  %6148 = vmatprep.mubr.bf16.mxu0 0
  %6149 = vmatmul.mubr.bf16.gmra.mrb[0].mxu0 %v5087
  %v6150 = vpop.f32.mrb[0].mxu0
  %v6151 = vadd.f32 %v6054, %v6150
  %v6152 = vpop.f32.mrb[0].mxu0
  %v6153 = vpop.f32.mrb[0].mxu0
  %v6154 = vadd.f32 %v6057, %v6153
  %v6155 = vpop.f32.mrb[0].mxu0
  %6156 = vmatprep.mubr.bf16.mxu0 0
  %6157 = vmatmul.mubr.bf16.gmra.mrb[0].mxu0 %v5096
  %v6158 = vpop.f32.mrb[0].mxu0
  %v6159 = vadd.f32 %v6062, %v6158
  %v6160 = vpop.f32.mrb[0].mxu0
  %v6161 = vpop.f32.mrb[0].mxu0
  %v6162 = vadd.f32 %v6065, %v6161
  %v6163 = vpop.f32.mrb[0].mxu0
  %6164 = vdwg.mxu0
  %v6165 = vld [vmem:[%s563] sm:$0xf]
  %v6166 = vld [vmem:[%s563 + $0x4] sm:$0x1]
  %v6167 = vld [vmem:[%s563 + $0x8] sm:$0xf]
  %v6168 = vld [vmem:[%s563 + $0xc] sm:$0x1]
  %v6169 = vld [vmem:[%s563 + $0x10] sm:$0xf]
  %v6170 = vld [vmem:[%s563 + $0x14] sm:$0x1]
  %v6171 = vld [vmem:[%s563 + $0x18] sm:$0xf]
  %v6172 = vld [vmem:[%s563 + $0x1c] sm:$0x1]
  %v6173 = vld [vmem:[%s563 + $0x20] sm:$0xf]
  %v6174 = vld [vmem:[%s563 + $0x24] sm:$0x1]
  %v6175 = vld [vmem:[%s563 + $0x28] sm:$0xf]
  %v6176 = vld [vmem:[%s563 + $0x2c] sm:$0x1]
  %v6177 = vld [vmem:[%s563 + $0x30] sm:$0xf]
  %v6178 = vld [vmem:[%s563 + $0x34] sm:$0x1]
  %v6179 = vld [vmem:[%s563 + $0x38] sm:$0xf]
  %v6180 = vld [vmem:[%s563 + $0x3c] sm:$0x1]
  %v6181 = vld [vmem:[%s563 + $0x50] sm:$0xf]
  %v6182 = vld [vmem:[%s563 + $0x54] sm:$0x1]
  %v6183 = vld [vmem:[%s563 + $0x58] sm:$0xf]
  %v6184 = vld [vmem:[%s563 + $0x5c] sm:$0x1]
  %v6185 = vld [vmem:[%s563 + $0x60] sm:$0xf]
  %v6186 = vld [vmem:[%s563 + $0x64] sm:$0x1]
  %v6187 = vld [vmem:[%s563 + $0x68] sm:$0xf]
  %v6188 = vld [vmem:[%s563 + $0x6c] sm:$0x1]
  %v6189 = vld [vmem:[%s563 + $0x70] sm:$0xf]
  %v6190 = vld [vmem:[%s563 + $0x74] sm:$0x1]
  %v6191 = vld [vmem:[%s563 + $0x78] sm:$0xf]
  %v6192 = vld [vmem:[%s563 + $0x7c] sm:$0x1]
  %v6193 = vld [vmem:[%s563 + $0x80] sm:$0xf]
  %v6194 = vld [vmem:[%s563 + $0x84] sm:$0x1]
  %v6195 = vld [vmem:[%s563 + $0x88] sm:$0xf]
  %v6196 = vld [vmem:[%s563 + $0x8c] sm:$0x1]
  %v6198 = vshrl.u32 %v6165, 16
  %v6200 = vrot.slane %v6198, 4
  %v6201 = vshll.u32 %v6165, 16
  %v6203 = vrot.slane %v6201, 5
  %v6204 = vor.u32 %v6200, %v6203
  %v6205 = vrot.slane %v6204, 4
  %v6207 = vshll.u32 %v6166, 16
  %v6209 = vrot.slane %v6207, 5
  %v6210 = vsel %vm127, %v6205, %v6209
  %v6212 = vshrl.u32 %v6167, 16
  %v6214 = vrot.slane %v6212, 4
  %v6215 = vshll.u32 %v6167, 16
  %v6217 = vrot.slane %v6215, 5
  %v6218 = vor.u32 %v6214, %v6217
  %v6219 = vrot.slane %v6218, 4
  %v6221 = vshll.u32 %v6168, 16
  %v6223 = vrot.slane %v6221, 5
  %v6224 = vsel %vm127, %v6219, %v6223
  %v6226 = vshrl.u32 %v6169, 16
  %v6228 = vrot.slane %v6226, 4
  %v6229 = vshll.u32 %v6169, 16
  %v6231 = vrot.slane %v6229, 5
  %v6232 = vor.u32 %v6228, %v6231
  %v6233 = vrot.slane %v6232, 4
  %v6235 = vshll.u32 %v6170, 16
  %v6237 = vrot.slane %v6235, 5
  %v6238 = vsel %vm127, %v6233, %v6237
  %v6240 = vshrl.u32 %v6171, 16
  %v6242 = vrot.slane %v6240, 4
  %v6243 = vshll.u32 %v6171, 16
  %v6245 = vrot.slane %v6243, 5
  %v6246 = vor.u32 %v6242, %v6245
  %v6247 = vrot.slane %v6246, 4
  %v6249 = vshll.u32 %v6172, 16
  %v6251 = vrot.slane %v6249, 5
  %v6252 = vsel %vm127, %v6247, %v6251
  %v6254 = vshrl.u32 %v6173, 16
  %v6256 = vrot.slane %v6254, 4
  %v6257 = vshll.u32 %v6173, 16
  %v6259 = vrot.slane %v6257, 5
  %v6260 = vor.u32 %v6256, %v6259
  %v6261 = vrot.slane %v6260, 4
  %v6263 = vshll.u32 %v6174, 16
  %v6265 = vrot.slane %v6263, 5
  %v6266 = vsel %vm127, %v6261, %v6265
  %v6268 = vshrl.u32 %v6175, 16
  %v6270 = vrot.slane %v6268, 4
  %v6271 = vshll.u32 %v6175, 16
  %v6273 = vrot.slane %v6271, 5
  %v6274 = vor.u32 %v6270, %v6273
  %v6275 = vrot.slane %v6274, 4
  %v6277 = vshll.u32 %v6176, 16
  %v6279 = vrot.slane %v6277, 5
  %v6280 = vsel %vm127, %v6275, %v6279
  %v6282 = vshrl.u32 %v6177, 16
  %v6284 = vrot.slane %v6282, 4
  %v6285 = vshll.u32 %v6177, 16
  %v6287 = vrot.slane %v6285, 5
  %v6288 = vor.u32 %v6284, %v6287
  %v6289 = vrot.slane %v6288, 4
  %v6291 = vshll.u32 %v6178, 16
  %v6293 = vrot.slane %v6291, 5
  %v6294 = vsel %vm127, %v6289, %v6293
  %v6296 = vshrl.u32 %v6179, 16
  %v6298 = vrot.slane %v6296, 4
  %v6299 = vshll.u32 %v6179, 16
  %v6301 = vrot.slane %v6299, 5
  %v6302 = vor.u32 %v6298, %v6301
  %v6303 = vrot.slane %v6302, 4
  %v6305 = vshll.u32 %v6180, 16
  %v6307 = vrot.slane %v6305, 5
  %v6308 = vsel %vm127, %v6303, %v6307
  %v6310 = vshrl.u32 %v6181, 16
  %v6312 = vrot.slane %v6310, 4
  %v6313 = vshll.u32 %v6181, 16
  %v6315 = vrot.slane %v6313, 5
  %v6316 = vor.u32 %v6312, %v6315
  %v6317 = vrot.slane %v6316, 4
  %v6319 = vshll.u32 %v6182, 16
  %v6321 = vrot.slane %v6319, 5
  %v6322 = vsel %vm127, %v6317, %v6321
  %v6324 = vshrl.u32 %v6183, 16
  %v6326 = vrot.slane %v6324, 4
  %v6327 = vshll.u32 %v6183, 16
  %v6329 = vrot.slane %v6327, 5
  %v6330 = vor.u32 %v6326, %v6329
  %v6331 = vrot.slane %v6330, 4
  %v6333 = vshll.u32 %v6184, 16
  %v6335 = vrot.slane %v6333, 5
  %v6336 = vsel %vm127, %v6331, %v6335
  %v6338 = vshrl.u32 %v6185, 16
  %v6340 = vrot.slane %v6338, 4
  %v6341 = vshll.u32 %v6185, 16
  %v6343 = vrot.slane %v6341, 5
  %v6344 = vor.u32 %v6340, %v6343
  %v6345 = vrot.slane %v6344, 4
  %v6347 = vshll.u32 %v6186, 16
  %v6349 = vrot.slane %v6347, 5
  %v6350 = vsel %vm127, %v6345, %v6349
  %v6352 = vshrl.u32 %v6187, 16
  %v6354 = vrot.slane %v6352, 4
  %v6355 = vshll.u32 %v6187, 16
  %v6357 = vrot.slane %v6355, 5
  %v6358 = vor.u32 %v6354, %v6357
  %v6359 = vrot.slane %v6358, 4
  %v6361 = vshll.u32 %v6188, 16
  %v6363 = vrot.slane %v6361, 5
  %v6364 = vsel %vm127, %v6359, %v6363
  %v6366 = vshrl.u32 %v6189, 16
  %v6368 = vrot.slane %v6366, 4
  %v6369 = vshll.u32 %v6189, 16
  %v6371 = vrot.slane %v6369, 5
  %v6372 = vor.u32 %v6368, %v6371
  %v6373 = vrot.slane %v6372, 4
  %v6375 = vshll.u32 %v6190, 16
  %v6377 = vrot.slane %v6375, 5
  %v6378 = vsel %vm127, %v6373, %v6377
  %v6380 = vshrl.u32 %v6191, 16
  %v6382 = vrot.slane %v6380, 4
  %v6383 = vshll.u32 %v6191, 16
  %v6385 = vrot.slane %v6383, 5
  %v6386 = vor.u32 %v6382, %v6385
  %v6387 = vrot.slane %v6386, 4
  %v6389 = vshll.u32 %v6192, 16
  %v6391 = vrot.slane %v6389, 5
  %v6392 = vsel %vm127, %v6387, %v6391
  %v6394 = vshrl.u32 %v6193, 16
  %v6396 = vrot.slane %v6394, 4
  %v6397 = vshll.u32 %v6193, 16
  %v6399 = vrot.slane %v6397, 5
  %v6400 = vor.u32 %v6396, %v6399
  %v6401 = vrot.slane %v6400, 4
  %v6403 = vshll.u32 %v6194, 16
  %v6405 = vrot.slane %v6403, 5
  %v6406 = vsel %vm127, %v6401, %v6405
  %v6408 = vshrl.u32 %v6195, 16
  %v6410 = vrot.slane %v6408, 4
  %v6411 = vshll.u32 %v6195, 16
  %v6413 = vrot.slane %v6411, 5
  %v6414 = vor.u32 %v6410, %v6413
  %v6415 = vrot.slane %v6414, 4
  %v6417 = vshll.u32 %v6196, 16
  %v6419 = vrot.slane %v6417, 5
  %v6420 = vsel %vm127, %v6415, %v6419
  %v6437 = vunpack.c.l.bf16 %v6210
  %v6438 = vunpack.c.l.bf16 %v6224
  %v6439 = vunpack.c.l.bf16 %v6238
  %v6440 = vunpack.c.l.bf16 %v6252
  %v6441 = vunpack.c.l.bf16 %v6266
  %v6442 = vunpack.c.l.bf16 %v6280
  %v6443 = vunpack.c.l.bf16 %v6294
  %v6444 = vunpack.c.l.bf16 %v6308
  %v6445 = vunpack.c.l.bf16 %v6322
  %v6446 = vunpack.c.l.bf16 %v6336
  %v6447 = vunpack.c.l.bf16 %v6350
  %v6448 = vunpack.c.l.bf16 %v6364
  %v6449 = vunpack.c.l.bf16 %v6378
  %v6450 = vunpack.c.l.bf16 %v6392
  %v6451 = vunpack.c.l.bf16 %v6406
  %v6452 = vunpack.c.l.bf16 %v6420
  %v6453 = vadd.f32 %v6103, %v6437
  %v6454 = vadd.f32 %v6106, %v6438
  %v6455 = vadd.f32 %v6111, %v6439
  %v6456 = vadd.f32 %v6114, %v6440
  %v6457 = vadd.f32 %v6119, %v6441
  %v6458 = vadd.f32 %v6122, %v6442
  %v6459 = vadd.f32 %v6127, %v6443
  %v6460 = vadd.f32 %v6130, %v6444
  %v6461 = vadd.f32 %v6135, %v6445
  %v6462 = vadd.f32 %v6138, %v6446
  %v6463 = vadd.f32 %v6143, %v6447
  %v6464 = vadd.f32 %v6146, %v6448
  %v6465 = vadd.f32 %v6151, %v6449
  %v6466 = vadd.f32 %v6154, %v6450
  %v6467 = vadd.f32 %v6159, %v6451
  %v6468 = vadd.f32 %v6162, %v6452
  %v6469 = vmax.f32 %v6453, 0.0
  %v6470 = vmax.f32 %v6454, 0.0
  %v6471 = vmax.f32 %v6455, 0.0
  %v6472 = vmax.f32 %v6456, 0.0
  %v6473 = vmax.f32 %v6457, 0.0
  %v6474 = vmax.f32 %v6458, 0.0
  %v6475 = vmax.f32 %v6459, 0.0
  %v6476 = vmax.f32 %v6460, 0.0
  %v6477 = vmax.f32 %v6461, 0.0
  %v6478 = vmax.f32 %v6462, 0.0
  %v6479 = vmax.f32 %v6463, 0.0
  %v6480 = vmax.f32 %v6464, 0.0
  %v6481 = vmax.f32 %v6465, 0.0
  %v6482 = vmax.f32 %v6466, 0.0
  %v6483 = vmax.f32 %v6467, 0.0
  %v6484 = vmax.f32 %v6468, 0.0
  %v6485 = vpack.c.bf16 %v6470, %v6469
  %v6486 = vpack.c.bf16 %v6472, %v6471
  %v6487 = vpack.c.bf16 %v6474, %v6473
  %v6488 = vpack.c.bf16 %v6476, %v6475
  %v6489 = vpack.c.bf16 %v6478, %v6477
  %v6490 = vpack.c.bf16 %v6480, %v6479
  %v6491 = vpack.c.bf16 %v6482, %v6481
  %v6492 = vpack.c.bf16 %v6484, %v6483
  %v6501 = vunpack.c.l.b16 %v6485
  %v6502 = vunpack.c.h.b16 %v6485
  %v6503 = vunpack.c.l.b16 %v6486
  %v6504 = vunpack.c.h.b16 %v6486
  %v6505 = vunpack.c.l.b16 %v6487
  %v6506 = vunpack.c.h.b16 %v6487
  %v6507 = vunpack.c.l.b16 %v6488
  %v6508 = vunpack.c.h.b16 %v6488
  %v6509 = vunpack.c.l.b16 %v6489
  %v6510 = vunpack.c.h.b16 %v6489
  %v6511 = vunpack.c.l.b16 %v6490
  %v6512 = vunpack.c.h.b16 %v6490
  %v6513 = vunpack.c.l.b16 %v6491
  %v6514 = vunpack.c.h.b16 %v6491
  %v6515 = vunpack.c.l.b16 %v6492
  %v6516 = vunpack.c.h.b16 %v6492
  %v6517 = vpack.c.b16 %v6501, %v6501
  %v6518 = vpack.c.b16 %v6502, %v6502
  %v6519 = vpack.c.b16 %v6503, %v6503
  %v6520 = vpack.c.b16 %v6504, %v6504
  %v6521 = vpack.c.b16 %v6505, %v6505
  %v6522 = vpack.c.b16 %v6506, %v6506
  %v6523 = vpack.c.b16 %v6507, %v6507
  %v6524 = vpack.c.b16 %v6508, %v6508
  %v6525 = vpack.c.b16 %v6509, %v6509
  %v6526 = vpack.c.b16 %v6510, %v6510
  %v6527 = vpack.c.b16 %v6511, %v6511
  %v6528 = vpack.c.b16 %v6512, %v6512
  %v6529 = vpack.c.b16 %v6513, %v6513
  %v6530 = vpack.c.b16 %v6514, %v6514
  %v6531 = vpack.c.b16 %v6515, %v6515
  %v6532 = vpack.c.b16 %v6516, %v6516
  %6549 = vst [vmem:[%s5] sm:$0xf] %v6517
  %6550 = vst [vmem:[%s5 + $0x4] sm:$0xf] %v6518
  %6551 = vst [vmem:[%s5 + $0x8] sm:$0xf] %v6519
  %6552 = vst [vmem:[%s5 + $0xc] sm:$0xf] %v6520
  %6553 = vst [vmem:[%s5 + $0x10] sm:$0xf] %v6521
  %6554 = vst [vmem:[%s5 + $0x14] sm:$0xf] %v6522
  %6555 = vst [vmem:[%s5 + $0x18] sm:$0xf] %v6523
  %6556 = vst [vmem:[%s5 + $0x1c] sm:$0xf] %v6524
  %6557 = vst [vmem:[%s5 + $0x20] sm:$0xf] %v6525
  %6558 = vst [vmem:[%s5 + $0x24] sm:$0xf] %v6526
  %6559 = vst [vmem:[%s5 + $0x28] sm:$0xf] %v6527
  %6560 = vst [vmem:[%s5 + $0x2c] sm:$0xf] %v6528
  %6561 = vst [vmem:[%s5 + $0x30] sm:$0xf] %v6529
  %6562 = vst [vmem:[%s5 + $0x34] sm:$0xf] %v6530
  %6563 = vst [vmem:[%s5 + $0x38] sm:$0xf] %v6531
  %6564 = vst [vmem:[%s5 + $0x3c] sm:$0xf] %v6532
  // Predicated region
  $region22: #{fwd.3} parent=0 // pred_check
    _
  $region23: #{fwd.3} parent=0 // pred_check_branch
    %6566 = sbr.rel (0) target = $region25
  $region24: #{fwd.3} parent=0 // pred_region
    _
  $region25: #{fwd.3} parent=0 // pred_fallthru
    _
  // Predicated region
  $region26: #{fwd.3} parent=0 // pred_check
    _
  $region27: #{fwd.3} parent=0 // pred_check_branch
    %6568 = sbr.rel (0) target = $region29
  $region28: #{fwd.3} parent=0 // pred_region
    _
  $region29: #{fwd.3} parent=0 // pred_fallthru
    _

</llo_original>
